<compile_context>
chip_gen: v5e
topology: v5e:2x2
jax: 0.10.0
libtpu: 0.0.40
codegen_flags: <defaults>
</compile_context>

<pallas_src>
import jax
import jax.numpy as jnp
from jax import lax
from jax.experimental import pallas as pl
from jax.experimental.pallas import tpu as pltpu


def _round_up(x, m):
    return (x + m - 1) // m * m


def _parser_kernel(tok_ref, tab_ref, b1_ref, w2_ref, b2_ref, out_ref):
    """One batch tile.

    tok_ref : (TB, F)            int32   token indices
    tab_ref : (F, Vpad, Hpad)    bf16    per-feature tables  E @ W1_f   (zero padded)
    b1_ref  : (1, Hpad)          f32
    w2_ref  : (Hpad, Cpad)       bf16
    b2_ref  : (1, Cpad)          f32
    out_ref : (TB, Cpad)         f32
    """
    ids = tok_ref[...]                                   # (TB, F) int32
    tb = tok_ref.shape[0]
    n_feat, v_pad, h_pad = tab_ref.shape

    # hidden pre-activation = sum_f onehot(tok[:, f], Vpad) @ T[f]
    col = lax.broadcasted_iota(jnp.int32, (tb, v_pad), 1)
    acc = jnp.zeros((tb, h_pad), jnp.float32)
    for f in range(n_feat):                              # static unroll (36 MXU pushes)
        onehot = (col == ids[:, f:f + 1]).astype(jnp.bfloat16)      # (TB, Vpad)
        acc = acc + jnp.dot(onehot, tab_ref[f],
                            preferred_element_type=jnp.float32)

    # bias + ReLU in f32 (dropout is identity at inference)
    h = jnp.maximum(acc + b1_ref[...], 0.0)

    # logits = h @ W2 + b2   (bf16 operands, f32 accumulate)
    logits = jnp.dot(h.astype(jnp.bfloat16), w2_ref[...],
                     preferred_element_type=jnp.float32)
    out_ref[...] = logits + b2_ref[...]


def prepare_parser_params(embeddings, w1, b1, w2, b2, n_features, embed_size):
    """Fold embeddings + embed_to_hidden into per-feature tables; pad to MXU-friendly sizes."""
    V, E = embeddings.shape
    D, H = w1.shape
    C = w2.shape[1]
    assert D == n_features * embed_size and E == embed_size

    v_pad = _round_up(V, 128)
    h_pad = _round_up(H, 128)
    c_pad = _round_up(C, 128)

    # T[f] = E @ W1[f*embed:(f+1)*embed, :]  -> (F, V, H)
    w1_r = w1.reshape(n_features, embed_size, H)
    tables = jnp.einsum('ve,feh->fvh', embeddings.astype(jnp.float32),
                        w1_r.astype(jnp.float32))
    tables = jnp.pad(tables, ((0, 0), (0, v_pad - V), (0, h_pad - H)))
    tables = tables.astype(jnp.bfloat16)                               # (F, Vpad, Hpad)

    b1_p = jnp.pad(b1.reshape(1, H).astype(jnp.float32), ((0, 0), (0, h_pad - H)))
    w2_p = jnp.pad(w2.astype(jnp.float32),
                   ((0, h_pad - H), (0, c_pad - C))).astype(jnp.bfloat16)
    b2_p = jnp.pad(b2.reshape(1, C).astype(jnp.float32), ((0, 0), (0, c_pad - C)))
    return tables, b1_p, w2_p, b2_p, C


def parser_forward_pallas(tokens, tables, b1_p, w2_p, b2_p, n_classes, tile_b=128):
    """tokens: (B, n_features) int32  ->  logits (B, n_classes) f32."""
    B, F = tokens.shape
    n_feat, v_pad, h_pad = tables.shape
    c_pad = w2_p.shape[1]

    b_pad = _round_up(max(B, 1), tile_b)
    tok = jnp.pad(tokens.astype(jnp.int32), ((0, b_pad - B), (0, 0)))
    grid = (b_pad // tile_b,)

    flops = grid[0] * (2 * tile_b * n_feat * v_pad * h_pad
                       + 2 * tile_b * h_pad * c_pad)
    bytes_accessed = (tok.size * 4 + tables.size * 2 + w2_p.size * 2
                      + b1_p.size * 4 + b2_p.size * 4 + b_pad * c_pad * 4)

    out = pl.pallas_call(
        _parser_kernel,
        out_shape=jax.ShapeDtypeStruct((b_pad, c_pad), jnp.float32),
        grid=grid,
        in_specs=[
            pl.BlockSpec((tile_b, F), lambda i: (i, 0)),            # tokens: tiled over batch
            pl.BlockSpec((n_feat, v_pad, h_pad), lambda i: (0, 0, 0)),  # tables: VMEM resident
            pl.BlockSpec((1, h_pad), lambda i: (0, 0)),
            pl.BlockSpec((h_pad, c_pad), lambda i: (0, 0)),
            pl.BlockSpec((1, c_pad), lambda i: (0, 0)),
        ],
        out_specs=pl.BlockSpec((tile_b, c_pad), lambda i: (i, 0)),  # lane-dense output
        compiler_params=pltpu.CompilerParams(
            dimension_semantics=("parallel",),                      # megacore on v7x
        ),
        cost_estimate=pl.CostEstimate(
            flops=int(flops), transcendentals=0, bytes_accessed=int(bytes_accessed)),
    )(tok, tables, b1_p, w2_p, b2_p)

    return out[:B, :n_classes]


def parser_model_forward(tokens, embeddings, w1, b1, w2, b2, n_features, embed_size,
                         tile_b=128):
    tables, b1_p, w2_p, b2_p, n_classes = prepare_parser_params(
        embeddings, w1, b1, w2, b2, n_features, embed_size)
    return parser_forward_pallas(tokens, tables, b1_p, w2_p, b2_p, n_classes,
                                 tile_b=tile_b)


def _xavier_uniform(key, shape):
    # matches torch.nn.init.xavier_uniform_ for a 2-D weight (fan_out, fan_in) = shape
    fan_out, fan_in = shape
    bound = jnp.sqrt(6.0 / (fan_in + fan_out))
    return jax.random.uniform(key, shape, minval=-bound, maxval=bound, dtype=jnp.float32)


if __name__ == "__main__":
    # Small, deterministic synthetic setup consistent with the module.
    vocab_size = 100
    embed_size = 32
    n_features = 36
    hidden_size = 64
    n_classes = 3
    batch = 8

    key = jax.random.PRNGKey(0)
    k_emb, k_tok, k_w1, k_b1, k_w2, k_b2 = jax.random.split(key, 6)

    embeddings = jax.random.normal(k_emb, (vocab_size, embed_size), dtype=jnp.float32)
    tokens = jax.random.randint(k_tok, (batch, n_features), 0, vocab_size, dtype=jnp.int32)

    # torch Linear stores weight as (out, in); build that way then transpose for x @ W.
    w1_torch = _xavier_uniform(k_w1, (hidden_size, n_features * embed_size))
    b1 = jax.random.uniform(
        k_b1, (1, hidden_size), dtype=jnp.float32,
        minval=-1.0 / jnp.sqrt(n_features * embed_size),
        maxval=1.0 / jnp.sqrt(n_features * embed_size))
    w2_torch = _xavier_uniform(k_w2, (n_classes, hidden_size))
    b2 = jax.random.uniform(
        k_b2, (1, n_classes), dtype=jnp.float32,
        minval=-1.0 / jnp.sqrt(hidden_size),
        maxval=1.0 / jnp.sqrt(hidden_size))

    w1 = w1_torch.T  # (n_features*embed_size, hidden)
    w2 = w2_torch.T  # (hidden, n_classes)

    logits = parser_model_forward(tokens, embeddings, w1, b1, w2, b2,
                                  n_features, embed_size)
    logits = jax.block_until_ready(logits)

    # Reference check in plain f32 JAX (kernel uses bf16 matmul operands with
    # f32 accumulation, so tolerance is loosened accordingly).
    emb = jnp.take(embeddings, tokens, axis=0).reshape(batch, n_features * embed_size)
    ref = jnp.maximum(emb @ w1 + b1, 0.0) @ w2 + b2
    assert logits.shape == (batch, n_classes)
    assert jnp.allclose(logits, ref, atol=5e-2, rtol=5e-2), (
        float(jnp.max(jnp.abs(logits - ref))))

    print("KERNEL_OK")
</pallas_src>

<mosaic_0001>
module attributes {stable_mosaic.version = 11 : i64} {
  func.func @_parser_kernel(%arg0: i32, %arg1: memref<128x36xi32, #tpu.memory_space<vmem>>, %arg2: memref<36x128x128xbf16, #tpu.memory_space<vmem>>, %arg3: memref<1x128xf32, #tpu.memory_space<vmem>>, %arg4: memref<128x128xbf16, #tpu.memory_space<vmem>>, %arg5: memref<1x128xf32, #tpu.memory_space<vmem>>, %arg6: memref<128x128xf32, #tpu.memory_space<vmem>>) attributes {dimension_semantics = [#tpu.dimension_semantics<parallel>], iteration_bounds = array<i64: 1>, scalar_prefetch = 0 : i64, scratch_operands = 0 : i64, tpu.core_type = #tpu.core_type<tc>, window_params = [{transform_indices = @transform_0, window_bounds = array<i64: 128, 36>}, {pipeline_mode = #tpu.pipeline_mode<synchronous>, transform_indices = @transform_1, window_bounds = array<i64: 36, 128, 128>}, {pipeline_mode = #tpu.pipeline_mode<synchronous>, transform_indices = @transform_2, window_bounds = array<i64: 1, 128>}, {pipeline_mode = #tpu.pipeline_mode<synchronous>, transform_indices = @transform_3, window_bounds = array<i64: 128, 128>}, {pipeline_mode = #tpu.pipeline_mode<synchronous>, transform_indices = @transform_4, window_bounds = array<i64: 1, 128>}, {transform_indices = @transform_5, window_bounds = array<i64: 128, 128>}]} {
    %c0 = arith.constant 0 : index
    %c0_0 = arith.constant 0 : index
    %0 = vector.load %arg1[%c0, %c0_0] : memref<128x36xi32, #tpu.memory_space<vmem>>, vector<128x36xi32>
    %1 = tpu.iota {dimensions = array<i32: 1>} : vector<128x128xi32>
    %cst = arith.constant 0.000000e+00 : f32
    %2 = vector.broadcast %cst : f32 to vector<128x128xf32>
    %3 = vector.extract_strided_slice %0 {offsets = [0, 0], sizes = [128, 1], strides = [1, 1]} : vector<128x36xi32> to vector<128x1xi32>
    %4 = vector.broadcast %3 : vector<128x1xi32> to vector<128x128xi32>
    %5 = arith.cmpi eq, %1, %4 : vector<128x128xi32>
    %6 = arith.extui %5 : vector<128x128xi1> to vector<128x128xi32>
    %7 = arith.sitofp %6 : vector<128x128xi32> to vector<128x128xf32>
    %8 = arith.truncf %7 : vector<128x128xf32> to vector<128x128xbf16>
    %c0_1 = arith.constant 0 : index
    %c0_2 = arith.constant 0 : index
    %c0_3 = arith.constant 0 : index
    %9 = vector.load %arg2[%c0_1, %c0_2, %c0_3] : memref<36x128x128xbf16, #tpu.memory_space<vmem>>, vector<1x128x128xbf16>
    %10 = vector.shape_cast %9 : vector<1x128x128xbf16> to vector<128x128xbf16>
    %cst_4 = arith.constant dense<0.000000e+00> : vector<128x128xf32>
    %11 = tpu.matmul %8, %10, %cst_4 {dimension_numbers = #tpu.dot_dimension_numbers<[1], [0], [0], [1], [0, 0, 1, 1], [], []>} : vector<128x128xbf16>, vector<128x128xbf16>, vector<128x128xf32> -> vector<128x128xf32>
    %12 = arith.addf %2, %11 : vector<128x128xf32>
    %13 = vector.extract_strided_slice %0 {offsets = [0, 1], sizes = [128, 1], strides = [1, 1]} : vector<128x36xi32> to vector<128x1xi32>
    %14 = vector.broadcast %13 : vector<128x1xi32> to vector<128x128xi32>
    %15 = arith.cmpi eq, %1, %14 : vector<128x128xi32>
    %16 = arith.extui %15 : vector<128x128xi1> to vector<128x128xi32>
    %17 = arith.sitofp %16 : vector<128x128xi32> to vector<128x128xf32>
    %18 = arith.truncf %17 : vector<128x128xf32> to vector<128x128xbf16>
    %c1 = arith.constant 1 : index
    %c0_5 = arith.constant 0 : index
    %c0_6 = arith.constant 0 : index
    %19 = vector.load %arg2[%c1, %c0_5, %c0_6] : memref<36x128x128xbf16, #tpu.memory_space<vmem>>, vector<1x128x128xbf16>
    %20 = vector.shape_cast %19 : vector<1x128x128xbf16> to vector<128x128xbf16>
    %cst_7 = arith.constant dense<0.000000e+00> : vector<128x128xf32>
    %21 = tpu.matmul %18, %20, %cst_7 {dimension_numbers = #tpu.dot_dimension_numbers<[1], [0], [0], [1], [0, 0, 1, 1], [], []>} : vector<128x128xbf16>, vector<128x128xbf16>, vector<128x128xf32> -> vector<128x128xf32>
    %22 = arith.addf %12, %21 : vector<128x128xf32>
    %23 = vector.extract_strided_slice %0 {offsets = [0, 2], sizes = [128, 1], strides = [1, 1]} : vector<128x36xi32> to vector<128x1xi32>
    %24 = vector.broadcast %23 : vector<128x1xi32> to vector<128x128xi32>
    %25 = arith.cmpi eq, %1, %24 : vector<128x128xi32>
    %26 = arith.extui %25 : vector<128x128xi1> to vector<128x128xi32>
    %27 = arith.sitofp %26 : vector<128x128xi32> to vector<128x128xf32>
    %28 = arith.truncf %27 : vector<128x128xf32> to vector<128x128xbf16>
    %c2 = arith.constant 2 : index
    %c0_8 = arith.constant 0 : index
    %c0_9 = arith.constant 0 : index
    %29 = vector.load %arg2[%c2, %c0_8, %c0_9] : memref<36x128x128xbf16, #tpu.memory_space<vmem>>, vector<1x128x128xbf16>
    %30 = vector.shape_cast %29 : vector<1x128x128xbf16> to vector<128x128xbf16>
    %cst_10 = arith.constant dense<0.000000e+00> : vector<128x128xf32>
    %31 = tpu.matmul %28, %30, %cst_10 {dimension_numbers = #tpu.dot_dimension_numbers<[1], [0], [0], [1], [0, 0, 1, 1], [], []>} : vector<128x128xbf16>, vector<128x128xbf16>, vector<128x128xf32> -> vector<128x128xf32>
    %32 = arith.addf %22, %31 : vector<128x128xf32>
    %33 = vector.extract_strided_slice %0 {offsets = [0, 3], sizes = [128, 1], strides = [1, 1]} : vector<128x36xi32> to vector<128x1xi32>
    %34 = vector.broadcast %33 : vector<128x1xi32> to vector<128x128xi32>
    %35 = arith.cmpi eq, %1, %34 : vector<128x128xi32>
    %36 = arith.extui %35 : vector<128x128xi1> to vector<128x128xi32>
    %37 = arith.sitofp %36 : vector<128x128xi32> to vector<128x128xf32>
    %38 = arith.truncf %37 : vector<128x128xf32> to vector<128x128xbf16>
    %c3 = arith.constant 3 : index
    %c0_11 = arith.constant 0 : index
    %c0_12 = arith.constant 0 : index
    %39 = vector.load %arg2[%c3, %c0_11, %c0_12] : memref<36x128x128xbf16, #tpu.memory_space<vmem>>, vector<1x128x128xbf16>
    %40 = vector.shape_cast %39 : vector<1x128x128xbf16> to vector<128x128xbf16>
    %cst_13 = arith.constant dense<0.000000e+00> : vector<128x128xf32>
    %41 = tpu.matmul %38, %40, %cst_13 {dimension_numbers = #tpu.dot_dimension_numbers<[1], [0], [0], [1], [0, 0, 1, 1], [], []>} : vector<128x128xbf16>, vector<128x128xbf16>, vector<128x128xf32> -> vector<128x128xf32>
    %42 = arith.addf %32, %41 : vector<128x128xf32>
    %43 = vector.extract_strided_slice %0 {offsets = [0, 4], sizes = [128, 1], strides = [1, 1]} : vector<128x36xi32> to vector<128x1xi32>
    %44 = vector.broadcast %43 : vector<128x1xi32> to vector<128x128xi32>
    %45 = arith.cmpi eq, %1, %44 : vector<128x128xi32>
    %46 = arith.extui %45 : vector<128x128xi1> to vector<128x128xi32>
    %47 = arith.sitofp %46 : vector<128x128xi32> to vector<128x128xf32>
    %48 = arith.truncf %47 : vector<128x128xf32> to vector<128x128xbf16>
    %c4 = arith.constant 4 : index
    %c0_14 = arith.constant 0 : index
    %c0_15 = arith.constant 0 : index
    %49 = vector.load %arg2[%c4, %c0_14, %c0_15] : memref<36x128x128xbf16, #tpu.memory_space<vmem>>, vector<1x128x128xbf16>
    %50 = vector.shape_cast %49 : vector<1x128x128xbf16> to vector<128x128xbf16>
    %cst_16 = arith.constant dense<0.000000e+00> : vector<128x128xf32>
    %51 = tpu.matmul %48, %50, %cst_16 {dimension_numbers = #tpu.dot_dimension_numbers<[1], [0], [0], [1], [0, 0, 1, 1], [], []>} : vector<128x128xbf16>, vector<128x128xbf16>, vector<128x128xf32> -> vector<128x128xf32>
    %52 = arith.addf %42, %51 : vector<128x128xf32>
    %53 = vector.extract_strided_slice %0 {offsets = [0, 5], sizes = [128, 1], strides = [1, 1]} : vector<128x36xi32> to vector<128x1xi32>
    %54 = vector.broadcast %53 : vector<128x1xi32> to vector<128x128xi32>
    %55 = arith.cmpi eq, %1, %54 : vector<128x128xi32>
    %56 = arith.extui %55 : vector<128x128xi1> to vector<128x128xi32>
    %57 = arith.sitofp %56 : vector<128x128xi32> to vector<128x128xf32>
    %58 = arith.truncf %57 : vector<128x128xf32> to vector<128x128xbf16>
    %c5 = arith.constant 5 : index
    %c0_17 = arith.constant 0 : index
    %c0_18 = arith.constant 0 : index
    %59 = vector.load %arg2[%c5, %c0_17, %c0_18] : memref<36x128x128xbf16, #tpu.memory_space<vmem>>, vector<1x128x128xbf16>
    %60 = vector.shape_cast %59 : vector<1x128x128xbf16> to vector<128x128xbf16>
    %cst_19 = arith.constant dense<0.000000e+00> : vector<128x128xf32>
    %61 = tpu.matmul %58, %60, %cst_19 {dimension_numbers = #tpu.dot_dimension_numbers<[1], [0], [0], [1], [0, 0, 1, 1], [], []>} : vector<128x128xbf16>, vector<128x128xbf16>, vector<128x128xf32> -> vector<128x128xf32>
    %62 = arith.addf %52, %61 : vector<128x128xf32>
    %63 = vector.extract_strided_slice %0 {offsets = [0, 6], sizes = [128, 1], strides = [1, 1]} : vector<128x36xi32> to vector<128x1xi32>
    %64 = vector.broadcast %63 : vector<128x1xi32> to vector<128x128xi32>
    %65 = arith.cmpi eq, %1, %64 : vector<128x128xi32>
    %66 = arith.extui %65 : vector<128x128xi1> to vector<128x128xi32>
    %67 = arith.sitofp %66 : vector<128x128xi32> to vector<128x128xf32>
    %68 = arith.truncf %67 : vector<128x128xf32> to vector<128x128xbf16>
    %c6 = arith.constant 6 : index
    %c0_20 = arith.constant 0 : index
    %c0_21 = arith.constant 0 : index
    %69 = vector.load %arg2[%c6, %c0_20, %c0_21] : memref<36x128x128xbf16, #tpu.memory_space<vmem>>, vector<1x128x128xbf16>
    %70 = vector.shape_cast %69 : vector<1x128x128xbf16> to vector<128x128xbf16>
    %cst_22 = arith.constant dense<0.000000e+00> : vector<128x128xf32>
    %71 = tpu.matmul %68, %70, %cst_22 {dimension_numbers = #tpu.dot_dimension_numbers<[1], [0], [0], [1], [0, 0, 1, 1], [], []>} : vector<128x128xbf16>, vector<128x128xbf16>, vector<128x128xf32> -> vector<128x128xf32>
    %72 = arith.addf %62, %71 : vector<128x128xf32>
    %73 = vector.extract_strided_slice %0 {offsets = [0, 7], sizes = [128, 1], strides = [1, 1]} : vector<128x36xi32> to vector<128x1xi32>
    %74 = vector.broadcast %73 : vector<128x1xi32> to vector<128x128xi32>
    %75 = arith.cmpi eq, %1, %74 : vector<128x128xi32>
    %76 = arith.extui %75 : vector<128x128xi1> to vector<128x128xi32>
    %77 = arith.sitofp %76 : vector<128x128xi32> to vector<128x128xf32>
    %78 = arith.truncf %77 : vector<128x128xf32> to vector<128x128xbf16>
    %c7 = arith.constant 7 : index
    %c0_23 = arith.constant 0 : index
    %c0_24 = arith.constant 0 : index
    %79 = vector.load %arg2[%c7, %c0_23, %c0_24] : memref<36x128x128xbf16, #tpu.memory_space<vmem>>, vector<1x128x128xbf16>
    %80 = vector.shape_cast %79 : vector<1x128x128xbf16> to vector<128x128xbf16>
    %cst_25 = arith.constant dense<0.000000e+00> : vector<128x128xf32>
    %81 = tpu.matmul %78, %80, %cst_25 {dimension_numbers = #tpu.dot_dimension_numbers<[1], [0], [0], [1], [0, 0, 1, 1], [], []>} : vector<128x128xbf16>, vector<128x128xbf16>, vector<128x128xf32> -> vector<128x128xf32>
    %82 = arith.addf %72, %81 : vector<128x128xf32>
    %83 = vector.extract_strided_slice %0 {offsets = [0, 8], sizes = [128, 1], strides = [1, 1]} : vector<128x36xi32> to vector<128x1xi32>
    %84 = vector.broadcast %83 : vector<128x1xi32> to vector<128x128xi32>
    %85 = arith.cmpi eq, %1, %84 : vector<128x128xi32>
    %86 = arith.extui %85 : vector<128x128xi1> to vector<128x128xi32>
    %87 = arith.sitofp %86 : vector<128x128xi32> to vector<128x128xf32>
    %88 = arith.truncf %87 : vector<128x128xf32> to vector<128x128xbf16>
    %c8 = arith.constant 8 : index
    %c0_26 = arith.constant 0 : index
    %c0_27 = arith.constant 0 : index
    %89 = vector.load %arg2[%c8, %c0_26, %c0_27] : memref<36x128x128xbf16, #tpu.memory_space<vmem>>, vector<1x128x128xbf16>
    %90 = vector.shape_cast %89 : vector<1x128x128xbf16> to vector<128x128xbf16>
    %cst_28 = arith.constant dense<0.000000e+00> : vector<128x128xf32>
    %91 = tpu.matmul %88, %90, %cst_28 {dimension_numbers = #tpu.dot_dimension_numbers<[1], [0], [0], [1], [0, 0, 1, 1], [], []>} : vector<128x128xbf16>, vector<128x128xbf16>, vector<128x128xf32> -> vector<128x128xf32>
    %92 = arith.addf %82, %91 : vector<128x128xf32>
    %93 = vector.extract_strided_slice %0 {offsets = [0, 9], sizes = [128, 1], strides = [1, 1]} : vector<128x36xi32> to vector<128x1xi32>
    %94 = vector.broadcast %93 : vector<128x1xi32> to vector<128x128xi32>
    %95 = arith.cmpi eq, %1, %94 : vector<128x128xi32>
    %96 = arith.extui %95 : vector<128x128xi1> to vector<128x128xi32>
    %97 = arith.sitofp %96 : vector<128x128xi32> to vector<128x128xf32>
    %98 = arith.truncf %97 : vector<128x128xf32> to vector<128x128xbf16>
    %c9 = arith.constant 9 : index
    %c0_29 = arith.constant 0 : index
    %c0_30 = arith.constant 0 : index
    %99 = vector.load %arg2[%c9, %c0_29, %c0_30] : memref<36x128x128xbf16, #tpu.memory_space<vmem>>, vector<1x128x128xbf16>
    %100 = vector.shape_cast %99 : vector<1x128x128xbf16> to vector<128x128xbf16>
    %cst_31 = arith.constant dense<0.000000e+00> : vector<128x128xf32>
    %101 = tpu.matmul %98, %100, %cst_31 {dimension_numbers = #tpu.dot_dimension_numbers<[1], [0], [0], [1], [0, 0, 1, 1], [], []>} : vector<128x128xbf16>, vector<128x128xbf16>, vector<128x128xf32> -> vector<128x128xf32>
    %102 = arith.addf %92, %101 : vector<128x128xf32>
    %103 = vector.extract_strided_slice %0 {offsets = [0, 10], sizes = [128, 1], strides = [1, 1]} : vector<128x36xi32> to vector<128x1xi32>
    %104 = vector.broadcast %103 : vector<128x1xi32> to vector<128x128xi32>
    %105 = arith.cmpi eq, %1, %104 : vector<128x128xi32>
    %106 = arith.extui %105 : vector<128x128xi1> to vector<128x128xi32>
    %107 = arith.sitofp %106 : vector<128x128xi32> to vector<128x128xf32>
    %108 = arith.truncf %107 : vector<128x128xf32> to vector<128x128xbf16>
    %c10 = arith.constant 10 : index
    %c0_32 = arith.constant 0 : index
    %c0_33 = arith.constant 0 : index
    %109 = vector.load %arg2[%c10, %c0_32, %c0_33] : memref<36x128x128xbf16, #tpu.memory_space<vmem>>, vector<1x128x128xbf16>
    %110 = vector.shape_cast %109 : vector<1x128x128xbf16> to vector<128x128xbf16>
    %cst_34 = arith.constant dense<0.000000e+00> : vector<128x128xf32>
    %111 = tpu.matmul %108, %110, %cst_34 {dimension_numbers = #tpu.dot_dimension_numbers<[1], [0], [0], [1], [0, 0, 1, 1], [], []>} : vector<128x128xbf16>, vector<128x128xbf16>, vector<128x128xf32> -> vector<128x128xf32>
    %112 = arith.addf %102, %111 : vector<128x128xf32>
    %113 = vector.extract_strided_slice %0 {offsets = [0, 11], sizes = [128, 1], strides = [1, 1]} : vector<128x36xi32> to vector<128x1xi32>
    %114 = vector.broadcast %113 : vector<128x1xi32> to vector<128x128xi32>
    %115 = arith.cmpi eq, %1, %114 : vector<128x128xi32>
    %116 = arith.extui %115 : vector<128x128xi1> to vector<128x128xi32>
    %117 = arith.sitofp %116 : vector<128x128xi32> to vector<128x128xf32>
    %118 = arith.truncf %117 : vector<128x128xf32> to vector<128x128xbf16>
    %c11 = arith.constant 11 : index
    %c0_35 = arith.constant 0 : index
    %c0_36 = arith.constant 0 : index
    %119 = vector.load %arg2[%c11, %c0_35, %c0_36] : memref<36x128x128xbf16, #tpu.memory_space<vmem>>, vector<1x128x128xbf16>
    %120 = vector.shape_cast %119 : vector<1x128x128xbf16> to vector<128x128xbf16>
    %cst_37 = arith.constant dense<0.000000e+00> : vector<128x128xf32>
    %121 = tpu.matmul %118, %120, %cst_37 {dimension_numbers = #tpu.dot_dimension_numbers<[1], [0], [0], [1], [0, 0, 1, 1], [], []>} : vector<128x128xbf16>, vector<128x128xbf16>, vector<128x128xf32> -> vector<128x128xf32>
    %122 = arith.addf %112, %121 : vector<128x128xf32>
    %123 = vector.extract_strided_slice %0 {offsets = [0, 12], sizes = [128, 1], strides = [1, 1]} : vector<128x36xi32> to vector<128x1xi32>
    %124 = vector.broadcast %123 : vector<128x1xi32> to vector<128x128xi32>
    %125 = arith.cmpi eq, %1, %124 : vector<128x128xi32>
    %126 = arith.extui %125 : vector<128x128xi1> to vector<128x128xi32>
    %127 = arith.sitofp %126 : vector<128x128xi32> to vector<128x128xf32>
    %128 = arith.truncf %127 : vector<128x128xf32> to vector<128x128xbf16>
    %c12 = arith.constant 12 : index
    %c0_38 = arith.constant 0 : index
    %c0_39 = arith.constant 0 : index
    %129 = vector.load %arg2[%c12, %c0_38, %c0_39] : memref<36x128x128xbf16, #tpu.memory_space<vmem>>, vector<1x128x128xbf16>
    %130 = vector.shape_cast %129 : vector<1x128x128xbf16> to vector<128x128xbf16>
    %cst_40 = arith.constant dense<0.000000e+00> : vector<128x128xf32>
    %131 = tpu.matmul %128, %130, %cst_40 {dimension_numbers = #tpu.dot_dimension_numbers<[1], [0], [0], [1], [0, 0, 1, 1], [], []>} : vector<128x128xbf16>, vector<128x128xbf16>, vector<128x128xf32> -> vector<128x128xf32>
    %132 = arith.addf %122, %131 : vector<128x128xf32>
    %133 = vector.extract_strided_slice %0 {offsets = [0, 13], sizes = [128, 1], strides = [1, 1]} : vector<128x36xi32> to vector<128x1xi32>
    %134 = vector.broadcast %133 : vector<128x1xi32> to vector<128x128xi32>
    %135 = arith.cmpi eq, %1, %134 : vector<128x128xi32>
    %136 = arith.extui %135 : vector<128x128xi1> to vector<128x128xi32>
    %137 = arith.sitofp %136 : vector<128x128xi32> to vector<128x128xf32>
    %138 = arith.truncf %137 : vector<128x128xf32> to vector<128x128xbf16>
    %c13 = arith.constant 13 : index
    %c0_41 = arith.constant 0 : index
    %c0_42 = arith.constant 0 : index
    %139 = vector.load %arg2[%c13, %c0_41, %c0_42] : memref<36x128x128xbf16, #tpu.memory_space<vmem>>, vector<1x128x128xbf16>
    %140 = vector.shape_cast %139 : vector<1x128x128xbf16> to vector<128x128xbf16>
    %cst_43 = arith.constant dense<0.000000e+00> : vector<128x128xf32>
    %141 = tpu.matmul %138, %140, %cst_43 {dimension_numbers = #tpu.dot_dimension_numbers<[1], [0], [0], [1], [0, 0, 1, 1], [], []>} : vector<128x128xbf16>, vector<128x128xbf16>, vector<128x128xf32> -> vector<128x128xf32>
    %142 = arith.addf %132, %141 : vector<128x128xf32>
    %143 = vector.extract_strided_slice %0 {offsets = [0, 14], sizes = [128, 1], strides = [1, 1]} : vector<128x36xi32> to vector<128x1xi32>
    %144 = vector.broadcast %143 : vector<128x1xi32> to vector<128x128xi32>
    %145 = arith.cmpi eq, %1, %144 : vector<128x128xi32>
    %146 = arith.extui %145 : vector<128x128xi1> to vector<128x128xi32>
    %147 = arith.sitofp %146 : vector<128x128xi32> to vector<128x128xf32>
    %148 = arith.truncf %147 : vector<128x128xf32> to vector<128x128xbf16>
    %c14 = arith.constant 14 : index
    %c0_44 = arith.constant 0 : index
    %c0_45 = arith.constant 0 : index
    %149 = vector.load %arg2[%c14, %c0_44, %c0_45] : memref<36x128x128xbf16, #tpu.memory_space<vmem>>, vector<1x128x128xbf16>
    %150 = vector.shape_cast %149 : vector<1x128x128xbf16> to vector<128x128xbf16>
    %cst_46 = arith.constant dense<0.000000e+00> : vector<128x128xf32>
    %151 = tpu.matmul %148, %150, %cst_46 {dimension_numbers = #tpu.dot_dimension_numbers<[1], [0], [0], [1], [0, 0, 1, 1], [], []>} : vector<128x128xbf16>, vector<128x128xbf16>, vector<128x128xf32> -> vector<128x128xf32>
    %152 = arith.addf %142, %151 : vector<128x128xf32>
    %153 = vector.extract_strided_slice %0 {offsets = [0, 15], sizes = [128, 1], strides = [1, 1]} : vector<128x36xi32> to vector<128x1xi32>
    %154 = vector.broadcast %153 : vector<128x1xi32> to vector<128x128xi32>
    %155 = arith.cmpi eq, %1, %154 : vector<128x128xi32>
    %156 = arith.extui %155 : vector<128x128xi1> to vector<128x128xi32>
    %157 = arith.sitofp %156 : vector<128x128xi32> to vector<128x128xf32>
    %158 = arith.truncf %157 : vector<128x128xf32> to vector<128x128xbf16>
    %c15 = arith.constant 15 : index
    %c0_47 = arith.constant 0 : index
    %c0_48 = arith.constant 0 : index
    %159 = vector.load %arg2[%c15, %c0_47, %c0_48] : memref<36x128x128xbf16, #tpu.memory_space<vmem>>, vector<1x128x128xbf16>
    %160 = vector.shape_cast %159 : vector<1x128x128xbf16> to vector<128x128xbf16>
    %cst_49 = arith.constant dense<0.000000e+00> : vector<128x128xf32>
    %161 = tpu.matmul %158, %160, %cst_49 {dimension_numbers = #tpu.dot_dimension_numbers<[1], [0], [0], [1], [0, 0, 1, 1], [], []>} : vector<128x128xbf16>, vector<128x128xbf16>, vector<128x128xf32> -> vector<128x128xf32>
    %162 = arith.addf %152, %161 : vector<128x128xf32>
    %163 = vector.extract_strided_slice %0 {offsets = [0, 16], sizes = [128, 1], strides = [1, 1]} : vector<128x36xi32> to vector<128x1xi32>
    %164 = vector.broadcast %163 : vector<128x1xi32> to vector<128x128xi32>
    %165 = arith.cmpi eq, %1, %164 : vector<128x128xi32>
    %166 = arith.extui %165 : vector<128x128xi1> to vector<128x128xi32>
    %167 = arith.sitofp %166 : vector<128x128xi32> to vector<128x128xf32>
    %168 = arith.truncf %167 : vector<128x128xf32> to vector<128x128xbf16>
    %c16 = arith.constant 16 : index
    %c0_50 = arith.constant 0 : index
    %c0_51 = arith.constant 0 : index
    %169 = vector.load %arg2[%c16, %c0_50, %c0_51] : memref<36x128x128xbf16, #tpu.memory_space<vmem>>, vector<1x128x128xbf16>
    %170 = vector.shape_cast %169 : vector<1x128x128xbf16> to vector<128x128xbf16>
    %cst_52 = arith.constant dense<0.000000e+00> : vector<128x128xf32>
    %171 = tpu.matmul %168, %170, %cst_52 {dimension_numbers = #tpu.dot_dimension_numbers<[1], [0], [0], [1], [0, 0, 1, 1], [], []>} : vector<128x128xbf16>, vector<128x128xbf16>, vector<128x128xf32> -> vector<128x128xf32>
    %172 = arith.addf %162, %171 : vector<128x128xf32>
    %173 = vector.extract_strided_slice %0 {offsets = [0, 17], sizes = [128, 1], strides = [1, 1]} : vector<128x36xi32> to vector<128x1xi32>
    %174 = vector.broadcast %173 : vector<128x1xi32> to vector<128x128xi32>
    %175 = arith.cmpi eq, %1, %174 : vector<128x128xi32>
    %176 = arith.extui %175 : vector<128x128xi1> to vector<128x128xi32>
    %177 = arith.sitofp %176 : vector<128x128xi32> to vector<128x128xf32>
    %178 = arith.truncf %177 : vector<128x128xf32> to vector<128x128xbf16>
    %c17 = arith.constant 17 : index
    %c0_53 = arith.constant 0 : index
    %c0_54 = arith.constant 0 : index
    %179 = vector.load %arg2[%c17, %c0_53, %c0_54] : memref<36x128x128xbf16, #tpu.memory_space<vmem>>, vector<1x128x128xbf16>
    %180 = vector.shape_cast %179 : vector<1x128x128xbf16> to vector<128x128xbf16>
    %cst_55 = arith.constant dense<0.000000e+00> : vector<128x128xf32>
    %181 = tpu.matmul %178, %180, %cst_55 {dimension_numbers = #tpu.dot_dimension_numbers<[1], [0], [0], [1], [0, 0, 1, 1], [], []>} : vector<128x128xbf16>, vector<128x128xbf16>, vector<128x128xf32> -> vector<128x128xf32>
    %182 = arith.addf %172, %181 : vector<128x128xf32>
    %183 = vector.extract_strided_slice %0 {offsets = [0, 18], sizes = [128, 1], strides = [1, 1]} : vector<128x36xi32> to vector<128x1xi32>
    %184 = vector.broadcast %183 : vector<128x1xi32> to vector<128x128xi32>
    %185 = arith.cmpi eq, %1, %184 : vector<128x128xi32>
    %186 = arith.extui %185 : vector<128x128xi1> to vector<128x128xi32>
    %187 = arith.sitofp %186 : vector<128x128xi32> to vector<128x128xf32>
    %188 = arith.truncf %187 : vector<128x128xf32> to vector<128x128xbf16>
    %c18 = arith.constant 18 : index
    %c0_56 = arith.constant 0 : index
    %c0_57 = arith.constant 0 : index
    %189 = vector.load %arg2[%c18, %c0_56, %c0_57] : memref<36x128x128xbf16, #tpu.memory_space<vmem>>, vector<1x128x128xbf16>
    %190 = vector.shape_cast %189 : vector<1x128x128xbf16> to vector<128x128xbf16>
    %cst_58 = arith.constant dense<0.000000e+00> : vector<128x128xf32>
    %191 = tpu.matmul %188, %190, %cst_58 {dimension_numbers = #tpu.dot_dimension_numbers<[1], [0], [0], [1], [0, 0, 1, 1], [], []>} : vector<128x128xbf16>, vector<128x128xbf16>, vector<128x128xf32> -> vector<128x128xf32>
    %192 = arith.addf %182, %191 : vector<128x128xf32>
    %193 = vector.extract_strided_slice %0 {offsets = [0, 19], sizes = [128, 1], strides = [1, 1]} : vector<128x36xi32> to vector<128x1xi32>
    %194 = vector.broadcast %193 : vector<128x1xi32> to vector<128x128xi32>
    %195 = arith.cmpi eq, %1, %194 : vector<128x128xi32>
    %196 = arith.extui %195 : vector<128x128xi1> to vector<128x128xi32>
    %197 = arith.sitofp %196 : vector<128x128xi32> to vector<128x128xf32>
    %198 = arith.truncf %197 : vector<128x128xf32> to vector<128x128xbf16>
    %c19 = arith.constant 19 : index
    %c0_59 = arith.constant 0 : index
    %c0_60 = arith.constant 0 : index
    %199 = vector.load %arg2[%c19, %c0_59, %c0_60] : memref<36x128x128xbf16, #tpu.memory_space<vmem>>, vector<1x128x128xbf16>
    %200 = vector.shape_cast %199 : vector<1x128x128xbf16> to vector<128x128xbf16>
    %cst_61 = arith.constant dense<0.000000e+00> : vector<128x128xf32>
    %201 = tpu.matmul %198, %200, %cst_61 {dimension_numbers = #tpu.dot_dimension_numbers<[1], [0], [0], [1], [0, 0, 1, 1], [], []>} : vector<128x128xbf16>, vector<128x128xbf16>, vector<128x128xf32> -> vector<128x128xf32>
    %202 = arith.addf %192, %201 : vector<128x128xf32>
    %203 = vector.extract_strided_slice %0 {offsets = [0, 20], sizes = [128, 1], strides = [1, 1]} : vector<128x36xi32> to vector<128x1xi32>
    %204 = vector.broadcast %203 : vector<128x1xi32> to vector<128x128xi32>
    %205 = arith.cmpi eq, %1, %204 : vector<128x128xi32>
    %206 = arith.extui %205 : vector<128x128xi1> to vector<128x128xi32>
    %207 = arith.sitofp %206 : vector<128x128xi32> to vector<128x128xf32>
    %208 = arith.truncf %207 : vector<128x128xf32> to vector<128x128xbf16>
    %c20 = arith.constant 20 : index
    %c0_62 = arith.constant 0 : index
    %c0_63 = arith.constant 0 : index
    %209 = vector.load %arg2[%c20, %c0_62, %c0_63] : memref<36x128x128xbf16, #tpu.memory_space<vmem>>, vector<1x128x128xbf16>
    %210 = vector.shape_cast %209 : vector<1x128x128xbf16> to vector<128x128xbf16>
    %cst_64 = arith.constant dense<0.000000e+00> : vector<128x128xf32>
    %211 = tpu.matmul %208, %210, %cst_64 {dimension_numbers = #tpu.dot_dimension_numbers<[1], [0], [0], [1], [0, 0, 1, 1], [], []>} : vector<128x128xbf16>, vector<128x128xbf16>, vector<128x128xf32> -> vector<128x128xf32>
    %212 = arith.addf %202, %211 : vector<128x128xf32>
    %213 = vector.extract_strided_slice %0 {offsets = [0, 21], sizes = [128, 1], strides = [1, 1]} : vector<128x36xi32> to vector<128x1xi32>
    %214 = vector.broadcast %213 : vector<128x1xi32> to vector<128x128xi32>
    %215 = arith.cmpi eq, %1, %214 : vector<128x128xi32>
    %216 = arith.extui %215 : vector<128x128xi1> to vector<128x128xi32>
    %217 = arith.sitofp %216 : vector<128x128xi32> to vector<128x128xf32>
    %218 = arith.truncf %217 : vector<128x128xf32> to vector<128x128xbf16>
    %c21 = arith.constant 21 : index
    %c0_65 = arith.constant 0 : index
    %c0_66 = arith.constant 0 : index
    %219 = vector.load %arg2[%c21, %c0_65, %c0_66] : memref<36x128x128xbf16, #tpu.memory_space<vmem>>, vector<1x128x128xbf16>
    %220 = vector.shape_cast %219 : vector<1x128x128xbf16> to vector<128x128xbf16>
    %cst_67 = arith.constant dense<0.000000e+00> : vector<128x128xf32>
    %221 = tpu.matmul %218, %220, %cst_67 {dimension_numbers = #tpu.dot_dimension_numbers<[1], [0], [0], [1], [0, 0, 1, 1], [], []>} : vector<128x128xbf16>, vector<128x128xbf16>, vector<128x128xf32> -> vector<128x128xf32>
    %222 = arith.addf %212, %221 : vector<128x128xf32>
    %223 = vector.extract_strided_slice %0 {offsets = [0, 22], sizes = [128, 1], strides = [1, 1]} : vector<128x36xi32> to vector<128x1xi32>
    %224 = vector.broadcast %223 : vector<128x1xi32> to vector<128x128xi32>
    %225 = arith.cmpi eq, %1, %224 : vector<128x128xi32>
    %226 = arith.extui %225 : vector<128x128xi1> to vector<128x128xi32>
    %227 = arith.sitofp %226 : vector<128x128xi32> to vector<128x128xf32>
    %228 = arith.truncf %227 : vector<128x128xf32> to vector<128x128xbf16>
    %c22 = arith.constant 22 : index
    %c0_68 = arith.constant 0 : index
    %c0_69 = arith.constant 0 : index
    %229 = vector.load %arg2[%c22, %c0_68, %c0_69] : memref<36x128x128xbf16, #tpu.memory_space<vmem>>, vector<1x128x128xbf16>
    %230 = vector.shape_cast %229 : vector<1x128x128xbf16> to vector<128x128xbf16>
    %cst_70 = arith.constant dense<0.000000e+00> : vector<128x128xf32>
    %231 = tpu.matmul %228, %230, %cst_70 {dimension_numbers = #tpu.dot_dimension_numbers<[1], [0], [0], [1], [0, 0, 1, 1], [], []>} : vector<128x128xbf16>, vector<128x128xbf16>, vector<128x128xf32> -> vector<128x128xf32>
    %232 = arith.addf %222, %231 : vector<128x128xf32>
    %233 = vector.extract_strided_slice %0 {offsets = [0, 23], sizes = [128, 1], strides = [1, 1]} : vector<128x36xi32> to vector<128x1xi32>
    %234 = vector.broadcast %233 : vector<128x1xi32> to vector<128x128xi32>
    %235 = arith.cmpi eq, %1, %234 : vector<128x128xi32>
    %236 = arith.extui %235 : vector<128x128xi1> to vector<128x128xi32>
    %237 = arith.sitofp %236 : vector<128x128xi32> to vector<128x128xf32>
    %238 = arith.truncf %237 : vector<128x128xf32> to vector<128x128xbf16>
    %c23 = arith.constant 23 : index
    %c0_71 = arith.constant 0 : index
    %c0_72 = arith.constant 0 : index
    %239 = vector.load %arg2[%c23, %c0_71, %c0_72] : memref<36x128x128xbf16, #tpu.memory_space<vmem>>, vector<1x128x128xbf16>
    %240 = vector.shape_cast %239 : vector<1x128x128xbf16> to vector<128x128xbf16>
    %cst_73 = arith.constant dense<0.000000e+00> : vector<128x128xf32>
    %241 = tpu.matmul %238, %240, %cst_73 {dimension_numbers = #tpu.dot_dimension_numbers<[1], [0], [0], [1], [0, 0, 1, 1], [], []>} : vector<128x128xbf16>, vector<128x128xbf16>, vector<128x128xf32> -> vector<128x128xf32>
    %242 = arith.addf %232, %241 : vector<128x128xf32>
    %243 = vector.extract_strided_slice %0 {offsets = [0, 24], sizes = [128, 1], strides = [1, 1]} : vector<128x36xi32> to vector<128x1xi32>
    %244 = vector.broadcast %243 : vector<128x1xi32> to vector<128x128xi32>
    %245 = arith.cmpi eq, %1, %244 : vector<128x128xi32>
    %246 = arith.extui %245 : vector<128x128xi1> to vector<128x128xi32>
    %247 = arith.sitofp %246 : vector<128x128xi32> to vector<128x128xf32>
    %248 = arith.truncf %247 : vector<128x128xf32> to vector<128x128xbf16>
    %c24 = arith.constant 24 : index
    %c0_74 = arith.constant 0 : index
    %c0_75 = arith.constant 0 : index
    %249 = vector.load %arg2[%c24, %c0_74, %c0_75] : memref<36x128x128xbf16, #tpu.memory_space<vmem>>, vector<1x128x128xbf16>
    %250 = vector.shape_cast %249 : vector<1x128x128xbf16> to vector<128x128xbf16>
    %cst_76 = arith.constant dense<0.000000e+00> : vector<128x128xf32>
    %251 = tpu.matmul %248, %250, %cst_76 {dimension_numbers = #tpu.dot_dimension_numbers<[1], [0], [0], [1], [0, 0, 1, 1], [], []>} : vector<128x128xbf16>, vector<128x128xbf16>, vector<128x128xf32> -> vector<128x128xf32>
    %252 = arith.addf %242, %251 : vector<128x128xf32>
    %253 = vector.extract_strided_slice %0 {offsets = [0, 25], sizes = [128, 1], strides = [1, 1]} : vector<128x36xi32> to vector<128x1xi32>
    %254 = vector.broadcast %253 : vector<128x1xi32> to vector<128x128xi32>
    %255 = arith.cmpi eq, %1, %254 : vector<128x128xi32>
    %256 = arith.extui %255 : vector<128x128xi1> to vector<128x128xi32>
    %257 = arith.sitofp %256 : vector<128x128xi32> to vector<128x128xf32>
    %258 = arith.truncf %257 : vector<128x128xf32> to vector<128x128xbf16>
    %c25 = arith.constant 25 : index
    %c0_77 = arith.constant 0 : index
    %c0_78 = arith.constant 0 : index
    %259 = vector.load %arg2[%c25, %c0_77, %c0_78] : memref<36x128x128xbf16, #tpu.memory_space<vmem>>, vector<1x128x128xbf16>
    %260 = vector.shape_cast %259 : vector<1x128x128xbf16> to vector<128x128xbf16>
    %cst_79 = arith.constant dense<0.000000e+00> : vector<128x128xf32>
    %261 = tpu.matmul %258, %260, %cst_79 {dimension_numbers = #tpu.dot_dimension_numbers<[1], [0], [0], [1], [0, 0, 1, 1], [], []>} : vector<128x128xbf16>, vector<128x128xbf16>, vector<128x128xf32> -> vector<128x128xf32>
    %262 = arith.addf %252, %261 : vector<128x128xf32>
    %263 = vector.extract_strided_slice %0 {offsets = [0, 26], sizes = [128, 1], strides = [1, 1]} : vector<128x36xi32> to vector<128x1xi32>
    %264 = vector.broadcast %263 : vector<128x1xi32> to vector<128x128xi32>
    %265 = arith.cmpi eq, %1, %264 : vector<128x128xi32>
    %266 = arith.extui %265 : vector<128x128xi1> to vector<128x128xi32>
    %267 = arith.sitofp %266 : vector<128x128xi32> to vector<128x128xf32>
    %268 = arith.truncf %267 : vector<128x128xf32> to vector<128x128xbf16>
    %c26 = arith.constant 26 : index
    %c0_80 = arith.constant 0 : index
    %c0_81 = arith.constant 0 : index
    %269 = vector.load %arg2[%c26, %c0_80, %c0_81] : memref<36x128x128xbf16, #tpu.memory_space<vmem>>, vector<1x128x128xbf16>
    %270 = vector.shape_cast %269 : vector<1x128x128xbf16> to vector<128x128xbf16>
    %cst_82 = arith.constant dense<0.000000e+00> : vector<128x128xf32>
    %271 = tpu.matmul %268, %270, %cst_82 {dimension_numbers = #tpu.dot_dimension_numbers<[1], [0], [0], [1], [0, 0, 1, 1], [], []>} : vector<128x128xbf16>, vector<128x128xbf16>, vector<128x128xf32> -> vector<128x128xf32>
    %272 = arith.addf %262, %271 : vector<128x128xf32>
    %273 = vector.extract_strided_slice %0 {offsets = [0, 27], sizes = [128, 1], strides = [1, 1]} : vector<128x36xi32> to vector<128x1xi32>
    %274 = vector.broadcast %273 : vector<128x1xi32> to vector<128x128xi32>
    %275 = arith.cmpi eq, %1, %274 : vector<128x128xi32>
    %276 = arith.extui %275 : vector<128x128xi1> to vector<128x128xi32>
    %277 = arith.sitofp %276 : vector<128x128xi32> to vector<128x128xf32>
    %278 = arith.truncf %277 : vector<128x128xf32> to vector<128x128xbf16>
    %c27 = arith.constant 27 : index
    %c0_83 = arith.constant 0 : index
    %c0_84 = arith.constant 0 : index
    %279 = vector.load %arg2[%c27, %c0_83, %c0_84] : memref<36x128x128xbf16, #tpu.memory_space<vmem>>, vector<1x128x128xbf16>
    %280 = vector.shape_cast %279 : vector<1x128x128xbf16> to vector<128x128xbf16>
    %cst_85 = arith.constant dense<0.000000e+00> : vector<128x128xf32>
    %281 = tpu.matmul %278, %280, %cst_85 {dimension_numbers = #tpu.dot_dimension_numbers<[1], [0], [0], [1], [0, 0, 1, 1], [], []>} : vector<128x128xbf16>, vector<128x128xbf16>, vector<128x128xf32> -> vector<128x128xf32>
    %282 = arith.addf %272, %281 : vector<128x128xf32>
    %283 = vector.extract_strided_slice %0 {offsets = [0, 28], sizes = [128, 1], strides = [1, 1]} : vector<128x36xi32> to vector<128x1xi32>
    %284 = vector.broadcast %283 : vector<128x1xi32> to vector<128x128xi32>
    %285 = arith.cmpi eq, %1, %284 : vector<128x128xi32>
    %286 = arith.extui %285 : vector<128x128xi1> to vector<128x128xi32>
    %287 = arith.sitofp %286 : vector<128x128xi32> to vector<128x128xf32>
    %288 = arith.truncf %287 : vector<128x128xf32> to vector<128x128xbf16>
    %c28 = arith.constant 28 : index
    %c0_86 = arith.constant 0 : index
    %c0_87 = arith.constant 0 : index
    %289 = vector.load %arg2[%c28, %c0_86, %c0_87] : memref<36x128x128xbf16, #tpu.memory_space<vmem>>, vector<1x128x128xbf16>
    %290 = vector.shape_cast %289 : vector<1x128x128xbf16> to vector<128x128xbf16>
    %cst_88 = arith.constant dense<0.000000e+00> : vector<128x128xf32>
    %291 = tpu.matmul %288, %290, %cst_88 {dimension_numbers = #tpu.dot_dimension_numbers<[1], [0], [0], [1], [0, 0, 1, 1], [], []>} : vector<128x128xbf16>, vector<128x128xbf16>, vector<128x128xf32> -> vector<128x128xf32>
    %292 = arith.addf %282, %291 : vector<128x128xf32>
    %293 = vector.extract_strided_slice %0 {offsets = [0, 29], sizes = [128, 1], strides = [1, 1]} : vector<128x36xi32> to vector<128x1xi32>
    %294 = vector.broadcast %293 : vector<128x1xi32> to vector<128x128xi32>
    %295 = arith.cmpi eq, %1, %294 : vector<128x128xi32>
    %296 = arith.extui %295 : vector<128x128xi1> to vector<128x128xi32>
    %297 = arith.sitofp %296 : vector<128x128xi32> to vector<128x128xf32>
    %298 = arith.truncf %297 : vector<128x128xf32> to vector<128x128xbf16>
    %c29 = arith.constant 29 : index
    %c0_89 = arith.constant 0 : index
    %c0_90 = arith.constant 0 : index
    %299 = vector.load %arg2[%c29, %c0_89, %c0_90] : memref<36x128x128xbf16, #tpu.memory_space<vmem>>, vector<1x128x128xbf16>
    %300 = vector.shape_cast %299 : vector<1x128x128xbf16> to vector<128x128xbf16>
    %cst_91 = arith.constant dense<0.000000e+00> : vector<128x128xf32>
    %301 = tpu.matmul %298, %300, %cst_91 {dimension_numbers = #tpu.dot_dimension_numbers<[1], [0], [0], [1], [0, 0, 1, 1], [], []>} : vector<128x128xbf16>, vector<128x128xbf16>, vector<128x128xf32> -> vector<128x128xf32>
    %302 = arith.addf %292, %301 : vector<128x128xf32>
    %303 = vector.extract_strided_slice %0 {offsets = [0, 30], sizes = [128, 1], strides = [1, 1]} : vector<128x36xi32> to vector<128x1xi32>
    %304 = vector.broadcast %303 : vector<128x1xi32> to vector<128x128xi32>
    %305 = arith.cmpi eq, %1, %304 : vector<128x128xi32>
    %306 = arith.extui %305 : vector<128x128xi1> to vector<128x128xi32>
    %307 = arith.sitofp %306 : vector<128x128xi32> to vector<128x128xf32>
    %308 = arith.truncf %307 : vector<128x128xf32> to vector<128x128xbf16>
    %c30 = arith.constant 30 : index
    %c0_92 = arith.constant 0 : index
    %c0_93 = arith.constant 0 : index
    %309 = vector.load %arg2[%c30, %c0_92, %c0_93] : memref<36x128x128xbf16, #tpu.memory_space<vmem>>, vector<1x128x128xbf16>
    %310 = vector.shape_cast %309 : vector<1x128x128xbf16> to vector<128x128xbf16>
    %cst_94 = arith.constant dense<0.000000e+00> : vector<128x128xf32>
    %311 = tpu.matmul %308, %310, %cst_94 {dimension_numbers = #tpu.dot_dimension_numbers<[1], [0], [0], [1], [0, 0, 1, 1], [], []>} : vector<128x128xbf16>, vector<128x128xbf16>, vector<128x128xf32> -> vector<128x128xf32>
    %312 = arith.addf %302, %311 : vector<128x128xf32>
    %313 = vector.extract_strided_slice %0 {offsets = [0, 31], sizes = [128, 1], strides = [1, 1]} : vector<128x36xi32> to vector<128x1xi32>
    %314 = vector.broadcast %313 : vector<128x1xi32> to vector<128x128xi32>
    %315 = arith.cmpi eq, %1, %314 : vector<128x128xi32>
    %316 = arith.extui %315 : vector<128x128xi1> to vector<128x128xi32>
    %317 = arith.sitofp %316 : vector<128x128xi32> to vector<128x128xf32>
    %318 = arith.truncf %317 : vector<128x128xf32> to vector<128x128xbf16>
    %c31 = arith.constant 31 : index
    %c0_95 = arith.constant 0 : index
    %c0_96 = arith.constant 0 : index
    %319 = vector.load %arg2[%c31, %c0_95, %c0_96] : memref<36x128x128xbf16, #tpu.memory_space<vmem>>, vector<1x128x128xbf16>
    %320 = vector.shape_cast %319 : vector<1x128x128xbf16> to vector<128x128xbf16>
    %cst_97 = arith.constant dense<0.000000e+00> : vector<128x128xf32>
    %321 = tpu.matmul %318, %320, %cst_97 {dimension_numbers = #tpu.dot_dimension_numbers<[1], [0], [0], [1], [0, 0, 1, 1], [], []>} : vector<128x128xbf16>, vector<128x128xbf16>, vector<128x128xf32> -> vector<128x128xf32>
    %322 = arith.addf %312, %321 : vector<128x128xf32>
    %323 = vector.extract_strided_slice %0 {offsets = [0, 32], sizes = [128, 1], strides = [1, 1]} : vector<128x36xi32> to vector<128x1xi32>
    %324 = vector.broadcast %323 : vector<128x1xi32> to vector<128x128xi32>
    %325 = arith.cmpi eq, %1, %324 : vector<128x128xi32>
    %326 = arith.extui %325 : vector<128x128xi1> to vector<128x128xi32>
    %327 = arith.sitofp %326 : vector<128x128xi32> to vector<128x128xf32>
    %328 = arith.truncf %327 : vector<128x128xf32> to vector<128x128xbf16>
    %c32 = arith.constant 32 : index
    %c0_98 = arith.constant 0 : index
    %c0_99 = arith.constant 0 : index
    %329 = vector.load %arg2[%c32, %c0_98, %c0_99] : memref<36x128x128xbf16, #tpu.memory_space<vmem>>, vector<1x128x128xbf16>
    %330 = vector.shape_cast %329 : vector<1x128x128xbf16> to vector<128x128xbf16>
    %cst_100 = arith.constant dense<0.000000e+00> : vector<128x128xf32>
    %331 = tpu.matmul %328, %330, %cst_100 {dimension_numbers = #tpu.dot_dimension_numbers<[1], [0], [0], [1], [0, 0, 1, 1], [], []>} : vector<128x128xbf16>, vector<128x128xbf16>, vector<128x128xf32> -> vector<128x128xf32>
    %332 = arith.addf %322, %331 : vector<128x128xf32>
    %333 = vector.extract_strided_slice %0 {offsets = [0, 33], sizes = [128, 1], strides = [1, 1]} : vector<128x36xi32> to vector<128x1xi32>
    %334 = vector.broadcast %333 : vector<128x1xi32> to vector<128x128xi32>
    %335 = arith.cmpi eq, %1, %334 : vector<128x128xi32>
    %336 = arith.extui %335 : vector<128x128xi1> to vector<128x128xi32>
    %337 = arith.sitofp %336 : vector<128x128xi32> to vector<128x128xf32>
    %338 = arith.truncf %337 : vector<128x128xf32> to vector<128x128xbf16>
    %c33 = arith.constant 33 : index
    %c0_101 = arith.constant 0 : index
    %c0_102 = arith.constant 0 : index
    %339 = vector.load %arg2[%c33, %c0_101, %c0_102] : memref<36x128x128xbf16, #tpu.memory_space<vmem>>, vector<1x128x128xbf16>
    %340 = vector.shape_cast %339 : vector<1x128x128xbf16> to vector<128x128xbf16>
    %cst_103 = arith.constant dense<0.000000e+00> : vector<128x128xf32>
    %341 = tpu.matmul %338, %340, %cst_103 {dimension_numbers = #tpu.dot_dimension_numbers<[1], [0], [0], [1], [0, 0, 1, 1], [], []>} : vector<128x128xbf16>, vector<128x128xbf16>, vector<128x128xf32> -> vector<128x128xf32>
    %342 = arith.addf %332, %341 : vector<128x128xf32>
    %343 = vector.extract_strided_slice %0 {offsets = [0, 34], sizes = [128, 1], strides = [1, 1]} : vector<128x36xi32> to vector<128x1xi32>
    %344 = vector.broadcast %343 : vector<128x1xi32> to vector<128x128xi32>
    %345 = arith.cmpi eq, %1, %344 : vector<128x128xi32>
    %346 = arith.extui %345 : vector<128x128xi1> to vector<128x128xi32>
    %347 = arith.sitofp %346 : vector<128x128xi32> to vector<128x128xf32>
    %348 = arith.truncf %347 : vector<128x128xf32> to vector<128x128xbf16>
    %c34 = arith.constant 34 : index
    %c0_104 = arith.constant 0 : index
    %c0_105 = arith.constant 0 : index
    %349 = vector.load %arg2[%c34, %c0_104, %c0_105] : memref<36x128x128xbf16, #tpu.memory_space<vmem>>, vector<1x128x128xbf16>
    %350 = vector.shape_cast %349 : vector<1x128x128xbf16> to vector<128x128xbf16>
    %cst_106 = arith.constant dense<0.000000e+00> : vector<128x128xf32>
    %351 = tpu.matmul %348, %350, %cst_106 {dimension_numbers = #tpu.dot_dimension_numbers<[1], [0], [0], [1], [0, 0, 1, 1], [], []>} : vector<128x128xbf16>, vector<128x128xbf16>, vector<128x128xf32> -> vector<128x128xf32>
    %352 = arith.addf %342, %351 : vector<128x128xf32>
    %353 = vector.extract_strided_slice %0 {offsets = [0, 35], sizes = [128, 1], strides = [1, 1]} : vector<128x36xi32> to vector<128x1xi32>
    %354 = vector.broadcast %353 : vector<128x1xi32> to vector<128x128xi32>
    %355 = arith.cmpi eq, %1, %354 : vector<128x128xi32>
    %356 = arith.extui %355 : vector<128x128xi1> to vector<128x128xi32>
    %357 = arith.sitofp %356 : vector<128x128xi32> to vector<128x128xf32>
    %358 = arith.truncf %357 : vector<128x128xf32> to vector<128x128xbf16>
    %c35 = arith.constant 35 : index
    %c0_107 = arith.constant 0 : index
    %c0_108 = arith.constant 0 : index
    %359 = vector.load %arg2[%c35, %c0_107, %c0_108] : memref<36x128x128xbf16, #tpu.memory_space<vmem>>, vector<1x128x128xbf16>
    %360 = vector.shape_cast %359 : vector<1x128x128xbf16> to vector<128x128xbf16>
    %cst_109 = arith.constant dense<0.000000e+00> : vector<128x128xf32>
    %361 = tpu.matmul %358, %360, %cst_109 {dimension_numbers = #tpu.dot_dimension_numbers<[1], [0], [0], [1], [0, 0, 1, 1], [], []>} : vector<128x128xbf16>, vector<128x128xbf16>, vector<128x128xf32> -> vector<128x128xf32>
    %362 = arith.addf %352, %361 : vector<128x128xf32>
    %c0_110 = arith.constant 0 : index
    %c0_111 = arith.constant 0 : index
    %363 = vector.load %arg3[%c0_110, %c0_111] : memref<1x128xf32, #tpu.memory_space<vmem>>, vector<1x128xf32>
    %364 = vector.broadcast %363 : vector<1x128xf32> to vector<128x128xf32>
    %365 = arith.addf %362, %364 : vector<128x128xf32>
    %cst_112 = arith.constant 0.000000e+00 : f32
    %366 = vector.broadcast %cst_112 : f32 to vector<128x128xf32>
    %367 = arith.maximumf %365, %366 : vector<128x128xf32>
    %368 = arith.truncf %367 : vector<128x128xf32> to vector<128x128xbf16>
    %c0_113 = arith.constant 0 : index
    %c0_114 = arith.constant 0 : index
    %369 = vector.load %arg4[%c0_113, %c0_114] : memref<128x128xbf16, #tpu.memory_space<vmem>>, vector<128x128xbf16>
    %cst_115 = arith.constant dense<0.000000e+00> : vector<128x128xf32>
    %370 = tpu.matmul %368, %369, %cst_115 {dimension_numbers = #tpu.dot_dimension_numbers<[1], [0], [0], [1], [0, 0, 1, 1], [], []>} : vector<128x128xbf16>, vector<128x128xbf16>, vector<128x128xf32> -> vector<128x128xf32>
    %c0_116 = arith.constant 0 : index
    %c0_117 = arith.constant 0 : index
    %371 = vector.load %arg5[%c0_116, %c0_117] : memref<1x128xf32, #tpu.memory_space<vmem>>, vector<1x128xf32>
    %372 = vector.broadcast %371 : vector<1x128xf32> to vector<128x128xf32>
    %373 = arith.addf %370, %372 : vector<128x128xf32>
    %c0_118 = arith.constant 0 : index
    %c0_119 = arith.constant 0 : index
    %374 = vector.load %arg6[%c0_118, %c0_119] : memref<128x128xf32, #tpu.memory_space<vmem>>, vector<128x128xf32>
    tpu.vector_store %arg6[%c0_118, %c0_119], %373 {strides = array<i32>} : memref<128x128xf32, #tpu.memory_space<vmem>>, vector<128x128xf32>,
    return
  }
  func.func @transform_0(%arg0: i32) -> (i32, i32) {
    %c0_i32 = arith.constant 0 : i32
    %c0_i32_0 = arith.constant 0 : i32
    return %arg0, %c0_i32 : i32, i32
  }
  func.func @transform_1(%arg0: i32) -> (i32, i32, i32) {
    %c0_i32 = arith.constant 0 : i32
    %c0_i32_0 = arith.constant 0 : i32
    %c0_i32_1 = arith.constant 0 : i32
    %c0_i32_2 = arith.constant 0 : i32
    return %c0_i32, %c0_i32_0, %c0_i32_1 : i32, i32, i32
  }
  func.func @transform_2(%arg0: i32) -> (i32, i32) {
    %c0_i32 = arith.constant 0 : i32
    %c0_i32_0 = arith.constant 0 : i32
    %c0_i32_1 = arith.constant 0 : i32
    return %c0_i32, %c0_i32_0 : i32, i32
  }
  func.func @transform_3(%arg0: i32) -> (i32, i32) {
    %c0_i32 = arith.constant 0 : i32
    %c0_i32_0 = arith.constant 0 : i32
    %c0_i32_1 = arith.constant 0 : i32
    return %c0_i32, %c0_i32_0 : i32, i32
  }
  func.func @transform_4(%arg0: i32) -> (i32, i32) {
    %c0_i32 = arith.constant 0 : i32
    %c0_i32_0 = arith.constant 0 : i32
    %c0_i32_1 = arith.constant 0 : i32
    return %c0_i32, %c0_i32_0 : i32, i32
  }
  func.func @transform_5(%arg0: i32) -> (i32, i32) {
    %c0_i32 = arith.constant 0 : i32
    %c0_i32_0 = arith.constant 0 : i32
    return %arg0, %c0_i32 : i32, i32
  }
}

</mosaic_0001>

<llo_original>
// kernel: tpu_custom_call.1
$region0: #{tpu_custom_call.1}
  #allocation0 [shape = 'u32[]', space=smem, size = 0x4, offset = 0x4, fixed_abs, tag = 'smem constant byte address 0x4 - core index']
  #allocation1 [shape = 'u32[72,128]{1,0:T(1,128)}', space=vmem, size = 0x9000, scoped, tag = 'internal scratch']
  %s0 = inlined_call_operand.vmem [shape: s32[128,36], index: 0, kind: input, shape index: {}]
  %s1 = inlined_call_operand.hbm [shape: bf16[36,128,128], index: 1, kind: input, shape index: {}]
  %s2 = inlined_call_operand.hbm [shape: f32[1,128], index: 2, kind: input, shape index: {}]
  %s3 = inlined_call_operand.hbm [shape: bf16[128,128], index: 3, kind: input, shape index: {}]
  %s4 = inlined_call_operand.hbm [shape: f32[1,128], index: 4, kind: input, shape index: {}]
  %s5 = inlined_call_operand.hbm [shape: f32[128,128], index: 5, kind: output, shape index: {}]
  %s6 = sld [smem:[#allocation0]]
  $region46: #{tpu_custom_call.1} parent=0
    _
  %s8 = ssub.s32 1, %s6
  %s9 = scalar_select 0, %s8, %s6
  $region1: #{tpu_custom_call.1} parent=0
    #allocation2 [shape = 'u8[1179648]{0}', space=vmem, size = 0x120000, scoped, tag = 'input window, operand 1, single buffered']
    #allocation3 [shape = 's32[1]{0}', space=sflag, size = 0x4, scoped, tag = 'scoped memory for tpu_custom_call.1']
    #allocation4 [shape = 's32[1]{0}', space=sflag, size = 0x4, scoped, tag = 'scoped memory for tpu_custom_call.1']
    #allocation5 [shape = 'u8[512]{0}', space=vmem, size = 0x400, scoped, tag = 'input window, operand 2, single buffered']
    #allocation6 [shape = 's32[1]{0}', space=sflag, size = 0x4, scoped, tag = 'scoped memory for tpu_custom_call.1']
    #allocation7 [shape = 'u8[32768]{0}', space=vmem, size = 0x8000, scoped, tag = 'input window, operand 3, single buffered']
    #allocation8 [shape = 'u8[512]{0}', space=vmem, size = 0x400, scoped, tag = 'input window, operand 4, single buffered']
    #allocation9 [shape = 's32[1]{0}', space=sflag, size = 0x4, scoped, tag = 'scoped memory for tpu_custom_call.1']
    #allocation10 [shape = 'u8[65536]{0}', space=vmem, size = 0x10000, scoped, tag = 'output window, operand 0, single buffered']
    %10 = vsyncpa [#allocation3], 0
    %11 = vsyncpa [#allocation6], 0
    %12 = vsyncpa [#allocation9], 0
    %13 = vsyncpa [#allocation4], 0
    // Predicated region
    $region2: #{tpu_custom_call.1} parent=1 // pred_check
      _
    $region3: #{tpu_custom_call.1} parent=1 // pred_check_branch
      %15 = sbr.rel (0) target = $region5
    $region4: #{tpu_custom_call.1} parent=1 // pred_region
      _
    $region5: #{tpu_custom_call.1} parent=1 // pred_fallthru
      _
    // Predicated region
    $region6: #{tpu_custom_call.1} parent=1 // pred_check
      _
    $region7: #{tpu_custom_call.1} parent=1 // pred_check_branch
      %17 = sbr.rel (0) target = $region9
    $region8: #{tpu_custom_call.1} parent=1 // pred_region
      %19 = vsyncadd [#allocation3], 0
      %s20 = sshll.u32 %s1, 4
      %s21 = int_to_ptr.hbm [resolvable:$true] %s20
      %s22 = sshll.u32 [#allocation2], 4
      %s23 = int_to_ptr.vmem [resolvable:$true] %s22
      %28 = dma.hbm_to_vmem [thread:$0]  %s21, 36864, %s23, [#allocation3], 64, 64, 4
    $region9: #{tpu_custom_call.1} parent=1 // pred_fallthru
      _
    // Predicated region
    $region10: #{tpu_custom_call.1} parent=1 // pred_check
      _
    $region11: #{tpu_custom_call.1} parent=1 // pred_check_branch
      %30 = sbr.rel (0) target = $region13
    $region12: #{tpu_custom_call.1} parent=1 // pred_region
      %32 = vsyncadd [#allocation6], 0
      %s34 = sshll.u32 %s2, 4
      %s35 = int_to_ptr.hbm [resolvable:$true] %s34
      %s36 = sshll.u32 [#allocation5], 4
      %s37 = int_to_ptr.vmem [resolvable:$true] %s36
      %39 = dma.hbm_to_vmem [thread:$0]  %s35, 16, %s37, [#allocation6]
    $region13: #{tpu_custom_call.1} parent=1 // pred_fallthru
      _
    // Predicated region
    $region14: #{tpu_custom_call.1} parent=1 // pred_check
      _
    $region15: #{tpu_custom_call.1} parent=1 // pred_check_branch
      %41 = sbr.rel (0) target = $region17
    $region16: #{tpu_custom_call.1} parent=1 // pred_region
      %43 = vsyncadd [#allocation6], 0
      %s44 = sshll.u32 %s3, 4
      %s45 = int_to_ptr.hbm [resolvable:$true] %s44
      %s46 = sshll.u32 [#allocation7], 4
      %s47 = int_to_ptr.vmem [resolvable:$true] %s46
      %52 = dma.hbm_to_vmem [thread:$0]  %s45, 1024, %s47, [#allocation6], 64, 64, 4
    $region17: #{tpu_custom_call.1} parent=1 // pred_fallthru
      _
    // Predicated region
    $region18: #{tpu_custom_call.1} parent=1 // pred_check
      _
    $region19: #{tpu_custom_call.1} parent=1 // pred_check_branch
      %54 = sbr.rel (0) target = $region21
    $region20: #{tpu_custom_call.1} parent=1 // pred_region
      %56 = vsyncadd [#allocation9], 0
      %s58 = sshll.u32 %s4, 4
      %s59 = int_to_ptr.hbm [resolvable:$true] %s58
      %s60 = sshll.u32 [#allocation8], 4
      %s61 = int_to_ptr.vmem [resolvable:$true] %s60
      %63 = dma.hbm_to_vmem [thread:$0]  %s59, 16, %s61, [#allocation9]
    $region21: #{tpu_custom_call.1} parent=1 // pred_fallthru
      _
    // Predicated region
    $region22: #{tpu_custom_call.1} parent=1 // pred_check
      _
    $region23: #{tpu_custom_call.1} parent=1 // pred_check_branch
      %65 = sbr.rel (0) target = $region25
    $region24: #{tpu_custom_call.1} parent=1 // pred_region
      %67 = dma.done [#allocation3], 36864
    $region25: #{tpu_custom_call.1} parent=1 // pred_fallthru
      _
    // Predicated region
    $region26: #{tpu_custom_call.1} parent=1 // pred_check
      _
    $region27: #{tpu_custom_call.1} parent=1 // pred_check_branch
      %69 = sbr.rel (0) target = $region29
    $region28: #{tpu_custom_call.1} parent=1 // pred_region
      %71 = dma.done [#allocation6], 16
    $region29: #{tpu_custom_call.1} parent=1 // pred_fallthru
      _
    // Predicated region
    $region30: #{tpu_custom_call.1} parent=1 // pred_check
      _
    $region31: #{tpu_custom_call.1} parent=1 // pred_check_branch
      %73 = sbr.rel (0) target = $region33
    $region32: #{tpu_custom_call.1} parent=1 // pred_region
      %75 = dma.done [#allocation6], 1024
    $region33: #{tpu_custom_call.1} parent=1 // pred_fallthru
      _
    // Predicated region
    $region34: #{tpu_custom_call.1} parent=1 // pred_check
      _
    $region35: #{tpu_custom_call.1} parent=1 // pred_check_branch
      %77 = sbr.rel (0) target = $region37
    $region36: #{tpu_custom_call.1} parent=1 // pred_region
      %79 = dma.done [#allocation9], 16
    $region37: #{tpu_custom_call.1} parent=1 // pred_fallthru
      _
    %v80 = vld [vmem:[%s0] sm:$0xff]
    %v81 = vld [vmem:[%s0 + $0x8] sm:$0xff]
    %v82 = vld [vmem:[%s0 + $0x10] sm:$0xff]
    %v83 = vld [vmem:[%s0 + $0x18] sm:$0xff]
    %v84 = vld [vmem:[%s0 + $0x20] sm:$0xff]
    %v85 = vld [vmem:[%s0 + $0x28] sm:$0xff]
    %v86 = vld [vmem:[%s0 + $0x30] sm:$0xff]
    %v87 = vld [vmem:[%s0 + $0x38] sm:$0xff]
    %v88 = vld [vmem:[%s0 + $0x40] sm:$0xff]
    %v89 = vld [vmem:[%s0 + $0x48] sm:$0xff]
    %v90 = vld [vmem:[%s0 + $0x50] sm:$0xff]
    %v91 = vld [vmem:[%s0 + $0x58] sm:$0xff]
    %v92 = vld [vmem:[%s0 + $0x60] sm:$0xff]
    %v93 = vld [vmem:[%s0 + $0x68] sm:$0xff]
    %v94 = vld [vmem:[%s0 + $0x70] sm:$0xff]
    %v95 = vld [vmem:[%s0 + $0x78] sm:$0xff]
    %v96 = vlaneseq
    %v97 = vand.u32 %v96, 127
    %98 = vset.pattern.permute.xlu0 0
    %99 = vperm.xlu0 %98, %v80
    %v100 = vpop.permute.xlu0 %99
    %101 = vset.pattern.permute.xlu0 0
    %102 = vperm.xlu0 %101, %v81
    %v103 = vpop.permute.xlu0 %102
    %104 = vset.pattern.permute.xlu0 0
    %105 = vperm.xlu0 %104, %v82
    %v106 = vpop.permute.xlu0 %105
    %107 = vset.pattern.permute.xlu0 0
    %108 = vperm.xlu0 %107, %v83
    %v109 = vpop.permute.xlu0 %108
    %110 = vset.pattern.permute.xlu0 0
    %111 = vperm.xlu0 %110, %v84
    %v112 = vpop.permute.xlu0 %111
    %113 = vset.pattern.permute.xlu0 0
    %114 = vperm.xlu0 %113, %v85
    %v115 = vpop.permute.xlu0 %114
    %116 = vset.pattern.permute.xlu0 0
    %117 = vperm.xlu0 %116, %v86
    %v118 = vpop.permute.xlu0 %117
    %119 = vset.pattern.permute.xlu0 0
    %120 = vperm.xlu0 %119, %v87
    %v121 = vpop.permute.xlu0 %120
    %122 = vset.pattern.permute.xlu0 0
    %123 = vperm.xlu0 %122, %v88
    %v124 = vpop.permute.xlu0 %123
    %125 = vset.pattern.permute.xlu0 0
    %126 = vperm.xlu0 %125, %v89
    %v127 = vpop.permute.xlu0 %126
    %128 = vset.pattern.permute.xlu0 0
    %129 = vperm.xlu0 %128, %v90
    %v130 = vpop.permute.xlu0 %129
    %131 = vset.pattern.permute.xlu0 0
    %132 = vperm.xlu0 %131, %v91
    %v133 = vpop.permute.xlu0 %132
    %134 = vset.pattern.permute.xlu0 0
    %135 = vperm.xlu0 %134, %v92
    %v136 = vpop.permute.xlu0 %135
    %137 = vset.pattern.permute.xlu0 0
    %138 = vperm.xlu0 %137, %v93
    %v139 = vpop.permute.xlu0 %138
    %140 = vset.pattern.permute.xlu0 0
    %141 = vperm.xlu0 %140, %v94
    %v142 = vpop.permute.xlu0 %141
    %143 = vset.pattern.permute.xlu0 0
    %144 = vperm.xlu0 %143, %v95
    %v145 = vpop.permute.xlu0 %144
    %vm146 = vcmp.eq.s32.totalorder %v97, %v100
    %vm147 = vcmp.eq.s32.totalorder %v97, %v103
    %vm148 = vcmp.eq.s32.totalorder %v97, %v106
    %vm149 = vcmp.eq.s32.totalorder %v97, %v109
    %vm150 = vcmp.eq.s32.totalorder %v97, %v112
    %vm151 = vcmp.eq.s32.totalorder %v97, %v115
    %vm152 = vcmp.eq.s32.totalorder %v97, %v118
    %vm153 = vcmp.eq.s32.totalorder %v97, %v121
    %vm154 = vcmp.eq.s32.totalorder %v97, %v124
    %vm155 = vcmp.eq.s32.totalorder %v97, %v127
    %vm156 = vcmp.eq.s32.totalorder %v97, %v130
    %vm157 = vcmp.eq.s32.totalorder %v97, %v133
    %vm158 = vcmp.eq.s32.totalorder %v97, %v136
    %vm159 = vcmp.eq.s32.totalorder %v97, %v139
    %vm160 = vcmp.eq.s32.totalorder %v97, %v142
    %vm161 = vcmp.eq.s32.totalorder %v97, %v145
    %v162 = vsel %vm146, 1, 0
    %v163 = vsel %vm147, 1, 0
    %v164 = vsel %vm148, 1, 0
    %v165 = vsel %vm149, 1, 0
    %v166 = vsel %vm150, 1, 0
    %v167 = vsel %vm151, 1, 0
    %v168 = vsel %vm152, 1, 0
    %v169 = vsel %vm153, 1, 0
    %v170 = vsel %vm154, 1, 0
    %v171 = vsel %vm155, 1, 0
    %v172 = vsel %vm156, 1, 0
    %v173 = vsel %vm157, 1, 0
    %v174 = vsel %vm158, 1, 0
    %v175 = vsel %vm159, 1, 0
    %v176 = vsel %vm160, 1, 0
    %v177 = vsel %vm161, 1, 0
    %v178 = vcvt.s32.f32 %v162
    %v179 = vcvt.s32.f32 %v163
    %v180 = vcvt.s32.f32 %v164
    %v181 = vcvt.s32.f32 %v165
    %v182 = vcvt.s32.f32 %v166
    %v183 = vcvt.s32.f32 %v167
    %v184 = vcvt.s32.f32 %v168
    %v185 = vcvt.s32.f32 %v169
    %v186 = vcvt.s32.f32 %v170
    %v187 = vcvt.s32.f32 %v171
    %v188 = vcvt.s32.f32 %v172
    %v189 = vcvt.s32.f32 %v173
    %v190 = vcvt.s32.f32 %v174
    %v191 = vcvt.s32.f32 %v175
    %v192 = vcvt.s32.f32 %v176
    %v193 = vcvt.s32.f32 %v177
    %v194 = vpack.c.bf16 %v179, %v178
    %v195 = vpack.c.bf16 %v181, %v180
    %v196 = vpack.c.bf16 %v183, %v182
    %v197 = vpack.c.bf16 %v185, %v184
    %v198 = vpack.c.bf16 %v187, %v186
    %v199 = vpack.c.bf16 %v189, %v188
    %v200 = vpack.c.bf16 %v191, %v190
    %v201 = vpack.c.bf16 %v193, %v192
    %v202 = vld [vmem:[#allocation2] sm:$0xf]
    %v203 = vld [vmem:[#allocation2 + $0x4] sm:$0xf]
    %v204 = vld [vmem:[#allocation2 + $0x8] sm:$0xf]
    %v205 = vld [vmem:[#allocation2 + $0xc] sm:$0xf]
    %v206 = vld [vmem:[#allocation2 + $0x10] sm:$0xf]
    %v207 = vld [vmem:[#allocation2 + $0x14] sm:$0xf]
    %v208 = vld [vmem:[#allocation2 + $0x18] sm:$0xf]
    %v209 = vld [vmem:[#allocation2 + $0x1c] sm:$0xf]
    %v210 = vld [vmem:[#allocation2 + $0x20] sm:$0xf]
    %v211 = vld [vmem:[#allocation2 + $0x24] sm:$0xf]
    %v212 = vld [vmem:[#allocation2 + $0x28] sm:$0xf]
    %v213 = vld [vmem:[#allocation2 + $0x2c] sm:$0xf]
    %v214 = vld [vmem:[#allocation2 + $0x30] sm:$0xf]
    %v215 = vld [vmem:[#allocation2 + $0x34] sm:$0xf]
    %v216 = vld [vmem:[#allocation2 + $0x38] sm:$0xf]
    %v217 = vld [vmem:[#allocation2 + $0x3c] sm:$0xf]
    %218 = vset.pattern.permute.xlu0 1
    %219 = vperm.xlu0 %218, %v80
    %v220 = vpop.permute.xlu0 %219
    %221 = vset.pattern.permute.xlu0 1
    %222 = vperm.xlu0 %221, %v81
    %v223 = vpop.permute.xlu0 %222
    %224 = vset.pattern.permute.xlu0 1
    %225 = vperm.xlu0 %224, %v82
    %v226 = vpop.permute.xlu0 %225
    %227 = vset.pattern.permute.xlu0 1
    %228 = vperm.xlu0 %227, %v83
    %v229 = vpop.permute.xlu0 %228
    %230 = vset.pattern.permute.xlu0 1
    %231 = vperm.xlu0 %230, %v84
    %v232 = vpop.permute.xlu0 %231
    %233 = vset.pattern.permute.xlu0 1
    %234 = vperm.xlu0 %233, %v85
    %v235 = vpop.permute.xlu0 %234
    %236 = vset.pattern.permute.xlu0 1
    %237 = vperm.xlu0 %236, %v86
    %v238 = vpop.permute.xlu0 %237
    %239 = vset.pattern.permute.xlu0 1
    %240 = vperm.xlu0 %239, %v87
    %v241 = vpop.permute.xlu0 %240
    %242 = vset.pattern.permute.xlu0 1
    %243 = vperm.xlu0 %242, %v88
    %v244 = vpop.permute.xlu0 %243
    %245 = vset.pattern.permute.xlu0 1
    %246 = vperm.xlu0 %245, %v89
    %v247 = vpop.permute.xlu0 %246
    %248 = vset.pattern.permute.xlu0 1
    %249 = vperm.xlu0 %248, %v90
    %v250 = vpop.permute.xlu0 %249
    %251 = vset.pattern.permute.xlu0 1
    %252 = vperm.xlu0 %251, %v91
    %v253 = vpop.permute.xlu0 %252
    %254 = vset.pattern.permute.xlu0 1
    %255 = vperm.xlu0 %254, %v92
    %v256 = vpop.permute.xlu0 %255
    %257 = vset.pattern.permute.xlu0 1
    %258 = vperm.xlu0 %257, %v93
    %v259 = vpop.permute.xlu0 %258
    %260 = vset.pattern.permute.xlu0 1
    %261 = vperm.xlu0 %260, %v94
    %v262 = vpop.permute.xlu0 %261
    %263 = vset.pattern.permute.xlu0 1
    %264 = vperm.xlu0 %263, %v95
    %v265 = vpop.permute.xlu0 %264
    %vm266 = vcmp.eq.s32.totalorder %v97, %v220
    %vm267 = vcmp.eq.s32.totalorder %v97, %v223
    %vm268 = vcmp.eq.s32.totalorder %v97, %v226
    %vm269 = vcmp.eq.s32.totalorder %v97, %v229
    %vm270 = vcmp.eq.s32.totalorder %v97, %v232
    %vm271 = vcmp.eq.s32.totalorder %v97, %v235
    %vm272 = vcmp.eq.s32.totalorder %v97, %v238
    %vm273 = vcmp.eq.s32.totalorder %v97, %v241
    %vm274 = vcmp.eq.s32.totalorder %v97, %v244
    %vm275 = vcmp.eq.s32.totalorder %v97, %v247
    %vm276 = vcmp.eq.s32.totalorder %v97, %v250
    %vm277 = vcmp.eq.s32.totalorder %v97, %v253
    %vm278 = vcmp.eq.s32.totalorder %v97, %v256
    %vm279 = vcmp.eq.s32.totalorder %v97, %v259
    %vm280 = vcmp.eq.s32.totalorder %v97, %v262
    %vm281 = vcmp.eq.s32.totalorder %v97, %v265
    %v282 = vsel %vm266, 1, 0
    %v283 = vsel %vm267, 1, 0
    %v284 = vsel %vm268, 1, 0
    %v285 = vsel %vm269, 1, 0
    %v286 = vsel %vm270, 1, 0
    %v287 = vsel %vm271, 1, 0
    %v288 = vsel %vm272, 1, 0
    %v289 = vsel %vm273, 1, 0
    %v290 = vsel %vm274, 1, 0
    %v291 = vsel %vm275, 1, 0
    %v292 = vsel %vm276, 1, 0
    %v293 = vsel %vm277, 1, 0
    %v294 = vsel %vm278, 1, 0
    %v295 = vsel %vm279, 1, 0
    %v296 = vsel %vm280, 1, 0
    %v297 = vsel %vm281, 1, 0
    %v298 = vcvt.s32.f32 %v282
    %v299 = vcvt.s32.f32 %v283
    %v300 = vcvt.s32.f32 %v284
    %v301 = vcvt.s32.f32 %v285
    %v302 = vcvt.s32.f32 %v286
    %v303 = vcvt.s32.f32 %v287
    %v304 = vcvt.s32.f32 %v288
    %v305 = vcvt.s32.f32 %v289
    %v306 = vcvt.s32.f32 %v290
    %v307 = vcvt.s32.f32 %v291
    %v308 = vcvt.s32.f32 %v292
    %v309 = vcvt.s32.f32 %v293
    %v310 = vcvt.s32.f32 %v294
    %v311 = vcvt.s32.f32 %v295
    %v312 = vcvt.s32.f32 %v296
    %v313 = vcvt.s32.f32 %v297
    %v314 = vpack.c.bf16 %v299, %v298
    %v315 = vpack.c.bf16 %v301, %v300
    %v316 = vpack.c.bf16 %v303, %v302
    %v317 = vpack.c.bf16 %v305, %v304
    %v318 = vpack.c.bf16 %v307, %v306
    %v319 = vpack.c.bf16 %v309, %v308
    %v320 = vpack.c.bf16 %v311, %v310
    %v321 = vpack.c.bf16 %v313, %v312
    %s322 = scalar_lea.vmem [#allocation2], 64
    %v323 = vld [vmem:[%s322] sm:$0xf]
    %v324 = vld [vmem:[%s322 + $0x4] sm:$0xf]
    %v325 = vld [vmem:[%s322 + $0x8] sm:$0xf]
    %v326 = vld [vmem:[%s322 + $0xc] sm:$0xf]
    %v327 = vld [vmem:[%s322 + $0x10] sm:$0xf]
    %v328 = vld [vmem:[%s322 + $0x14] sm:$0xf]
    %v329 = vld [vmem:[%s322 + $0x18] sm:$0xf]
    %v330 = vld [vmem:[%s322 + $0x1c] sm:$0xf]
    %v331 = vld [vmem:[%s322 + $0x20] sm:$0xf]
    %v332 = vld [vmem:[%s322 + $0x24] sm:$0xf]
    %v333 = vld [vmem:[%s322 + $0x28] sm:$0xf]
    %v334 = vld [vmem:[%s322 + $0x2c] sm:$0xf]
    %v335 = vld [vmem:[%s322 + $0x30] sm:$0xf]
    %v336 = vld [vmem:[%s322 + $0x34] sm:$0xf]
    %v337 = vld [vmem:[%s322 + $0x38] sm:$0xf]
    %v338 = vld [vmem:[%s322 + $0x3c] sm:$0xf]
    %v355 = vunpack.c.l.b16 %v323
    %v356 = vunpack.c.l.b16 %v324
    %v357 = vunpack.c.l.b16 %v325
    %v358 = vunpack.c.l.b16 %v326
    %v359 = vunpack.c.l.b16 %v327
    %v360 = vunpack.c.l.b16 %v328
    %v361 = vunpack.c.l.b16 %v329
    %v362 = vunpack.c.l.b16 %v330
    %v363 = vunpack.c.l.b16 %v331
    %v364 = vunpack.c.l.b16 %v332
    %v365 = vunpack.c.l.b16 %v333
    %v366 = vunpack.c.l.b16 %v334
    %v367 = vunpack.c.l.b16 %v335
    %v368 = vunpack.c.l.b16 %v336
    %v369 = vunpack.c.l.b16 %v337
    %v370 = vunpack.c.l.b16 %v338
    %v371 = vpack.c.b16 %v356, %v355
    %v372 = vpack.c.b16 %v358, %v357
    %v373 = vpack.c.b16 %v360, %v359
    %v374 = vpack.c.b16 %v362, %v361
    %v375 = vpack.c.b16 %v364, %v363
    %v376 = vpack.c.b16 %v366, %v365
    %v377 = vpack.c.b16 %v368, %v367
    %v378 = vpack.c.b16 %v370, %v369
    %387 = vmatpush.bf16.msra.mxu0 %v378
    %388 = vmatpush.bf16.msra.mxu0 %v377
    %389 = vmatpush.bf16.msra.mxu0 %v376
    %390 = vmatpush.bf16.msra.mxu0 %v375
    %391 = vmatpush.bf16.msra.mxu0 %v374
    %392 = vmatpush.bf16.msra.mxu0 %v373
    %393 = vmatpush.bf16.msra.mxu0 %v372
    %394 = vmatpush.bf16.msra.mxu0 %v371
    %395 = vmatmul.bf16.gmra.mxu0 %v314
    %v396 = vpop.f32.mrf.mxu0
    %v397 = vadd.f32 0.0, %v396
    %v398 = vpop.f32.mrf.mxu0
    %v399 = vadd.f32 0.0, %v398
    %400 = vmatmul.bf16.gmra.mxu0 %v315
    %v401 = vpop.f32.mrf.mxu0
    %v402 = vadd.f32 0.0, %v401
    %v403 = vpop.f32.mrf.mxu0
    %v404 = vadd.f32 0.0, %v403
    %405 = vmatmul.bf16.gmra.mxu0 %v316
    %v406 = vpop.f32.mrf.mxu0
    %v407 = vadd.f32 0.0, %v406
    %v408 = vpop.f32.mrf.mxu0
    %v409 = vadd.f32 0.0, %v408
    %410 = vmatmul.bf16.gmra.mxu0 %v317
    %v411 = vpop.f32.mrf.mxu0
    %v412 = vadd.f32 0.0, %v411
    %v413 = vpop.f32.mrf.mxu0
    %v414 = vadd.f32 0.0, %v413
    %415 = vmatmul.bf16.gmra.mxu0 %v318
    %v416 = vpop.f32.mrf.mxu0
    %v417 = vadd.f32 0.0, %v416
    %v418 = vpop.f32.mrf.mxu0
    %v419 = vadd.f32 0.0, %v418
    %420 = vmatmul.bf16.gmra.mxu0 %v319
    %v421 = vpop.f32.mrf.mxu0
    %v422 = vadd.f32 0.0, %v421
    %v423 = vpop.f32.mrf.mxu0
    %v424 = vadd.f32 0.0, %v423
    %425 = vmatmul.bf16.gmra.mxu0 %v320
    %v426 = vpop.f32.mrf.mxu0
    %v427 = vadd.f32 0.0, %v426
    %v428 = vpop.f32.mrf.mxu0
    %v429 = vadd.f32 0.0, %v428
    %430 = vmatmul.bf16.gmra.mxu0 %v321
    %v431 = vpop.f32.mrf.mxu0
    %v432 = vadd.f32 0.0, %v431
    %v433 = vpop.f32.mrf.mxu0
    %v434 = vadd.f32 0.0, %v433
    %435 = vdwg.mxu0
    %v452 = vunpack.c.l.b16 %v202
    %v453 = vunpack.c.l.b16 %v203
    %v454 = vunpack.c.l.b16 %v204
    %v455 = vunpack.c.l.b16 %v205
    %v456 = vunpack.c.l.b16 %v206
    %v457 = vunpack.c.l.b16 %v207
    %v458 = vunpack.c.l.b16 %v208
    %v459 = vunpack.c.l.b16 %v209
    %v460 = vunpack.c.l.b16 %v210
    %v461 = vunpack.c.l.b16 %v211
    %v462 = vunpack.c.l.b16 %v212
    %v463 = vunpack.c.l.b16 %v213
    %v464 = vunpack.c.l.b16 %v214
    %v465 = vunpack.c.l.b16 %v215
    %v466 = vunpack.c.l.b16 %v216
    %v467 = vunpack.c.l.b16 %v217
    %v468 = vpack.c.b16 %v453, %v452
    %v469 = vpack.c.b16 %v455, %v454
    %v470 = vpack.c.b16 %v457, %v456
    %v471 = vpack.c.b16 %v459, %v458
    %v472 = vpack.c.b16 %v461, %v460
    %v473 = vpack.c.b16 %v463, %v462
    %v474 = vpack.c.b16 %v465, %v464
    %v475 = vpack.c.b16 %v467, %v466
    %484 = vmatpush.bf16.msra.mxu0 %v475
    %485 = vmatpush.bf16.msra.mxu0 %v474
    %486 = vmatpush.bf16.msra.mxu0 %v473
    %487 = vmatpush.bf16.msra.mxu0 %v472
    %488 = vmatpush.bf16.msra.mxu0 %v471
    %489 = vmatpush.bf16.msra.mxu0 %v470
    %490 = vmatpush.bf16.msra.mxu0 %v469
    %491 = vmatpush.bf16.msra.mxu0 %v468
    %492 = vmatmul.bf16.gmra.mxu0 %v194
    %v493 = vpop.f32.mrf.mxu0
    %v494 = vadd.f32 %v397, %v493
    %v495 = vpop.f32.mrf.mxu0
    %v496 = vadd.f32 %v399, %v495
    %497 = vmatmul.bf16.gmra.mxu0 %v195
    %v498 = vpop.f32.mrf.mxu0
    %v499 = vadd.f32 %v402, %v498
    %v500 = vpop.f32.mrf.mxu0
    %v501 = vadd.f32 %v404, %v500
    %502 = vmatmul.bf16.gmra.mxu0 %v196
    %v503 = vpop.f32.mrf.mxu0
    %v504 = vadd.f32 %v407, %v503
    %v505 = vpop.f32.mrf.mxu0
    %v506 = vadd.f32 %v409, %v505
    %507 = vmatmul.bf16.gmra.mxu0 %v197
    %v508 = vpop.f32.mrf.mxu0
    %v509 = vadd.f32 %v412, %v508
    %v510 = vpop.f32.mrf.mxu0
    %v511 = vadd.f32 %v414, %v510
    %512 = vmatmul.bf16.gmra.mxu0 %v198
    %v513 = vpop.f32.mrf.mxu0
    %v514 = vadd.f32 %v417, %v513
    %v515 = vpop.f32.mrf.mxu0
    %v516 = vadd.f32 %v419, %v515
    %517 = vmatmul.bf16.gmra.mxu0 %v199
    %v518 = vpop.f32.mrf.mxu0
    %v519 = vadd.f32 %v422, %v518
    %v520 = vpop.f32.mrf.mxu0
    %v521 = vadd.f32 %v424, %v520
    %522 = vmatmul.bf16.gmra.mxu0 %v200
    %v523 = vpop.f32.mrf.mxu0
    %v524 = vadd.f32 %v427, %v523
    %v525 = vpop.f32.mrf.mxu0
    %v526 = vadd.f32 %v429, %v525
    %527 = vmatmul.bf16.gmra.mxu0 %v201
    %v528 = vpop.f32.mrf.mxu0
    %v529 = vadd.f32 %v432, %v528
    %v530 = vpop.f32.mrf.mxu0
    %v531 = vadd.f32 %v434, %v530
    %532 = vdwg.mxu0
    %533 = vset.pattern.permute.xlu0 2
    %534 = vperm.xlu0 %533, %v80
    %v535 = vpop.permute.xlu0 %534
    %536 = vset.pattern.permute.xlu0 2
    %537 = vperm.xlu0 %536, %v81
    %v538 = vpop.permute.xlu0 %537
    %539 = vset.pattern.permute.xlu0 2
    %540 = vperm.xlu0 %539, %v82
    %v541 = vpop.permute.xlu0 %540
    %542 = vset.pattern.permute.xlu0 2
    %543 = vperm.xlu0 %542, %v83
    %v544 = vpop.permute.xlu0 %543
    %545 = vset.pattern.permute.xlu0 2
    %546 = vperm.xlu0 %545, %v84
    %v547 = vpop.permute.xlu0 %546
    %548 = vset.pattern.permute.xlu0 2
    %549 = vperm.xlu0 %548, %v85
    %v550 = vpop.permute.xlu0 %549
    %551 = vset.pattern.permute.xlu0 2
    %552 = vperm.xlu0 %551, %v86
    %v553 = vpop.permute.xlu0 %552
    %554 = vset.pattern.permute.xlu0 2
    %555 = vperm.xlu0 %554, %v87
    %v556 = vpop.permute.xlu0 %555
    %557 = vset.pattern.permute.xlu0 2
    %558 = vperm.xlu0 %557, %v88
    %v559 = vpop.permute.xlu0 %558
    %560 = vset.pattern.permute.xlu0 2
    %561 = vperm.xlu0 %560, %v89
    %v562 = vpop.permute.xlu0 %561
    %563 = vset.pattern.permute.xlu0 2
    %564 = vperm.xlu0 %563, %v90
    %v565 = vpop.permute.xlu0 %564
    %566 = vset.pattern.permute.xlu0 2
    %567 = vperm.xlu0 %566, %v91
    %v568 = vpop.permute.xlu0 %567
    %569 = vset.pattern.permute.xlu0 2
    %570 = vperm.xlu0 %569, %v92
    %v571 = vpop.permute.xlu0 %570
    %572 = vset.pattern.permute.xlu0 2
    %573 = vperm.xlu0 %572, %v93
    %v574 = vpop.permute.xlu0 %573
    %575 = vset.pattern.permute.xlu0 2
    %576 = vperm.xlu0 %575, %v94
    %v577 = vpop.permute.xlu0 %576
    %578 = vset.pattern.permute.xlu0 2
    %579 = vperm.xlu0 %578, %v95
    %v580 = vpop.permute.xlu0 %579
    %vm581 = vcmp.eq.s32.totalorder %v97, %v535
    %vm582 = vcmp.eq.s32.totalorder %v97, %v538
    %vm583 = vcmp.eq.s32.totalorder %v97, %v541
    %vm584 = vcmp.eq.s32.totalorder %v97, %v544
    %vm585 = vcmp.eq.s32.totalorder %v97, %v547
    %vm586 = vcmp.eq.s32.totalorder %v97, %v550
    %vm587 = vcmp.eq.s32.totalorder %v97, %v553
    %vm588 = vcmp.eq.s32.totalorder %v97, %v556
    %vm589 = vcmp.eq.s32.totalorder %v97, %v559
    %vm590 = vcmp.eq.s32.totalorder %v97, %v562
    %vm591 = vcmp.eq.s32.totalorder %v97, %v565
    %vm592 = vcmp.eq.s32.totalorder %v97, %v568
    %vm593 = vcmp.eq.s32.totalorder %v97, %v571
    %vm594 = vcmp.eq.s32.totalorder %v97, %v574
    %vm595 = vcmp.eq.s32.totalorder %v97, %v577
    %vm596 = vcmp.eq.s32.totalorder %v97, %v580
    %v597 = vsel %vm581, 1, 0
    %v598 = vsel %vm582, 1, 0
    %v599 = vsel %vm583, 1, 0
    %v600 = vsel %vm584, 1, 0
    %v601 = vsel %vm585, 1, 0
    %v602 = vsel %vm586, 1, 0
    %v603 = vsel %vm587, 1, 0
    %v604 = vsel %vm588, 1, 0
    %v605 = vsel %vm589, 1, 0
    %v606 = vsel %vm590, 1, 0
    %v607 = vsel %vm591, 1, 0
    %v608 = vsel %vm592, 1, 0
    %v609 = vsel %vm593, 1, 0
    %v610 = vsel %vm594, 1, 0
    %v611 = vsel %vm595, 1, 0
    %v612 = vsel %vm596, 1, 0
    %v613 = vcvt.s32.f32 %v597
    %v614 = vcvt.s32.f32 %v598
    %v615 = vcvt.s32.f32 %v599
    %v616 = vcvt.s32.f32 %v600
    %v617 = vcvt.s32.f32 %v601
    %v618 = vcvt.s32.f32 %v602
    %v619 = vcvt.s32.f32 %v603
    %v620 = vcvt.s32.f32 %v604
    %v621 = vcvt.s32.f32 %v605
    %v622 = vcvt.s32.f32 %v606
    %v623 = vcvt.s32.f32 %v607
    %v624 = vcvt.s32.f32 %v608
    %v625 = vcvt.s32.f32 %v609
    %v626 = vcvt.s32.f32 %v610
    %v627 = vcvt.s32.f32 %v611
    %v628 = vcvt.s32.f32 %v612
    %v629 = vpack.c.bf16 %v614, %v613
    %v630 = vpack.c.bf16 %v616, %v615
    %v631 = vpack.c.bf16 %v618, %v617
    %v632 = vpack.c.bf16 %v620, %v619
    %v633 = vpack.c.bf16 %v622, %v621
    %v634 = vpack.c.bf16 %v624, %v623
    %v635 = vpack.c.bf16 %v626, %v625
    %v636 = vpack.c.bf16 %v628, %v627
    %s637 = scalar_lea.vmem [#allocation2], 128
    %v638 = vld [vmem:[%s637] sm:$0xf]
    %v639 = vld [vmem:[%s637 + $0x4] sm:$0xf]
    %v640 = vld [vmem:[%s637 + $0x8] sm:$0xf]
    %v641 = vld [vmem:[%s637 + $0xc] sm:$0xf]
    %v642 = vld [vmem:[%s637 + $0x10] sm:$0xf]
    %v643 = vld [vmem:[%s637 + $0x14] sm:$0xf]
    %v644 = vld [vmem:[%s637 + $0x18] sm:$0xf]
    %v645 = vld [vmem:[%s637 + $0x1c] sm:$0xf]
    %v646 = vld [vmem:[%s637 + $0x20] sm:$0xf]
    %v647 = vld [vmem:[%s637 + $0x24] sm:$0xf]
    %v648 = vld [vmem:[%s637 + $0x28] sm:$0xf]
    %v649 = vld [vmem:[%s637 + $0x2c] sm:$0xf]
    %v650 = vld [vmem:[%s637 + $0x30] sm:$0xf]
    %v651 = vld [vmem:[%s637 + $0x34] sm:$0xf]
    %v652 = vld [vmem:[%s637 + $0x38] sm:$0xf]
    %v653 = vld [vmem:[%s637 + $0x3c] sm:$0xf]
    %v670 = vunpack.c.l.b16 %v638
    %v671 = vunpack.c.l.b16 %v639
    %v672 = vunpack.c.l.b16 %v640
    %v673 = vunpack.c.l.b16 %v641
    %v674 = vunpack.c.l.b16 %v642
    %v675 = vunpack.c.l.b16 %v643
    %v676 = vunpack.c.l.b16 %v644
    %v677 = vunpack.c.l.b16 %v645
    %v678 = vunpack.c.l.b16 %v646
    %v679 = vunpack.c.l.b16 %v647
    %v680 = vunpack.c.l.b16 %v648
    %v681 = vunpack.c.l.b16 %v649
    %v682 = vunpack.c.l.b16 %v650
    %v683 = vunpack.c.l.b16 %v651
    %v684 = vunpack.c.l.b16 %v652
    %v685 = vunpack.c.l.b16 %v653
    %v686 = vpack.c.b16 %v671, %v670
    %v687 = vpack.c.b16 %v673, %v672
    %v688 = vpack.c.b16 %v675, %v674
    %v689 = vpack.c.b16 %v677, %v676
    %v690 = vpack.c.b16 %v679, %v678
    %v691 = vpack.c.b16 %v681, %v680
    %v692 = vpack.c.b16 %v683, %v682
    %v693 = vpack.c.b16 %v685, %v684
    %702 = vmatpush.bf16.msra.mxu0 %v693
    %703 = vmatpush.bf16.msra.mxu0 %v692
    %704 = vmatpush.bf16.msra.mxu0 %v691
    %705 = vmatpush.bf16.msra.mxu0 %v690
    %706 = vmatpush.bf16.msra.mxu0 %v689
    %707 = vmatpush.bf16.msra.mxu0 %v688
    %708 = vmatpush.bf16.msra.mxu0 %v687
    %709 = vmatpush.bf16.msra.mxu0 %v686
    %710 = vmatmul.bf16.gmra.mxu0 %v629
    %v711 = vpop.f32.mrf.mxu0
    %v712 = vadd.f32 0.0, %v711
    %v713 = vpop.f32.mrf.mxu0
    %v714 = vadd.f32 0.0, %v713
    %715 = vmatmul.bf16.gmra.mxu0 %v630
    %v716 = vpop.f32.mrf.mxu0
    %v717 = vadd.f32 0.0, %v716
    %v718 = vpop.f32.mrf.mxu0
    %v719 = vadd.f32 0.0, %v718
    %720 = vmatmul.bf16.gmra.mxu0 %v631
    %v721 = vpop.f32.mrf.mxu0
    %v722 = vadd.f32 0.0, %v721
    %v723 = vpop.f32.mrf.mxu0
    %v724 = vadd.f32 0.0, %v723
    %725 = vmatmul.bf16.gmra.mxu0 %v632
    %v726 = vpop.f32.mrf.mxu0
    %v727 = vadd.f32 0.0, %v726
    %v728 = vpop.f32.mrf.mxu0
    %v729 = vadd.f32 0.0, %v728
    %730 = vmatmul.bf16.gmra.mxu0 %v633
    %v731 = vpop.f32.mrf.mxu0
    %v732 = vadd.f32 0.0, %v731
    %v733 = vpop.f32.mrf.mxu0
    %v734 = vadd.f32 0.0, %v733
    %735 = vmatmul.bf16.gmra.mxu0 %v634
    %v736 = vpop.f32.mrf.mxu0
    %v737 = vadd.f32 0.0, %v736
    %v738 = vpop.f32.mrf.mxu0
    %v739 = vadd.f32 0.0, %v738
    %740 = vmatmul.bf16.gmra.mxu0 %v635
    %v741 = vpop.f32.mrf.mxu0
    %v742 = vadd.f32 0.0, %v741
    %v743 = vpop.f32.mrf.mxu0
    %v744 = vadd.f32 0.0, %v743
    %745 = vmatmul.bf16.gmra.mxu0 %v636
    %v746 = vpop.f32.mrf.mxu0
    %v747 = vadd.f32 0.0, %v746
    %v748 = vpop.f32.mrf.mxu0
    %v749 = vadd.f32 0.0, %v748
    %750 = vdwg.mxu0
    %v751 = vadd.f32 %v494, %v712
    %v752 = vadd.f32 %v496, %v714
    %v753 = vadd.f32 %v499, %v717
    %v754 = vadd.f32 %v501, %v719
    %v755 = vadd.f32 %v504, %v722
    %v756 = vadd.f32 %v506, %v724
    %v757 = vadd.f32 %v509, %v727
    %v758 = vadd.f32 %v511, %v729
    %v759 = vadd.f32 %v514, %v732
    %v760 = vadd.f32 %v516, %v734
    %v761 = vadd.f32 %v519, %v737
    %v762 = vadd.f32 %v521, %v739
    %v763 = vadd.f32 %v524, %v742
    %v764 = vadd.f32 %v526, %v744
    %v765 = vadd.f32 %v529, %v747
    %v766 = vadd.f32 %v531, %v749
    %767 = vset.pattern.permute.xlu0 3
    %768 = vperm.xlu0 %767, %v80
    %v769 = vpop.permute.xlu0 %768
    %770 = vset.pattern.permute.xlu0 3
    %771 = vperm.xlu0 %770, %v81
    %v772 = vpop.permute.xlu0 %771
    %773 = vset.pattern.permute.xlu0 3
    %774 = vperm.xlu0 %773, %v82
    %v775 = vpop.permute.xlu0 %774
    %776 = vset.pattern.permute.xlu0 3
    %777 = vperm.xlu0 %776, %v83
    %v778 = vpop.permute.xlu0 %777
    %779 = vset.pattern.permute.xlu0 3
    %780 = vperm.xlu0 %779, %v84
    %v781 = vpop.permute.xlu0 %780
    %782 = vset.pattern.permute.xlu0 3
    %783 = vperm.xlu0 %782, %v85
    %v784 = vpop.permute.xlu0 %783
    %785 = vset.pattern.permute.xlu0 3
    %786 = vperm.xlu0 %785, %v86
    %v787 = vpop.permute.xlu0 %786
    %788 = vset.pattern.permute.xlu0 3
    %789 = vperm.xlu0 %788, %v87
    %v790 = vpop.permute.xlu0 %789
    %791 = vset.pattern.permute.xlu0 3
    %792 = vperm.xlu0 %791, %v88
    %v793 = vpop.permute.xlu0 %792
    %794 = vset.pattern.permute.xlu0 3
    %795 = vperm.xlu0 %794, %v89
    %v796 = vpop.permute.xlu0 %795
    %797 = vset.pattern.permute.xlu0 3
    %798 = vperm.xlu0 %797, %v90
    %v799 = vpop.permute.xlu0 %798
    %800 = vset.pattern.permute.xlu0 3
    %801 = vperm.xlu0 %800, %v91
    %v802 = vpop.permute.xlu0 %801
    %803 = vset.pattern.permute.xlu0 3
    %804 = vperm.xlu0 %803, %v92
    %v805 = vpop.permute.xlu0 %804
    %806 = vset.pattern.permute.xlu0 3
    %807 = vperm.xlu0 %806, %v93
    %v808 = vpop.permute.xlu0 %807
    %809 = vset.pattern.permute.xlu0 3
    %810 = vperm.xlu0 %809, %v94
    %v811 = vpop.permute.xlu0 %810
    %812 = vset.pattern.permute.xlu0 3
    %813 = vperm.xlu0 %812, %v95
    %v814 = vpop.permute.xlu0 %813
    %vm815 = vcmp.eq.s32.totalorder %v97, %v769
    %vm816 = vcmp.eq.s32.totalorder %v97, %v772
    %vm817 = vcmp.eq.s32.totalorder %v97, %v775
    %vm818 = vcmp.eq.s32.totalorder %v97, %v778
    %vm819 = vcmp.eq.s32.totalorder %v97, %v781
    %vm820 = vcmp.eq.s32.totalorder %v97, %v784
    %vm821 = vcmp.eq.s32.totalorder %v97, %v787
    %vm822 = vcmp.eq.s32.totalorder %v97, %v790
    %vm823 = vcmp.eq.s32.totalorder %v97, %v793
    %vm824 = vcmp.eq.s32.totalorder %v97, %v796
    %vm825 = vcmp.eq.s32.totalorder %v97, %v799
    %vm826 = vcmp.eq.s32.totalorder %v97, %v802
    %vm827 = vcmp.eq.s32.totalorder %v97, %v805
    %vm828 = vcmp.eq.s32.totalorder %v97, %v808
    %vm829 = vcmp.eq.s32.totalorder %v97, %v811
    %vm830 = vcmp.eq.s32.totalorder %v97, %v814
    %v831 = vsel %vm815, 1, 0
    %v832 = vsel %vm816, 1, 0
    %v833 = vsel %vm817, 1, 0
    %v834 = vsel %vm818, 1, 0
    %v835 = vsel %vm819, 1, 0
    %v836 = vsel %vm820, 1, 0
    %v837 = vsel %vm821, 1, 0
    %v838 = vsel %vm822, 1, 0
    %v839 = vsel %vm823, 1, 0
    %v840 = vsel %vm824, 1, 0
    %v841 = vsel %vm825, 1, 0
    %v842 = vsel %vm826, 1, 0
    %v843 = vsel %vm827, 1, 0
    %v844 = vsel %vm828, 1, 0
    %v845 = vsel %vm829, 1, 0
    %v846 = vsel %vm830, 1, 0
    %v847 = vcvt.s32.f32 %v831
    %v848 = vcvt.s32.f32 %v832
    %v849 = vcvt.s32.f32 %v833
    %v850 = vcvt.s32.f32 %v834
    %v851 = vcvt.s32.f32 %v835
    %v852 = vcvt.s32.f32 %v836
    %v853 = vcvt.s32.f32 %v837
    %v854 = vcvt.s32.f32 %v838
    %v855 = vcvt.s32.f32 %v839
    %v856 = vcvt.s32.f32 %v840
    %v857 = vcvt.s32.f32 %v841
    %v858 = vcvt.s32.f32 %v842
    %v859 = vcvt.s32.f32 %v843
    %v860 = vcvt.s32.f32 %v844
    %v861 = vcvt.s32.f32 %v845
    %v862 = vcvt.s32.f32 %v846
    %v863 = vpack.c.bf16 %v848, %v847
    %v864 = vpack.c.bf16 %v850, %v849
    %v865 = vpack.c.bf16 %v852, %v851
    %v866 = vpack.c.bf16 %v854, %v853
    %v867 = vpack.c.bf16 %v856, %v855
    %v868 = vpack.c.bf16 %v858, %v857
    %v869 = vpack.c.bf16 %v860, %v859
    %v870 = vpack.c.bf16 %v862, %v861
    %s871 = scalar_lea.vmem [#allocation2], 192
    %v872 = vld [vmem:[%s871] sm:$0xf]
    %v873 = vld [vmem:[%s871 + $0x4] sm:$0xf]
    %v874 = vld [vmem:[%s871 + $0x8] sm:$0xf]
    %v875 = vld [vmem:[%s871 + $0xc] sm:$0xf]
    %v876 = vld [vmem:[%s871 + $0x10] sm:$0xf]
    %v877 = vld [vmem:[%s871 + $0x14] sm:$0xf]
    %v878 = vld [vmem:[%s871 + $0x18] sm:$0xf]
    %v879 = vld [vmem:[%s871 + $0x1c] sm:$0xf]
    %v880 = vld [vmem:[%s871 + $0x20] sm:$0xf]
    %v881 = vld [vmem:[%s871 + $0x24] sm:$0xf]
    %v882 = vld [vmem:[%s871 + $0x28] sm:$0xf]
    %v883 = vld [vmem:[%s871 + $0x2c] sm:$0xf]
    %v884 = vld [vmem:[%s871 + $0x30] sm:$0xf]
    %v885 = vld [vmem:[%s871 + $0x34] sm:$0xf]
    %v886 = vld [vmem:[%s871 + $0x38] sm:$0xf]
    %v887 = vld [vmem:[%s871 + $0x3c] sm:$0xf]
    %v904 = vunpack.c.l.b16 %v872
    %v905 = vunpack.c.l.b16 %v873
    %v906 = vunpack.c.l.b16 %v874
    %v907 = vunpack.c.l.b16 %v875
    %v908 = vunpack.c.l.b16 %v876
    %v909 = vunpack.c.l.b16 %v877
    %v910 = vunpack.c.l.b16 %v878
    %v911 = vunpack.c.l.b16 %v879
    %v912 = vunpack.c.l.b16 %v880
    %v913 = vunpack.c.l.b16 %v881
    %v914 = vunpack.c.l.b16 %v882
    %v915 = vunpack.c.l.b16 %v883
    %v916 = vunpack.c.l.b16 %v884
    %v917 = vunpack.c.l.b16 %v885
    %v918 = vunpack.c.l.b16 %v886
    %v919 = vunpack.c.l.b16 %v887
    %v920 = vpack.c.b16 %v905, %v904
    %v921 = vpack.c.b16 %v907, %v906
    %v922 = vpack.c.b16 %v909, %v908
    %v923 = vpack.c.b16 %v911, %v910
    %v924 = vpack.c.b16 %v913, %v912
    %v925 = vpack.c.b16 %v915, %v914
    %v926 = vpack.c.b16 %v917, %v916
    %v927 = vpack.c.b16 %v919, %v918
    %936 = vmatpush.bf16.msra.mxu0 %v927
    %937 = vmatpush.bf16.msra.mxu0 %v926
    %938 = vmatpush.bf16.msra.mxu0 %v925
    %939 = vmatpush.bf16.msra.mxu0 %v924
    %940 = vmatpush.bf16.msra.mxu0 %v923
    %941 = vmatpush.bf16.msra.mxu0 %v922
    %942 = vmatpush.bf16.msra.mxu0 %v921
    %943 = vmatpush.bf16.msra.mxu0 %v920
    %944 = vmatmul.bf16.gmra.mxu0 %v863
    %v945 = vpop.f32.mrf.mxu0
    %v946 = vadd.f32 0.0, %v945
    %v947 = vpop.f32.mrf.mxu0
    %v948 = vadd.f32 0.0, %v947
    %949 = vmatmul.bf16.gmra.mxu0 %v864
    %v950 = vpop.f32.mrf.mxu0
    %v951 = vadd.f32 0.0, %v950
    %v952 = vpop.f32.mrf.mxu0
    %v953 = vadd.f32 0.0, %v952
    %954 = vmatmul.bf16.gmra.mxu0 %v865
    %v955 = vpop.f32.mrf.mxu0
    %v956 = vadd.f32 0.0, %v955
    %v957 = vpop.f32.mrf.mxu0
    %v958 = vadd.f32 0.0, %v957
    %959 = vmatmul.bf16.gmra.mxu0 %v866
    %v960 = vpop.f32.mrf.mxu0
    %v961 = vadd.f32 0.0, %v960
    %v962 = vpop.f32.mrf.mxu0
    %v963 = vadd.f32 0.0, %v962
    %964 = vmatmul.bf16.gmra.mxu0 %v867
    %v965 = vpop.f32.mrf.mxu0
    %v966 = vadd.f32 0.0, %v965
    %v967 = vpop.f32.mrf.mxu0
    %v968 = vadd.f32 0.0, %v967
    %969 = vmatmul.bf16.gmra.mxu0 %v868
    %v970 = vpop.f32.mrf.mxu0
    %v971 = vadd.f32 0.0, %v970
    %v972 = vpop.f32.mrf.mxu0
    %v973 = vadd.f32 0.0, %v972
    %974 = vmatmul.bf16.gmra.mxu0 %v869
    %v975 = vpop.f32.mrf.mxu0
    %v976 = vadd.f32 0.0, %v975
    %v977 = vpop.f32.mrf.mxu0
    %v978 = vadd.f32 0.0, %v977
    %979 = vmatmul.bf16.gmra.mxu0 %v870
    %v980 = vpop.f32.mrf.mxu0
    %v981 = vadd.f32 0.0, %v980
    %v982 = vpop.f32.mrf.mxu0
    %v983 = vadd.f32 0.0, %v982
    %984 = vdwg.mxu0
    %v985 = vadd.f32 %v751, %v946
    %v986 = vadd.f32 %v752, %v948
    %v987 = vadd.f32 %v753, %v951
    %v988 = vadd.f32 %v754, %v953
    %v989 = vadd.f32 %v755, %v956
    %v990 = vadd.f32 %v756, %v958
    %v991 = vadd.f32 %v757, %v961
    %v992 = vadd.f32 %v758, %v963
    %v993 = vadd.f32 %v759, %v966
    %v994 = vadd.f32 %v760, %v968
    %v995 = vadd.f32 %v761, %v971
    %v996 = vadd.f32 %v762, %v973
    %v997 = vadd.f32 %v763, %v976
    %v998 = vadd.f32 %v764, %v978
    %v999 = vadd.f32 %v765, %v981
    %v1000 = vadd.f32 %v766, %v983
    %1001 = vset.pattern.permute.xlu0 4
    %1002 = vperm.xlu0 %1001, %v80
    %v1003 = vpop.permute.xlu0 %1002
    %1004 = vset.pattern.permute.xlu0 4
    %1005 = vperm.xlu0 %1004, %v81
    %v1006 = vpop.permute.xlu0 %1005
    %1007 = vset.pattern.permute.xlu0 4
    %1008 = vperm.xlu0 %1007, %v82
    %v1009 = vpop.permute.xlu0 %1008
    %1010 = vset.pattern.permute.xlu0 4
    %1011 = vperm.xlu0 %1010, %v83
    %v1012 = vpop.permute.xlu0 %1011
    %1013 = vset.pattern.permute.xlu0 4
    %1014 = vperm.xlu0 %1013, %v84
    %v1015 = vpop.permute.xlu0 %1014
    %1016 = vset.pattern.permute.xlu0 4
    %1017 = vperm.xlu0 %1016, %v85
    %v1018 = vpop.permute.xlu0 %1017
    %1019 = vset.pattern.permute.xlu0 4
    %1020 = vperm.xlu0 %1019, %v86
    %v1021 = vpop.permute.xlu0 %1020
    %1022 = vset.pattern.permute.xlu0 4
    %1023 = vperm.xlu0 %1022, %v87
    %v1024 = vpop.permute.xlu0 %1023
    %1025 = vset.pattern.permute.xlu0 4
    %1026 = vperm.xlu0 %1025, %v88
    %v1027 = vpop.permute.xlu0 %1026
    %1028 = vset.pattern.permute.xlu0 4
    %1029 = vperm.xlu0 %1028, %v89
    %v1030 = vpop.permute.xlu0 %1029
    %1031 = vset.pattern.permute.xlu0 4
    %1032 = vperm.xlu0 %1031, %v90
    %v1033 = vpop.permute.xlu0 %1032
    %1034 = vset.pattern.permute.xlu0 4
    %1035 = vperm.xlu0 %1034, %v91
    %v1036 = vpop.permute.xlu0 %1035
    %1037 = vset.pattern.permute.xlu0 4
    %1038 = vperm.xlu0 %1037, %v92
    %v1039 = vpop.permute.xlu0 %1038
    %1040 = vset.pattern.permute.xlu0 4
    %1041 = vperm.xlu0 %1040, %v93
    %v1042 = vpop.permute.xlu0 %1041
    %1043 = vset.pattern.permute.xlu0 4
    %1044 = vperm.xlu0 %1043, %v94
    %v1045 = vpop.permute.xlu0 %1044
    %1046 = vset.pattern.permute.xlu0 4
    %1047 = vperm.xlu0 %1046, %v95
    %v1048 = vpop.permute.xlu0 %1047
    %vm1049 = vcmp.eq.s32.totalorder %v97, %v1003
    %vm1050 = vcmp.eq.s32.totalorder %v97, %v1006
    %vm1051 = vcmp.eq.s32.totalorder %v97, %v1009
    %vm1052 = vcmp.eq.s32.totalorder %v97, %v1012
    %vm1053 = vcmp.eq.s32.totalorder %v97, %v1015
    %vm1054 = vcmp.eq.s32.totalorder %v97, %v1018
    %vm1055 = vcmp.eq.s32.totalorder %v97, %v1021
    %vm1056 = vcmp.eq.s32.totalorder %v97, %v1024
    %vm1057 = vcmp.eq.s32.totalorder %v97, %v1027
    %vm1058 = vcmp.eq.s32.totalorder %v97, %v1030
    %vm1059 = vcmp.eq.s32.totalorder %v97, %v1033
    %vm1060 = vcmp.eq.s32.totalorder %v97, %v1036
    %vm1061 = vcmp.eq.s32.totalorder %v97, %v1039
    %vm1062 = vcmp.eq.s32.totalorder %v97, %v1042
    %vm1063 = vcmp.eq.s32.totalorder %v97, %v1045
    %vm1064 = vcmp.eq.s32.totalorder %v97, %v1048
    %v1065 = vsel %vm1049, 1, 0
    %v1066 = vsel %vm1050, 1, 0
    %v1067 = vsel %vm1051, 1, 0
    %v1068 = vsel %vm1052, 1, 0
    %v1069 = vsel %vm1053, 1, 0
    %v1070 = vsel %vm1054, 1, 0
    %v1071 = vsel %vm1055, 1, 0
    %v1072 = vsel %vm1056, 1, 0
    %v1073 = vsel %vm1057, 1, 0
    %v1074 = vsel %vm1058, 1, 0
    %v1075 = vsel %vm1059, 1, 0
    %v1076 = vsel %vm1060, 1, 0
    %v1077 = vsel %vm1061, 1, 0
    %v1078 = vsel %vm1062, 1, 0
    %v1079 = vsel %vm1063, 1, 0
    %v1080 = vsel %vm1064, 1, 0
    %v1081 = vcvt.s32.f32 %v1065
    %v1082 = vcvt.s32.f32 %v1066
    %v1083 = vcvt.s32.f32 %v1067
    %v1084 = vcvt.s32.f32 %v1068
    %v1085 = vcvt.s32.f32 %v1069
    %v1086 = vcvt.s32.f32 %v1070
    %v1087 = vcvt.s32.f32 %v1071
    %v1088 = vcvt.s32.f32 %v1072
    %v1089 = vcvt.s32.f32 %v1073
    %v1090 = vcvt.s32.f32 %v1074
    %v1091 = vcvt.s32.f32 %v1075
    %v1092 = vcvt.s32.f32 %v1076
    %v1093 = vcvt.s32.f32 %v1077
    %v1094 = vcvt.s32.f32 %v1078
    %v1095 = vcvt.s32.f32 %v1079
    %v1096 = vcvt.s32.f32 %v1080
    %v1097 = vpack.c.bf16 %v1082, %v1081
    %v1098 = vpack.c.bf16 %v1084, %v1083
    %v1099 = vpack.c.bf16 %v1086, %v1085
    %v1100 = vpack.c.bf16 %v1088, %v1087
    %v1101 = vpack.c.bf16 %v1090, %v1089
    %v1102 = vpack.c.bf16 %v1092, %v1091
    %v1103 = vpack.c.bf16 %v1094, %v1093
    %v1104 = vpack.c.bf16 %v1096, %v1095
    %s1105 = scalar_lea.vmem [#allocation2], 256
    %v1106 = vld [vmem:[%s1105] sm:$0xf]
    %v1107 = vld [vmem:[%s1105 + $0x4] sm:$0xf]
    %v1108 = vld [vmem:[%s1105 + $0x8] sm:$0xf]
    %v1109 = vld [vmem:[%s1105 + $0xc] sm:$0xf]
    %v1110 = vld [vmem:[%s1105 + $0x10] sm:$0xf]
    %v1111 = vld [vmem:[%s1105 + $0x14] sm:$0xf]
    %v1112 = vld [vmem:[%s1105 + $0x18] sm:$0xf]
    %v1113 = vld [vmem:[%s1105 + $0x1c] sm:$0xf]
    %v1114 = vld [vmem:[%s1105 + $0x20] sm:$0xf]
    %v1115 = vld [vmem:[%s1105 + $0x24] sm:$0xf]
    %v1116 = vld [vmem:[%s1105 + $0x28] sm:$0xf]
    %v1117 = vld [vmem:[%s1105 + $0x2c] sm:$0xf]
    %v1118 = vld [vmem:[%s1105 + $0x30] sm:$0xf]
    %v1119 = vld [vmem:[%s1105 + $0x34] sm:$0xf]
    %v1120 = vld [vmem:[%s1105 + $0x38] sm:$0xf]
    %v1121 = vld [vmem:[%s1105 + $0x3c] sm:$0xf]
    %v1138 = vunpack.c.l.b16 %v1106
    %v1139 = vunpack.c.l.b16 %v1107
    %v1140 = vunpack.c.l.b16 %v1108
    %v1141 = vunpack.c.l.b16 %v1109
    %v1142 = vunpack.c.l.b16 %v1110
    %v1143 = vunpack.c.l.b16 %v1111
    %v1144 = vunpack.c.l.b16 %v1112
    %v1145 = vunpack.c.l.b16 %v1113
    %v1146 = vunpack.c.l.b16 %v1114
    %v1147 = vunpack.c.l.b16 %v1115
    %v1148 = vunpack.c.l.b16 %v1116
    %v1149 = vunpack.c.l.b16 %v1117
    %v1150 = vunpack.c.l.b16 %v1118
    %v1151 = vunpack.c.l.b16 %v1119
    %v1152 = vunpack.c.l.b16 %v1120
    %v1153 = vunpack.c.l.b16 %v1121
    %v1154 = vpack.c.b16 %v1139, %v1138
    %v1155 = vpack.c.b16 %v1141, %v1140
    %v1156 = vpack.c.b16 %v1143, %v1142
    %v1157 = vpack.c.b16 %v1145, %v1144
    %v1158 = vpack.c.b16 %v1147, %v1146
    %v1159 = vpack.c.b16 %v1149, %v1148
    %v1160 = vpack.c.b16 %v1151, %v1150
    %v1161 = vpack.c.b16 %v1153, %v1152
    %1170 = vmatpush.bf16.msra.mxu0 %v1161
    %1171 = vmatpush.bf16.msra.mxu0 %v1160
    %1172 = vmatpush.bf16.msra.mxu0 %v1159
    %1173 = vmatpush.bf16.msra.mxu0 %v1158
    %1174 = vmatpush.bf16.msra.mxu0 %v1157
    %1175 = vmatpush.bf16.msra.mxu0 %v1156
    %1176 = vmatpush.bf16.msra.mxu0 %v1155
    %1177 = vmatpush.bf16.msra.mxu0 %v1154
    %1178 = vmatmul.bf16.gmra.mxu0 %v1097
    %v1179 = vpop.f32.mrf.mxu0
    %v1180 = vadd.f32 0.0, %v1179
    %v1181 = vpop.f32.mrf.mxu0
    %v1182 = vadd.f32 0.0, %v1181
    %1183 = vmatmul.bf16.gmra.mxu0 %v1098
    %v1184 = vpop.f32.mrf.mxu0
    %v1185 = vadd.f32 0.0, %v1184
    %v1186 = vpop.f32.mrf.mxu0
    %v1187 = vadd.f32 0.0, %v1186
    %1188 = vmatmul.bf16.gmra.mxu0 %v1099
    %v1189 = vpop.f32.mrf.mxu0
    %v1190 = vadd.f32 0.0, %v1189
    %v1191 = vpop.f32.mrf.mxu0
    %v1192 = vadd.f32 0.0, %v1191
    %1193 = vmatmul.bf16.gmra.mxu0 %v1100
    %v1194 = vpop.f32.mrf.mxu0
    %v1195 = vadd.f32 0.0, %v1194
    %v1196 = vpop.f32.mrf.mxu0
    %v1197 = vadd.f32 0.0, %v1196
    %1198 = vmatmul.bf16.gmra.mxu0 %v1101
    %v1199 = vpop.f32.mrf.mxu0
    %v1200 = vadd.f32 0.0, %v1199
    %v1201 = vpop.f32.mrf.mxu0
    %v1202 = vadd.f32 0.0, %v1201
    %1203 = vmatmul.bf16.gmra.mxu0 %v1102
    %v1204 = vpop.f32.mrf.mxu0
    %v1205 = vadd.f32 0.0, %v1204
    %v1206 = vpop.f32.mrf.mxu0
    %v1207 = vadd.f32 0.0, %v1206
    %1208 = vmatmul.bf16.gmra.mxu0 %v1103
    %v1209 = vpop.f32.mrf.mxu0
    %v1210 = vadd.f32 0.0, %v1209
    %v1211 = vpop.f32.mrf.mxu0
    %v1212 = vadd.f32 0.0, %v1211
    %1213 = vmatmul.bf16.gmra.mxu0 %v1104
    %v1214 = vpop.f32.mrf.mxu0
    %v1215 = vadd.f32 0.0, %v1214
    %v1216 = vpop.f32.mrf.mxu0
    %v1217 = vadd.f32 0.0, %v1216
    %1218 = vdwg.mxu0
    %v1219 = vadd.f32 %v985, %v1180
    %v1220 = vadd.f32 %v986, %v1182
    %v1221 = vadd.f32 %v987, %v1185
    %v1222 = vadd.f32 %v988, %v1187
    %v1223 = vadd.f32 %v989, %v1190
    %v1224 = vadd.f32 %v990, %v1192
    %v1225 = vadd.f32 %v991, %v1195
    %v1226 = vadd.f32 %v992, %v1197
    %v1227 = vadd.f32 %v993, %v1200
    %v1228 = vadd.f32 %v994, %v1202
    %v1229 = vadd.f32 %v995, %v1205
    %v1230 = vadd.f32 %v996, %v1207
    %v1231 = vadd.f32 %v997, %v1210
    %v1232 = vadd.f32 %v998, %v1212
    %v1233 = vadd.f32 %v999, %v1215
    %v1234 = vadd.f32 %v1000, %v1217
    %1235 = vset.pattern.permute.xlu0 5
    %1236 = vperm.xlu0 %1235, %v80
    %v1237 = vpop.permute.xlu0 %1236
    %1238 = vset.pattern.permute.xlu0 5
    %1239 = vperm.xlu0 %1238, %v81
    %v1240 = vpop.permute.xlu0 %1239
    %1241 = vset.pattern.permute.xlu0 5
    %1242 = vperm.xlu0 %1241, %v82
    %v1243 = vpop.permute.xlu0 %1242
    %1244 = vset.pattern.permute.xlu0 5
    %1245 = vperm.xlu0 %1244, %v83
    %v1246 = vpop.permute.xlu0 %1245
    %1247 = vset.pattern.permute.xlu0 5
    %1248 = vperm.xlu0 %1247, %v84
    %v1249 = vpop.permute.xlu0 %1248
    %1250 = vset.pattern.permute.xlu0 5
    %1251 = vperm.xlu0 %1250, %v85
    %v1252 = vpop.permute.xlu0 %1251
    %1253 = vset.pattern.permute.xlu0 5
    %1254 = vperm.xlu0 %1253, %v86
    %v1255 = vpop.permute.xlu0 %1254
    %1256 = vset.pattern.permute.xlu0 5
    %1257 = vperm.xlu0 %1256, %v87
    %v1258 = vpop.permute.xlu0 %1257
    %1259 = vset.pattern.permute.xlu0 5
    %1260 = vperm.xlu0 %1259, %v88
    %v1261 = vpop.permute.xlu0 %1260
    %1262 = vset.pattern.permute.xlu0 5
    %1263 = vperm.xlu0 %1262, %v89
    %v1264 = vpop.permute.xlu0 %1263
    %1265 = vset.pattern.permute.xlu0 5
    %1266 = vperm.xlu0 %1265, %v90
    %v1267 = vpop.permute.xlu0 %1266
    %1268 = vset.pattern.permute.xlu0 5
    %1269 = vperm.xlu0 %1268, %v91
    %v1270 = vpop.permute.xlu0 %1269
    %1271 = vset.pattern.permute.xlu0 5
    %1272 = vperm.xlu0 %1271, %v92
    %v1273 = vpop.permute.xlu0 %1272
    %1274 = vset.pattern.permute.xlu0 5
    %1275 = vperm.xlu0 %1274, %v93
    %v1276 = vpop.permute.xlu0 %1275
    %1277 = vset.pattern.permute.xlu0 5
    %1278 = vperm.xlu0 %1277, %v94
    %v1279 = vpop.permute.xlu0 %1278
    %1280 = vset.pattern.permute.xlu0 5
    %1281 = vperm.xlu0 %1280, %v95
    %v1282 = vpop.permute.xlu0 %1281
    %vm1283 = vcmp.eq.s32.totalorder %v97, %v1237
    %vm1284 = vcmp.eq.s32.totalorder %v97, %v1240
    %vm1285 = vcmp.eq.s32.totalorder %v97, %v1243
    %vm1286 = vcmp.eq.s32.totalorder %v97, %v1246
    %vm1287 = vcmp.eq.s32.totalorder %v97, %v1249
    %vm1288 = vcmp.eq.s32.totalorder %v97, %v1252
    %vm1289 = vcmp.eq.s32.totalorder %v97, %v1255
    %vm1290 = vcmp.eq.s32.totalorder %v97, %v1258
    %vm1291 = vcmp.eq.s32.totalorder %v97, %v1261
    %vm1292 = vcmp.eq.s32.totalorder %v97, %v1264
    %vm1293 = vcmp.eq.s32.totalorder %v97, %v1267
    %vm1294 = vcmp.eq.s32.totalorder %v97, %v1270
    %vm1295 = vcmp.eq.s32.totalorder %v97, %v1273
    %vm1296 = vcmp.eq.s32.totalorder %v97, %v1276
    %vm1297 = vcmp.eq.s32.totalorder %v97, %v1279
    %vm1298 = vcmp.eq.s32.totalorder %v97, %v1282
    %v1299 = vsel %vm1283, 1, 0
    %v1300 = vsel %vm1284, 1, 0
    %v1301 = vsel %vm1285, 1, 0
    %v1302 = vsel %vm1286, 1, 0
    %v1303 = vsel %vm1287, 1, 0
    %v1304 = vsel %vm1288, 1, 0
    %v1305 = vsel %vm1289, 1, 0
    %v1306 = vsel %vm1290, 1, 0
    %v1307 = vsel %vm1291, 1, 0
    %v1308 = vsel %vm1292, 1, 0
    %v1309 = vsel %vm1293, 1, 0
    %v1310 = vsel %vm1294, 1, 0
    %v1311 = vsel %vm1295, 1, 0
    %v1312 = vsel %vm1296, 1, 0
    %v1313 = vsel %vm1297, 1, 0
    %v1314 = vsel %vm1298, 1, 0
    %v1315 = vcvt.s32.f32 %v1299
    %v1316 = vcvt.s32.f32 %v1300
    %v1317 = vcvt.s32.f32 %v1301
    %v1318 = vcvt.s32.f32 %v1302
    %v1319 = vcvt.s32.f32 %v1303
    %v1320 = vcvt.s32.f32 %v1304
    %v1321 = vcvt.s32.f32 %v1305
    %v1322 = vcvt.s32.f32 %v1306
    %v1323 = vcvt.s32.f32 %v1307
    %v1324 = vcvt.s32.f32 %v1308
    %v1325 = vcvt.s32.f32 %v1309
    %v1326 = vcvt.s32.f32 %v1310
    %v1327 = vcvt.s32.f32 %v1311
    %v1328 = vcvt.s32.f32 %v1312
    %v1329 = vcvt.s32.f32 %v1313
    %v1330 = vcvt.s32.f32 %v1314
    %v1331 = vpack.c.bf16 %v1316, %v1315
    %v1332 = vpack.c.bf16 %v1318, %v1317
    %v1333 = vpack.c.bf16 %v1320, %v1319
    %v1334 = vpack.c.bf16 %v1322, %v1321
    %v1335 = vpack.c.bf16 %v1324, %v1323
    %v1336 = vpack.c.bf16 %v1326, %v1325
    %v1337 = vpack.c.bf16 %v1328, %v1327
    %v1338 = vpack.c.bf16 %v1330, %v1329
    %s1339 = scalar_lea.vmem [#allocation2], 320
    %v1340 = vld [vmem:[%s1339] sm:$0xf]
    %v1341 = vld [vmem:[%s1339 + $0x4] sm:$0xf]
    %v1342 = vld [vmem:[%s1339 + $0x8] sm:$0xf]
    %v1343 = vld [vmem:[%s1339 + $0xc] sm:$0xf]
    %v1344 = vld [vmem:[%s1339 + $0x10] sm:$0xf]
    %v1345 = vld [vmem:[%s1339 + $0x14] sm:$0xf]
    %v1346 = vld [vmem:[%s1339 + $0x18] sm:$0xf]
    %v1347 = vld [vmem:[%s1339 + $0x1c] sm:$0xf]
    %v1348 = vld [vmem:[%s1339 + $0x20] sm:$0xf]
    %v1349 = vld [vmem:[%s1339 + $0x24] sm:$0xf]
    %v1350 = vld [vmem:[%s1339 + $0x28] sm:$0xf]
    %v1351 = vld [vmem:[%s1339 + $0x2c] sm:$0xf]
    %v1352 = vld [vmem:[%s1339 + $0x30] sm:$0xf]
    %v1353 = vld [vmem:[%s1339 + $0x34] sm:$0xf]
    %v1354 = vld [vmem:[%s1339 + $0x38] sm:$0xf]
    %v1355 = vld [vmem:[%s1339 + $0x3c] sm:$0xf]
    %v1372 = vunpack.c.l.b16 %v1340
    %v1373 = vunpack.c.l.b16 %v1341
    %v1374 = vunpack.c.l.b16 %v1342
    %v1375 = vunpack.c.l.b16 %v1343
    %v1376 = vunpack.c.l.b16 %v1344
    %v1377 = vunpack.c.l.b16 %v1345
    %v1378 = vunpack.c.l.b16 %v1346
    %v1379 = vunpack.c.l.b16 %v1347
    %v1380 = vunpack.c.l.b16 %v1348
    %v1381 = vunpack.c.l.b16 %v1349
    %v1382 = vunpack.c.l.b16 %v1350
    %v1383 = vunpack.c.l.b16 %v1351
    %v1384 = vunpack.c.l.b16 %v1352
    %v1385 = vunpack.c.l.b16 %v1353
    %v1386 = vunpack.c.l.b16 %v1354
    %v1387 = vunpack.c.l.b16 %v1355
    %v1388 = vpack.c.b16 %v1373, %v1372
    %v1389 = vpack.c.b16 %v1375, %v1374
    %v1390 = vpack.c.b16 %v1377, %v1376
    %v1391 = vpack.c.b16 %v1379, %v1378
    %v1392 = vpack.c.b16 %v1381, %v1380
    %v1393 = vpack.c.b16 %v1383, %v1382
    %v1394 = vpack.c.b16 %v1385, %v1384
    %v1395 = vpack.c.b16 %v1387, %v1386
    %1404 = vmatpush.bf16.msra.mxu0 %v1395
    %1405 = vmatpush.bf16.msra.mxu0 %v1394
    %1406 = vmatpush.bf16.msra.mxu0 %v1393
    %1407 = vmatpush.bf16.msra.mxu0 %v1392
    %1408 = vmatpush.bf16.msra.mxu0 %v1391
    %1409 = vmatpush.bf16.msra.mxu0 %v1390
    %1410 = vmatpush.bf16.msra.mxu0 %v1389
    %1411 = vmatpush.bf16.msra.mxu0 %v1388
    %1412 = vmatmul.bf16.gmra.mxu0 %v1331
    %v1413 = vpop.f32.mrf.mxu0
    %v1414 = vadd.f32 0.0, %v1413
    %v1415 = vpop.f32.mrf.mxu0
    %v1416 = vadd.f32 0.0, %v1415
    %1417 = vmatmul.bf16.gmra.mxu0 %v1332
    %v1418 = vpop.f32.mrf.mxu0
    %v1419 = vadd.f32 0.0, %v1418
    %v1420 = vpop.f32.mrf.mxu0
    %v1421 = vadd.f32 0.0, %v1420
    %1422 = vmatmul.bf16.gmra.mxu0 %v1333
    %v1423 = vpop.f32.mrf.mxu0
    %v1424 = vadd.f32 0.0, %v1423
    %v1425 = vpop.f32.mrf.mxu0
    %v1426 = vadd.f32 0.0, %v1425
    %1427 = vmatmul.bf16.gmra.mxu0 %v1334
    %v1428 = vpop.f32.mrf.mxu0
    %v1429 = vadd.f32 0.0, %v1428
    %v1430 = vpop.f32.mrf.mxu0
    %v1431 = vadd.f32 0.0, %v1430
    %1432 = vmatmul.bf16.gmra.mxu0 %v1335
    %v1433 = vpop.f32.mrf.mxu0
    %v1434 = vadd.f32 0.0, %v1433
    %v1435 = vpop.f32.mrf.mxu0
    %v1436 = vadd.f32 0.0, %v1435
    %1437 = vmatmul.bf16.gmra.mxu0 %v1336
    %v1438 = vpop.f32.mrf.mxu0
    %v1439 = vadd.f32 0.0, %v1438
    %v1440 = vpop.f32.mrf.mxu0
    %v1441 = vadd.f32 0.0, %v1440
    %1442 = vmatmul.bf16.gmra.mxu0 %v1337
    %v1443 = vpop.f32.mrf.mxu0
    %v1444 = vadd.f32 0.0, %v1443
    %v1445 = vpop.f32.mrf.mxu0
    %v1446 = vadd.f32 0.0, %v1445
    %1447 = vmatmul.bf16.gmra.mxu0 %v1338
    %v1448 = vpop.f32.mrf.mxu0
    %v1449 = vadd.f32 0.0, %v1448
    %v1450 = vpop.f32.mrf.mxu0
    %v1451 = vadd.f32 0.0, %v1450
    %1452 = vdwg.mxu0
    %v1453 = vadd.f32 %v1219, %v1414
    %v1454 = vadd.f32 %v1220, %v1416
    %v1455 = vadd.f32 %v1221, %v1419
    %v1456 = vadd.f32 %v1222, %v1421
    %v1457 = vadd.f32 %v1223, %v1424
    %v1458 = vadd.f32 %v1224, %v1426
    %v1459 = vadd.f32 %v1225, %v1429
    %v1460 = vadd.f32 %v1226, %v1431
    %v1461 = vadd.f32 %v1227, %v1434
    %v1462 = vadd.f32 %v1228, %v1436
    %v1463 = vadd.f32 %v1229, %v1439
    %v1464 = vadd.f32 %v1230, %v1441
    %v1465 = vadd.f32 %v1231, %v1444
    %v1466 = vadd.f32 %v1232, %v1446
    %v1467 = vadd.f32 %v1233, %v1449
    %v1468 = vadd.f32 %v1234, %v1451
    %1469 = vset.pattern.permute.xlu0 6
    %1470 = vperm.xlu0 %1469, %v80
    %v1471 = vpop.permute.xlu0 %1470
    %1472 = vset.pattern.permute.xlu0 6
    %1473 = vperm.xlu0 %1472, %v81
    %v1474 = vpop.permute.xlu0 %1473
    %1475 = vset.pattern.permute.xlu0 6
    %1476 = vperm.xlu0 %1475, %v82
    %v1477 = vpop.permute.xlu0 %1476
    %1478 = vset.pattern.permute.xlu0 6
    %1479 = vperm.xlu0 %1478, %v83
    %v1480 = vpop.permute.xlu0 %1479
    %1481 = vset.pattern.permute.xlu0 6
    %1482 = vperm.xlu0 %1481, %v84
    %v1483 = vpop.permute.xlu0 %1482
    %1484 = vset.pattern.permute.xlu0 6
    %1485 = vperm.xlu0 %1484, %v85
    %v1486 = vpop.permute.xlu0 %1485
    %1487 = vset.pattern.permute.xlu0 6
    %1488 = vperm.xlu0 %1487, %v86
    %v1489 = vpop.permute.xlu0 %1488
    %1490 = vset.pattern.permute.xlu0 6
    %1491 = vperm.xlu0 %1490, %v87
    %v1492 = vpop.permute.xlu0 %1491
    %1493 = vset.pattern.permute.xlu0 6
    %1494 = vperm.xlu0 %1493, %v88
    %v1495 = vpop.permute.xlu0 %1494
    %1496 = vset.pattern.permute.xlu0 6
    %1497 = vperm.xlu0 %1496, %v89
    %v1498 = vpop.permute.xlu0 %1497
    %1499 = vset.pattern.permute.xlu0 6
    %1500 = vperm.xlu0 %1499, %v90
    %v1501 = vpop.permute.xlu0 %1500
    %1502 = vset.pattern.permute.xlu0 6
    %1503 = vperm.xlu0 %1502, %v91
    %v1504 = vpop.permute.xlu0 %1503
    %1505 = vset.pattern.permute.xlu0 6
    %1506 = vperm.xlu0 %1505, %v92
    %v1507 = vpop.permute.xlu0 %1506
    %1508 = vset.pattern.permute.xlu0 6
    %1509 = vperm.xlu0 %1508, %v93
    %v1510 = vpop.permute.xlu0 %1509
    %1511 = vset.pattern.permute.xlu0 6
    %1512 = vperm.xlu0 %1511, %v94
    %v1513 = vpop.permute.xlu0 %1512
    %1514 = vset.pattern.permute.xlu0 6
    %1515 = vperm.xlu0 %1514, %v95
    %v1516 = vpop.permute.xlu0 %1515
    %vm1517 = vcmp.eq.s32.totalorder %v97, %v1471
    %vm1518 = vcmp.eq.s32.totalorder %v97, %v1474
    %vm1519 = vcmp.eq.s32.totalorder %v97, %v1477
    %vm1520 = vcmp.eq.s32.totalorder %v97, %v1480
    %vm1521 = vcmp.eq.s32.totalorder %v97, %v1483
    %vm1522 = vcmp.eq.s32.totalorder %v97, %v1486
    %vm1523 = vcmp.eq.s32.totalorder %v97, %v1489
    %vm1524 = vcmp.eq.s32.totalorder %v97, %v1492
    %vm1525 = vcmp.eq.s32.totalorder %v97, %v1495
    %vm1526 = vcmp.eq.s32.totalorder %v97, %v1498
    %vm1527 = vcmp.eq.s32.totalorder %v97, %v1501
    %vm1528 = vcmp.eq.s32.totalorder %v97, %v1504
    %vm1529 = vcmp.eq.s32.totalorder %v97, %v1507
    %vm1530 = vcmp.eq.s32.totalorder %v97, %v1510
    %vm1531 = vcmp.eq.s32.totalorder %v97, %v1513
    %vm1532 = vcmp.eq.s32.totalorder %v97, %v1516
    %v1533 = vsel %vm1517, 1, 0
    %v1534 = vsel %vm1518, 1, 0
    %v1535 = vsel %vm1519, 1, 0
    %v1536 = vsel %vm1520, 1, 0
    %v1537 = vsel %vm1521, 1, 0
    %v1538 = vsel %vm1522, 1, 0
    %v1539 = vsel %vm1523, 1, 0
    %v1540 = vsel %vm1524, 1, 0
    %v1541 = vsel %vm1525, 1, 0
    %v1542 = vsel %vm1526, 1, 0
    %v1543 = vsel %vm1527, 1, 0
    %v1544 = vsel %vm1528, 1, 0
    %v1545 = vsel %vm1529, 1, 0
    %v1546 = vsel %vm1530, 1, 0
    %v1547 = vsel %vm1531, 1, 0
    %v1548 = vsel %vm1532, 1, 0
    %v1549 = vcvt.s32.f32 %v1533
    %v1550 = vcvt.s32.f32 %v1534
    %v1551 = vcvt.s32.f32 %v1535
    %v1552 = vcvt.s32.f32 %v1536
    %v1553 = vcvt.s32.f32 %v1537
    %v1554 = vcvt.s32.f32 %v1538
    %v1555 = vcvt.s32.f32 %v1539
    %v1556 = vcvt.s32.f32 %v1540
    %v1557 = vcvt.s32.f32 %v1541
    %v1558 = vcvt.s32.f32 %v1542
    %v1559 = vcvt.s32.f32 %v1543
    %v1560 = vcvt.s32.f32 %v1544
    %v1561 = vcvt.s32.f32 %v1545
    %v1562 = vcvt.s32.f32 %v1546
    %v1563 = vcvt.s32.f32 %v1547
    %v1564 = vcvt.s32.f32 %v1548
    %v1565 = vpack.c.bf16 %v1550, %v1549
    %v1566 = vpack.c.bf16 %v1552, %v1551
    %v1567 = vpack.c.bf16 %v1554, %v1553
    %v1568 = vpack.c.bf16 %v1556, %v1555
    %v1569 = vpack.c.bf16 %v1558, %v1557
    %v1570 = vpack.c.bf16 %v1560, %v1559
    %v1571 = vpack.c.bf16 %v1562, %v1561
    %v1572 = vpack.c.bf16 %v1564, %v1563
    %s1573 = scalar_lea.vmem [#allocation2], 384
    %v1574 = vld [vmem:[%s1573] sm:$0xf]
    %v1575 = vld [vmem:[%s1573 + $0x4] sm:$0xf]
    %v1576 = vld [vmem:[%s1573 + $0x8] sm:$0xf]
    %v1577 = vld [vmem:[%s1573 + $0xc] sm:$0xf]
    %v1578 = vld [vmem:[%s1573 + $0x10] sm:$0xf]
    %v1579 = vld [vmem:[%s1573 + $0x14] sm:$0xf]
    %v1580 = vld [vmem:[%s1573 + $0x18] sm:$0xf]
    %v1581 = vld [vmem:[%s1573 + $0x1c] sm:$0xf]
    %v1582 = vld [vmem:[%s1573 + $0x20] sm:$0xf]
    %v1583 = vld [vmem:[%s1573 + $0x24] sm:$0xf]
    %v1584 = vld [vmem:[%s1573 + $0x28] sm:$0xf]
    %v1585 = vld [vmem:[%s1573 + $0x2c] sm:$0xf]
    %v1586 = vld [vmem:[%s1573 + $0x30] sm:$0xf]
    %v1587 = vld [vmem:[%s1573 + $0x34] sm:$0xf]
    %v1588 = vld [vmem:[%s1573 + $0x38] sm:$0xf]
    %v1589 = vld [vmem:[%s1573 + $0x3c] sm:$0xf]
    %v1606 = vunpack.c.l.b16 %v1574
    %v1607 = vunpack.c.l.b16 %v1575
    %v1608 = vunpack.c.l.b16 %v1576
    %v1609 = vunpack.c.l.b16 %v1577
    %v1610 = vunpack.c.l.b16 %v1578
    %v1611 = vunpack.c.l.b16 %v1579
    %v1612 = vunpack.c.l.b16 %v1580
    %v1613 = vunpack.c.l.b16 %v1581
    %v1614 = vunpack.c.l.b16 %v1582
    %v1615 = vunpack.c.l.b16 %v1583
    %v1616 = vunpack.c.l.b16 %v1584
    %v1617 = vunpack.c.l.b16 %v1585
    %v1618 = vunpack.c.l.b16 %v1586
    %v1619 = vunpack.c.l.b16 %v1587
    %v1620 = vunpack.c.l.b16 %v1588
    %v1621 = vunpack.c.l.b16 %v1589
    %v1622 = vpack.c.b16 %v1607, %v1606
    %v1623 = vpack.c.b16 %v1609, %v1608
    %v1624 = vpack.c.b16 %v1611, %v1610
    %v1625 = vpack.c.b16 %v1613, %v1612
    %v1626 = vpack.c.b16 %v1615, %v1614
    %v1627 = vpack.c.b16 %v1617, %v1616
    %v1628 = vpack.c.b16 %v1619, %v1618
    %v1629 = vpack.c.b16 %v1621, %v1620
    %1638 = vmatpush.bf16.msra.mxu0 %v1629
    %1639 = vmatpush.bf16.msra.mxu0 %v1628
    %1640 = vmatpush.bf16.msra.mxu0 %v1627
    %1641 = vmatpush.bf16.msra.mxu0 %v1626
    %1642 = vmatpush.bf16.msra.mxu0 %v1625
    %1643 = vmatpush.bf16.msra.mxu0 %v1624
    %1644 = vmatpush.bf16.msra.mxu0 %v1623
    %1645 = vmatpush.bf16.msra.mxu0 %v1622
    %1646 = vmatmul.bf16.gmra.mxu0 %v1565
    %v1647 = vpop.f32.mrf.mxu0
    %v1648 = vadd.f32 0.0, %v1647
    %v1649 = vpop.f32.mrf.mxu0
    %v1650 = vadd.f32 0.0, %v1649
    %1651 = vmatmul.bf16.gmra.mxu0 %v1566
    %v1652 = vpop.f32.mrf.mxu0
    %v1653 = vadd.f32 0.0, %v1652
    %v1654 = vpop.f32.mrf.mxu0
    %v1655 = vadd.f32 0.0, %v1654
    %1656 = vmatmul.bf16.gmra.mxu0 %v1567
    %v1657 = vpop.f32.mrf.mxu0
    %v1658 = vadd.f32 0.0, %v1657
    %v1659 = vpop.f32.mrf.mxu0
    %v1660 = vadd.f32 0.0, %v1659
    %1661 = vmatmul.bf16.gmra.mxu0 %v1568
    %v1662 = vpop.f32.mrf.mxu0
    %v1663 = vadd.f32 0.0, %v1662
    %v1664 = vpop.f32.mrf.mxu0
    %v1665 = vadd.f32 0.0, %v1664
    %1666 = vmatmul.bf16.gmra.mxu0 %v1569
    %v1667 = vpop.f32.mrf.mxu0
    %v1668 = vadd.f32 0.0, %v1667
    %v1669 = vpop.f32.mrf.mxu0
    %v1670 = vadd.f32 0.0, %v1669
    %1671 = vmatmul.bf16.gmra.mxu0 %v1570
    %v1672 = vpop.f32.mrf.mxu0
    %v1673 = vadd.f32 0.0, %v1672
    %v1674 = vpop.f32.mrf.mxu0
    %v1675 = vadd.f32 0.0, %v1674
    %1676 = vmatmul.bf16.gmra.mxu0 %v1571
    %v1677 = vpop.f32.mrf.mxu0
    %v1678 = vadd.f32 0.0, %v1677
    %v1679 = vpop.f32.mrf.mxu0
    %v1680 = vadd.f32 0.0, %v1679
    %1681 = vmatmul.bf16.gmra.mxu0 %v1572
    %v1682 = vpop.f32.mrf.mxu0
    %v1683 = vadd.f32 0.0, %v1682
    %v1684 = vpop.f32.mrf.mxu0
    %v1685 = vadd.f32 0.0, %v1684
    %1686 = vdwg.mxu0
    %v1687 = vadd.f32 %v1453, %v1648
    %v1688 = vadd.f32 %v1454, %v1650
    %v1689 = vadd.f32 %v1455, %v1653
    %v1690 = vadd.f32 %v1456, %v1655
    %v1691 = vadd.f32 %v1457, %v1658
    %v1692 = vadd.f32 %v1458, %v1660
    %v1693 = vadd.f32 %v1459, %v1663
    %v1694 = vadd.f32 %v1460, %v1665
    %v1695 = vadd.f32 %v1461, %v1668
    %v1696 = vadd.f32 %v1462, %v1670
    %v1697 = vadd.f32 %v1463, %v1673
    %v1698 = vadd.f32 %v1464, %v1675
    %v1699 = vadd.f32 %v1465, %v1678
    %v1700 = vadd.f32 %v1466, %v1680
    %v1701 = vadd.f32 %v1467, %v1683
    %v1702 = vadd.f32 %v1468, %v1685
    %1703 = vset.pattern.permute.xlu0 7
    %1704 = vperm.xlu0 %1703, %v80
    %v1705 = vpop.permute.xlu0 %1704
    %1706 = vset.pattern.permute.xlu0 7
    %1707 = vperm.xlu0 %1706, %v81
    %v1708 = vpop.permute.xlu0 %1707
    %1709 = vset.pattern.permute.xlu0 7
    %1710 = vperm.xlu0 %1709, %v82
    %v1711 = vpop.permute.xlu0 %1710
    %1712 = vset.pattern.permute.xlu0 7
    %1713 = vperm.xlu0 %1712, %v83
    %v1714 = vpop.permute.xlu0 %1713
    %1715 = vset.pattern.permute.xlu0 7
    %1716 = vperm.xlu0 %1715, %v84
    %v1717 = vpop.permute.xlu0 %1716
    %1718 = vset.pattern.permute.xlu0 7
    %1719 = vperm.xlu0 %1718, %v85
    %v1720 = vpop.permute.xlu0 %1719
    %1721 = vset.pattern.permute.xlu0 7
    %1722 = vperm.xlu0 %1721, %v86
    %v1723 = vpop.permute.xlu0 %1722
    %1724 = vset.pattern.permute.xlu0 7
    %1725 = vperm.xlu0 %1724, %v87
    %v1726 = vpop.permute.xlu0 %1725
    %1727 = vset.pattern.permute.xlu0 7
    %1728 = vperm.xlu0 %1727, %v88
    %v1729 = vpop.permute.xlu0 %1728
    %1730 = vset.pattern.permute.xlu0 7
    %1731 = vperm.xlu0 %1730, %v89
    %v1732 = vpop.permute.xlu0 %1731
    %1733 = vset.pattern.permute.xlu0 7
    %1734 = vperm.xlu0 %1733, %v90
    %v1735 = vpop.permute.xlu0 %1734
    %1736 = vset.pattern.permute.xlu0 7
    %1737 = vperm.xlu0 %1736, %v91
    %v1738 = vpop.permute.xlu0 %1737
    %1739 = vset.pattern.permute.xlu0 7
    %1740 = vperm.xlu0 %1739, %v92
    %v1741 = vpop.permute.xlu0 %1740
    %1742 = vset.pattern.permute.xlu0 7
    %1743 = vperm.xlu0 %1742, %v93
    %v1744 = vpop.permute.xlu0 %1743
    %1745 = vset.pattern.permute.xlu0 7
    %1746 = vperm.xlu0 %1745, %v94
    %v1747 = vpop.permute.xlu0 %1746
    %1748 = vset.pattern.permute.xlu0 7
    %1749 = vperm.xlu0 %1748, %v95
    %v1750 = vpop.permute.xlu0 %1749
    %vm1751 = vcmp.eq.s32.totalorder %v97, %v1705
    %vm1752 = vcmp.eq.s32.totalorder %v97, %v1708
    %vm1753 = vcmp.eq.s32.totalorder %v97, %v1711
    %vm1754 = vcmp.eq.s32.totalorder %v97, %v1714
    %vm1755 = vcmp.eq.s32.totalorder %v97, %v1717
    %vm1756 = vcmp.eq.s32.totalorder %v97, %v1720
    %vm1757 = vcmp.eq.s32.totalorder %v97, %v1723
    %vm1758 = vcmp.eq.s32.totalorder %v97, %v1726
    %vm1759 = vcmp.eq.s32.totalorder %v97, %v1729
    %vm1760 = vcmp.eq.s32.totalorder %v97, %v1732
    %vm1761 = vcmp.eq.s32.totalorder %v97, %v1735
    %vm1762 = vcmp.eq.s32.totalorder %v97, %v1738
    %vm1763 = vcmp.eq.s32.totalorder %v97, %v1741
    %vm1764 = vcmp.eq.s32.totalorder %v97, %v1744
    %vm1765 = vcmp.eq.s32.totalorder %v97, %v1747
    %vm1766 = vcmp.eq.s32.totalorder %v97, %v1750
    %v1767 = vsel %vm1751, 1, 0
    %v1768 = vsel %vm1752, 1, 0
    %v1769 = vsel %vm1753, 1, 0
    %v1770 = vsel %vm1754, 1, 0
    %v1771 = vsel %vm1755, 1, 0
    %v1772 = vsel %vm1756, 1, 0
    %v1773 = vsel %vm1757, 1, 0
    %v1774 = vsel %vm1758, 1, 0
    %v1775 = vsel %vm1759, 1, 0
    %v1776 = vsel %vm1760, 1, 0
    %v1777 = vsel %vm1761, 1, 0
    %v1778 = vsel %vm1762, 1, 0
    %v1779 = vsel %vm1763, 1, 0
    %v1780 = vsel %vm1764, 1, 0
    %v1781 = vsel %vm1765, 1, 0
    %v1782 = vsel %vm1766, 1, 0
    %v1783 = vcvt.s32.f32 %v1767
    %v1784 = vcvt.s32.f32 %v1768
    %v1785 = vcvt.s32.f32 %v1769
    %v1786 = vcvt.s32.f32 %v1770
    %v1787 = vcvt.s32.f32 %v1771
    %v1788 = vcvt.s32.f32 %v1772
    %v1789 = vcvt.s32.f32 %v1773
    %v1790 = vcvt.s32.f32 %v1774
    %v1791 = vcvt.s32.f32 %v1775
    %v1792 = vcvt.s32.f32 %v1776
    %v1793 = vcvt.s32.f32 %v1777
    %v1794 = vcvt.s32.f32 %v1778
    %v1795 = vcvt.s32.f32 %v1779
    %v1796 = vcvt.s32.f32 %v1780
    %v1797 = vcvt.s32.f32 %v1781
    %v1798 = vcvt.s32.f32 %v1782
    %v1799 = vpack.c.bf16 %v1784, %v1783
    %v1800 = vpack.c.bf16 %v1786, %v1785
    %v1801 = vpack.c.bf16 %v1788, %v1787
    %v1802 = vpack.c.bf16 %v1790, %v1789
    %v1803 = vpack.c.bf16 %v1792, %v1791
    %v1804 = vpack.c.bf16 %v1794, %v1793
    %v1805 = vpack.c.bf16 %v1796, %v1795
    %v1806 = vpack.c.bf16 %v1798, %v1797
    %s1807 = scalar_lea.vmem [#allocation2], 448
    %v1808 = vld [vmem:[%s1807] sm:$0xf]
    %v1809 = vld [vmem:[%s1807 + $0x4] sm:$0xf]
    %v1810 = vld [vmem:[%s1807 + $0x8] sm:$0xf]
    %v1811 = vld [vmem:[%s1807 + $0xc] sm:$0xf]
    %v1812 = vld [vmem:[%s1807 + $0x10] sm:$0xf]
    %v1813 = vld [vmem:[%s1807 + $0x14] sm:$0xf]
    %v1814 = vld [vmem:[%s1807 + $0x18] sm:$0xf]
    %v1815 = vld [vmem:[%s1807 + $0x1c] sm:$0xf]
    %v1816 = vld [vmem:[%s1807 + $0x20] sm:$0xf]
    %v1817 = vld [vmem:[%s1807 + $0x24] sm:$0xf]
    %v1818 = vld [vmem:[%s1807 + $0x28] sm:$0xf]
    %v1819 = vld [vmem:[%s1807 + $0x2c] sm:$0xf]
    %v1820 = vld [vmem:[%s1807 + $0x30] sm:$0xf]
    %v1821 = vld [vmem:[%s1807 + $0x34] sm:$0xf]
    %v1822 = vld [vmem:[%s1807 + $0x38] sm:$0xf]
    %v1823 = vld [vmem:[%s1807 + $0x3c] sm:$0xf]
    %v1840 = vunpack.c.l.b16 %v1808
    %v1841 = vunpack.c.l.b16 %v1809
    %v1842 = vunpack.c.l.b16 %v1810
    %v1843 = vunpack.c.l.b16 %v1811
    %v1844 = vunpack.c.l.b16 %v1812
    %v1845 = vunpack.c.l.b16 %v1813
    %v1846 = vunpack.c.l.b16 %v1814
    %v1847 = vunpack.c.l.b16 %v1815
    %v1848 = vunpack.c.l.b16 %v1816
    %v1849 = vunpack.c.l.b16 %v1817
    %v1850 = vunpack.c.l.b16 %v1818
    %v1851 = vunpack.c.l.b16 %v1819
    %v1852 = vunpack.c.l.b16 %v1820
    %v1853 = vunpack.c.l.b16 %v1821
    %v1854 = vunpack.c.l.b16 %v1822
    %v1855 = vunpack.c.l.b16 %v1823
    %v1856 = vpack.c.b16 %v1841, %v1840
    %v1857 = vpack.c.b16 %v1843, %v1842
    %v1858 = vpack.c.b16 %v1845, %v1844
    %v1859 = vpack.c.b16 %v1847, %v1846
    %v1860 = vpack.c.b16 %v1849, %v1848
    %v1861 = vpack.c.b16 %v1851, %v1850
    %v1862 = vpack.c.b16 %v1853, %v1852
    %v1863 = vpack.c.b16 %v1855, %v1854
    %1872 = vmatpush.bf16.msra.mxu0 %v1863
    %1873 = vmatpush.bf16.msra.mxu0 %v1862
    %1874 = vmatpush.bf16.msra.mxu0 %v1861
    %1875 = vmatpush.bf16.msra.mxu0 %v1860
    %1876 = vmatpush.bf16.msra.mxu0 %v1859
    %1877 = vmatpush.bf16.msra.mxu0 %v1858
    %1878 = vmatpush.bf16.msra.mxu0 %v1857
    %1879 = vmatpush.bf16.msra.mxu0 %v1856
    %1880 = vmatmul.bf16.gmra.mxu0 %v1799
    %v1881 = vpop.f32.mrf.mxu0
    %v1882 = vadd.f32 0.0, %v1881
    %v1883 = vpop.f32.mrf.mxu0
    %v1884 = vadd.f32 0.0, %v1883
    %1885 = vmatmul.bf16.gmra.mxu0 %v1800
    %v1886 = vpop.f32.mrf.mxu0
    %v1887 = vadd.f32 0.0, %v1886
    %v1888 = vpop.f32.mrf.mxu0
    %v1889 = vadd.f32 0.0, %v1888
    %1890 = vmatmul.bf16.gmra.mxu0 %v1801
    %v1891 = vpop.f32.mrf.mxu0
    %v1892 = vadd.f32 0.0, %v1891
    %v1893 = vpop.f32.mrf.mxu0
    %v1894 = vadd.f32 0.0, %v1893
    %1895 = vmatmul.bf16.gmra.mxu0 %v1802
    %v1896 = vpop.f32.mrf.mxu0
    %v1897 = vadd.f32 0.0, %v1896
    %v1898 = vpop.f32.mrf.mxu0
    %v1899 = vadd.f32 0.0, %v1898
    %1900 = vmatmul.bf16.gmra.mxu0 %v1803
    %v1901 = vpop.f32.mrf.mxu0
    %v1902 = vadd.f32 0.0, %v1901
    %v1903 = vpop.f32.mrf.mxu0
    %v1904 = vadd.f32 0.0, %v1903
    %1905 = vmatmul.bf16.gmra.mxu0 %v1804
    %v1906 = vpop.f32.mrf.mxu0
    %v1907 = vadd.f32 0.0, %v1906
    %v1908 = vpop.f32.mrf.mxu0
    %v1909 = vadd.f32 0.0, %v1908
    %1910 = vmatmul.bf16.gmra.mxu0 %v1805
    %v1911 = vpop.f32.mrf.mxu0
    %v1912 = vadd.f32 0.0, %v1911
    %v1913 = vpop.f32.mrf.mxu0
    %v1914 = vadd.f32 0.0, %v1913
    %1915 = vmatmul.bf16.gmra.mxu0 %v1806
    %v1916 = vpop.f32.mrf.mxu0
    %v1917 = vadd.f32 0.0, %v1916
    %v1918 = vpop.f32.mrf.mxu0
    %v1919 = vadd.f32 0.0, %v1918
    %1920 = vdwg.mxu0
    %v1921 = vadd.f32 %v1687, %v1882
    %v1922 = vadd.f32 %v1688, %v1884
    %v1923 = vadd.f32 %v1689, %v1887
    %v1924 = vadd.f32 %v1690, %v1889
    %v1925 = vadd.f32 %v1691, %v1892
    %v1926 = vadd.f32 %v1692, %v1894
    %v1927 = vadd.f32 %v1693, %v1897
    %v1928 = vadd.f32 %v1694, %v1899
    %v1929 = vadd.f32 %v1695, %v1902
    %v1930 = vadd.f32 %v1696, %v1904
    %v1931 = vadd.f32 %v1697, %v1907
    %v1932 = vadd.f32 %v1698, %v1909
    %v1933 = vadd.f32 %v1699, %v1912
    %v1934 = vadd.f32 %v1700, %v1914
    %v1935 = vadd.f32 %v1701, %v1917
    %v1936 = vadd.f32 %v1702, %v1919
    %1937 = vset.pattern.permute.xlu0 8
    %1938 = vperm.xlu0 %1937, %v80
    %v1939 = vpop.permute.xlu0 %1938
    %1940 = vset.pattern.permute.xlu0 8
    %1941 = vperm.xlu0 %1940, %v81
    %v1942 = vpop.permute.xlu0 %1941
    %1943 = vset.pattern.permute.xlu0 8
    %1944 = vperm.xlu0 %1943, %v82
    %v1945 = vpop.permute.xlu0 %1944
    %1946 = vset.pattern.permute.xlu0 8
    %1947 = vperm.xlu0 %1946, %v83
    %v1948 = vpop.permute.xlu0 %1947
    %1949 = vset.pattern.permute.xlu0 8
    %1950 = vperm.xlu0 %1949, %v84
    %v1951 = vpop.permute.xlu0 %1950
    %1952 = vset.pattern.permute.xlu0 8
    %1953 = vperm.xlu0 %1952, %v85
    %v1954 = vpop.permute.xlu0 %1953
    %1955 = vset.pattern.permute.xlu0 8
    %1956 = vperm.xlu0 %1955, %v86
    %v1957 = vpop.permute.xlu0 %1956
    %1958 = vset.pattern.permute.xlu0 8
    %1959 = vperm.xlu0 %1958, %v87
    %v1960 = vpop.permute.xlu0 %1959
    %1961 = vset.pattern.permute.xlu0 8
    %1962 = vperm.xlu0 %1961, %v88
    %v1963 = vpop.permute.xlu0 %1962
    %1964 = vset.pattern.permute.xlu0 8
    %1965 = vperm.xlu0 %1964, %v89
    %v1966 = vpop.permute.xlu0 %1965
    %1967 = vset.pattern.permute.xlu0 8
    %1968 = vperm.xlu0 %1967, %v90
    %v1969 = vpop.permute.xlu0 %1968
    %1970 = vset.pattern.permute.xlu0 8
    %1971 = vperm.xlu0 %1970, %v91
    %v1972 = vpop.permute.xlu0 %1971
    %1973 = vset.pattern.permute.xlu0 8
    %1974 = vperm.xlu0 %1973, %v92
    %v1975 = vpop.permute.xlu0 %1974
    %1976 = vset.pattern.permute.xlu0 8
    %1977 = vperm.xlu0 %1976, %v93
    %v1978 = vpop.permute.xlu0 %1977
    %1979 = vset.pattern.permute.xlu0 8
    %1980 = vperm.xlu0 %1979, %v94
    %v1981 = vpop.permute.xlu0 %1980
    %1982 = vset.pattern.permute.xlu0 8
    %1983 = vperm.xlu0 %1982, %v95
    %v1984 = vpop.permute.xlu0 %1983
    %vm1985 = vcmp.eq.s32.totalorder %v97, %v1939
    %vm1986 = vcmp.eq.s32.totalorder %v97, %v1942
    %vm1987 = vcmp.eq.s32.totalorder %v97, %v1945
    %vm1988 = vcmp.eq.s32.totalorder %v97, %v1948
    %vm1989 = vcmp.eq.s32.totalorder %v97, %v1951
    %vm1990 = vcmp.eq.s32.totalorder %v97, %v1954
    %vm1991 = vcmp.eq.s32.totalorder %v97, %v1957
    %vm1992 = vcmp.eq.s32.totalorder %v97, %v1960
    %vm1993 = vcmp.eq.s32.totalorder %v97, %v1963
    %vm1994 = vcmp.eq.s32.totalorder %v97, %v1966
    %vm1995 = vcmp.eq.s32.totalorder %v97, %v1969
    %vm1996 = vcmp.eq.s32.totalorder %v97, %v1972
    %vm1997 = vcmp.eq.s32.totalorder %v97, %v1975
    %vm1998 = vcmp.eq.s32.totalorder %v97, %v1978
    %vm1999 = vcmp.eq.s32.totalorder %v97, %v1981
    %vm2000 = vcmp.eq.s32.totalorder %v97, %v1984
    %v2001 = vsel %vm1985, 1, 0
    %v2002 = vsel %vm1986, 1, 0
    %v2003 = vsel %vm1987, 1, 0
    %v2004 = vsel %vm1988, 1, 0
    %v2005 = vsel %vm1989, 1, 0
    %v2006 = vsel %vm1990, 1, 0
    %v2007 = vsel %vm1991, 1, 0
    %v2008 = vsel %vm1992, 1, 0
    %v2009 = vsel %vm1993, 1, 0
    %v2010 = vsel %vm1994, 1, 0
    %v2011 = vsel %vm1995, 1, 0
    %v2012 = vsel %vm1996, 1, 0
    %v2013 = vsel %vm1997, 1, 0
    %v2014 = vsel %vm1998, 1, 0
    %v2015 = vsel %vm1999, 1, 0
    %v2016 = vsel %vm2000, 1, 0
    %v2017 = vcvt.s32.f32 %v2001
    %v2018 = vcvt.s32.f32 %v2002
    %v2019 = vcvt.s32.f32 %v2003
    %v2020 = vcvt.s32.f32 %v2004
    %v2021 = vcvt.s32.f32 %v2005
    %v2022 = vcvt.s32.f32 %v2006
    %v2023 = vcvt.s32.f32 %v2007
    %v2024 = vcvt.s32.f32 %v2008
    %v2025 = vcvt.s32.f32 %v2009
    %v2026 = vcvt.s32.f32 %v2010
    %v2027 = vcvt.s32.f32 %v2011
    %v2028 = vcvt.s32.f32 %v2012
    %v2029 = vcvt.s32.f32 %v2013
    %v2030 = vcvt.s32.f32 %v2014
    %v2031 = vcvt.s32.f32 %v2015
    %v2032 = vcvt.s32.f32 %v2016
    %v2033 = vpack.c.bf16 %v2018, %v2017
    %v2034 = vpack.c.bf16 %v2020, %v2019
    %v2035 = vpack.c.bf16 %v2022, %v2021
    %v2036 = vpack.c.bf16 %v2024, %v2023
    %v2037 = vpack.c.bf16 %v2026, %v2025
    %v2038 = vpack.c.bf16 %v2028, %v2027
    %v2039 = vpack.c.bf16 %v2030, %v2029
    %v2040 = vpack.c.bf16 %v2032, %v2031
    %s2041 = scalar_lea.vmem [#allocation2], 512
    %v2042 = vld [vmem:[%s2041] sm:$0xf]
    %v2043 = vld [vmem:[%s2041 + $0x4] sm:$0xf]
    %v2044 = vld [vmem:[%s2041 + $0x8] sm:$0xf]
    %v2045 = vld [vmem:[%s2041 + $0xc] sm:$0xf]
    %v2046 = vld [vmem:[%s2041 + $0x10] sm:$0xf]
    %v2047 = vld [vmem:[%s2041 + $0x14] sm:$0xf]
    %v2048 = vld [vmem:[%s2041 + $0x18] sm:$0xf]
    %v2049 = vld [vmem:[%s2041 + $0x1c] sm:$0xf]
    %v2050 = vld [vmem:[%s2041 + $0x20] sm:$0xf]
    %v2051 = vld [vmem:[%s2041 + $0x24] sm:$0xf]
    %v2052 = vld [vmem:[%s2041 + $0x28] sm:$0xf]
    %v2053 = vld [vmem:[%s2041 + $0x2c] sm:$0xf]
    %v2054 = vld [vmem:[%s2041 + $0x30] sm:$0xf]
    %v2055 = vld [vmem:[%s2041 + $0x34] sm:$0xf]
    %v2056 = vld [vmem:[%s2041 + $0x38] sm:$0xf]
    %v2057 = vld [vmem:[%s2041 + $0x3c] sm:$0xf]
    %v2074 = vunpack.c.l.b16 %v2042
    %v2075 = vunpack.c.l.b16 %v2043
    %v2076 = vunpack.c.l.b16 %v2044
    %v2077 = vunpack.c.l.b16 %v2045
    %v2078 = vunpack.c.l.b16 %v2046
    %v2079 = vunpack.c.l.b16 %v2047
    %v2080 = vunpack.c.l.b16 %v2048
    %v2081 = vunpack.c.l.b16 %v2049
    %v2082 = vunpack.c.l.b16 %v2050
    %v2083 = vunpack.c.l.b16 %v2051
    %v2084 = vunpack.c.l.b16 %v2052
    %v2085 = vunpack.c.l.b16 %v2053
    %v2086 = vunpack.c.l.b16 %v2054
    %v2087 = vunpack.c.l.b16 %v2055
    %v2088 = vunpack.c.l.b16 %v2056
    %v2089 = vunpack.c.l.b16 %v2057
    %v2090 = vpack.c.b16 %v2075, %v2074
    %v2091 = vpack.c.b16 %v2077, %v2076
    %v2092 = vpack.c.b16 %v2079, %v2078
    %v2093 = vpack.c.b16 %v2081, %v2080
    %v2094 = vpack.c.b16 %v2083, %v2082
    %v2095 = vpack.c.b16 %v2085, %v2084
    %v2096 = vpack.c.b16 %v2087, %v2086
    %v2097 = vpack.c.b16 %v2089, %v2088
    %2106 = vmatpush.bf16.msra.mxu0 %v2097
    %2107 = vmatpush.bf16.msra.mxu0 %v2096
    %2108 = vmatpush.bf16.msra.mxu0 %v2095
    %2109 = vmatpush.bf16.msra.mxu0 %v2094
    %2110 = vmatpush.bf16.msra.mxu0 %v2093
    %2111 = vmatpush.bf16.msra.mxu0 %v2092
    %2112 = vmatpush.bf16.msra.mxu0 %v2091
    %2113 = vmatpush.bf16.msra.mxu0 %v2090
    %2114 = vmatmul.bf16.gmra.mxu0 %v2033
    %v2115 = vpop.f32.mrf.mxu0
    %v2116 = vadd.f32 0.0, %v2115
    %v2117 = vpop.f32.mrf.mxu0
    %v2118 = vadd.f32 0.0, %v2117
    %2119 = vmatmul.bf16.gmra.mxu0 %v2034
    %v2120 = vpop.f32.mrf.mxu0
    %v2121 = vadd.f32 0.0, %v2120
    %v2122 = vpop.f32.mrf.mxu0
    %v2123 = vadd.f32 0.0, %v2122
    %2124 = vmatmul.bf16.gmra.mxu0 %v2035
    %v2125 = vpop.f32.mrf.mxu0
    %v2126 = vadd.f32 0.0, %v2125
    %v2127 = vpop.f32.mrf.mxu0
    %v2128 = vadd.f32 0.0, %v2127
    %2129 = vmatmul.bf16.gmra.mxu0 %v2036
    %v2130 = vpop.f32.mrf.mxu0
    %v2131 = vadd.f32 0.0, %v2130
    %v2132 = vpop.f32.mrf.mxu0
    %v2133 = vadd.f32 0.0, %v2132
    %2134 = vmatmul.bf16.gmra.mxu0 %v2037
    %v2135 = vpop.f32.mrf.mxu0
    %v2136 = vadd.f32 0.0, %v2135
    %v2137 = vpop.f32.mrf.mxu0
    %v2138 = vadd.f32 0.0, %v2137
    %2139 = vmatmul.bf16.gmra.mxu0 %v2038
    %v2140 = vpop.f32.mrf.mxu0
    %v2141 = vadd.f32 0.0, %v2140
    %v2142 = vpop.f32.mrf.mxu0
    %v2143 = vadd.f32 0.0, %v2142
    %2144 = vmatmul.bf16.gmra.mxu0 %v2039
    %v2145 = vpop.f32.mrf.mxu0
    %v2146 = vadd.f32 0.0, %v2145
    %v2147 = vpop.f32.mrf.mxu0
    %v2148 = vadd.f32 0.0, %v2147
    %2149 = vmatmul.bf16.gmra.mxu0 %v2040
    %v2150 = vpop.f32.mrf.mxu0
    %v2151 = vadd.f32 0.0, %v2150
    %v2152 = vpop.f32.mrf.mxu0
    %v2153 = vadd.f32 0.0, %v2152
    %2154 = vdwg.mxu0
    %v2155 = vadd.f32 %v1921, %v2116
    %v2156 = vadd.f32 %v1922, %v2118
    %v2157 = vadd.f32 %v1923, %v2121
    %v2158 = vadd.f32 %v1924, %v2123
    %v2159 = vadd.f32 %v1925, %v2126
    %v2160 = vadd.f32 %v1926, %v2128
    %v2161 = vadd.f32 %v1927, %v2131
    %v2162 = vadd.f32 %v1928, %v2133
    %v2163 = vadd.f32 %v1929, %v2136
    %v2164 = vadd.f32 %v1930, %v2138
    %v2165 = vadd.f32 %v1931, %v2141
    %v2166 = vadd.f32 %v1932, %v2143
    %v2167 = vadd.f32 %v1933, %v2146
    %v2168 = vadd.f32 %v1934, %v2148
    %v2169 = vadd.f32 %v1935, %v2151
    %v2170 = vadd.f32 %v1936, %v2153
    %2171 = vset.pattern.permute.xlu0 9
    %2172 = vperm.xlu0 %2171, %v80
    %v2173 = vpop.permute.xlu0 %2172
    %2174 = vset.pattern.permute.xlu0 9
    %2175 = vperm.xlu0 %2174, %v81
    %v2176 = vpop.permute.xlu0 %2175
    %2177 = vset.pattern.permute.xlu0 9
    %2178 = vperm.xlu0 %2177, %v82
    %v2179 = vpop.permute.xlu0 %2178
    %2180 = vset.pattern.permute.xlu0 9
    %2181 = vperm.xlu0 %2180, %v83
    %v2182 = vpop.permute.xlu0 %2181
    %2183 = vset.pattern.permute.xlu0 9
    %2184 = vperm.xlu0 %2183, %v84
    %v2185 = vpop.permute.xlu0 %2184
    %2186 = vset.pattern.permute.xlu0 9
    %2187 = vperm.xlu0 %2186, %v85
    %v2188 = vpop.permute.xlu0 %2187
    %2189 = vset.pattern.permute.xlu0 9
    %2190 = vperm.xlu0 %2189, %v86
    %v2191 = vpop.permute.xlu0 %2190
    %2192 = vset.pattern.permute.xlu0 9
    %2193 = vperm.xlu0 %2192, %v87
    %v2194 = vpop.permute.xlu0 %2193
    %2195 = vset.pattern.permute.xlu0 9
    %2196 = vperm.xlu0 %2195, %v88
    %v2197 = vpop.permute.xlu0 %2196
    %2198 = vset.pattern.permute.xlu0 9
    %2199 = vperm.xlu0 %2198, %v89
    %v2200 = vpop.permute.xlu0 %2199
    %2201 = vset.pattern.permute.xlu0 9
    %2202 = vperm.xlu0 %2201, %v90
    %v2203 = vpop.permute.xlu0 %2202
    %2204 = vset.pattern.permute.xlu0 9
    %2205 = vperm.xlu0 %2204, %v91
    %v2206 = vpop.permute.xlu0 %2205
    %2207 = vset.pattern.permute.xlu0 9
    %2208 = vperm.xlu0 %2207, %v92
    %v2209 = vpop.permute.xlu0 %2208
    %2210 = vset.pattern.permute.xlu0 9
    %2211 = vperm.xlu0 %2210, %v93
    %v2212 = vpop.permute.xlu0 %2211
    %2213 = vset.pattern.permute.xlu0 9
    %2214 = vperm.xlu0 %2213, %v94
    %v2215 = vpop.permute.xlu0 %2214
    %2216 = vset.pattern.permute.xlu0 9
    %2217 = vperm.xlu0 %2216, %v95
    %v2218 = vpop.permute.xlu0 %2217
    %vm2219 = vcmp.eq.s32.totalorder %v97, %v2173
    %vm2220 = vcmp.eq.s32.totalorder %v97, %v2176
    %vm2221 = vcmp.eq.s32.totalorder %v97, %v2179
    %vm2222 = vcmp.eq.s32.totalorder %v97, %v2182
    %vm2223 = vcmp.eq.s32.totalorder %v97, %v2185
    %vm2224 = vcmp.eq.s32.totalorder %v97, %v2188
    %vm2225 = vcmp.eq.s32.totalorder %v97, %v2191
    %vm2226 = vcmp.eq.s32.totalorder %v97, %v2194
    %vm2227 = vcmp.eq.s32.totalorder %v97, %v2197
    %vm2228 = vcmp.eq.s32.totalorder %v97, %v2200
    %vm2229 = vcmp.eq.s32.totalorder %v97, %v2203
    %vm2230 = vcmp.eq.s32.totalorder %v97, %v2206
    %vm2231 = vcmp.eq.s32.totalorder %v97, %v2209
    %vm2232 = vcmp.eq.s32.totalorder %v97, %v2212
    %vm2233 = vcmp.eq.s32.totalorder %v97, %v2215
    %vm2234 = vcmp.eq.s32.totalorder %v97, %v2218
    %v2235 = vsel %vm2219, 1, 0
    %v2236 = vsel %vm2220, 1, 0
    %v2237 = vsel %vm2221, 1, 0
    %v2238 = vsel %vm2222, 1, 0
    %v2239 = vsel %vm2223, 1, 0
    %v2240 = vsel %vm2224, 1, 0
    %v2241 = vsel %vm2225, 1, 0
    %v2242 = vsel %vm2226, 1, 0
    %v2243 = vsel %vm2227, 1, 0
    %v2244 = vsel %vm2228, 1, 0
    %v2245 = vsel %vm2229, 1, 0
    %v2246 = vsel %vm2230, 1, 0
    %v2247 = vsel %vm2231, 1, 0
    %v2248 = vsel %vm2232, 1, 0
    %v2249 = vsel %vm2233, 1, 0
    %v2250 = vsel %vm2234, 1, 0
    %v2251 = vcvt.s32.f32 %v2235
    %v2252 = vcvt.s32.f32 %v2236
    %v2253 = vcvt.s32.f32 %v2237
    %v2254 = vcvt.s32.f32 %v2238
    %v2255 = vcvt.s32.f32 %v2239
    %v2256 = vcvt.s32.f32 %v2240
    %v2257 = vcvt.s32.f32 %v2241
    %v2258 = vcvt.s32.f32 %v2242
    %v2259 = vcvt.s32.f32 %v2243
    %v2260 = vcvt.s32.f32 %v2244
    %v2261 = vcvt.s32.f32 %v2245
    %v2262 = vcvt.s32.f32 %v2246
    %v2263 = vcvt.s32.f32 %v2247
    %v2264 = vcvt.s32.f32 %v2248
    %v2265 = vcvt.s32.f32 %v2249
    %v2266 = vcvt.s32.f32 %v2250
    %v2267 = vpack.c.bf16 %v2252, %v2251
    %v2268 = vpack.c.bf16 %v2254, %v2253
    %v2269 = vpack.c.bf16 %v2256, %v2255
    %v2270 = vpack.c.bf16 %v2258, %v2257
    %v2271 = vpack.c.bf16 %v2260, %v2259
    %v2272 = vpack.c.bf16 %v2262, %v2261
    %v2273 = vpack.c.bf16 %v2264, %v2263
    %v2274 = vpack.c.bf16 %v2266, %v2265
    %s2275 = scalar_lea.vmem [#allocation2], 576
    %v2276 = vld [vmem:[%s2275] sm:$0xf]
    %v2277 = vld [vmem:[%s2275 + $0x4] sm:$0xf]
    %v2278 = vld [vmem:[%s2275 + $0x8] sm:$0xf]
    %v2279 = vld [vmem:[%s2275 + $0xc] sm:$0xf]
    %v2280 = vld [vmem:[%s2275 + $0x10] sm:$0xf]
    %v2281 = vld [vmem:[%s2275 + $0x14] sm:$0xf]
    %v2282 = vld [vmem:[%s2275 + $0x18] sm:$0xf]
    %v2283 = vld [vmem:[%s2275 + $0x1c] sm:$0xf]
    %v2284 = vld [vmem:[%s2275 + $0x20] sm:$0xf]
    %v2285 = vld [vmem:[%s2275 + $0x24] sm:$0xf]
    %v2286 = vld [vmem:[%s2275 + $0x28] sm:$0xf]
    %v2287 = vld [vmem:[%s2275 + $0x2c] sm:$0xf]
    %v2288 = vld [vmem:[%s2275 + $0x30] sm:$0xf]
    %v2289 = vld [vmem:[%s2275 + $0x34] sm:$0xf]
    %v2290 = vld [vmem:[%s2275 + $0x38] sm:$0xf]
    %v2291 = vld [vmem:[%s2275 + $0x3c] sm:$0xf]
    %v2308 = vunpack.c.l.b16 %v2276
    %v2309 = vunpack.c.l.b16 %v2277
    %v2310 = vunpack.c.l.b16 %v2278
    %v2311 = vunpack.c.l.b16 %v2279
    %v2312 = vunpack.c.l.b16 %v2280
    %v2313 = vunpack.c.l.b16 %v2281
    %v2314 = vunpack.c.l.b16 %v2282
    %v2315 = vunpack.c.l.b16 %v2283
    %v2316 = vunpack.c.l.b16 %v2284
    %v2317 = vunpack.c.l.b16 %v2285
    %v2318 = vunpack.c.l.b16 %v2286
    %v2319 = vunpack.c.l.b16 %v2287
    %v2320 = vunpack.c.l.b16 %v2288
    %v2321 = vunpack.c.l.b16 %v2289
    %v2322 = vunpack.c.l.b16 %v2290
    %v2323 = vunpack.c.l.b16 %v2291
    %v2324 = vpack.c.b16 %v2309, %v2308
    %v2325 = vpack.c.b16 %v2311, %v2310
    %v2326 = vpack.c.b16 %v2313, %v2312
    %v2327 = vpack.c.b16 %v2315, %v2314
    %v2328 = vpack.c.b16 %v2317, %v2316
    %v2329 = vpack.c.b16 %v2319, %v2318
    %v2330 = vpack.c.b16 %v2321, %v2320
    %v2331 = vpack.c.b16 %v2323, %v2322
    %2340 = vmatpush.bf16.msra.mxu0 %v2331
    %2341 = vmatpush.bf16.msra.mxu0 %v2330
    %2342 = vmatpush.bf16.msra.mxu0 %v2329
    %2343 = vmatpush.bf16.msra.mxu0 %v2328
    %2344 = vmatpush.bf16.msra.mxu0 %v2327
    %2345 = vmatpush.bf16.msra.mxu0 %v2326
    %2346 = vmatpush.bf16.msra.mxu0 %v2325
    %2347 = vmatpush.bf16.msra.mxu0 %v2324
    %2348 = vmatmul.bf16.gmra.mxu0 %v2267
    %v2349 = vpop.f32.mrf.mxu0
    %v2350 = vadd.f32 0.0, %v2349
    %v2351 = vpop.f32.mrf.mxu0
    %v2352 = vadd.f32 0.0, %v2351
    %2353 = vmatmul.bf16.gmra.mxu0 %v2268
    %v2354 = vpop.f32.mrf.mxu0
    %v2355 = vadd.f32 0.0, %v2354
    %v2356 = vpop.f32.mrf.mxu0
    %v2357 = vadd.f32 0.0, %v2356
    %2358 = vmatmul.bf16.gmra.mxu0 %v2269
    %v2359 = vpop.f32.mrf.mxu0
    %v2360 = vadd.f32 0.0, %v2359
    %v2361 = vpop.f32.mrf.mxu0
    %v2362 = vadd.f32 0.0, %v2361
    %2363 = vmatmul.bf16.gmra.mxu0 %v2270
    %v2364 = vpop.f32.mrf.mxu0
    %v2365 = vadd.f32 0.0, %v2364
    %v2366 = vpop.f32.mrf.mxu0
    %v2367 = vadd.f32 0.0, %v2366
    %2368 = vmatmul.bf16.gmra.mxu0 %v2271
    %v2369 = vpop.f32.mrf.mxu0
    %v2370 = vadd.f32 0.0, %v2369
    %v2371 = vpop.f32.mrf.mxu0
    %v2372 = vadd.f32 0.0, %v2371
    %2373 = vmatmul.bf16.gmra.mxu0 %v2272
    %v2374 = vpop.f32.mrf.mxu0
    %v2375 = vadd.f32 0.0, %v2374
    %v2376 = vpop.f32.mrf.mxu0
    %v2377 = vadd.f32 0.0, %v2376
    %2378 = vmatmul.bf16.gmra.mxu0 %v2273
    %v2379 = vpop.f32.mrf.mxu0
    %v2380 = vadd.f32 0.0, %v2379
    %v2381 = vpop.f32.mrf.mxu0
    %v2382 = vadd.f32 0.0, %v2381
    %2383 = vmatmul.bf16.gmra.mxu0 %v2274
    %v2384 = vpop.f32.mrf.mxu0
    %v2385 = vadd.f32 0.0, %v2384
    %v2386 = vpop.f32.mrf.mxu0
    %v2387 = vadd.f32 0.0, %v2386
    %2388 = vdwg.mxu0
    %v2389 = vadd.f32 %v2155, %v2350
    %v2390 = vadd.f32 %v2156, %v2352
    %v2391 = vadd.f32 %v2157, %v2355
    %v2392 = vadd.f32 %v2158, %v2357
    %v2393 = vadd.f32 %v2159, %v2360
    %v2394 = vadd.f32 %v2160, %v2362
    %v2395 = vadd.f32 %v2161, %v2365
    %v2396 = vadd.f32 %v2162, %v2367
    %v2397 = vadd.f32 %v2163, %v2370
    %v2398 = vadd.f32 %v2164, %v2372
    %v2399 = vadd.f32 %v2165, %v2375
    %v2400 = vadd.f32 %v2166, %v2377
    %v2401 = vadd.f32 %v2167, %v2380
    %v2402 = vadd.f32 %v2168, %v2382
    %v2403 = vadd.f32 %v2169, %v2385
    %v2404 = vadd.f32 %v2170, %v2387
    %2405 = vset.pattern.permute.xlu0 10
    %2406 = vperm.xlu0 %2405, %v80
    %v2407 = vpop.permute.xlu0 %2406
    %2408 = vset.pattern.permute.xlu0 10
    %2409 = vperm.xlu0 %2408, %v81
    %v2410 = vpop.permute.xlu0 %2409
    %2411 = vset.pattern.permute.xlu0 10
    %2412 = vperm.xlu0 %2411, %v82
    %v2413 = vpop.permute.xlu0 %2412
    %2414 = vset.pattern.permute.xlu0 10
    %2415 = vperm.xlu0 %2414, %v83
    %v2416 = vpop.permute.xlu0 %2415
    %2417 = vset.pattern.permute.xlu0 10
    %2418 = vperm.xlu0 %2417, %v84
    %v2419 = vpop.permute.xlu0 %2418
    %2420 = vset.pattern.permute.xlu0 10
    %2421 = vperm.xlu0 %2420, %v85
    %v2422 = vpop.permute.xlu0 %2421
    %2423 = vset.pattern.permute.xlu0 10
    %2424 = vperm.xlu0 %2423, %v86
    %v2425 = vpop.permute.xlu0 %2424
    %2426 = vset.pattern.permute.xlu0 10
    %2427 = vperm.xlu0 %2426, %v87
    %v2428 = vpop.permute.xlu0 %2427
    %2429 = vset.pattern.permute.xlu0 10
    %2430 = vperm.xlu0 %2429, %v88
    %v2431 = vpop.permute.xlu0 %2430
    %2432 = vset.pattern.permute.xlu0 10
    %2433 = vperm.xlu0 %2432, %v89
    %v2434 = vpop.permute.xlu0 %2433
    %2435 = vset.pattern.permute.xlu0 10
    %2436 = vperm.xlu0 %2435, %v90
    %v2437 = vpop.permute.xlu0 %2436
    %2438 = vset.pattern.permute.xlu0 10
    %2439 = vperm.xlu0 %2438, %v91
    %v2440 = vpop.permute.xlu0 %2439
    %2441 = vset.pattern.permute.xlu0 10
    %2442 = vperm.xlu0 %2441, %v92
    %v2443 = vpop.permute.xlu0 %2442
    %2444 = vset.pattern.permute.xlu0 10
    %2445 = vperm.xlu0 %2444, %v93
    %v2446 = vpop.permute.xlu0 %2445
    %2447 = vset.pattern.permute.xlu0 10
    %2448 = vperm.xlu0 %2447, %v94
    %v2449 = vpop.permute.xlu0 %2448
    %2450 = vset.pattern.permute.xlu0 10
    %2451 = vperm.xlu0 %2450, %v95
    %v2452 = vpop.permute.xlu0 %2451
    %vm2453 = vcmp.eq.s32.totalorder %v97, %v2407
    %vm2454 = vcmp.eq.s32.totalorder %v97, %v2410
    %vm2455 = vcmp.eq.s32.totalorder %v97, %v2413
    %vm2456 = vcmp.eq.s32.totalorder %v97, %v2416
    %vm2457 = vcmp.eq.s32.totalorder %v97, %v2419
    %vm2458 = vcmp.eq.s32.totalorder %v97, %v2422
    %vm2459 = vcmp.eq.s32.totalorder %v97, %v2425
    %vm2460 = vcmp.eq.s32.totalorder %v97, %v2428
    %vm2461 = vcmp.eq.s32.totalorder %v97, %v2431
    %vm2462 = vcmp.eq.s32.totalorder %v97, %v2434
    %vm2463 = vcmp.eq.s32.totalorder %v97, %v2437
    %vm2464 = vcmp.eq.s32.totalorder %v97, %v2440
    %vm2465 = vcmp.eq.s32.totalorder %v97, %v2443
    %vm2466 = vcmp.eq.s32.totalorder %v97, %v2446
    %vm2467 = vcmp.eq.s32.totalorder %v97, %v2449
    %vm2468 = vcmp.eq.s32.totalorder %v97, %v2452
    %v2469 = vsel %vm2453, 1, 0
    %v2470 = vsel %vm2454, 1, 0
    %v2471 = vsel %vm2455, 1, 0
    %v2472 = vsel %vm2456, 1, 0
    %v2473 = vsel %vm2457, 1, 0
    %v2474 = vsel %vm2458, 1, 0
    %v2475 = vsel %vm2459, 1, 0
    %v2476 = vsel %vm2460, 1, 0
    %v2477 = vsel %vm2461, 1, 0
    %v2478 = vsel %vm2462, 1, 0
    %v2479 = vsel %vm2463, 1, 0
    %v2480 = vsel %vm2464, 1, 0
    %v2481 = vsel %vm2465, 1, 0
    %v2482 = vsel %vm2466, 1, 0
    %v2483 = vsel %vm2467, 1, 0
    %v2484 = vsel %vm2468, 1, 0
    %v2485 = vcvt.s32.f32 %v2469
    %v2486 = vcvt.s32.f32 %v2470
    %v2487 = vcvt.s32.f32 %v2471
    %v2488 = vcvt.s32.f32 %v2472
    %v2489 = vcvt.s32.f32 %v2473
    %v2490 = vcvt.s32.f32 %v2474
    %v2491 = vcvt.s32.f32 %v2475
    %v2492 = vcvt.s32.f32 %v2476
    %v2493 = vcvt.s32.f32 %v2477
    %v2494 = vcvt.s32.f32 %v2478
    %v2495 = vcvt.s32.f32 %v2479
    %v2496 = vcvt.s32.f32 %v2480
    %v2497 = vcvt.s32.f32 %v2481
    %v2498 = vcvt.s32.f32 %v2482
    %v2499 = vcvt.s32.f32 %v2483
    %v2500 = vcvt.s32.f32 %v2484
    %v2501 = vpack.c.bf16 %v2486, %v2485
    %v2502 = vpack.c.bf16 %v2488, %v2487
    %v2503 = vpack.c.bf16 %v2490, %v2489
    %v2504 = vpack.c.bf16 %v2492, %v2491
    %v2505 = vpack.c.bf16 %v2494, %v2493
    %v2506 = vpack.c.bf16 %v2496, %v2495
    %v2507 = vpack.c.bf16 %v2498, %v2497
    %v2508 = vpack.c.bf16 %v2500, %v2499
    %s2509 = scalar_lea.vmem [#allocation2], 640
    %v2510 = vld [vmem:[%s2509] sm:$0xf]
    %v2511 = vld [vmem:[%s2509 + $0x4] sm:$0xf]
    %v2512 = vld [vmem:[%s2509 + $0x8] sm:$0xf]
    %v2513 = vld [vmem:[%s2509 + $0xc] sm:$0xf]
    %v2514 = vld [vmem:[%s2509 + $0x10] sm:$0xf]
    %v2515 = vld [vmem:[%s2509 + $0x14] sm:$0xf]
    %v2516 = vld [vmem:[%s2509 + $0x18] sm:$0xf]
    %v2517 = vld [vmem:[%s2509 + $0x1c] sm:$0xf]
    %v2518 = vld [vmem:[%s2509 + $0x20] sm:$0xf]
    %v2519 = vld [vmem:[%s2509 + $0x24] sm:$0xf]
    %v2520 = vld [vmem:[%s2509 + $0x28] sm:$0xf]
    %v2521 = vld [vmem:[%s2509 + $0x2c] sm:$0xf]
    %v2522 = vld [vmem:[%s2509 + $0x30] sm:$0xf]
    %v2523 = vld [vmem:[%s2509 + $0x34] sm:$0xf]
    %v2524 = vld [vmem:[%s2509 + $0x38] sm:$0xf]
    %v2525 = vld [vmem:[%s2509 + $0x3c] sm:$0xf]
    %v2542 = vunpack.c.l.b16 %v2510
    %v2543 = vunpack.c.l.b16 %v2511
    %v2544 = vunpack.c.l.b16 %v2512
    %v2545 = vunpack.c.l.b16 %v2513
    %v2546 = vunpack.c.l.b16 %v2514
    %v2547 = vunpack.c.l.b16 %v2515
    %v2548 = vunpack.c.l.b16 %v2516
    %v2549 = vunpack.c.l.b16 %v2517
    %v2550 = vunpack.c.l.b16 %v2518
    %v2551 = vunpack.c.l.b16 %v2519
    %v2552 = vunpack.c.l.b16 %v2520
    %v2553 = vunpack.c.l.b16 %v2521
    %v2554 = vunpack.c.l.b16 %v2522
    %v2555 = vunpack.c.l.b16 %v2523
    %v2556 = vunpack.c.l.b16 %v2524
    %v2557 = vunpack.c.l.b16 %v2525
    %v2558 = vpack.c.b16 %v2543, %v2542
    %v2559 = vpack.c.b16 %v2545, %v2544
    %v2560 = vpack.c.b16 %v2547, %v2546
    %v2561 = vpack.c.b16 %v2549, %v2548
    %v2562 = vpack.c.b16 %v2551, %v2550
    %v2563 = vpack.c.b16 %v2553, %v2552
    %v2564 = vpack.c.b16 %v2555, %v2554
    %v2565 = vpack.c.b16 %v2557, %v2556
    %2574 = vmatpush.bf16.msra.mxu0 %v2565
    %2575 = vmatpush.bf16.msra.mxu0 %v2564
    %2576 = vmatpush.bf16.msra.mxu0 %v2563
    %2577 = vmatpush.bf16.msra.mxu0 %v2562
    %2578 = vmatpush.bf16.msra.mxu0 %v2561
    %2579 = vmatpush.bf16.msra.mxu0 %v2560
    %2580 = vmatpush.bf16.msra.mxu0 %v2559
    %2581 = vmatpush.bf16.msra.mxu0 %v2558
    %2582 = vmatmul.bf16.gmra.mxu0 %v2501
    %v2583 = vpop.f32.mrf.mxu0
    %v2584 = vadd.f32 0.0, %v2583
    %v2585 = vpop.f32.mrf.mxu0
    %v2586 = vadd.f32 0.0, %v2585
    %2587 = vmatmul.bf16.gmra.mxu0 %v2502
    %v2588 = vpop.f32.mrf.mxu0
    %v2589 = vadd.f32 0.0, %v2588
    %v2590 = vpop.f32.mrf.mxu0
    %v2591 = vadd.f32 0.0, %v2590
    %2592 = vmatmul.bf16.gmra.mxu0 %v2503
    %v2593 = vpop.f32.mrf.mxu0
    %v2594 = vadd.f32 0.0, %v2593
    %v2595 = vpop.f32.mrf.mxu0
    %v2596 = vadd.f32 0.0, %v2595
    %2597 = vmatmul.bf16.gmra.mxu0 %v2504
    %v2598 = vpop.f32.mrf.mxu0
    %v2599 = vadd.f32 0.0, %v2598
    %v2600 = vpop.f32.mrf.mxu0
    %v2601 = vadd.f32 0.0, %v2600
    %2602 = vmatmul.bf16.gmra.mxu0 %v2505
    %v2603 = vpop.f32.mrf.mxu0
    %v2604 = vadd.f32 0.0, %v2603
    %v2605 = vpop.f32.mrf.mxu0
    %v2606 = vadd.f32 0.0, %v2605
    %2607 = vmatmul.bf16.gmra.mxu0 %v2506
    %v2608 = vpop.f32.mrf.mxu0
    %v2609 = vadd.f32 0.0, %v2608
    %v2610 = vpop.f32.mrf.mxu0
    %v2611 = vadd.f32 0.0, %v2610
    %2612 = vmatmul.bf16.gmra.mxu0 %v2507
    %v2613 = vpop.f32.mrf.mxu0
    %v2614 = vadd.f32 0.0, %v2613
    %v2615 = vpop.f32.mrf.mxu0
    %v2616 = vadd.f32 0.0, %v2615
    %2617 = vmatmul.bf16.gmra.mxu0 %v2508
    %v2618 = vpop.f32.mrf.mxu0
    %v2619 = vadd.f32 0.0, %v2618
    %v2620 = vpop.f32.mrf.mxu0
    %v2621 = vadd.f32 0.0, %v2620
    %2622 = vdwg.mxu0
    %v2623 = vadd.f32 %v2389, %v2584
    %v2624 = vadd.f32 %v2390, %v2586
    %v2625 = vadd.f32 %v2391, %v2589
    %v2626 = vadd.f32 %v2392, %v2591
    %v2627 = vadd.f32 %v2393, %v2594
    %v2628 = vadd.f32 %v2394, %v2596
    %v2629 = vadd.f32 %v2395, %v2599
    %v2630 = vadd.f32 %v2396, %v2601
    %v2631 = vadd.f32 %v2397, %v2604
    %v2632 = vadd.f32 %v2398, %v2606
    %v2633 = vadd.f32 %v2399, %v2609
    %v2634 = vadd.f32 %v2400, %v2611
    %v2635 = vadd.f32 %v2401, %v2614
    %v2636 = vadd.f32 %v2402, %v2616
    %v2637 = vadd.f32 %v2403, %v2619
    %v2638 = vadd.f32 %v2404, %v2621
    %2639 = vset.pattern.permute.xlu0 11
    %2640 = vperm.xlu0 %2639, %v80
    %v2641 = vpop.permute.xlu0 %2640
    %2642 = vset.pattern.permute.xlu0 11
    %2643 = vperm.xlu0 %2642, %v81
    %v2644 = vpop.permute.xlu0 %2643
    %2645 = vset.pattern.permute.xlu0 11
    %2646 = vperm.xlu0 %2645, %v82
    %v2647 = vpop.permute.xlu0 %2646
    %2648 = vset.pattern.permute.xlu0 11
    %2649 = vperm.xlu0 %2648, %v83
    %v2650 = vpop.permute.xlu0 %2649
    %2651 = vset.pattern.permute.xlu0 11
    %2652 = vperm.xlu0 %2651, %v84
    %v2653 = vpop.permute.xlu0 %2652
    %2654 = vset.pattern.permute.xlu0 11
    %2655 = vperm.xlu0 %2654, %v85
    %v2656 = vpop.permute.xlu0 %2655
    %2657 = vset.pattern.permute.xlu0 11
    %2658 = vperm.xlu0 %2657, %v86
    %v2659 = vpop.permute.xlu0 %2658
    %2660 = vset.pattern.permute.xlu0 11
    %2661 = vperm.xlu0 %2660, %v87
    %v2662 = vpop.permute.xlu0 %2661
    %2663 = vset.pattern.permute.xlu0 11
    %2664 = vperm.xlu0 %2663, %v88
    %v2665 = vpop.permute.xlu0 %2664
    %2666 = vset.pattern.permute.xlu0 11
    %2667 = vperm.xlu0 %2666, %v89
    %v2668 = vpop.permute.xlu0 %2667
    %2669 = vset.pattern.permute.xlu0 11
    %2670 = vperm.xlu0 %2669, %v90
    %v2671 = vpop.permute.xlu0 %2670
    %2672 = vset.pattern.permute.xlu0 11
    %2673 = vperm.xlu0 %2672, %v91
    %v2674 = vpop.permute.xlu0 %2673
    %2675 = vset.pattern.permute.xlu0 11
    %2676 = vperm.xlu0 %2675, %v92
    %v2677 = vpop.permute.xlu0 %2676
    %2678 = vset.pattern.permute.xlu0 11
    %2679 = vperm.xlu0 %2678, %v93
    %v2680 = vpop.permute.xlu0 %2679
    %2681 = vset.pattern.permute.xlu0 11
    %2682 = vperm.xlu0 %2681, %v94
    %v2683 = vpop.permute.xlu0 %2682
    %2684 = vset.pattern.permute.xlu0 11
    %2685 = vperm.xlu0 %2684, %v95
    %v2686 = vpop.permute.xlu0 %2685
    %vm2687 = vcmp.eq.s32.totalorder %v97, %v2641
    %vm2688 = vcmp.eq.s32.totalorder %v97, %v2644
    %vm2689 = vcmp.eq.s32.totalorder %v97, %v2647
    %vm2690 = vcmp.eq.s32.totalorder %v97, %v2650
    %vm2691 = vcmp.eq.s32.totalorder %v97, %v2653
    %vm2692 = vcmp.eq.s32.totalorder %v97, %v2656
    %vm2693 = vcmp.eq.s32.totalorder %v97, %v2659
    %vm2694 = vcmp.eq.s32.totalorder %v97, %v2662
    %vm2695 = vcmp.eq.s32.totalorder %v97, %v2665
    %vm2696 = vcmp.eq.s32.totalorder %v97, %v2668
    %vm2697 = vcmp.eq.s32.totalorder %v97, %v2671
    %vm2698 = vcmp.eq.s32.totalorder %v97, %v2674
    %vm2699 = vcmp.eq.s32.totalorder %v97, %v2677
    %vm2700 = vcmp.eq.s32.totalorder %v97, %v2680
    %vm2701 = vcmp.eq.s32.totalorder %v97, %v2683
    %vm2702 = vcmp.eq.s32.totalorder %v97, %v2686
    %v2703 = vsel %vm2687, 1, 0
    %v2704 = vsel %vm2688, 1, 0
    %v2705 = vsel %vm2689, 1, 0
    %v2706 = vsel %vm2690, 1, 0
    %v2707 = vsel %vm2691, 1, 0
    %v2708 = vsel %vm2692, 1, 0
    %v2709 = vsel %vm2693, 1, 0
    %v2710 = vsel %vm2694, 1, 0
    %v2711 = vsel %vm2695, 1, 0
    %v2712 = vsel %vm2696, 1, 0
    %v2713 = vsel %vm2697, 1, 0
    %v2714 = vsel %vm2698, 1, 0
    %v2715 = vsel %vm2699, 1, 0
    %v2716 = vsel %vm2700, 1, 0
    %v2717 = vsel %vm2701, 1, 0
    %v2718 = vsel %vm2702, 1, 0
    %v2719 = vcvt.s32.f32 %v2703
    %v2720 = vcvt.s32.f32 %v2704
    %v2721 = vcvt.s32.f32 %v2705
    %v2722 = vcvt.s32.f32 %v2706
    %v2723 = vcvt.s32.f32 %v2707
    %v2724 = vcvt.s32.f32 %v2708
    %v2725 = vcvt.s32.f32 %v2709
    %v2726 = vcvt.s32.f32 %v2710
    %v2727 = vcvt.s32.f32 %v2711
    %v2728 = vcvt.s32.f32 %v2712
    %v2729 = vcvt.s32.f32 %v2713
    %v2730 = vcvt.s32.f32 %v2714
    %v2731 = vcvt.s32.f32 %v2715
    %v2732 = vcvt.s32.f32 %v2716
    %v2733 = vcvt.s32.f32 %v2717
    %v2734 = vcvt.s32.f32 %v2718
    %v2735 = vpack.c.bf16 %v2720, %v2719
    %v2736 = vpack.c.bf16 %v2722, %v2721
    %v2737 = vpack.c.bf16 %v2724, %v2723
    %v2738 = vpack.c.bf16 %v2726, %v2725
    %v2739 = vpack.c.bf16 %v2728, %v2727
    %v2740 = vpack.c.bf16 %v2730, %v2729
    %v2741 = vpack.c.bf16 %v2732, %v2731
    %v2742 = vpack.c.bf16 %v2734, %v2733
    %s2743 = scalar_lea.vmem [#allocation2], 704
    %v2744 = vld [vmem:[%s2743] sm:$0xf]
    %v2745 = vld [vmem:[%s2743 + $0x4] sm:$0xf]
    %v2746 = vld [vmem:[%s2743 + $0x8] sm:$0xf]
    %v2747 = vld [vmem:[%s2743 + $0xc] sm:$0xf]
    %v2748 = vld [vmem:[%s2743 + $0x10] sm:$0xf]
    %v2749 = vld [vmem:[%s2743 + $0x14] sm:$0xf]
    %v2750 = vld [vmem:[%s2743 + $0x18] sm:$0xf]
    %v2751 = vld [vmem:[%s2743 + $0x1c] sm:$0xf]
    %v2752 = vld [vmem:[%s2743 + $0x20] sm:$0xf]
    %v2753 = vld [vmem:[%s2743 + $0x24] sm:$0xf]
    %v2754 = vld [vmem:[%s2743 + $0x28] sm:$0xf]
    %v2755 = vld [vmem:[%s2743 + $0x2c] sm:$0xf]
    %v2756 = vld [vmem:[%s2743 + $0x30] sm:$0xf]
    %v2757 = vld [vmem:[%s2743 + $0x34] sm:$0xf]
    %v2758 = vld [vmem:[%s2743 + $0x38] sm:$0xf]
    %v2759 = vld [vmem:[%s2743 + $0x3c] sm:$0xf]
    %v2776 = vunpack.c.l.b16 %v2744
    %v2777 = vunpack.c.l.b16 %v2745
    %v2778 = vunpack.c.l.b16 %v2746
    %v2779 = vunpack.c.l.b16 %v2747
    %v2780 = vunpack.c.l.b16 %v2748
    %v2781 = vunpack.c.l.b16 %v2749
    %v2782 = vunpack.c.l.b16 %v2750
    %v2783 = vunpack.c.l.b16 %v2751
    %v2784 = vunpack.c.l.b16 %v2752
    %v2785 = vunpack.c.l.b16 %v2753
    %v2786 = vunpack.c.l.b16 %v2754
    %v2787 = vunpack.c.l.b16 %v2755
    %v2788 = vunpack.c.l.b16 %v2756
    %v2789 = vunpack.c.l.b16 %v2757
    %v2790 = vunpack.c.l.b16 %v2758
    %v2791 = vunpack.c.l.b16 %v2759
    %v2792 = vpack.c.b16 %v2777, %v2776
    %v2793 = vpack.c.b16 %v2779, %v2778
    %v2794 = vpack.c.b16 %v2781, %v2780
    %v2795 = vpack.c.b16 %v2783, %v2782
    %v2796 = vpack.c.b16 %v2785, %v2784
    %v2797 = vpack.c.b16 %v2787, %v2786
    %v2798 = vpack.c.b16 %v2789, %v2788
    %v2799 = vpack.c.b16 %v2791, %v2790
    %2808 = vmatpush.bf16.msra.mxu0 %v2799
    %2809 = vmatpush.bf16.msra.mxu0 %v2798
    %2810 = vmatpush.bf16.msra.mxu0 %v2797
    %2811 = vmatpush.bf16.msra.mxu0 %v2796
    %2812 = vmatpush.bf16.msra.mxu0 %v2795
    %2813 = vmatpush.bf16.msra.mxu0 %v2794
    %2814 = vmatpush.bf16.msra.mxu0 %v2793
    %2815 = vmatpush.bf16.msra.mxu0 %v2792
    %2816 = vmatmul.bf16.gmra.mxu0 %v2735
    %v2817 = vpop.f32.mrf.mxu0
    %v2818 = vadd.f32 0.0, %v2817
    %v2819 = vpop.f32.mrf.mxu0
    %v2820 = vadd.f32 0.0, %v2819
    %2821 = vmatmul.bf16.gmra.mxu0 %v2736
    %v2822 = vpop.f32.mrf.mxu0
    %v2823 = vadd.f32 0.0, %v2822
    %v2824 = vpop.f32.mrf.mxu0
    %v2825 = vadd.f32 0.0, %v2824
    %2826 = vmatmul.bf16.gmra.mxu0 %v2737
    %v2827 = vpop.f32.mrf.mxu0
    %v2828 = vadd.f32 0.0, %v2827
    %v2829 = vpop.f32.mrf.mxu0
    %v2830 = vadd.f32 0.0, %v2829
    %2831 = vmatmul.bf16.gmra.mxu0 %v2738
    %v2832 = vpop.f32.mrf.mxu0
    %v2833 = vadd.f32 0.0, %v2832
    %v2834 = vpop.f32.mrf.mxu0
    %v2835 = vadd.f32 0.0, %v2834
    %2836 = vmatmul.bf16.gmra.mxu0 %v2739
    %v2837 = vpop.f32.mrf.mxu0
    %v2838 = vadd.f32 0.0, %v2837
    %v2839 = vpop.f32.mrf.mxu0
    %v2840 = vadd.f32 0.0, %v2839
    %2841 = vmatmul.bf16.gmra.mxu0 %v2740
    %v2842 = vpop.f32.mrf.mxu0
    %v2843 = vadd.f32 0.0, %v2842
    %v2844 = vpop.f32.mrf.mxu0
    %v2845 = vadd.f32 0.0, %v2844
    %2846 = vmatmul.bf16.gmra.mxu0 %v2741
    %v2847 = vpop.f32.mrf.mxu0
    %v2848 = vadd.f32 0.0, %v2847
    %v2849 = vpop.f32.mrf.mxu0
    %v2850 = vadd.f32 0.0, %v2849
    %2851 = vmatmul.bf16.gmra.mxu0 %v2742
    %v2852 = vpop.f32.mrf.mxu0
    %v2853 = vadd.f32 0.0, %v2852
    %v2854 = vpop.f32.mrf.mxu0
    %v2855 = vadd.f32 0.0, %v2854
    %2856 = vdwg.mxu0
    %v2857 = vadd.f32 %v2623, %v2818
    %v2858 = vadd.f32 %v2624, %v2820
    %v2859 = vadd.f32 %v2625, %v2823
    %v2860 = vadd.f32 %v2626, %v2825
    %v2861 = vadd.f32 %v2627, %v2828
    %v2862 = vadd.f32 %v2628, %v2830
    %v2863 = vadd.f32 %v2629, %v2833
    %v2864 = vadd.f32 %v2630, %v2835
    %v2865 = vadd.f32 %v2631, %v2838
    %v2866 = vadd.f32 %v2632, %v2840
    %v2867 = vadd.f32 %v2633, %v2843
    %v2868 = vadd.f32 %v2634, %v2845
    %v2869 = vadd.f32 %v2635, %v2848
    %v2870 = vadd.f32 %v2636, %v2850
    %v2871 = vadd.f32 %v2637, %v2853
    %v2872 = vadd.f32 %v2638, %v2855
    %2873 = vset.pattern.permute.xlu0 12
    %2874 = vperm.xlu0 %2873, %v80
    %v2875 = vpop.permute.xlu0 %2874
    %2876 = vset.pattern.permute.xlu0 12
    %2877 = vperm.xlu0 %2876, %v81
    %v2878 = vpop.permute.xlu0 %2877
    %2879 = vset.pattern.permute.xlu0 12
    %2880 = vperm.xlu0 %2879, %v82
    %v2881 = vpop.permute.xlu0 %2880
    %2882 = vset.pattern.permute.xlu0 12
    %2883 = vperm.xlu0 %2882, %v83
    %v2884 = vpop.permute.xlu0 %2883
    %2885 = vset.pattern.permute.xlu0 12
    %2886 = vperm.xlu0 %2885, %v84
    %v2887 = vpop.permute.xlu0 %2886
    %2888 = vset.pattern.permute.xlu0 12
    %2889 = vperm.xlu0 %2888, %v85
    %v2890 = vpop.permute.xlu0 %2889
    %2891 = vset.pattern.permute.xlu0 12
    %2892 = vperm.xlu0 %2891, %v86
    %v2893 = vpop.permute.xlu0 %2892
    %2894 = vset.pattern.permute.xlu0 12
    %2895 = vperm.xlu0 %2894, %v87
    %v2896 = vpop.permute.xlu0 %2895
    %2897 = vset.pattern.permute.xlu0 12
    %2898 = vperm.xlu0 %2897, %v88
    %v2899 = vpop.permute.xlu0 %2898
    %2900 = vset.pattern.permute.xlu0 12
    %2901 = vperm.xlu0 %2900, %v89
    %v2902 = vpop.permute.xlu0 %2901
    %2903 = vset.pattern.permute.xlu0 12
    %2904 = vperm.xlu0 %2903, %v90
    %v2905 = vpop.permute.xlu0 %2904
    %2906 = vset.pattern.permute.xlu0 12
    %2907 = vperm.xlu0 %2906, %v91
    %v2908 = vpop.permute.xlu0 %2907
    %2909 = vset.pattern.permute.xlu0 12
    %2910 = vperm.xlu0 %2909, %v92
    %v2911 = vpop.permute.xlu0 %2910
    %2912 = vset.pattern.permute.xlu0 12
    %2913 = vperm.xlu0 %2912, %v93
    %v2914 = vpop.permute.xlu0 %2913
    %2915 = vset.pattern.permute.xlu0 12
    %2916 = vperm.xlu0 %2915, %v94
    %v2917 = vpop.permute.xlu0 %2916
    %2918 = vset.pattern.permute.xlu0 12
    %2919 = vperm.xlu0 %2918, %v95
    %v2920 = vpop.permute.xlu0 %2919
    %vm2921 = vcmp.eq.s32.totalorder %v97, %v2875
    %vm2922 = vcmp.eq.s32.totalorder %v97, %v2878
    %vm2923 = vcmp.eq.s32.totalorder %v97, %v2881
    %vm2924 = vcmp.eq.s32.totalorder %v97, %v2884
    %vm2925 = vcmp.eq.s32.totalorder %v97, %v2887
    %vm2926 = vcmp.eq.s32.totalorder %v97, %v2890
    %vm2927 = vcmp.eq.s32.totalorder %v97, %v2893
    %vm2928 = vcmp.eq.s32.totalorder %v97, %v2896
    %vm2929 = vcmp.eq.s32.totalorder %v97, %v2899
    %vm2930 = vcmp.eq.s32.totalorder %v97, %v2902
    %vm2931 = vcmp.eq.s32.totalorder %v97, %v2905
    %vm2932 = vcmp.eq.s32.totalorder %v97, %v2908
    %vm2933 = vcmp.eq.s32.totalorder %v97, %v2911
    %vm2934 = vcmp.eq.s32.totalorder %v97, %v2914
    %vm2935 = vcmp.eq.s32.totalorder %v97, %v2917
    %vm2936 = vcmp.eq.s32.totalorder %v97, %v2920
    %v2937 = vsel %vm2921, 1, 0
    %v2938 = vsel %vm2922, 1, 0
    %v2939 = vsel %vm2923, 1, 0
    %v2940 = vsel %vm2924, 1, 0
    %v2941 = vsel %vm2925, 1, 0
    %v2942 = vsel %vm2926, 1, 0
    %v2943 = vsel %vm2927, 1, 0
    %v2944 = vsel %vm2928, 1, 0
    %v2945 = vsel %vm2929, 1, 0
    %v2946 = vsel %vm2930, 1, 0
    %v2947 = vsel %vm2931, 1, 0
    %v2948 = vsel %vm2932, 1, 0
    %v2949 = vsel %vm2933, 1, 0
    %v2950 = vsel %vm2934, 1, 0
    %v2951 = vsel %vm2935, 1, 0
    %v2952 = vsel %vm2936, 1, 0
    %v2953 = vcvt.s32.f32 %v2937
    %v2954 = vcvt.s32.f32 %v2938
    %v2955 = vcvt.s32.f32 %v2939
    %v2956 = vcvt.s32.f32 %v2940
    %v2957 = vcvt.s32.f32 %v2941
    %v2958 = vcvt.s32.f32 %v2942
    %v2959 = vcvt.s32.f32 %v2943
    %v2960 = vcvt.s32.f32 %v2944
    %v2961 = vcvt.s32.f32 %v2945
    %v2962 = vcvt.s32.f32 %v2946
    %v2963 = vcvt.s32.f32 %v2947
    %v2964 = vcvt.s32.f32 %v2948
    %v2965 = vcvt.s32.f32 %v2949
    %v2966 = vcvt.s32.f32 %v2950
    %v2967 = vcvt.s32.f32 %v2951
    %v2968 = vcvt.s32.f32 %v2952
    %v2969 = vpack.c.bf16 %v2954, %v2953
    %v2970 = vpack.c.bf16 %v2956, %v2955
    %v2971 = vpack.c.bf16 %v2958, %v2957
    %v2972 = vpack.c.bf16 %v2960, %v2959
    %v2973 = vpack.c.bf16 %v2962, %v2961
    %v2974 = vpack.c.bf16 %v2964, %v2963
    %v2975 = vpack.c.bf16 %v2966, %v2965
    %v2976 = vpack.c.bf16 %v2968, %v2967
    %s2977 = scalar_lea.vmem [#allocation2], 768
    %v2978 = vld [vmem:[%s2977] sm:$0xf]
    %v2979 = vld [vmem:[%s2977 + $0x4] sm:$0xf]
    %v2980 = vld [vmem:[%s2977 + $0x8] sm:$0xf]
    %v2981 = vld [vmem:[%s2977 + $0xc] sm:$0xf]
    %v2982 = vld [vmem:[%s2977 + $0x10] sm:$0xf]
    %v2983 = vld [vmem:[%s2977 + $0x14] sm:$0xf]
    %v2984 = vld [vmem:[%s2977 + $0x18] sm:$0xf]
    %v2985 = vld [vmem:[%s2977 + $0x1c] sm:$0xf]
    %v2986 = vld [vmem:[%s2977 + $0x20] sm:$0xf]
    %v2987 = vld [vmem:[%s2977 + $0x24] sm:$0xf]
    %v2988 = vld [vmem:[%s2977 + $0x28] sm:$0xf]
    %v2989 = vld [vmem:[%s2977 + $0x2c] sm:$0xf]
    %v2990 = vld [vmem:[%s2977 + $0x30] sm:$0xf]
    %v2991 = vld [vmem:[%s2977 + $0x34] sm:$0xf]
    %v2992 = vld [vmem:[%s2977 + $0x38] sm:$0xf]
    %v2993 = vld [vmem:[%s2977 + $0x3c] sm:$0xf]
    %v3010 = vunpack.c.l.b16 %v2978
    %v3011 = vunpack.c.l.b16 %v2979
    %v3012 = vunpack.c.l.b16 %v2980
    %v3013 = vunpack.c.l.b16 %v2981
    %v3014 = vunpack.c.l.b16 %v2982
    %v3015 = vunpack.c.l.b16 %v2983
    %v3016 = vunpack.c.l.b16 %v2984
    %v3017 = vunpack.c.l.b16 %v2985
    %v3018 = vunpack.c.l.b16 %v2986
    %v3019 = vunpack.c.l.b16 %v2987
    %v3020 = vunpack.c.l.b16 %v2988
    %v3021 = vunpack.c.l.b16 %v2989
    %v3022 = vunpack.c.l.b16 %v2990
    %v3023 = vunpack.c.l.b16 %v2991
    %v3024 = vunpack.c.l.b16 %v2992
    %v3025 = vunpack.c.l.b16 %v2993
    %v3026 = vpack.c.b16 %v3011, %v3010
    %v3027 = vpack.c.b16 %v3013, %v3012
    %v3028 = vpack.c.b16 %v3015, %v3014
    %v3029 = vpack.c.b16 %v3017, %v3016
    %v3030 = vpack.c.b16 %v3019, %v3018
    %v3031 = vpack.c.b16 %v3021, %v3020
    %v3032 = vpack.c.b16 %v3023, %v3022
    %v3033 = vpack.c.b16 %v3025, %v3024
    %3042 = vmatpush.bf16.msra.mxu0 %v3033
    %3043 = vmatpush.bf16.msra.mxu0 %v3032
    %3044 = vmatpush.bf16.msra.mxu0 %v3031
    %3045 = vmatpush.bf16.msra.mxu0 %v3030
    %3046 = vmatpush.bf16.msra.mxu0 %v3029
    %3047 = vmatpush.bf16.msra.mxu0 %v3028
    %3048 = vmatpush.bf16.msra.mxu0 %v3027
    %3049 = vmatpush.bf16.msra.mxu0 %v3026
    %3050 = vmatmul.bf16.gmra.mxu0 %v2969
    %v3051 = vpop.f32.mrf.mxu0
    %v3052 = vadd.f32 0.0, %v3051
    %v3053 = vpop.f32.mrf.mxu0
    %v3054 = vadd.f32 0.0, %v3053
    %3055 = vmatmul.bf16.gmra.mxu0 %v2970
    %v3056 = vpop.f32.mrf.mxu0
    %v3057 = vadd.f32 0.0, %v3056
    %v3058 = vpop.f32.mrf.mxu0
    %v3059 = vadd.f32 0.0, %v3058
    %3060 = vmatmul.bf16.gmra.mxu0 %v2971
    %v3061 = vpop.f32.mrf.mxu0
    %v3062 = vadd.f32 0.0, %v3061
    %v3063 = vpop.f32.mrf.mxu0
    %v3064 = vadd.f32 0.0, %v3063
    %3065 = vmatmul.bf16.gmra.mxu0 %v2972
    %v3066 = vpop.f32.mrf.mxu0
    %v3067 = vadd.f32 0.0, %v3066
    %v3068 = vpop.f32.mrf.mxu0
    %v3069 = vadd.f32 0.0, %v3068
    %3070 = vmatmul.bf16.gmra.mxu0 %v2973
    %v3071 = vpop.f32.mrf.mxu0
    %v3072 = vadd.f32 0.0, %v3071
    %v3073 = vpop.f32.mrf.mxu0
    %v3074 = vadd.f32 0.0, %v3073
    %3075 = vmatmul.bf16.gmra.mxu0 %v2974
    %v3076 = vpop.f32.mrf.mxu0
    %v3077 = vadd.f32 0.0, %v3076
    %v3078 = vpop.f32.mrf.mxu0
    %v3079 = vadd.f32 0.0, %v3078
    %3080 = vmatmul.bf16.gmra.mxu0 %v2975
    %v3081 = vpop.f32.mrf.mxu0
    %v3082 = vadd.f32 0.0, %v3081
    %v3083 = vpop.f32.mrf.mxu0
    %v3084 = vadd.f32 0.0, %v3083
    %3085 = vmatmul.bf16.gmra.mxu0 %v2976
    %v3086 = vpop.f32.mrf.mxu0
    %v3087 = vadd.f32 0.0, %v3086
    %v3088 = vpop.f32.mrf.mxu0
    %v3089 = vadd.f32 0.0, %v3088
    %3090 = vdwg.mxu0
    %v3091 = vadd.f32 %v2857, %v3052
    %v3092 = vadd.f32 %v2858, %v3054
    %v3093 = vadd.f32 %v2859, %v3057
    %v3094 = vadd.f32 %v2860, %v3059
    %v3095 = vadd.f32 %v2861, %v3062
    %v3096 = vadd.f32 %v2862, %v3064
    %v3097 = vadd.f32 %v2863, %v3067
    %v3098 = vadd.f32 %v2864, %v3069
    %v3099 = vadd.f32 %v2865, %v3072
    %v3100 = vadd.f32 %v2866, %v3074
    %v3101 = vadd.f32 %v2867, %v3077
    %v3102 = vadd.f32 %v2868, %v3079
    %v3103 = vadd.f32 %v2869, %v3082
    %v3104 = vadd.f32 %v2870, %v3084
    %v3105 = vadd.f32 %v2871, %v3087
    %v3106 = vadd.f32 %v2872, %v3089
    %3107 = vset.pattern.permute.xlu0 13
    %3108 = vperm.xlu0 %3107, %v80
    %v3109 = vpop.permute.xlu0 %3108
    %3110 = vset.pattern.permute.xlu0 13
    %3111 = vperm.xlu0 %3110, %v81
    %v3112 = vpop.permute.xlu0 %3111
    %3113 = vset.pattern.permute.xlu0 13
    %3114 = vperm.xlu0 %3113, %v82
    %v3115 = vpop.permute.xlu0 %3114
    %3116 = vset.pattern.permute.xlu0 13
    %3117 = vperm.xlu0 %3116, %v83
    %v3118 = vpop.permute.xlu0 %3117
    %3119 = vset.pattern.permute.xlu0 13
    %3120 = vperm.xlu0 %3119, %v84
    %v3121 = vpop.permute.xlu0 %3120
    %3122 = vset.pattern.permute.xlu0 13
    %3123 = vperm.xlu0 %3122, %v85
    %v3124 = vpop.permute.xlu0 %3123
    %3125 = vset.pattern.permute.xlu0 13
    %3126 = vperm.xlu0 %3125, %v86
    %v3127 = vpop.permute.xlu0 %3126
    %3128 = vset.pattern.permute.xlu0 13
    %3129 = vperm.xlu0 %3128, %v87
    %v3130 = vpop.permute.xlu0 %3129
    %3131 = vset.pattern.permute.xlu0 13
    %3132 = vperm.xlu0 %3131, %v88
    %v3133 = vpop.permute.xlu0 %3132
    %3134 = vset.pattern.permute.xlu0 13
    %3135 = vperm.xlu0 %3134, %v89
    %v3136 = vpop.permute.xlu0 %3135
    %3137 = vset.pattern.permute.xlu0 13
    %3138 = vperm.xlu0 %3137, %v90
    %v3139 = vpop.permute.xlu0 %3138
    %3140 = vset.pattern.permute.xlu0 13
    %3141 = vperm.xlu0 %3140, %v91
    %v3142 = vpop.permute.xlu0 %3141
    %3143 = vset.pattern.permute.xlu0 13
    %3144 = vperm.xlu0 %3143, %v92
    %v3145 = vpop.permute.xlu0 %3144
    %3146 = vset.pattern.permute.xlu0 13
    %3147 = vperm.xlu0 %3146, %v93
    %v3148 = vpop.permute.xlu0 %3147
    %3149 = vset.pattern.permute.xlu0 13
    %3150 = vperm.xlu0 %3149, %v94
    %v3151 = vpop.permute.xlu0 %3150
    %3152 = vset.pattern.permute.xlu0 13
    %3153 = vperm.xlu0 %3152, %v95
    %v3154 = vpop.permute.xlu0 %3153
    %vm3155 = vcmp.eq.s32.totalorder %v97, %v3109
    %vm3156 = vcmp.eq.s32.totalorder %v97, %v3112
    %vm3157 = vcmp.eq.s32.totalorder %v97, %v3115
    %vm3158 = vcmp.eq.s32.totalorder %v97, %v3118
    %vm3159 = vcmp.eq.s32.totalorder %v97, %v3121
    %vm3160 = vcmp.eq.s32.totalorder %v97, %v3124
    %vm3161 = vcmp.eq.s32.totalorder %v97, %v3127
    %vm3162 = vcmp.eq.s32.totalorder %v97, %v3130
    %vm3163 = vcmp.eq.s32.totalorder %v97, %v3133
    %vm3164 = vcmp.eq.s32.totalorder %v97, %v3136
    %vm3165 = vcmp.eq.s32.totalorder %v97, %v3139
    %vm3166 = vcmp.eq.s32.totalorder %v97, %v3142
    %vm3167 = vcmp.eq.s32.totalorder %v97, %v3145
    %vm3168 = vcmp.eq.s32.totalorder %v97, %v3148
    %vm3169 = vcmp.eq.s32.totalorder %v97, %v3151
    %vm3170 = vcmp.eq.s32.totalorder %v97, %v3154
    %v3171 = vsel %vm3155, 1, 0
    %v3172 = vsel %vm3156, 1, 0
    %v3173 = vsel %vm3157, 1, 0
    %v3174 = vsel %vm3158, 1, 0
    %v3175 = vsel %vm3159, 1, 0
    %v3176 = vsel %vm3160, 1, 0
    %v3177 = vsel %vm3161, 1, 0
    %v3178 = vsel %vm3162, 1, 0
    %v3179 = vsel %vm3163, 1, 0
    %v3180 = vsel %vm3164, 1, 0
    %v3181 = vsel %vm3165, 1, 0
    %v3182 = vsel %vm3166, 1, 0
    %v3183 = vsel %vm3167, 1, 0
    %v3184 = vsel %vm3168, 1, 0
    %v3185 = vsel %vm3169, 1, 0
    %v3186 = vsel %vm3170, 1, 0
    %v3187 = vcvt.s32.f32 %v3171
    %v3188 = vcvt.s32.f32 %v3172
    %v3189 = vcvt.s32.f32 %v3173
    %v3190 = vcvt.s32.f32 %v3174
    %v3191 = vcvt.s32.f32 %v3175
    %v3192 = vcvt.s32.f32 %v3176
    %v3193 = vcvt.s32.f32 %v3177
    %v3194 = vcvt.s32.f32 %v3178
    %v3195 = vcvt.s32.f32 %v3179
    %v3196 = vcvt.s32.f32 %v3180
    %v3197 = vcvt.s32.f32 %v3181
    %v3198 = vcvt.s32.f32 %v3182
    %v3199 = vcvt.s32.f32 %v3183
    %v3200 = vcvt.s32.f32 %v3184
    %v3201 = vcvt.s32.f32 %v3185
    %v3202 = vcvt.s32.f32 %v3186
    %v3203 = vpack.c.bf16 %v3188, %v3187
    %v3204 = vpack.c.bf16 %v3190, %v3189
    %v3205 = vpack.c.bf16 %v3192, %v3191
    %v3206 = vpack.c.bf16 %v3194, %v3193
    %v3207 = vpack.c.bf16 %v3196, %v3195
    %v3208 = vpack.c.bf16 %v3198, %v3197
    %v3209 = vpack.c.bf16 %v3200, %v3199
    %v3210 = vpack.c.bf16 %v3202, %v3201
    %s3211 = scalar_lea.vmem [#allocation2], 832
    %v3212 = vld [vmem:[%s3211] sm:$0xf]
    %v3213 = vld [vmem:[%s3211 + $0x4] sm:$0xf]
    %v3214 = vld [vmem:[%s3211 + $0x8] sm:$0xf]
    %v3215 = vld [vmem:[%s3211 + $0xc] sm:$0xf]
    %v3216 = vld [vmem:[%s3211 + $0x10] sm:$0xf]
    %v3217 = vld [vmem:[%s3211 + $0x14] sm:$0xf]
    %v3218 = vld [vmem:[%s3211 + $0x18] sm:$0xf]
    %v3219 = vld [vmem:[%s3211 + $0x1c] sm:$0xf]
    %v3220 = vld [vmem:[%s3211 + $0x20] sm:$0xf]
    %v3221 = vld [vmem:[%s3211 + $0x24] sm:$0xf]
    %v3222 = vld [vmem:[%s3211 + $0x28] sm:$0xf]
    %v3223 = vld [vmem:[%s3211 + $0x2c] sm:$0xf]
    %v3224 = vld [vmem:[%s3211 + $0x30] sm:$0xf]
    %v3225 = vld [vmem:[%s3211 + $0x34] sm:$0xf]
    %v3226 = vld [vmem:[%s3211 + $0x38] sm:$0xf]
    %v3227 = vld [vmem:[%s3211 + $0x3c] sm:$0xf]
    %v3244 = vunpack.c.l.b16 %v3212
    %v3245 = vunpack.c.l.b16 %v3213
    %v3246 = vunpack.c.l.b16 %v3214
    %v3247 = vunpack.c.l.b16 %v3215
    %v3248 = vunpack.c.l.b16 %v3216
    %v3249 = vunpack.c.l.b16 %v3217
    %v3250 = vunpack.c.l.b16 %v3218
    %v3251 = vunpack.c.l.b16 %v3219
    %v3252 = vunpack.c.l.b16 %v3220
    %v3253 = vunpack.c.l.b16 %v3221
    %v3254 = vunpack.c.l.b16 %v3222
    %v3255 = vunpack.c.l.b16 %v3223
    %v3256 = vunpack.c.l.b16 %v3224
    %v3257 = vunpack.c.l.b16 %v3225
    %v3258 = vunpack.c.l.b16 %v3226
    %v3259 = vunpack.c.l.b16 %v3227
    %v3260 = vpack.c.b16 %v3245, %v3244
    %v3261 = vpack.c.b16 %v3247, %v3246
    %v3262 = vpack.c.b16 %v3249, %v3248
    %v3263 = vpack.c.b16 %v3251, %v3250
    %v3264 = vpack.c.b16 %v3253, %v3252
    %v3265 = vpack.c.b16 %v3255, %v3254
    %v3266 = vpack.c.b16 %v3257, %v3256
    %v3267 = vpack.c.b16 %v3259, %v3258
    %3276 = vmatpush.bf16.msra.mxu0 %v3267
    %3277 = vmatpush.bf16.msra.mxu0 %v3266
    %3278 = vmatpush.bf16.msra.mxu0 %v3265
    %3279 = vmatpush.bf16.msra.mxu0 %v3264
    %3280 = vmatpush.bf16.msra.mxu0 %v3263
    %3281 = vmatpush.bf16.msra.mxu0 %v3262
    %3282 = vmatpush.bf16.msra.mxu0 %v3261
    %3283 = vmatpush.bf16.msra.mxu0 %v3260
    %3284 = vmatmul.bf16.gmra.mxu0 %v3203
    %v3285 = vpop.f32.mrf.mxu0
    %v3286 = vadd.f32 0.0, %v3285
    %v3287 = vpop.f32.mrf.mxu0
    %v3288 = vadd.f32 0.0, %v3287
    %3289 = vmatmul.bf16.gmra.mxu0 %v3204
    %v3290 = vpop.f32.mrf.mxu0
    %v3291 = vadd.f32 0.0, %v3290
    %v3292 = vpop.f32.mrf.mxu0
    %v3293 = vadd.f32 0.0, %v3292
    %3294 = vmatmul.bf16.gmra.mxu0 %v3205
    %v3295 = vpop.f32.mrf.mxu0
    %v3296 = vadd.f32 0.0, %v3295
    %v3297 = vpop.f32.mrf.mxu0
    %v3298 = vadd.f32 0.0, %v3297
    %3299 = vmatmul.bf16.gmra.mxu0 %v3206
    %v3300 = vpop.f32.mrf.mxu0
    %v3301 = vadd.f32 0.0, %v3300
    %v3302 = vpop.f32.mrf.mxu0
    %v3303 = vadd.f32 0.0, %v3302
    %3304 = vmatmul.bf16.gmra.mxu0 %v3207
    %v3305 = vpop.f32.mrf.mxu0
    %v3306 = vadd.f32 0.0, %v3305
    %v3307 = vpop.f32.mrf.mxu0
    %v3308 = vadd.f32 0.0, %v3307
    %3309 = vmatmul.bf16.gmra.mxu0 %v3208
    %v3310 = vpop.f32.mrf.mxu0
    %v3311 = vadd.f32 0.0, %v3310
    %v3312 = vpop.f32.mrf.mxu0
    %v3313 = vadd.f32 0.0, %v3312
    %3314 = vmatmul.bf16.gmra.mxu0 %v3209
    %v3315 = vpop.f32.mrf.mxu0
    %v3316 = vadd.f32 0.0, %v3315
    %v3317 = vpop.f32.mrf.mxu0
    %v3318 = vadd.f32 0.0, %v3317
    %3319 = vmatmul.bf16.gmra.mxu0 %v3210
    %v3320 = vpop.f32.mrf.mxu0
    %v3321 = vadd.f32 0.0, %v3320
    %v3322 = vpop.f32.mrf.mxu0
    %v3323 = vadd.f32 0.0, %v3322
    %3324 = vdwg.mxu0
    %v3325 = vadd.f32 %v3091, %v3286
    %v3326 = vadd.f32 %v3092, %v3288
    %v3327 = vadd.f32 %v3093, %v3291
    %v3328 = vadd.f32 %v3094, %v3293
    %v3329 = vadd.f32 %v3095, %v3296
    %v3330 = vadd.f32 %v3096, %v3298
    %v3331 = vadd.f32 %v3097, %v3301
    %v3332 = vadd.f32 %v3098, %v3303
    %v3333 = vadd.f32 %v3099, %v3306
    %v3334 = vadd.f32 %v3100, %v3308
    %v3335 = vadd.f32 %v3101, %v3311
    %v3336 = vadd.f32 %v3102, %v3313
    %v3337 = vadd.f32 %v3103, %v3316
    %v3338 = vadd.f32 %v3104, %v3318
    %v3339 = vadd.f32 %v3105, %v3321
    %v3340 = vadd.f32 %v3106, %v3323
    %3341 = vset.pattern.permute.xlu0 14
    %3342 = vperm.xlu0 %3341, %v80
    %v3343 = vpop.permute.xlu0 %3342
    %3344 = vset.pattern.permute.xlu0 14
    %3345 = vperm.xlu0 %3344, %v81
    %v3346 = vpop.permute.xlu0 %3345
    %3347 = vset.pattern.permute.xlu0 14
    %3348 = vperm.xlu0 %3347, %v82
    %v3349 = vpop.permute.xlu0 %3348
    %3350 = vset.pattern.permute.xlu0 14
    %3351 = vperm.xlu0 %3350, %v83
    %v3352 = vpop.permute.xlu0 %3351
    %3353 = vset.pattern.permute.xlu0 14
    %3354 = vperm.xlu0 %3353, %v84
    %v3355 = vpop.permute.xlu0 %3354
    %3356 = vset.pattern.permute.xlu0 14
    %3357 = vperm.xlu0 %3356, %v85
    %v3358 = vpop.permute.xlu0 %3357
    %3359 = vset.pattern.permute.xlu0 14
    %3360 = vperm.xlu0 %3359, %v86
    %v3361 = vpop.permute.xlu0 %3360
    %3362 = vset.pattern.permute.xlu0 14
    %3363 = vperm.xlu0 %3362, %v87
    %v3364 = vpop.permute.xlu0 %3363
    %3365 = vset.pattern.permute.xlu0 14
    %3366 = vperm.xlu0 %3365, %v88
    %v3367 = vpop.permute.xlu0 %3366
    %3368 = vset.pattern.permute.xlu0 14
    %3369 = vperm.xlu0 %3368, %v89
    %v3370 = vpop.permute.xlu0 %3369
    %3371 = vset.pattern.permute.xlu0 14
    %3372 = vperm.xlu0 %3371, %v90
    %v3373 = vpop.permute.xlu0 %3372
    %3374 = vset.pattern.permute.xlu0 14
    %3375 = vperm.xlu0 %3374, %v91
    %v3376 = vpop.permute.xlu0 %3375
    %3377 = vset.pattern.permute.xlu0 14
    %3378 = vperm.xlu0 %3377, %v92
    %v3379 = vpop.permute.xlu0 %3378
    %3380 = vset.pattern.permute.xlu0 14
    %3381 = vperm.xlu0 %3380, %v93
    %v3382 = vpop.permute.xlu0 %3381
    %3383 = vset.pattern.permute.xlu0 14
    %3384 = vperm.xlu0 %3383, %v94
    %v3385 = vpop.permute.xlu0 %3384
    %3386 = vset.pattern.permute.xlu0 14
    %3387 = vperm.xlu0 %3386, %v95
    %v3388 = vpop.permute.xlu0 %3387
    %vm3389 = vcmp.eq.s32.totalorder %v97, %v3343
    %vm3390 = vcmp.eq.s32.totalorder %v97, %v3346
    %vm3391 = vcmp.eq.s32.totalorder %v97, %v3349
    %vm3392 = vcmp.eq.s32.totalorder %v97, %v3352
    %vm3393 = vcmp.eq.s32.totalorder %v97, %v3355
    %vm3394 = vcmp.eq.s32.totalorder %v97, %v3358
    %vm3395 = vcmp.eq.s32.totalorder %v97, %v3361
    %vm3396 = vcmp.eq.s32.totalorder %v97, %v3364
    %vm3397 = vcmp.eq.s32.totalorder %v97, %v3367
    %vm3398 = vcmp.eq.s32.totalorder %v97, %v3370
    %vm3399 = vcmp.eq.s32.totalorder %v97, %v3373
    %vm3400 = vcmp.eq.s32.totalorder %v97, %v3376
    %vm3401 = vcmp.eq.s32.totalorder %v97, %v3379
    %vm3402 = vcmp.eq.s32.totalorder %v97, %v3382
    %vm3403 = vcmp.eq.s32.totalorder %v97, %v3385
    %vm3404 = vcmp.eq.s32.totalorder %v97, %v3388
    %v3405 = vsel %vm3389, 1, 0
    %v3406 = vsel %vm3390, 1, 0
    %v3407 = vsel %vm3391, 1, 0
    %v3408 = vsel %vm3392, 1, 0
    %v3409 = vsel %vm3393, 1, 0
    %v3410 = vsel %vm3394, 1, 0
    %v3411 = vsel %vm3395, 1, 0
    %v3412 = vsel %vm3396, 1, 0
    %v3413 = vsel %vm3397, 1, 0
    %v3414 = vsel %vm3398, 1, 0
    %v3415 = vsel %vm3399, 1, 0
    %v3416 = vsel %vm3400, 1, 0
    %v3417 = vsel %vm3401, 1, 0
    %v3418 = vsel %vm3402, 1, 0
    %v3419 = vsel %vm3403, 1, 0
    %v3420 = vsel %vm3404, 1, 0
    %v3421 = vcvt.s32.f32 %v3405
    %v3422 = vcvt.s32.f32 %v3406
    %v3423 = vcvt.s32.f32 %v3407
    %v3424 = vcvt.s32.f32 %v3408
    %v3425 = vcvt.s32.f32 %v3409
    %v3426 = vcvt.s32.f32 %v3410
    %v3427 = vcvt.s32.f32 %v3411
    %v3428 = vcvt.s32.f32 %v3412
    %v3429 = vcvt.s32.f32 %v3413
    %v3430 = vcvt.s32.f32 %v3414
    %v3431 = vcvt.s32.f32 %v3415
    %v3432 = vcvt.s32.f32 %v3416
    %v3433 = vcvt.s32.f32 %v3417
    %v3434 = vcvt.s32.f32 %v3418
    %v3435 = vcvt.s32.f32 %v3419
    %v3436 = vcvt.s32.f32 %v3420
    %v3437 = vpack.c.bf16 %v3422, %v3421
    %v3438 = vpack.c.bf16 %v3424, %v3423
    %v3439 = vpack.c.bf16 %v3426, %v3425
    %v3440 = vpack.c.bf16 %v3428, %v3427
    %v3441 = vpack.c.bf16 %v3430, %v3429
    %v3442 = vpack.c.bf16 %v3432, %v3431
    %v3443 = vpack.c.bf16 %v3434, %v3433
    %v3444 = vpack.c.bf16 %v3436, %v3435
    %s3445 = scalar_lea.vmem [#allocation2], 896
    %v3446 = vld [vmem:[%s3445] sm:$0xf]
    %v3447 = vld [vmem:[%s3445 + $0x4] sm:$0xf]
    %v3448 = vld [vmem:[%s3445 + $0x8] sm:$0xf]
    %v3449 = vld [vmem:[%s3445 + $0xc] sm:$0xf]
    %v3450 = vld [vmem:[%s3445 + $0x10] sm:$0xf]
    %v3451 = vld [vmem:[%s3445 + $0x14] sm:$0xf]
    %v3452 = vld [vmem:[%s3445 + $0x18] sm:$0xf]
    %v3453 = vld [vmem:[%s3445 + $0x1c] sm:$0xf]
    %v3454 = vld [vmem:[%s3445 + $0x20] sm:$0xf]
    %v3455 = vld [vmem:[%s3445 + $0x24] sm:$0xf]
    %v3456 = vld [vmem:[%s3445 + $0x28] sm:$0xf]
    %v3457 = vld [vmem:[%s3445 + $0x2c] sm:$0xf]
    %v3458 = vld [vmem:[%s3445 + $0x30] sm:$0xf]
    %v3459 = vld [vmem:[%s3445 + $0x34] sm:$0xf]
    %v3460 = vld [vmem:[%s3445 + $0x38] sm:$0xf]
    %v3461 = vld [vmem:[%s3445 + $0x3c] sm:$0xf]
    %v3478 = vunpack.c.l.b16 %v3446
    %v3479 = vunpack.c.l.b16 %v3447
    %v3480 = vunpack.c.l.b16 %v3448
    %v3481 = vunpack.c.l.b16 %v3449
    %v3482 = vunpack.c.l.b16 %v3450
    %v3483 = vunpack.c.l.b16 %v3451
    %v3484 = vunpack.c.l.b16 %v3452
    %v3485 = vunpack.c.l.b16 %v3453
    %v3486 = vunpack.c.l.b16 %v3454
    %v3487 = vunpack.c.l.b16 %v3455
    %v3488 = vunpack.c.l.b16 %v3456
    %v3489 = vunpack.c.l.b16 %v3457
    %v3490 = vunpack.c.l.b16 %v3458
    %v3491 = vunpack.c.l.b16 %v3459
    %v3492 = vunpack.c.l.b16 %v3460
    %v3493 = vunpack.c.l.b16 %v3461
    %v3494 = vpack.c.b16 %v3479, %v3478
    %v3495 = vpack.c.b16 %v3481, %v3480
    %v3496 = vpack.c.b16 %v3483, %v3482
    %v3497 = vpack.c.b16 %v3485, %v3484
    %v3498 = vpack.c.b16 %v3487, %v3486
    %v3499 = vpack.c.b16 %v3489, %v3488
    %v3500 = vpack.c.b16 %v3491, %v3490
    %v3501 = vpack.c.b16 %v3493, %v3492
    %3510 = vmatpush.bf16.msra.mxu0 %v3501
    %3511 = vmatpush.bf16.msra.mxu0 %v3500
    %3512 = vmatpush.bf16.msra.mxu0 %v3499
    %3513 = vmatpush.bf16.msra.mxu0 %v3498
    %3514 = vmatpush.bf16.msra.mxu0 %v3497
    %3515 = vmatpush.bf16.msra.mxu0 %v3496
    %3516 = vmatpush.bf16.msra.mxu0 %v3495
    %3517 = vmatpush.bf16.msra.mxu0 %v3494
    %3518 = vmatmul.bf16.gmra.mxu0 %v3437
    %v3519 = vpop.f32.mrf.mxu0
    %v3520 = vadd.f32 0.0, %v3519
    %v3521 = vpop.f32.mrf.mxu0
    %v3522 = vadd.f32 0.0, %v3521
    %3523 = vmatmul.bf16.gmra.mxu0 %v3438
    %v3524 = vpop.f32.mrf.mxu0
    %v3525 = vadd.f32 0.0, %v3524
    %v3526 = vpop.f32.mrf.mxu0
    %v3527 = vadd.f32 0.0, %v3526
    %3528 = vmatmul.bf16.gmra.mxu0 %v3439
    %v3529 = vpop.f32.mrf.mxu0
    %v3530 = vadd.f32 0.0, %v3529
    %v3531 = vpop.f32.mrf.mxu0
    %v3532 = vadd.f32 0.0, %v3531
    %3533 = vmatmul.bf16.gmra.mxu0 %v3440
    %v3534 = vpop.f32.mrf.mxu0
    %v3535 = vadd.f32 0.0, %v3534
    %v3536 = vpop.f32.mrf.mxu0
    %v3537 = vadd.f32 0.0, %v3536
    %3538 = vmatmul.bf16.gmra.mxu0 %v3441
    %v3539 = vpop.f32.mrf.mxu0
    %v3540 = vadd.f32 0.0, %v3539
    %v3541 = vpop.f32.mrf.mxu0
    %v3542 = vadd.f32 0.0, %v3541
    %3543 = vmatmul.bf16.gmra.mxu0 %v3442
    %v3544 = vpop.f32.mrf.mxu0
    %v3545 = vadd.f32 0.0, %v3544
    %v3546 = vpop.f32.mrf.mxu0
    %v3547 = vadd.f32 0.0, %v3546
    %3548 = vmatmul.bf16.gmra.mxu0 %v3443
    %v3549 = vpop.f32.mrf.mxu0
    %v3550 = vadd.f32 0.0, %v3549
    %v3551 = vpop.f32.mrf.mxu0
    %v3552 = vadd.f32 0.0, %v3551
    %3553 = vmatmul.bf16.gmra.mxu0 %v3444
    %v3554 = vpop.f32.mrf.mxu0
    %v3555 = vadd.f32 0.0, %v3554
    %v3556 = vpop.f32.mrf.mxu0
    %v3557 = vadd.f32 0.0, %v3556
    %3558 = vdwg.mxu0
    %v3559 = vadd.f32 %v3325, %v3520
    %v3560 = vadd.f32 %v3326, %v3522
    %v3561 = vadd.f32 %v3327, %v3525
    %v3562 = vadd.f32 %v3328, %v3527
    %v3563 = vadd.f32 %v3329, %v3530
    %v3564 = vadd.f32 %v3330, %v3532
    %v3565 = vadd.f32 %v3331, %v3535
    %v3566 = vadd.f32 %v3332, %v3537
    %v3567 = vadd.f32 %v3333, %v3540
    %v3568 = vadd.f32 %v3334, %v3542
    %v3569 = vadd.f32 %v3335, %v3545
    %v3570 = vadd.f32 %v3336, %v3547
    %v3571 = vadd.f32 %v3337, %v3550
    %v3572 = vadd.f32 %v3338, %v3552
    %v3573 = vadd.f32 %v3339, %v3555
    %v3574 = vadd.f32 %v3340, %v3557
    %3575 = vset.pattern.permute.xlu0 15
    %3576 = vperm.xlu0 %3575, %v80
    %v3577 = vpop.permute.xlu0 %3576
    %3578 = vset.pattern.permute.xlu0 15
    %3579 = vperm.xlu0 %3578, %v81
    %v3580 = vpop.permute.xlu0 %3579
    %3581 = vset.pattern.permute.xlu0 15
    %3582 = vperm.xlu0 %3581, %v82
    %v3583 = vpop.permute.xlu0 %3582
    %3584 = vset.pattern.permute.xlu0 15
    %3585 = vperm.xlu0 %3584, %v83
    %v3586 = vpop.permute.xlu0 %3585
    %3587 = vset.pattern.permute.xlu0 15
    %3588 = vperm.xlu0 %3587, %v84
    %v3589 = vpop.permute.xlu0 %3588
    %3590 = vset.pattern.permute.xlu0 15
    %3591 = vperm.xlu0 %3590, %v85
    %v3592 = vpop.permute.xlu0 %3591
    %3593 = vset.pattern.permute.xlu0 15
    %3594 = vperm.xlu0 %3593, %v86
    %v3595 = vpop.permute.xlu0 %3594
    %3596 = vset.pattern.permute.xlu0 15
    %3597 = vperm.xlu0 %3596, %v87
    %v3598 = vpop.permute.xlu0 %3597
    %3599 = vset.pattern.permute.xlu0 15
    %3600 = vperm.xlu0 %3599, %v88
    %v3601 = vpop.permute.xlu0 %3600
    %3602 = vset.pattern.permute.xlu0 15
    %3603 = vperm.xlu0 %3602, %v89
    %v3604 = vpop.permute.xlu0 %3603
    %3605 = vset.pattern.permute.xlu0 15
    %3606 = vperm.xlu0 %3605, %v90
    %v3607 = vpop.permute.xlu0 %3606
    %3608 = vset.pattern.permute.xlu0 15
    %3609 = vperm.xlu0 %3608, %v91
    %v3610 = vpop.permute.xlu0 %3609
    %3611 = vset.pattern.permute.xlu0 15
    %3612 = vperm.xlu0 %3611, %v92
    %v3613 = vpop.permute.xlu0 %3612
    %3614 = vset.pattern.permute.xlu0 15
    %3615 = vperm.xlu0 %3614, %v93
    %v3616 = vpop.permute.xlu0 %3615
    %3617 = vset.pattern.permute.xlu0 15
    %3618 = vperm.xlu0 %3617, %v94
    %v3619 = vpop.permute.xlu0 %3618
    %3620 = vset.pattern.permute.xlu0 15
    %3621 = vperm.xlu0 %3620, %v95
    %v3622 = vpop.permute.xlu0 %3621
    %vm3623 = vcmp.eq.s32.totalorder %v97, %v3577
    %vm3624 = vcmp.eq.s32.totalorder %v97, %v3580
    %vm3625 = vcmp.eq.s32.totalorder %v97, %v3583
    %vm3626 = vcmp.eq.s32.totalorder %v97, %v3586
    %vm3627 = vcmp.eq.s32.totalorder %v97, %v3589
    %vm3628 = vcmp.eq.s32.totalorder %v97, %v3592
    %vm3629 = vcmp.eq.s32.totalorder %v97, %v3595
    %vm3630 = vcmp.eq.s32.totalorder %v97, %v3598
    %vm3631 = vcmp.eq.s32.totalorder %v97, %v3601
    %vm3632 = vcmp.eq.s32.totalorder %v97, %v3604
    %vm3633 = vcmp.eq.s32.totalorder %v97, %v3607
    %vm3634 = vcmp.eq.s32.totalorder %v97, %v3610
    %vm3635 = vcmp.eq.s32.totalorder %v97, %v3613
    %vm3636 = vcmp.eq.s32.totalorder %v97, %v3616
    %vm3637 = vcmp.eq.s32.totalorder %v97, %v3619
    %vm3638 = vcmp.eq.s32.totalorder %v97, %v3622
    %v3639 = vsel %vm3623, 1, 0
    %v3640 = vsel %vm3624, 1, 0
    %v3641 = vsel %vm3625, 1, 0
    %v3642 = vsel %vm3626, 1, 0
    %v3643 = vsel %vm3627, 1, 0
    %v3644 = vsel %vm3628, 1, 0
    %v3645 = vsel %vm3629, 1, 0
    %v3646 = vsel %vm3630, 1, 0
    %v3647 = vsel %vm3631, 1, 0
    %v3648 = vsel %vm3632, 1, 0
    %v3649 = vsel %vm3633, 1, 0
    %v3650 = vsel %vm3634, 1, 0
    %v3651 = vsel %vm3635, 1, 0
    %v3652 = vsel %vm3636, 1, 0
    %v3653 = vsel %vm3637, 1, 0
    %v3654 = vsel %vm3638, 1, 0
    %v3655 = vcvt.s32.f32 %v3639
    %v3656 = vcvt.s32.f32 %v3640
    %v3657 = vcvt.s32.f32 %v3641
    %v3658 = vcvt.s32.f32 %v3642
    %v3659 = vcvt.s32.f32 %v3643
    %v3660 = vcvt.s32.f32 %v3644
    %v3661 = vcvt.s32.f32 %v3645
    %v3662 = vcvt.s32.f32 %v3646
    %v3663 = vcvt.s32.f32 %v3647
    %v3664 = vcvt.s32.f32 %v3648
    %v3665 = vcvt.s32.f32 %v3649
    %v3666 = vcvt.s32.f32 %v3650
    %v3667 = vcvt.s32.f32 %v3651
    %v3668 = vcvt.s32.f32 %v3652
    %v3669 = vcvt.s32.f32 %v3653
    %v3670 = vcvt.s32.f32 %v3654
    %v3671 = vpack.c.bf16 %v3656, %v3655
    %v3672 = vpack.c.bf16 %v3658, %v3657
    %v3673 = vpack.c.bf16 %v3660, %v3659
    %v3674 = vpack.c.bf16 %v3662, %v3661
    %v3675 = vpack.c.bf16 %v3664, %v3663
    %v3676 = vpack.c.bf16 %v3666, %v3665
    %v3677 = vpack.c.bf16 %v3668, %v3667
    %v3678 = vpack.c.bf16 %v3670, %v3669
    %s3679 = scalar_lea.vmem [#allocation2], 960
    %v3680 = vld [vmem:[%s3679] sm:$0xf]
    %v3681 = vld [vmem:[%s3679 + $0x4] sm:$0xf]
    %v3682 = vld [vmem:[%s3679 + $0x8] sm:$0xf]
    %v3683 = vld [vmem:[%s3679 + $0xc] sm:$0xf]
    %v3684 = vld [vmem:[%s3679 + $0x10] sm:$0xf]
    %v3685 = vld [vmem:[%s3679 + $0x14] sm:$0xf]
    %v3686 = vld [vmem:[%s3679 + $0x18] sm:$0xf]
    %v3687 = vld [vmem:[%s3679 + $0x1c] sm:$0xf]
    %v3688 = vld [vmem:[%s3679 + $0x20] sm:$0xf]
    %v3689 = vld [vmem:[%s3679 + $0x24] sm:$0xf]
    %v3690 = vld [vmem:[%s3679 + $0x28] sm:$0xf]
    %v3691 = vld [vmem:[%s3679 + $0x2c] sm:$0xf]
    %v3692 = vld [vmem:[%s3679 + $0x30] sm:$0xf]
    %v3693 = vld [vmem:[%s3679 + $0x34] sm:$0xf]
    %v3694 = vld [vmem:[%s3679 + $0x38] sm:$0xf]
    %v3695 = vld [vmem:[%s3679 + $0x3c] sm:$0xf]
    %v3712 = vunpack.c.l.b16 %v3680
    %v3713 = vunpack.c.l.b16 %v3681
    %v3714 = vunpack.c.l.b16 %v3682
    %v3715 = vunpack.c.l.b16 %v3683
    %v3716 = vunpack.c.l.b16 %v3684
    %v3717 = vunpack.c.l.b16 %v3685
    %v3718 = vunpack.c.l.b16 %v3686
    %v3719 = vunpack.c.l.b16 %v3687
    %v3720 = vunpack.c.l.b16 %v3688
    %v3721 = vunpack.c.l.b16 %v3689
    %v3722 = vunpack.c.l.b16 %v3690
    %v3723 = vunpack.c.l.b16 %v3691
    %v3724 = vunpack.c.l.b16 %v3692
    %v3725 = vunpack.c.l.b16 %v3693
    %v3726 = vunpack.c.l.b16 %v3694
    %v3727 = vunpack.c.l.b16 %v3695
    %v3728 = vpack.c.b16 %v3713, %v3712
    %v3729 = vpack.c.b16 %v3715, %v3714
    %v3730 = vpack.c.b16 %v3717, %v3716
    %v3731 = vpack.c.b16 %v3719, %v3718
    %v3732 = vpack.c.b16 %v3721, %v3720
    %v3733 = vpack.c.b16 %v3723, %v3722
    %v3734 = vpack.c.b16 %v3725, %v3724
    %v3735 = vpack.c.b16 %v3727, %v3726
    %3744 = vmatpush.bf16.msra.mxu0 %v3735
    %3745 = vmatpush.bf16.msra.mxu0 %v3734
    %3746 = vmatpush.bf16.msra.mxu0 %v3733
    %3747 = vmatpush.bf16.msra.mxu0 %v3732
    %3748 = vmatpush.bf16.msra.mxu0 %v3731
    %3749 = vmatpush.bf16.msra.mxu0 %v3730
    %3750 = vmatpush.bf16.msra.mxu0 %v3729
    %3751 = vmatpush.bf16.msra.mxu0 %v3728
    %3752 = vmatmul.bf16.gmra.mxu0 %v3671
    %v3753 = vpop.f32.mrf.mxu0
    %v3754 = vadd.f32 0.0, %v3753
    %v3755 = vpop.f32.mrf.mxu0
    %v3756 = vadd.f32 0.0, %v3755
    %3757 = vmatmul.bf16.gmra.mxu0 %v3672
    %v3758 = vpop.f32.mrf.mxu0
    %v3759 = vadd.f32 0.0, %v3758
    %v3760 = vpop.f32.mrf.mxu0
    %v3761 = vadd.f32 0.0, %v3760
    %3762 = vmatmul.bf16.gmra.mxu0 %v3673
    %v3763 = vpop.f32.mrf.mxu0
    %v3764 = vadd.f32 0.0, %v3763
    %v3765 = vpop.f32.mrf.mxu0
    %v3766 = vadd.f32 0.0, %v3765
    %3767 = vmatmul.bf16.gmra.mxu0 %v3674
    %v3768 = vpop.f32.mrf.mxu0
    %v3769 = vadd.f32 0.0, %v3768
    %v3770 = vpop.f32.mrf.mxu0
    %v3771 = vadd.f32 0.0, %v3770
    %3772 = vmatmul.bf16.gmra.mxu0 %v3675
    %v3773 = vpop.f32.mrf.mxu0
    %v3774 = vadd.f32 0.0, %v3773
    %v3775 = vpop.f32.mrf.mxu0
    %v3776 = vadd.f32 0.0, %v3775
    %3777 = vmatmul.bf16.gmra.mxu0 %v3676
    %v3778 = vpop.f32.mrf.mxu0
    %v3779 = vadd.f32 0.0, %v3778
    %v3780 = vpop.f32.mrf.mxu0
    %v3781 = vadd.f32 0.0, %v3780
    %3782 = vmatmul.bf16.gmra.mxu0 %v3677
    %v3783 = vpop.f32.mrf.mxu0
    %v3784 = vadd.f32 0.0, %v3783
    %v3785 = vpop.f32.mrf.mxu0
    %v3786 = vadd.f32 0.0, %v3785
    %3787 = vmatmul.bf16.gmra.mxu0 %v3678
    %v3788 = vpop.f32.mrf.mxu0
    %v3789 = vadd.f32 0.0, %v3788
    %v3790 = vpop.f32.mrf.mxu0
    %v3791 = vadd.f32 0.0, %v3790
    %3792 = vdwg.mxu0
    %v3793 = vadd.f32 %v3559, %v3754
    %v3794 = vadd.f32 %v3560, %v3756
    %v3795 = vadd.f32 %v3561, %v3759
    %v3796 = vadd.f32 %v3562, %v3761
    %v3797 = vadd.f32 %v3563, %v3764
    %v3798 = vadd.f32 %v3564, %v3766
    %v3799 = vadd.f32 %v3565, %v3769
    %v3800 = vadd.f32 %v3566, %v3771
    %v3801 = vadd.f32 %v3567, %v3774
    %v3802 = vadd.f32 %v3568, %v3776
    %v3803 = vadd.f32 %v3569, %v3779
    %v3804 = vadd.f32 %v3570, %v3781
    %v3805 = vadd.f32 %v3571, %v3784
    %v3806 = vadd.f32 %v3572, %v3786
    %v3807 = vadd.f32 %v3573, %v3789
    %v3808 = vadd.f32 %v3574, %v3791
    %3809 = vset.pattern.permute.xlu0 16
    %3810 = vperm.xlu0 %3809, %v80
    %v3811 = vpop.permute.xlu0 %3810
    %3812 = vset.pattern.permute.xlu0 16
    %3813 = vperm.xlu0 %3812, %v81
    %v3814 = vpop.permute.xlu0 %3813
    %3815 = vset.pattern.permute.xlu0 16
    %3816 = vperm.xlu0 %3815, %v82
    %v3817 = vpop.permute.xlu0 %3816
    %3818 = vset.pattern.permute.xlu0 16
    %3819 = vperm.xlu0 %3818, %v83
    %v3820 = vpop.permute.xlu0 %3819
    %3821 = vset.pattern.permute.xlu0 16
    %3822 = vperm.xlu0 %3821, %v84
    %v3823 = vpop.permute.xlu0 %3822
    %3824 = vset.pattern.permute.xlu0 16
    %3825 = vperm.xlu0 %3824, %v85
    %v3826 = vpop.permute.xlu0 %3825
    %3827 = vset.pattern.permute.xlu0 16
    %3828 = vperm.xlu0 %3827, %v86
    %v3829 = vpop.permute.xlu0 %3828
    %3830 = vset.pattern.permute.xlu0 16
    %3831 = vperm.xlu0 %3830, %v87
    %v3832 = vpop.permute.xlu0 %3831
    %3833 = vset.pattern.permute.xlu0 16
    %3834 = vperm.xlu0 %3833, %v88
    %v3835 = vpop.permute.xlu0 %3834
    %3836 = vset.pattern.permute.xlu0 16
    %3837 = vperm.xlu0 %3836, %v89
    %v3838 = vpop.permute.xlu0 %3837
    %3839 = vset.pattern.permute.xlu0 16
    %3840 = vperm.xlu0 %3839, %v90
    %v3841 = vpop.permute.xlu0 %3840
    %3842 = vset.pattern.permute.xlu0 16
    %3843 = vperm.xlu0 %3842, %v91
    %v3844 = vpop.permute.xlu0 %3843
    %3845 = vset.pattern.permute.xlu0 16
    %3846 = vperm.xlu0 %3845, %v92
    %v3847 = vpop.permute.xlu0 %3846
    %3848 = vset.pattern.permute.xlu0 16
    %3849 = vperm.xlu0 %3848, %v93
    %v3850 = vpop.permute.xlu0 %3849
    %3851 = vset.pattern.permute.xlu0 16
    %3852 = vperm.xlu0 %3851, %v94
    %v3853 = vpop.permute.xlu0 %3852
    %3854 = vset.pattern.permute.xlu0 16
    %3855 = vperm.xlu0 %3854, %v95
    %v3856 = vpop.permute.xlu0 %3855
    %vm3857 = vcmp.eq.s32.totalorder %v97, %v3811
    %vm3858 = vcmp.eq.s32.totalorder %v97, %v3814
    %vm3859 = vcmp.eq.s32.totalorder %v97, %v3817
    %vm3860 = vcmp.eq.s32.totalorder %v97, %v3820
    %vm3861 = vcmp.eq.s32.totalorder %v97, %v3823
    %vm3862 = vcmp.eq.s32.totalorder %v97, %v3826
    %vm3863 = vcmp.eq.s32.totalorder %v97, %v3829
    %vm3864 = vcmp.eq.s32.totalorder %v97, %v3832
    %vm3865 = vcmp.eq.s32.totalorder %v97, %v3835
    %vm3866 = vcmp.eq.s32.totalorder %v97, %v3838
    %vm3867 = vcmp.eq.s32.totalorder %v97, %v3841
    %vm3868 = vcmp.eq.s32.totalorder %v97, %v3844
    %vm3869 = vcmp.eq.s32.totalorder %v97, %v3847
    %vm3870 = vcmp.eq.s32.totalorder %v97, %v3850
    %vm3871 = vcmp.eq.s32.totalorder %v97, %v3853
    %vm3872 = vcmp.eq.s32.totalorder %v97, %v3856
    %v3873 = vsel %vm3857, 1, 0
    %v3874 = vsel %vm3858, 1, 0
    %v3875 = vsel %vm3859, 1, 0
    %v3876 = vsel %vm3860, 1, 0
    %v3877 = vsel %vm3861, 1, 0
    %v3878 = vsel %vm3862, 1, 0
    %v3879 = vsel %vm3863, 1, 0
    %v3880 = vsel %vm3864, 1, 0
    %v3881 = vsel %vm3865, 1, 0
    %v3882 = vsel %vm3866, 1, 0
    %v3883 = vsel %vm3867, 1, 0
    %v3884 = vsel %vm3868, 1, 0
    %v3885 = vsel %vm3869, 1, 0
    %v3886 = vsel %vm3870, 1, 0
    %v3887 = vsel %vm3871, 1, 0
    %v3888 = vsel %vm3872, 1, 0
    %v3889 = vcvt.s32.f32 %v3873
    %v3890 = vcvt.s32.f32 %v3874
    %v3891 = vcvt.s32.f32 %v3875
    %v3892 = vcvt.s32.f32 %v3876
    %v3893 = vcvt.s32.f32 %v3877
    %v3894 = vcvt.s32.f32 %v3878
    %v3895 = vcvt.s32.f32 %v3879
    %v3896 = vcvt.s32.f32 %v3880
    %v3897 = vcvt.s32.f32 %v3881
    %v3898 = vcvt.s32.f32 %v3882
    %v3899 = vcvt.s32.f32 %v3883
    %v3900 = vcvt.s32.f32 %v3884
    %v3901 = vcvt.s32.f32 %v3885
    %v3902 = vcvt.s32.f32 %v3886
    %v3903 = vcvt.s32.f32 %v3887
    %v3904 = vcvt.s32.f32 %v3888
    %v3905 = vpack.c.bf16 %v3890, %v3889
    %v3906 = vpack.c.bf16 %v3892, %v3891
    %v3907 = vpack.c.bf16 %v3894, %v3893
    %v3908 = vpack.c.bf16 %v3896, %v3895
    %v3909 = vpack.c.bf16 %v3898, %v3897
    %v3910 = vpack.c.bf16 %v3900, %v3899
    %v3911 = vpack.c.bf16 %v3902, %v3901
    %v3912 = vpack.c.bf16 %v3904, %v3903
    %s3913 = scalar_lea.vmem [#allocation2], 1024
    %v3914 = vld [vmem:[%s3913] sm:$0xf]
    %v3915 = vld [vmem:[%s3913 + $0x4] sm:$0xf]
    %v3916 = vld [vmem:[%s3913 + $0x8] sm:$0xf]
    %v3917 = vld [vmem:[%s3913 + $0xc] sm:$0xf]
    %v3918 = vld [vmem:[%s3913 + $0x10] sm:$0xf]
    %v3919 = vld [vmem:[%s3913 + $0x14] sm:$0xf]
    %v3920 = vld [vmem:[%s3913 + $0x18] sm:$0xf]
    %v3921 = vld [vmem:[%s3913 + $0x1c] sm:$0xf]
    %v3922 = vld [vmem:[%s3913 + $0x20] sm:$0xf]
    %v3923 = vld [vmem:[%s3913 + $0x24] sm:$0xf]
    %v3924 = vld [vmem:[%s3913 + $0x28] sm:$0xf]
    %v3925 = vld [vmem:[%s3913 + $0x2c] sm:$0xf]
    %v3926 = vld [vmem:[%s3913 + $0x30] sm:$0xf]
    %v3927 = vld [vmem:[%s3913 + $0x34] sm:$0xf]
    %v3928 = vld [vmem:[%s3913 + $0x38] sm:$0xf]
    %v3929 = vld [vmem:[%s3913 + $0x3c] sm:$0xf]
    %v3946 = vunpack.c.l.b16 %v3914
    %v3947 = vunpack.c.l.b16 %v3915
    %v3948 = vunpack.c.l.b16 %v3916
    %v3949 = vunpack.c.l.b16 %v3917
    %v3950 = vunpack.c.l.b16 %v3918
    %v3951 = vunpack.c.l.b16 %v3919
    %v3952 = vunpack.c.l.b16 %v3920
    %v3953 = vunpack.c.l.b16 %v3921
    %v3954 = vunpack.c.l.b16 %v3922
    %v3955 = vunpack.c.l.b16 %v3923
    %v3956 = vunpack.c.l.b16 %v3924
    %v3957 = vunpack.c.l.b16 %v3925
    %v3958 = vunpack.c.l.b16 %v3926
    %v3959 = vunpack.c.l.b16 %v3927
    %v3960 = vunpack.c.l.b16 %v3928
    %v3961 = vunpack.c.l.b16 %v3929
    %v3962 = vpack.c.b16 %v3947, %v3946
    %v3963 = vpack.c.b16 %v3949, %v3948
    %v3964 = vpack.c.b16 %v3951, %v3950
    %v3965 = vpack.c.b16 %v3953, %v3952
    %v3966 = vpack.c.b16 %v3955, %v3954
    %v3967 = vpack.c.b16 %v3957, %v3956
    %v3968 = vpack.c.b16 %v3959, %v3958
    %v3969 = vpack.c.b16 %v3961, %v3960
    %3978 = vmatpush.bf16.msra.mxu0 %v3969
    %3979 = vmatpush.bf16.msra.mxu0 %v3968
    %3980 = vmatpush.bf16.msra.mxu0 %v3967
    %3981 = vmatpush.bf16.msra.mxu0 %v3966
    %3982 = vmatpush.bf16.msra.mxu0 %v3965
    %3983 = vmatpush.bf16.msra.mxu0 %v3964
    %3984 = vmatpush.bf16.msra.mxu0 %v3963
    %3985 = vmatpush.bf16.msra.mxu0 %v3962
    %3986 = vmatmul.bf16.gmra.mxu0 %v3905
    %v3987 = vpop.f32.mrf.mxu0
    %v3988 = vadd.f32 0.0, %v3987
    %v3989 = vpop.f32.mrf.mxu0
    %v3990 = vadd.f32 0.0, %v3989
    %3991 = vmatmul.bf16.gmra.mxu0 %v3906
    %v3992 = vpop.f32.mrf.mxu0
    %v3993 = vadd.f32 0.0, %v3992
    %v3994 = vpop.f32.mrf.mxu0
    %v3995 = vadd.f32 0.0, %v3994
    %3996 = vmatmul.bf16.gmra.mxu0 %v3907
    %v3997 = vpop.f32.mrf.mxu0
    %v3998 = vadd.f32 0.0, %v3997
    %v3999 = vpop.f32.mrf.mxu0
    %v4000 = vadd.f32 0.0, %v3999
    %4001 = vmatmul.bf16.gmra.mxu0 %v3908
    %v4002 = vpop.f32.mrf.mxu0
    %v4003 = vadd.f32 0.0, %v4002
    %v4004 = vpop.f32.mrf.mxu0
    %v4005 = vadd.f32 0.0, %v4004
    %4006 = vmatmul.bf16.gmra.mxu0 %v3909
    %v4007 = vpop.f32.mrf.mxu0
    %v4008 = vadd.f32 0.0, %v4007
    %v4009 = vpop.f32.mrf.mxu0
    %v4010 = vadd.f32 0.0, %v4009
    %4011 = vmatmul.bf16.gmra.mxu0 %v3910
    %v4012 = vpop.f32.mrf.mxu0
    %v4013 = vadd.f32 0.0, %v4012
    %v4014 = vpop.f32.mrf.mxu0
    %v4015 = vadd.f32 0.0, %v4014
    %4016 = vmatmul.bf16.gmra.mxu0 %v3911
    %v4017 = vpop.f32.mrf.mxu0
    %v4018 = vadd.f32 0.0, %v4017
    %v4019 = vpop.f32.mrf.mxu0
    %v4020 = vadd.f32 0.0, %v4019
    %4021 = vmatmul.bf16.gmra.mxu0 %v3912
    %v4022 = vpop.f32.mrf.mxu0
    %v4023 = vadd.f32 0.0, %v4022
    %v4024 = vpop.f32.mrf.mxu0
    %v4025 = vadd.f32 0.0, %v4024
    %4026 = vdwg.mxu0
    %v4027 = vadd.f32 %v3793, %v3988
    %v4028 = vadd.f32 %v3794, %v3990
    %v4029 = vadd.f32 %v3795, %v3993
    %v4030 = vadd.f32 %v3796, %v3995
    %v4031 = vadd.f32 %v3797, %v3998
    %v4032 = vadd.f32 %v3798, %v4000
    %v4033 = vadd.f32 %v3799, %v4003
    %v4034 = vadd.f32 %v3800, %v4005
    %v4035 = vadd.f32 %v3801, %v4008
    %v4036 = vadd.f32 %v3802, %v4010
    %v4037 = vadd.f32 %v3803, %v4013
    %v4038 = vadd.f32 %v3804, %v4015
    %v4039 = vadd.f32 %v3805, %v4018
    %v4040 = vadd.f32 %v3806, %v4020
    %v4041 = vadd.f32 %v3807, %v4023
    %v4042 = vadd.f32 %v3808, %v4025
    %4043 = vset.pattern.permute.xlu0 17
    %4044 = vperm.xlu0 %4043, %v80
    %v4045 = vpop.permute.xlu0 %4044
    %4046 = vset.pattern.permute.xlu0 17
    %4047 = vperm.xlu0 %4046, %v81
    %v4048 = vpop.permute.xlu0 %4047
    %4049 = vset.pattern.permute.xlu0 17
    %4050 = vperm.xlu0 %4049, %v82
    %v4051 = vpop.permute.xlu0 %4050
    %4052 = vset.pattern.permute.xlu0 17
    %4053 = vperm.xlu0 %4052, %v83
    %v4054 = vpop.permute.xlu0 %4053
    %4055 = vset.pattern.permute.xlu0 17
    %4056 = vperm.xlu0 %4055, %v84
    %v4057 = vpop.permute.xlu0 %4056
    %4058 = vset.pattern.permute.xlu0 17
    %4059 = vperm.xlu0 %4058, %v85
    %v4060 = vpop.permute.xlu0 %4059
    %4061 = vset.pattern.permute.xlu0 17
    %4062 = vperm.xlu0 %4061, %v86
    %v4063 = vpop.permute.xlu0 %4062
    %4064 = vset.pattern.permute.xlu0 17
    %4065 = vperm.xlu0 %4064, %v87
    %v4066 = vpop.permute.xlu0 %4065
    %4067 = vset.pattern.permute.xlu0 17
    %4068 = vperm.xlu0 %4067, %v88
    %v4069 = vpop.permute.xlu0 %4068
    %4070 = vset.pattern.permute.xlu0 17
    %4071 = vperm.xlu0 %4070, %v89
    %v4072 = vpop.permute.xlu0 %4071
    %4073 = vset.pattern.permute.xlu0 17
    %4074 = vperm.xlu0 %4073, %v90
    %v4075 = vpop.permute.xlu0 %4074
    %4076 = vset.pattern.permute.xlu0 17
    %4077 = vperm.xlu0 %4076, %v91
    %v4078 = vpop.permute.xlu0 %4077
    %4079 = vset.pattern.permute.xlu0 17
    %4080 = vperm.xlu0 %4079, %v92
    %v4081 = vpop.permute.xlu0 %4080
    %4082 = vset.pattern.permute.xlu0 17
    %4083 = vperm.xlu0 %4082, %v93
    %v4084 = vpop.permute.xlu0 %4083
    %4085 = vset.pattern.permute.xlu0 17
    %4086 = vperm.xlu0 %4085, %v94
    %v4087 = vpop.permute.xlu0 %4086
    %4088 = vset.pattern.permute.xlu0 17
    %4089 = vperm.xlu0 %4088, %v95
    %v4090 = vpop.permute.xlu0 %4089
    %vm4091 = vcmp.eq.s32.totalorder %v97, %v4045
    %vm4092 = vcmp.eq.s32.totalorder %v97, %v4048
    %vm4093 = vcmp.eq.s32.totalorder %v97, %v4051
    %vm4094 = vcmp.eq.s32.totalorder %v97, %v4054
    %vm4095 = vcmp.eq.s32.totalorder %v97, %v4057
    %vm4096 = vcmp.eq.s32.totalorder %v97, %v4060
    %vm4097 = vcmp.eq.s32.totalorder %v97, %v4063
    %vm4098 = vcmp.eq.s32.totalorder %v97, %v4066
    %vm4099 = vcmp.eq.s32.totalorder %v97, %v4069
    %vm4100 = vcmp.eq.s32.totalorder %v97, %v4072
    %vm4101 = vcmp.eq.s32.totalorder %v97, %v4075
    %vm4102 = vcmp.eq.s32.totalorder %v97, %v4078
    %vm4103 = vcmp.eq.s32.totalorder %v97, %v4081
    %vm4104 = vcmp.eq.s32.totalorder %v97, %v4084
    %vm4105 = vcmp.eq.s32.totalorder %v97, %v4087
    %vm4106 = vcmp.eq.s32.totalorder %v97, %v4090
    %v4107 = vsel %vm4091, 1, 0
    %v4108 = vsel %vm4092, 1, 0
    %v4109 = vsel %vm4093, 1, 0
    %v4110 = vsel %vm4094, 1, 0
    %v4111 = vsel %vm4095, 1, 0
    %v4112 = vsel %vm4096, 1, 0
    %v4113 = vsel %vm4097, 1, 0
    %v4114 = vsel %vm4098, 1, 0
    %v4115 = vsel %vm4099, 1, 0
    %v4116 = vsel %vm4100, 1, 0
    %v4117 = vsel %vm4101, 1, 0
    %v4118 = vsel %vm4102, 1, 0
    %v4119 = vsel %vm4103, 1, 0
    %v4120 = vsel %vm4104, 1, 0
    %v4121 = vsel %vm4105, 1, 0
    %v4122 = vsel %vm4106, 1, 0
    %v4123 = vcvt.s32.f32 %v4107
    %v4124 = vcvt.s32.f32 %v4108
    %v4125 = vcvt.s32.f32 %v4109
    %v4126 = vcvt.s32.f32 %v4110
    %v4127 = vcvt.s32.f32 %v4111
    %v4128 = vcvt.s32.f32 %v4112
    %v4129 = vcvt.s32.f32 %v4113
    %v4130 = vcvt.s32.f32 %v4114
    %v4131 = vcvt.s32.f32 %v4115
    %v4132 = vcvt.s32.f32 %v4116
    %v4133 = vcvt.s32.f32 %v4117
    %v4134 = vcvt.s32.f32 %v4118
    %v4135 = vcvt.s32.f32 %v4119
    %v4136 = vcvt.s32.f32 %v4120
    %v4137 = vcvt.s32.f32 %v4121
    %v4138 = vcvt.s32.f32 %v4122
    %v4139 = vpack.c.bf16 %v4124, %v4123
    %v4140 = vpack.c.bf16 %v4126, %v4125
    %v4141 = vpack.c.bf16 %v4128, %v4127
    %v4142 = vpack.c.bf16 %v4130, %v4129
    %v4143 = vpack.c.bf16 %v4132, %v4131
    %v4144 = vpack.c.bf16 %v4134, %v4133
    %v4145 = vpack.c.bf16 %v4136, %v4135
    %v4146 = vpack.c.bf16 %v4138, %v4137
    %s4147 = scalar_lea.vmem [#allocation2], 1088
    %v4148 = vld [vmem:[%s4147] sm:$0xf]
    %v4149 = vld [vmem:[%s4147 + $0x4] sm:$0xf]
    %v4150 = vld [vmem:[%s4147 + $0x8] sm:$0xf]
    %v4151 = vld [vmem:[%s4147 + $0xc] sm:$0xf]
    %v4152 = vld [vmem:[%s4147 + $0x10] sm:$0xf]
    %v4153 = vld [vmem:[%s4147 + $0x14] sm:$0xf]
    %v4154 = vld [vmem:[%s4147 + $0x18] sm:$0xf]
    %v4155 = vld [vmem:[%s4147 + $0x1c] sm:$0xf]
    %v4156 = vld [vmem:[%s4147 + $0x20] sm:$0xf]
    %v4157 = vld [vmem:[%s4147 + $0x24] sm:$0xf]
    %v4158 = vld [vmem:[%s4147 + $0x28] sm:$0xf]
    %v4159 = vld [vmem:[%s4147 + $0x2c] sm:$0xf]
    %v4160 = vld [vmem:[%s4147 + $0x30] sm:$0xf]
    %v4161 = vld [vmem:[%s4147 + $0x34] sm:$0xf]
    %v4162 = vld [vmem:[%s4147 + $0x38] sm:$0xf]
    %v4163 = vld [vmem:[%s4147 + $0x3c] sm:$0xf]
    %v4180 = vunpack.c.l.b16 %v4148
    %v4181 = vunpack.c.l.b16 %v4149
    %v4182 = vunpack.c.l.b16 %v4150
    %v4183 = vunpack.c.l.b16 %v4151
    %v4184 = vunpack.c.l.b16 %v4152
    %v4185 = vunpack.c.l.b16 %v4153
    %v4186 = vunpack.c.l.b16 %v4154
    %v4187 = vunpack.c.l.b16 %v4155
    %v4188 = vunpack.c.l.b16 %v4156
    %v4189 = vunpack.c.l.b16 %v4157
    %v4190 = vunpack.c.l.b16 %v4158
    %v4191 = vunpack.c.l.b16 %v4159
    %v4192 = vunpack.c.l.b16 %v4160
    %v4193 = vunpack.c.l.b16 %v4161
    %v4194 = vunpack.c.l.b16 %v4162
    %v4195 = vunpack.c.l.b16 %v4163
    %v4196 = vpack.c.b16 %v4181, %v4180
    %v4197 = vpack.c.b16 %v4183, %v4182
    %v4198 = vpack.c.b16 %v4185, %v4184
    %v4199 = vpack.c.b16 %v4187, %v4186
    %v4200 = vpack.c.b16 %v4189, %v4188
    %v4201 = vpack.c.b16 %v4191, %v4190
    %v4202 = vpack.c.b16 %v4193, %v4192
    %v4203 = vpack.c.b16 %v4195, %v4194
    %4212 = vmatpush.bf16.msra.mxu0 %v4203
    %4213 = vmatpush.bf16.msra.mxu0 %v4202
    %4214 = vmatpush.bf16.msra.mxu0 %v4201
    %4215 = vmatpush.bf16.msra.mxu0 %v4200
    %4216 = vmatpush.bf16.msra.mxu0 %v4199
    %4217 = vmatpush.bf16.msra.mxu0 %v4198
    %4218 = vmatpush.bf16.msra.mxu0 %v4197
    %4219 = vmatpush.bf16.msra.mxu0 %v4196
    %4220 = vmatmul.bf16.gmra.mxu0 %v4139
    %v4221 = vpop.f32.mrf.mxu0
    %v4222 = vadd.f32 0.0, %v4221
    %v4223 = vpop.f32.mrf.mxu0
    %v4224 = vadd.f32 0.0, %v4223
    %4225 = vmatmul.bf16.gmra.mxu0 %v4140
    %v4226 = vpop.f32.mrf.mxu0
    %v4227 = vadd.f32 0.0, %v4226
    %v4228 = vpop.f32.mrf.mxu0
    %v4229 = vadd.f32 0.0, %v4228
    %4230 = vmatmul.bf16.gmra.mxu0 %v4141
    %v4231 = vpop.f32.mrf.mxu0
    %v4232 = vadd.f32 0.0, %v4231
    %v4233 = vpop.f32.mrf.mxu0
    %v4234 = vadd.f32 0.0, %v4233
    %4235 = vmatmul.bf16.gmra.mxu0 %v4142
    %v4236 = vpop.f32.mrf.mxu0
    %v4237 = vadd.f32 0.0, %v4236
    %v4238 = vpop.f32.mrf.mxu0
    %v4239 = vadd.f32 0.0, %v4238
    %4240 = vmatmul.bf16.gmra.mxu0 %v4143
    %v4241 = vpop.f32.mrf.mxu0
    %v4242 = vadd.f32 0.0, %v4241
    %v4243 = vpop.f32.mrf.mxu0
    %v4244 = vadd.f32 0.0, %v4243
    %4245 = vmatmul.bf16.gmra.mxu0 %v4144
    %v4246 = vpop.f32.mrf.mxu0
    %v4247 = vadd.f32 0.0, %v4246
    %v4248 = vpop.f32.mrf.mxu0
    %v4249 = vadd.f32 0.0, %v4248
    %4250 = vmatmul.bf16.gmra.mxu0 %v4145
    %v4251 = vpop.f32.mrf.mxu0
    %v4252 = vadd.f32 0.0, %v4251
    %v4253 = vpop.f32.mrf.mxu0
    %v4254 = vadd.f32 0.0, %v4253
    %4255 = vmatmul.bf16.gmra.mxu0 %v4146
    %v4256 = vpop.f32.mrf.mxu0
    %v4257 = vadd.f32 0.0, %v4256
    %v4258 = vpop.f32.mrf.mxu0
    %v4259 = vadd.f32 0.0, %v4258
    %4260 = vdwg.mxu0
    %v4261 = vadd.f32 %v4027, %v4222
    %v4262 = vadd.f32 %v4028, %v4224
    %v4263 = vadd.f32 %v4029, %v4227
    %v4264 = vadd.f32 %v4030, %v4229
    %v4265 = vadd.f32 %v4031, %v4232
    %v4266 = vadd.f32 %v4032, %v4234
    %v4267 = vadd.f32 %v4033, %v4237
    %v4268 = vadd.f32 %v4034, %v4239
    %v4269 = vadd.f32 %v4035, %v4242
    %v4270 = vadd.f32 %v4036, %v4244
    %v4271 = vadd.f32 %v4037, %v4247
    %v4272 = vadd.f32 %v4038, %v4249
    %v4273 = vadd.f32 %v4039, %v4252
    %v4274 = vadd.f32 %v4040, %v4254
    %v4275 = vadd.f32 %v4041, %v4257
    %v4276 = vadd.f32 %v4042, %v4259
    %4277 = vset.pattern.permute.xlu0 18
    %4278 = vperm.xlu0 %4277, %v80
    %v4279 = vpop.permute.xlu0 %4278
    %4280 = vset.pattern.permute.xlu0 18
    %4281 = vperm.xlu0 %4280, %v81
    %v4282 = vpop.permute.xlu0 %4281
    %4283 = vset.pattern.permute.xlu0 18
    %4284 = vperm.xlu0 %4283, %v82
    %v4285 = vpop.permute.xlu0 %4284
    %4286 = vset.pattern.permute.xlu0 18
    %4287 = vperm.xlu0 %4286, %v83
    %v4288 = vpop.permute.xlu0 %4287
    %4289 = vset.pattern.permute.xlu0 18
    %4290 = vperm.xlu0 %4289, %v84
    %v4291 = vpop.permute.xlu0 %4290
    %4292 = vset.pattern.permute.xlu0 18
    %4293 = vperm.xlu0 %4292, %v85
    %v4294 = vpop.permute.xlu0 %4293
    %4295 = vset.pattern.permute.xlu0 18
    %4296 = vperm.xlu0 %4295, %v86
    %v4297 = vpop.permute.xlu0 %4296
    %4298 = vset.pattern.permute.xlu0 18
    %4299 = vperm.xlu0 %4298, %v87
    %v4300 = vpop.permute.xlu0 %4299
    %4301 = vset.pattern.permute.xlu0 18
    %4302 = vperm.xlu0 %4301, %v88
    %v4303 = vpop.permute.xlu0 %4302
    %4304 = vset.pattern.permute.xlu0 18
    %4305 = vperm.xlu0 %4304, %v89
    %v4306 = vpop.permute.xlu0 %4305
    %4307 = vset.pattern.permute.xlu0 18
    %4308 = vperm.xlu0 %4307, %v90
    %v4309 = vpop.permute.xlu0 %4308
    %4310 = vset.pattern.permute.xlu0 18
    %4311 = vperm.xlu0 %4310, %v91
    %v4312 = vpop.permute.xlu0 %4311
    %4313 = vset.pattern.permute.xlu0 18
    %4314 = vperm.xlu0 %4313, %v92
    %v4315 = vpop.permute.xlu0 %4314
    %4316 = vset.pattern.permute.xlu0 18
    %4317 = vperm.xlu0 %4316, %v93
    %v4318 = vpop.permute.xlu0 %4317
    %4319 = vset.pattern.permute.xlu0 18
    %4320 = vperm.xlu0 %4319, %v94
    %v4321 = vpop.permute.xlu0 %4320
    %4322 = vset.pattern.permute.xlu0 18
    %4323 = vperm.xlu0 %4322, %v95
    %v4324 = vpop.permute.xlu0 %4323
    %vm4325 = vcmp.eq.s32.totalorder %v97, %v4279
    %vm4326 = vcmp.eq.s32.totalorder %v97, %v4282
    %vm4327 = vcmp.eq.s32.totalorder %v97, %v4285
    %vm4328 = vcmp.eq.s32.totalorder %v97, %v4288
    %vm4329 = vcmp.eq.s32.totalorder %v97, %v4291
    %vm4330 = vcmp.eq.s32.totalorder %v97, %v4294
    %vm4331 = vcmp.eq.s32.totalorder %v97, %v4297
    %vm4332 = vcmp.eq.s32.totalorder %v97, %v4300
    %vm4333 = vcmp.eq.s32.totalorder %v97, %v4303
    %vm4334 = vcmp.eq.s32.totalorder %v97, %v4306
    %vm4335 = vcmp.eq.s32.totalorder %v97, %v4309
    %vm4336 = vcmp.eq.s32.totalorder %v97, %v4312
    %vm4337 = vcmp.eq.s32.totalorder %v97, %v4315
    %vm4338 = vcmp.eq.s32.totalorder %v97, %v4318
    %vm4339 = vcmp.eq.s32.totalorder %v97, %v4321
    %vm4340 = vcmp.eq.s32.totalorder %v97, %v4324
    %v4341 = vsel %vm4325, 1, 0
    %v4342 = vsel %vm4326, 1, 0
    %v4343 = vsel %vm4327, 1, 0
    %v4344 = vsel %vm4328, 1, 0
    %v4345 = vsel %vm4329, 1, 0
    %v4346 = vsel %vm4330, 1, 0
    %v4347 = vsel %vm4331, 1, 0
    %v4348 = vsel %vm4332, 1, 0
    %v4349 = vsel %vm4333, 1, 0
    %v4350 = vsel %vm4334, 1, 0
    %v4351 = vsel %vm4335, 1, 0
    %v4352 = vsel %vm4336, 1, 0
    %v4353 = vsel %vm4337, 1, 0
    %v4354 = vsel %vm4338, 1, 0
    %v4355 = vsel %vm4339, 1, 0
    %v4356 = vsel %vm4340, 1, 0
    %v4357 = vcvt.s32.f32 %v4341
    %v4358 = vcvt.s32.f32 %v4342
    %v4359 = vcvt.s32.f32 %v4343
    %v4360 = vcvt.s32.f32 %v4344
    %v4361 = vcvt.s32.f32 %v4345
    %v4362 = vcvt.s32.f32 %v4346
    %v4363 = vcvt.s32.f32 %v4347
    %v4364 = vcvt.s32.f32 %v4348
    %v4365 = vcvt.s32.f32 %v4349
    %v4366 = vcvt.s32.f32 %v4350
    %v4367 = vcvt.s32.f32 %v4351
    %v4368 = vcvt.s32.f32 %v4352
    %v4369 = vcvt.s32.f32 %v4353
    %v4370 = vcvt.s32.f32 %v4354
    %v4371 = vcvt.s32.f32 %v4355
    %v4372 = vcvt.s32.f32 %v4356
    %v4373 = vpack.c.bf16 %v4358, %v4357
    %v4374 = vpack.c.bf16 %v4360, %v4359
    %v4375 = vpack.c.bf16 %v4362, %v4361
    %v4376 = vpack.c.bf16 %v4364, %v4363
    %v4377 = vpack.c.bf16 %v4366, %v4365
    %v4378 = vpack.c.bf16 %v4368, %v4367
    %v4379 = vpack.c.bf16 %v4370, %v4369
    %v4380 = vpack.c.bf16 %v4372, %v4371
    %s4381 = scalar_lea.vmem [#allocation2], 1152
    %v4382 = vld [vmem:[%s4381] sm:$0xf]
    %v4383 = vld [vmem:[%s4381 + $0x4] sm:$0xf]
    %v4384 = vld [vmem:[%s4381 + $0x8] sm:$0xf]
    %v4385 = vld [vmem:[%s4381 + $0xc] sm:$0xf]
    %v4386 = vld [vmem:[%s4381 + $0x10] sm:$0xf]
    %v4387 = vld [vmem:[%s4381 + $0x14] sm:$0xf]
    %v4388 = vld [vmem:[%s4381 + $0x18] sm:$0xf]
    %v4389 = vld [vmem:[%s4381 + $0x1c] sm:$0xf]
    %v4390 = vld [vmem:[%s4381 + $0x20] sm:$0xf]
    %v4391 = vld [vmem:[%s4381 + $0x24] sm:$0xf]
    %v4392 = vld [vmem:[%s4381 + $0x28] sm:$0xf]
    %v4393 = vld [vmem:[%s4381 + $0x2c] sm:$0xf]
    %v4394 = vld [vmem:[%s4381 + $0x30] sm:$0xf]
    %v4395 = vld [vmem:[%s4381 + $0x34] sm:$0xf]
    %v4396 = vld [vmem:[%s4381 + $0x38] sm:$0xf]
    %v4397 = vld [vmem:[%s4381 + $0x3c] sm:$0xf]
    %v4414 = vunpack.c.l.b16 %v4382
    %v4415 = vunpack.c.l.b16 %v4383
    %v4416 = vunpack.c.l.b16 %v4384
    %v4417 = vunpack.c.l.b16 %v4385
    %v4418 = vunpack.c.l.b16 %v4386
    %v4419 = vunpack.c.l.b16 %v4387
    %v4420 = vunpack.c.l.b16 %v4388
    %v4421 = vunpack.c.l.b16 %v4389
    %v4422 = vunpack.c.l.b16 %v4390
    %v4423 = vunpack.c.l.b16 %v4391
    %v4424 = vunpack.c.l.b16 %v4392
    %v4425 = vunpack.c.l.b16 %v4393
    %v4426 = vunpack.c.l.b16 %v4394
    %v4427 = vunpack.c.l.b16 %v4395
    %v4428 = vunpack.c.l.b16 %v4396
    %v4429 = vunpack.c.l.b16 %v4397
    %v4430 = vpack.c.b16 %v4415, %v4414
    %v4431 = vpack.c.b16 %v4417, %v4416
    %v4432 = vpack.c.b16 %v4419, %v4418
    %v4433 = vpack.c.b16 %v4421, %v4420
    %v4434 = vpack.c.b16 %v4423, %v4422
    %v4435 = vpack.c.b16 %v4425, %v4424
    %v4436 = vpack.c.b16 %v4427, %v4426
    %v4437 = vpack.c.b16 %v4429, %v4428
    %4446 = vmatpush.bf16.msra.mxu0 %v4437
    %4447 = vmatpush.bf16.msra.mxu0 %v4436
    %4448 = vmatpush.bf16.msra.mxu0 %v4435
    %4449 = vmatpush.bf16.msra.mxu0 %v4434
    %4450 = vmatpush.bf16.msra.mxu0 %v4433
    %4451 = vmatpush.bf16.msra.mxu0 %v4432
    %4452 = vmatpush.bf16.msra.mxu0 %v4431
    %4453 = vmatpush.bf16.msra.mxu0 %v4430
    %4454 = vmatmul.bf16.gmra.mxu0 %v4373
    %v4455 = vpop.f32.mrf.mxu0
    %v4456 = vadd.f32 0.0, %v4455
    %v4457 = vpop.f32.mrf.mxu0
    %v4458 = vadd.f32 0.0, %v4457
    %4459 = vmatmul.bf16.gmra.mxu0 %v4374
    %v4460 = vpop.f32.mrf.mxu0
    %v4461 = vadd.f32 0.0, %v4460
    %v4462 = vpop.f32.mrf.mxu0
    %v4463 = vadd.f32 0.0, %v4462
    %4464 = vmatmul.bf16.gmra.mxu0 %v4375
    %v4465 = vpop.f32.mrf.mxu0
    %v4466 = vadd.f32 0.0, %v4465
    %v4467 = vpop.f32.mrf.mxu0
    %v4468 = vadd.f32 0.0, %v4467
    %4469 = vmatmul.bf16.gmra.mxu0 %v4376
    %v4470 = vpop.f32.mrf.mxu0
    %v4471 = vadd.f32 0.0, %v4470
    %v4472 = vpop.f32.mrf.mxu0
    %v4473 = vadd.f32 0.0, %v4472
    %4474 = vmatmul.bf16.gmra.mxu0 %v4377
    %v4475 = vpop.f32.mrf.mxu0
    %v4476 = vadd.f32 0.0, %v4475
    %v4477 = vpop.f32.mrf.mxu0
    %v4478 = vadd.f32 0.0, %v4477
    %4479 = vmatmul.bf16.gmra.mxu0 %v4378
    %v4480 = vpop.f32.mrf.mxu0
    %v4481 = vadd.f32 0.0, %v4480
    %v4482 = vpop.f32.mrf.mxu0
    %v4483 = vadd.f32 0.0, %v4482
    %4484 = vmatmul.bf16.gmra.mxu0 %v4379
    %v4485 = vpop.f32.mrf.mxu0
    %v4486 = vadd.f32 0.0, %v4485
    %v4487 = vpop.f32.mrf.mxu0
    %v4488 = vadd.f32 0.0, %v4487
    %4489 = vmatmul.bf16.gmra.mxu0 %v4380
    %v4490 = vpop.f32.mrf.mxu0
    %v4491 = vadd.f32 0.0, %v4490
    %v4492 = vpop.f32.mrf.mxu0
    %v4493 = vadd.f32 0.0, %v4492
    %4494 = vdwg.mxu0
    %v4495 = vadd.f32 %v4261, %v4456
    %v4496 = vadd.f32 %v4262, %v4458
    %v4497 = vadd.f32 %v4263, %v4461
    %v4498 = vadd.f32 %v4264, %v4463
    %v4499 = vadd.f32 %v4265, %v4466
    %v4500 = vadd.f32 %v4266, %v4468
    %v4501 = vadd.f32 %v4267, %v4471
    %v4502 = vadd.f32 %v4268, %v4473
    %v4503 = vadd.f32 %v4269, %v4476
    %v4504 = vadd.f32 %v4270, %v4478
    %v4505 = vadd.f32 %v4271, %v4481
    %v4506 = vadd.f32 %v4272, %v4483
    %v4507 = vadd.f32 %v4273, %v4486
    %v4508 = vadd.f32 %v4274, %v4488
    %v4509 = vadd.f32 %v4275, %v4491
    %v4510 = vadd.f32 %v4276, %v4493
    %4511 = vset.pattern.permute.xlu0 19
    %4512 = vperm.xlu0 %4511, %v80
    %v4513 = vpop.permute.xlu0 %4512
    %4514 = vset.pattern.permute.xlu0 19
    %4515 = vperm.xlu0 %4514, %v81
    %v4516 = vpop.permute.xlu0 %4515
    %4517 = vset.pattern.permute.xlu0 19
    %4518 = vperm.xlu0 %4517, %v82
    %v4519 = vpop.permute.xlu0 %4518
    %4520 = vset.pattern.permute.xlu0 19
    %4521 = vperm.xlu0 %4520, %v83
    %v4522 = vpop.permute.xlu0 %4521
    %4523 = vset.pattern.permute.xlu0 19
    %4524 = vperm.xlu0 %4523, %v84
    %v4525 = vpop.permute.xlu0 %4524
    %4526 = vset.pattern.permute.xlu0 19
    %4527 = vperm.xlu0 %4526, %v85
    %v4528 = vpop.permute.xlu0 %4527
    %4529 = vset.pattern.permute.xlu0 19
    %4530 = vperm.xlu0 %4529, %v86
    %v4531 = vpop.permute.xlu0 %4530
    %4532 = vset.pattern.permute.xlu0 19
    %4533 = vperm.xlu0 %4532, %v87
    %v4534 = vpop.permute.xlu0 %4533
    %4535 = vset.pattern.permute.xlu0 19
    %4536 = vperm.xlu0 %4535, %v88
    %v4537 = vpop.permute.xlu0 %4536
    %4538 = vset.pattern.permute.xlu0 19
    %4539 = vperm.xlu0 %4538, %v89
    %v4540 = vpop.permute.xlu0 %4539
    %4541 = vset.pattern.permute.xlu0 19
    %4542 = vperm.xlu0 %4541, %v90
    %v4543 = vpop.permute.xlu0 %4542
    %4544 = vset.pattern.permute.xlu0 19
    %4545 = vperm.xlu0 %4544, %v91
    %v4546 = vpop.permute.xlu0 %4545
    %4547 = vset.pattern.permute.xlu0 19
    %4548 = vperm.xlu0 %4547, %v92
    %v4549 = vpop.permute.xlu0 %4548
    %4550 = vset.pattern.permute.xlu0 19
    %4551 = vperm.xlu0 %4550, %v93
    %v4552 = vpop.permute.xlu0 %4551
    %4553 = vset.pattern.permute.xlu0 19
    %4554 = vperm.xlu0 %4553, %v94
    %v4555 = vpop.permute.xlu0 %4554
    %4556 = vset.pattern.permute.xlu0 19
    %4557 = vperm.xlu0 %4556, %v95
    %v4558 = vpop.permute.xlu0 %4557
    %vm4559 = vcmp.eq.s32.totalorder %v97, %v4513
    %vm4560 = vcmp.eq.s32.totalorder %v97, %v4516
    %vm4561 = vcmp.eq.s32.totalorder %v97, %v4519
    %vm4562 = vcmp.eq.s32.totalorder %v97, %v4522
    %vm4563 = vcmp.eq.s32.totalorder %v97, %v4525
    %vm4564 = vcmp.eq.s32.totalorder %v97, %v4528
    %vm4565 = vcmp.eq.s32.totalorder %v97, %v4531
    %vm4566 = vcmp.eq.s32.totalorder %v97, %v4534
    %vm4567 = vcmp.eq.s32.totalorder %v97, %v4537
    %vm4568 = vcmp.eq.s32.totalorder %v97, %v4540
    %vm4569 = vcmp.eq.s32.totalorder %v97, %v4543
    %vm4570 = vcmp.eq.s32.totalorder %v97, %v4546
    %vm4571 = vcmp.eq.s32.totalorder %v97, %v4549
    %vm4572 = vcmp.eq.s32.totalorder %v97, %v4552
    %vm4573 = vcmp.eq.s32.totalorder %v97, %v4555
    %vm4574 = vcmp.eq.s32.totalorder %v97, %v4558
    %v4575 = vsel %vm4559, 1, 0
    %v4576 = vsel %vm4560, 1, 0
    %v4577 = vsel %vm4561, 1, 0
    %v4578 = vsel %vm4562, 1, 0
    %v4579 = vsel %vm4563, 1, 0
    %v4580 = vsel %vm4564, 1, 0
    %v4581 = vsel %vm4565, 1, 0
    %v4582 = vsel %vm4566, 1, 0
    %v4583 = vsel %vm4567, 1, 0
    %v4584 = vsel %vm4568, 1, 0
    %v4585 = vsel %vm4569, 1, 0
    %v4586 = vsel %vm4570, 1, 0
    %v4587 = vsel %vm4571, 1, 0
    %v4588 = vsel %vm4572, 1, 0
    %v4589 = vsel %vm4573, 1, 0
    %v4590 = vsel %vm4574, 1, 0
    %v4591 = vcvt.s32.f32 %v4575
    %v4592 = vcvt.s32.f32 %v4576
    %v4593 = vcvt.s32.f32 %v4577
    %v4594 = vcvt.s32.f32 %v4578
    %v4595 = vcvt.s32.f32 %v4579
    %v4596 = vcvt.s32.f32 %v4580
    %v4597 = vcvt.s32.f32 %v4581
    %v4598 = vcvt.s32.f32 %v4582
    %v4599 = vcvt.s32.f32 %v4583
    %v4600 = vcvt.s32.f32 %v4584
    %v4601 = vcvt.s32.f32 %v4585
    %v4602 = vcvt.s32.f32 %v4586
    %v4603 = vcvt.s32.f32 %v4587
    %v4604 = vcvt.s32.f32 %v4588
    %v4605 = vcvt.s32.f32 %v4589
    %v4606 = vcvt.s32.f32 %v4590
    %v4607 = vpack.c.bf16 %v4592, %v4591
    %v4608 = vpack.c.bf16 %v4594, %v4593
    %v4609 = vpack.c.bf16 %v4596, %v4595
    %v4610 = vpack.c.bf16 %v4598, %v4597
    %v4611 = vpack.c.bf16 %v4600, %v4599
    %v4612 = vpack.c.bf16 %v4602, %v4601
    %v4613 = vpack.c.bf16 %v4604, %v4603
    %v4614 = vpack.c.bf16 %v4606, %v4605
    %s4615 = scalar_lea.vmem [#allocation2], 1216
    %v4616 = vld [vmem:[%s4615] sm:$0xf]
    %v4617 = vld [vmem:[%s4615 + $0x4] sm:$0xf]
    %v4618 = vld [vmem:[%s4615 + $0x8] sm:$0xf]
    %v4619 = vld [vmem:[%s4615 + $0xc] sm:$0xf]
    %v4620 = vld [vmem:[%s4615 + $0x10] sm:$0xf]
    %v4621 = vld [vmem:[%s4615 + $0x14] sm:$0xf]
    %v4622 = vld [vmem:[%s4615 + $0x18] sm:$0xf]
    %v4623 = vld [vmem:[%s4615 + $0x1c] sm:$0xf]
    %v4624 = vld [vmem:[%s4615 + $0x20] sm:$0xf]
    %v4625 = vld [vmem:[%s4615 + $0x24] sm:$0xf]
    %v4626 = vld [vmem:[%s4615 + $0x28] sm:$0xf]
    %v4627 = vld [vmem:[%s4615 + $0x2c] sm:$0xf]
    %v4628 = vld [vmem:[%s4615 + $0x30] sm:$0xf]
    %v4629 = vld [vmem:[%s4615 + $0x34] sm:$0xf]
    %v4630 = vld [vmem:[%s4615 + $0x38] sm:$0xf]
    %v4631 = vld [vmem:[%s4615 + $0x3c] sm:$0xf]
    %v4648 = vunpack.c.l.b16 %v4616
    %v4649 = vunpack.c.l.b16 %v4617
    %v4650 = vunpack.c.l.b16 %v4618
    %v4651 = vunpack.c.l.b16 %v4619
    %v4652 = vunpack.c.l.b16 %v4620
    %v4653 = vunpack.c.l.b16 %v4621
    %v4654 = vunpack.c.l.b16 %v4622
    %v4655 = vunpack.c.l.b16 %v4623
    %v4656 = vunpack.c.l.b16 %v4624
    %v4657 = vunpack.c.l.b16 %v4625
    %v4658 = vunpack.c.l.b16 %v4626
    %v4659 = vunpack.c.l.b16 %v4627
    %v4660 = vunpack.c.l.b16 %v4628
    %v4661 = vunpack.c.l.b16 %v4629
    %v4662 = vunpack.c.l.b16 %v4630
    %v4663 = vunpack.c.l.b16 %v4631
    %v4664 = vpack.c.b16 %v4649, %v4648
    %v4665 = vpack.c.b16 %v4651, %v4650
    %v4666 = vpack.c.b16 %v4653, %v4652
    %v4667 = vpack.c.b16 %v4655, %v4654
    %v4668 = vpack.c.b16 %v4657, %v4656
    %v4669 = vpack.c.b16 %v4659, %v4658
    %v4670 = vpack.c.b16 %v4661, %v4660
    %v4671 = vpack.c.b16 %v4663, %v4662
    %4680 = vmatpush.bf16.msra.mxu0 %v4671
    %4681 = vmatpush.bf16.msra.mxu0 %v4670
    %4682 = vmatpush.bf16.msra.mxu0 %v4669
    %4683 = vmatpush.bf16.msra.mxu0 %v4668
    %4684 = vmatpush.bf16.msra.mxu0 %v4667
    %4685 = vmatpush.bf16.msra.mxu0 %v4666
    %4686 = vmatpush.bf16.msra.mxu0 %v4665
    %4687 = vmatpush.bf16.msra.mxu0 %v4664
    %4688 = vmatmul.bf16.gmra.mxu0 %v4607
    %v4689 = vpop.f32.mrf.mxu0
    %v4690 = vadd.f32 0.0, %v4689
    %v4691 = vpop.f32.mrf.mxu0
    %v4692 = vadd.f32 0.0, %v4691
    %4693 = vmatmul.bf16.gmra.mxu0 %v4608
    %v4694 = vpop.f32.mrf.mxu0
    %v4695 = vadd.f32 0.0, %v4694
    %v4696 = vpop.f32.mrf.mxu0
    %v4697 = vadd.f32 0.0, %v4696
    %4698 = vmatmul.bf16.gmra.mxu0 %v4609
    %v4699 = vpop.f32.mrf.mxu0
    %v4700 = vadd.f32 0.0, %v4699
    %v4701 = vpop.f32.mrf.mxu0
    %v4702 = vadd.f32 0.0, %v4701
    %4703 = vmatmul.bf16.gmra.mxu0 %v4610
    %v4704 = vpop.f32.mrf.mxu0
    %v4705 = vadd.f32 0.0, %v4704
    %v4706 = vpop.f32.mrf.mxu0
    %v4707 = vadd.f32 0.0, %v4706
    %4708 = vmatmul.bf16.gmra.mxu0 %v4611
    %v4709 = vpop.f32.mrf.mxu0
    %v4710 = vadd.f32 0.0, %v4709
    %v4711 = vpop.f32.mrf.mxu0
    %v4712 = vadd.f32 0.0, %v4711
    %4713 = vmatmul.bf16.gmra.mxu0 %v4612
    %v4714 = vpop.f32.mrf.mxu0
    %v4715 = vadd.f32 0.0, %v4714
    %v4716 = vpop.f32.mrf.mxu0
    %v4717 = vadd.f32 0.0, %v4716
    %4718 = vmatmul.bf16.gmra.mxu0 %v4613
    %v4719 = vpop.f32.mrf.mxu0
    %v4720 = vadd.f32 0.0, %v4719
    %v4721 = vpop.f32.mrf.mxu0
    %v4722 = vadd.f32 0.0, %v4721
    %4723 = vmatmul.bf16.gmra.mxu0 %v4614
    %v4724 = vpop.f32.mrf.mxu0
    %v4725 = vadd.f32 0.0, %v4724
    %v4726 = vpop.f32.mrf.mxu0
    %v4727 = vadd.f32 0.0, %v4726
    %4728 = vdwg.mxu0
    %v4729 = vadd.f32 %v4495, %v4690
    %v4730 = vadd.f32 %v4496, %v4692
    %v4731 = vadd.f32 %v4497, %v4695
    %v4732 = vadd.f32 %v4498, %v4697
    %v4733 = vadd.f32 %v4499, %v4700
    %v4734 = vadd.f32 %v4500, %v4702
    %v4735 = vadd.f32 %v4501, %v4705
    %v4736 = vadd.f32 %v4502, %v4707
    %v4737 = vadd.f32 %v4503, %v4710
    %v4738 = vadd.f32 %v4504, %v4712
    %v4739 = vadd.f32 %v4505, %v4715
    %v4740 = vadd.f32 %v4506, %v4717
    %v4741 = vadd.f32 %v4507, %v4720
    %v4742 = vadd.f32 %v4508, %v4722
    %v4743 = vadd.f32 %v4509, %v4725
    %v4744 = vadd.f32 %v4510, %v4727
    %4745 = vset.pattern.permute.xlu0 20
    %4746 = vperm.xlu0 %4745, %v80
    %v4747 = vpop.permute.xlu0 %4746
    %4748 = vset.pattern.permute.xlu0 20
    %4749 = vperm.xlu0 %4748, %v81
    %v4750 = vpop.permute.xlu0 %4749
    %4751 = vset.pattern.permute.xlu0 20
    %4752 = vperm.xlu0 %4751, %v82
    %v4753 = vpop.permute.xlu0 %4752
    %4754 = vset.pattern.permute.xlu0 20
    %4755 = vperm.xlu0 %4754, %v83
    %v4756 = vpop.permute.xlu0 %4755
    %4757 = vset.pattern.permute.xlu0 20
    %4758 = vperm.xlu0 %4757, %v84
    %v4759 = vpop.permute.xlu0 %4758
    %4760 = vset.pattern.permute.xlu0 20
    %4761 = vperm.xlu0 %4760, %v85
    %v4762 = vpop.permute.xlu0 %4761
    %4763 = vset.pattern.permute.xlu0 20
    %4764 = vperm.xlu0 %4763, %v86
    %v4765 = vpop.permute.xlu0 %4764
    %4766 = vset.pattern.permute.xlu0 20
    %4767 = vperm.xlu0 %4766, %v87
    %v4768 = vpop.permute.xlu0 %4767
    %4769 = vset.pattern.permute.xlu0 20
    %4770 = vperm.xlu0 %4769, %v88
    %v4771 = vpop.permute.xlu0 %4770
    %4772 = vset.pattern.permute.xlu0 20
    %4773 = vperm.xlu0 %4772, %v89
    %v4774 = vpop.permute.xlu0 %4773
    %4775 = vset.pattern.permute.xlu0 20
    %4776 = vperm.xlu0 %4775, %v90
    %v4777 = vpop.permute.xlu0 %4776
    %4778 = vset.pattern.permute.xlu0 20
    %4779 = vperm.xlu0 %4778, %v91
    %v4780 = vpop.permute.xlu0 %4779
    %4781 = vset.pattern.permute.xlu0 20
    %4782 = vperm.xlu0 %4781, %v92
    %v4783 = vpop.permute.xlu0 %4782
    %4784 = vset.pattern.permute.xlu0 20
    %4785 = vperm.xlu0 %4784, %v93
    %v4786 = vpop.permute.xlu0 %4785
    %4787 = vset.pattern.permute.xlu0 20
    %4788 = vperm.xlu0 %4787, %v94
    %v4789 = vpop.permute.xlu0 %4788
    %4790 = vset.pattern.permute.xlu0 20
    %4791 = vperm.xlu0 %4790, %v95
    %v4792 = vpop.permute.xlu0 %4791
    %vm4793 = vcmp.eq.s32.totalorder %v97, %v4747
    %vm4794 = vcmp.eq.s32.totalorder %v97, %v4750
    %vm4795 = vcmp.eq.s32.totalorder %v97, %v4753
    %vm4796 = vcmp.eq.s32.totalorder %v97, %v4756
    %vm4797 = vcmp.eq.s32.totalorder %v97, %v4759
    %vm4798 = vcmp.eq.s32.totalorder %v97, %v4762
    %vm4799 = vcmp.eq.s32.totalorder %v97, %v4765
    %vm4800 = vcmp.eq.s32.totalorder %v97, %v4768
    %vm4801 = vcmp.eq.s32.totalorder %v97, %v4771
    %vm4802 = vcmp.eq.s32.totalorder %v97, %v4774
    %vm4803 = vcmp.eq.s32.totalorder %v97, %v4777
    %vm4804 = vcmp.eq.s32.totalorder %v97, %v4780
    %vm4805 = vcmp.eq.s32.totalorder %v97, %v4783
    %vm4806 = vcmp.eq.s32.totalorder %v97, %v4786
    %vm4807 = vcmp.eq.s32.totalorder %v97, %v4789
    %vm4808 = vcmp.eq.s32.totalorder %v97, %v4792
    %v4809 = vsel %vm4793, 1, 0
    %v4810 = vsel %vm4794, 1, 0
    %v4811 = vsel %vm4795, 1, 0
    %v4812 = vsel %vm4796, 1, 0
    %v4813 = vsel %vm4797, 1, 0
    %v4814 = vsel %vm4798, 1, 0
    %v4815 = vsel %vm4799, 1, 0
    %v4816 = vsel %vm4800, 1, 0
    %v4817 = vsel %vm4801, 1, 0
    %v4818 = vsel %vm4802, 1, 0
    %v4819 = vsel %vm4803, 1, 0
    %v4820 = vsel %vm4804, 1, 0
    %v4821 = vsel %vm4805, 1, 0
    %v4822 = vsel %vm4806, 1, 0
    %v4823 = vsel %vm4807, 1, 0
    %v4824 = vsel %vm4808, 1, 0
    %v4825 = vcvt.s32.f32 %v4809
    %v4826 = vcvt.s32.f32 %v4810
    %v4827 = vcvt.s32.f32 %v4811
    %v4828 = vcvt.s32.f32 %v4812
    %v4829 = vcvt.s32.f32 %v4813
    %v4830 = vcvt.s32.f32 %v4814
    %v4831 = vcvt.s32.f32 %v4815
    %v4832 = vcvt.s32.f32 %v4816
    %v4833 = vcvt.s32.f32 %v4817
    %v4834 = vcvt.s32.f32 %v4818
    %v4835 = vcvt.s32.f32 %v4819
    %v4836 = vcvt.s32.f32 %v4820
    %v4837 = vcvt.s32.f32 %v4821
    %v4838 = vcvt.s32.f32 %v4822
    %v4839 = vcvt.s32.f32 %v4823
    %v4840 = vcvt.s32.f32 %v4824
    %v4841 = vpack.c.bf16 %v4826, %v4825
    %v4842 = vpack.c.bf16 %v4828, %v4827
    %v4843 = vpack.c.bf16 %v4830, %v4829
    %v4844 = vpack.c.bf16 %v4832, %v4831
    %v4845 = vpack.c.bf16 %v4834, %v4833
    %v4846 = vpack.c.bf16 %v4836, %v4835
    %v4847 = vpack.c.bf16 %v4838, %v4837
    %v4848 = vpack.c.bf16 %v4840, %v4839
    %s4849 = scalar_lea.vmem [#allocation2], 1280
    %v4850 = vld [vmem:[%s4849] sm:$0xf]
    %v4851 = vld [vmem:[%s4849 + $0x4] sm:$0xf]
    %v4852 = vld [vmem:[%s4849 + $0x8] sm:$0xf]
    %v4853 = vld [vmem:[%s4849 + $0xc] sm:$0xf]
    %v4854 = vld [vmem:[%s4849 + $0x10] sm:$0xf]
    %v4855 = vld [vmem:[%s4849 + $0x14] sm:$0xf]
    %v4856 = vld [vmem:[%s4849 + $0x18] sm:$0xf]
    %v4857 = vld [vmem:[%s4849 + $0x1c] sm:$0xf]
    %v4858 = vld [vmem:[%s4849 + $0x20] sm:$0xf]
    %v4859 = vld [vmem:[%s4849 + $0x24] sm:$0xf]
    %v4860 = vld [vmem:[%s4849 + $0x28] sm:$0xf]
    %v4861 = vld [vmem:[%s4849 + $0x2c] sm:$0xf]
    %v4862 = vld [vmem:[%s4849 + $0x30] sm:$0xf]
    %v4863 = vld [vmem:[%s4849 + $0x34] sm:$0xf]
    %v4864 = vld [vmem:[%s4849 + $0x38] sm:$0xf]
    %v4865 = vld [vmem:[%s4849 + $0x3c] sm:$0xf]
    %v4882 = vunpack.c.l.b16 %v4850
    %v4883 = vunpack.c.l.b16 %v4851
    %v4884 = vunpack.c.l.b16 %v4852
    %v4885 = vunpack.c.l.b16 %v4853
    %v4886 = vunpack.c.l.b16 %v4854
    %v4887 = vunpack.c.l.b16 %v4855
    %v4888 = vunpack.c.l.b16 %v4856
    %v4889 = vunpack.c.l.b16 %v4857
    %v4890 = vunpack.c.l.b16 %v4858
    %v4891 = vunpack.c.l.b16 %v4859
    %v4892 = vunpack.c.l.b16 %v4860
    %v4893 = vunpack.c.l.b16 %v4861
    %v4894 = vunpack.c.l.b16 %v4862
    %v4895 = vunpack.c.l.b16 %v4863
    %v4896 = vunpack.c.l.b16 %v4864
    %v4897 = vunpack.c.l.b16 %v4865
    %v4898 = vpack.c.b16 %v4883, %v4882
    %v4899 = vpack.c.b16 %v4885, %v4884
    %v4900 = vpack.c.b16 %v4887, %v4886
    %v4901 = vpack.c.b16 %v4889, %v4888
    %v4902 = vpack.c.b16 %v4891, %v4890
    %v4903 = vpack.c.b16 %v4893, %v4892
    %v4904 = vpack.c.b16 %v4895, %v4894
    %v4905 = vpack.c.b16 %v4897, %v4896
    %4914 = vmatpush.bf16.msra.mxu0 %v4905
    %4915 = vmatpush.bf16.msra.mxu0 %v4904
    %4916 = vmatpush.bf16.msra.mxu0 %v4903
    %4917 = vmatpush.bf16.msra.mxu0 %v4902
    %4918 = vmatpush.bf16.msra.mxu0 %v4901
    %4919 = vmatpush.bf16.msra.mxu0 %v4900
    %4920 = vmatpush.bf16.msra.mxu0 %v4899
    %4921 = vmatpush.bf16.msra.mxu0 %v4898
    %4922 = vmatmul.bf16.gmra.mxu0 %v4841
    %v4923 = vpop.f32.mrf.mxu0
    %v4924 = vadd.f32 0.0, %v4923
    %v4925 = vpop.f32.mrf.mxu0
    %v4926 = vadd.f32 0.0, %v4925
    %4927 = vmatmul.bf16.gmra.mxu0 %v4842
    %v4928 = vpop.f32.mrf.mxu0
    %v4929 = vadd.f32 0.0, %v4928
    %v4930 = vpop.f32.mrf.mxu0
    %v4931 = vadd.f32 0.0, %v4930
    %4932 = vmatmul.bf16.gmra.mxu0 %v4843
    %v4933 = vpop.f32.mrf.mxu0
    %v4934 = vadd.f32 0.0, %v4933
    %v4935 = vpop.f32.mrf.mxu0
    %v4936 = vadd.f32 0.0, %v4935
    %4937 = vmatmul.bf16.gmra.mxu0 %v4844
    %v4938 = vpop.f32.mrf.mxu0
    %v4939 = vadd.f32 0.0, %v4938
    %v4940 = vpop.f32.mrf.mxu0
    %v4941 = vadd.f32 0.0, %v4940
    %4942 = vmatmul.bf16.gmra.mxu0 %v4845
    %v4943 = vpop.f32.mrf.mxu0
    %v4944 = vadd.f32 0.0, %v4943
    %v4945 = vpop.f32.mrf.mxu0
    %v4946 = vadd.f32 0.0, %v4945
    %4947 = vmatmul.bf16.gmra.mxu0 %v4846
    %v4948 = vpop.f32.mrf.mxu0
    %v4949 = vadd.f32 0.0, %v4948
    %v4950 = vpop.f32.mrf.mxu0
    %v4951 = vadd.f32 0.0, %v4950
    %4952 = vmatmul.bf16.gmra.mxu0 %v4847
    %v4953 = vpop.f32.mrf.mxu0
    %v4954 = vadd.f32 0.0, %v4953
    %v4955 = vpop.f32.mrf.mxu0
    %v4956 = vadd.f32 0.0, %v4955
    %4957 = vmatmul.bf16.gmra.mxu0 %v4848
    %v4958 = vpop.f32.mrf.mxu0
    %v4959 = vadd.f32 0.0, %v4958
    %v4960 = vpop.f32.mrf.mxu0
    %v4961 = vadd.f32 0.0, %v4960
    %4962 = vdwg.mxu0
    %v4963 = vadd.f32 %v4729, %v4924
    %v4964 = vadd.f32 %v4730, %v4926
    %v4965 = vadd.f32 %v4731, %v4929
    %v4966 = vadd.f32 %v4732, %v4931
    %v4967 = vadd.f32 %v4733, %v4934
    %v4968 = vadd.f32 %v4734, %v4936
    %v4969 = vadd.f32 %v4735, %v4939
    %v4970 = vadd.f32 %v4736, %v4941
    %v4971 = vadd.f32 %v4737, %v4944
    %v4972 = vadd.f32 %v4738, %v4946
    %v4973 = vadd.f32 %v4739, %v4949
    %v4974 = vadd.f32 %v4740, %v4951
    %v4975 = vadd.f32 %v4741, %v4954
    %v4976 = vadd.f32 %v4742, %v4956
    %v4977 = vadd.f32 %v4743, %v4959
    %v4978 = vadd.f32 %v4744, %v4961
    %4979 = vset.pattern.permute.xlu0 21
    %4980 = vperm.xlu0 %4979, %v80
    %v4981 = vpop.permute.xlu0 %4980
    %4982 = vset.pattern.permute.xlu0 21
    %4983 = vperm.xlu0 %4982, %v81
    %v4984 = vpop.permute.xlu0 %4983
    %4985 = vset.pattern.permute.xlu0 21
    %4986 = vperm.xlu0 %4985, %v82
    %v4987 = vpop.permute.xlu0 %4986
    %4988 = vset.pattern.permute.xlu0 21
    %4989 = vperm.xlu0 %4988, %v83
    %v4990 = vpop.permute.xlu0 %4989
    %4991 = vset.pattern.permute.xlu0 21
    %4992 = vperm.xlu0 %4991, %v84
    %v4993 = vpop.permute.xlu0 %4992
    %4994 = vset.pattern.permute.xlu0 21
    %4995 = vperm.xlu0 %4994, %v85
    %v4996 = vpop.permute.xlu0 %4995
    %4997 = vset.pattern.permute.xlu0 21
    %4998 = vperm.xlu0 %4997, %v86
    %v4999 = vpop.permute.xlu0 %4998
    %5000 = vset.pattern.permute.xlu0 21
    %5001 = vperm.xlu0 %5000, %v87
    %v5002 = vpop.permute.xlu0 %5001
    %5003 = vset.pattern.permute.xlu0 21
    %5004 = vperm.xlu0 %5003, %v88
    %v5005 = vpop.permute.xlu0 %5004
    %5006 = vset.pattern.permute.xlu0 21
    %5007 = vperm.xlu0 %5006, %v89
    %v5008 = vpop.permute.xlu0 %5007
    %5009 = vset.pattern.permute.xlu0 21
    %5010 = vperm.xlu0 %5009, %v90
    %v5011 = vpop.permute.xlu0 %5010
    %5012 = vset.pattern.permute.xlu0 21
    %5013 = vperm.xlu0 %5012, %v91
    %v5014 = vpop.permute.xlu0 %5013
    %5015 = vset.pattern.permute.xlu0 21
    %5016 = vperm.xlu0 %5015, %v92
    %v5017 = vpop.permute.xlu0 %5016
    %5018 = vset.pattern.permute.xlu0 21
    %5019 = vperm.xlu0 %5018, %v93
    %v5020 = vpop.permute.xlu0 %5019
    %5021 = vset.pattern.permute.xlu0 21
    %5022 = vperm.xlu0 %5021, %v94
    %v5023 = vpop.permute.xlu0 %5022
    %5024 = vset.pattern.permute.xlu0 21
    %5025 = vperm.xlu0 %5024, %v95
    %v5026 = vpop.permute.xlu0 %5025
    %vm5027 = vcmp.eq.s32.totalorder %v97, %v4981
    %vm5028 = vcmp.eq.s32.totalorder %v97, %v4984
    %vm5029 = vcmp.eq.s32.totalorder %v97, %v4987
    %vm5030 = vcmp.eq.s32.totalorder %v97, %v4990
    %vm5031 = vcmp.eq.s32.totalorder %v97, %v4993
    %vm5032 = vcmp.eq.s32.totalorder %v97, %v4996
    %vm5033 = vcmp.eq.s32.totalorder %v97, %v4999
    %vm5034 = vcmp.eq.s32.totalorder %v97, %v5002
    %vm5035 = vcmp.eq.s32.totalorder %v97, %v5005
    %vm5036 = vcmp.eq.s32.totalorder %v97, %v5008
    %vm5037 = vcmp.eq.s32.totalorder %v97, %v5011
    %vm5038 = vcmp.eq.s32.totalorder %v97, %v5014
    %vm5039 = vcmp.eq.s32.totalorder %v97, %v5017
    %vm5040 = vcmp.eq.s32.totalorder %v97, %v5020
    %vm5041 = vcmp.eq.s32.totalorder %v97, %v5023
    %vm5042 = vcmp.eq.s32.totalorder %v97, %v5026
    %v5043 = vsel %vm5027, 1, 0
    %v5044 = vsel %vm5028, 1, 0
    %v5045 = vsel %vm5029, 1, 0
    %v5046 = vsel %vm5030, 1, 0
    %v5047 = vsel %vm5031, 1, 0
    %v5048 = vsel %vm5032, 1, 0
    %v5049 = vsel %vm5033, 1, 0
    %v5050 = vsel %vm5034, 1, 0
    %v5051 = vsel %vm5035, 1, 0
    %v5052 = vsel %vm5036, 1, 0
    %v5053 = vsel %vm5037, 1, 0
    %v5054 = vsel %vm5038, 1, 0
    %v5055 = vsel %vm5039, 1, 0
    %v5056 = vsel %vm5040, 1, 0
    %v5057 = vsel %vm5041, 1, 0
    %v5058 = vsel %vm5042, 1, 0
    %v5059 = vcvt.s32.f32 %v5043
    %v5060 = vcvt.s32.f32 %v5044
    %v5061 = vcvt.s32.f32 %v5045
    %v5062 = vcvt.s32.f32 %v5046
    %v5063 = vcvt.s32.f32 %v5047
    %v5064 = vcvt.s32.f32 %v5048
    %v5065 = vcvt.s32.f32 %v5049
    %v5066 = vcvt.s32.f32 %v5050
    %v5067 = vcvt.s32.f32 %v5051
    %v5068 = vcvt.s32.f32 %v5052
    %v5069 = vcvt.s32.f32 %v5053
    %v5070 = vcvt.s32.f32 %v5054
    %v5071 = vcvt.s32.f32 %v5055
    %v5072 = vcvt.s32.f32 %v5056
    %v5073 = vcvt.s32.f32 %v5057
    %v5074 = vcvt.s32.f32 %v5058
    %v5075 = vpack.c.bf16 %v5060, %v5059
    %v5076 = vpack.c.bf16 %v5062, %v5061
    %v5077 = vpack.c.bf16 %v5064, %v5063
    %v5078 = vpack.c.bf16 %v5066, %v5065
    %v5079 = vpack.c.bf16 %v5068, %v5067
    %v5080 = vpack.c.bf16 %v5070, %v5069
    %v5081 = vpack.c.bf16 %v5072, %v5071
    %v5082 = vpack.c.bf16 %v5074, %v5073
    %s5083 = scalar_lea.vmem [#allocation2], 1344
    %v5084 = vld [vmem:[%s5083] sm:$0xf]
    %v5085 = vld [vmem:[%s5083 + $0x4] sm:$0xf]
    %v5086 = vld [vmem:[%s5083 + $0x8] sm:$0xf]
    %v5087 = vld [vmem:[%s5083 + $0xc] sm:$0xf]
    %v5088 = vld [vmem:[%s5083 + $0x10] sm:$0xf]
    %v5089 = vld [vmem:[%s5083 + $0x14] sm:$0xf]
    %v5090 = vld [vmem:[%s5083 + $0x18] sm:$0xf]
    %v5091 = vld [vmem:[%s5083 + $0x1c] sm:$0xf]
    %v5092 = vld [vmem:[%s5083 + $0x20] sm:$0xf]
    %v5093 = vld [vmem:[%s5083 + $0x24] sm:$0xf]
    %v5094 = vld [vmem:[%s5083 + $0x28] sm:$0xf]
    %v5095 = vld [vmem:[%s5083 + $0x2c] sm:$0xf]
    %v5096 = vld [vmem:[%s5083 + $0x30] sm:$0xf]
    %v5097 = vld [vmem:[%s5083 + $0x34] sm:$0xf]
    %v5098 = vld [vmem:[%s5083 + $0x38] sm:$0xf]
    %v5099 = vld [vmem:[%s5083 + $0x3c] sm:$0xf]
    %v5116 = vunpack.c.l.b16 %v5084
    %v5117 = vunpack.c.l.b16 %v5085
    %v5118 = vunpack.c.l.b16 %v5086
    %v5119 = vunpack.c.l.b16 %v5087
    %v5120 = vunpack.c.l.b16 %v5088
    %v5121 = vunpack.c.l.b16 %v5089
    %v5122 = vunpack.c.l.b16 %v5090
    %v5123 = vunpack.c.l.b16 %v5091
    %v5124 = vunpack.c.l.b16 %v5092
    %v5125 = vunpack.c.l.b16 %v5093
    %v5126 = vunpack.c.l.b16 %v5094
    %v5127 = vunpack.c.l.b16 %v5095
    %v5128 = vunpack.c.l.b16 %v5096
    %v5129 = vunpack.c.l.b16 %v5097
    %v5130 = vunpack.c.l.b16 %v5098
    %v5131 = vunpack.c.l.b16 %v5099
    %v5132 = vpack.c.b16 %v5117, %v5116
    %v5133 = vpack.c.b16 %v5119, %v5118
    %v5134 = vpack.c.b16 %v5121, %v5120
    %v5135 = vpack.c.b16 %v5123, %v5122
    %v5136 = vpack.c.b16 %v5125, %v5124
    %v5137 = vpack.c.b16 %v5127, %v5126
    %v5138 = vpack.c.b16 %v5129, %v5128
    %v5139 = vpack.c.b16 %v5131, %v5130
    %5148 = vmatpush.bf16.msra.mxu0 %v5139
    %5149 = vmatpush.bf16.msra.mxu0 %v5138
    %5150 = vmatpush.bf16.msra.mxu0 %v5137
    %5151 = vmatpush.bf16.msra.mxu0 %v5136
    %5152 = vmatpush.bf16.msra.mxu0 %v5135
    %5153 = vmatpush.bf16.msra.mxu0 %v5134
    %5154 = vmatpush.bf16.msra.mxu0 %v5133
    %5155 = vmatpush.bf16.msra.mxu0 %v5132
    %5156 = vmatmul.bf16.gmra.mxu0 %v5075
    %v5157 = vpop.f32.mrf.mxu0
    %v5158 = vadd.f32 0.0, %v5157
    %v5159 = vpop.f32.mrf.mxu0
    %v5160 = vadd.f32 0.0, %v5159
    %5161 = vmatmul.bf16.gmra.mxu0 %v5076
    %v5162 = vpop.f32.mrf.mxu0
    %v5163 = vadd.f32 0.0, %v5162
    %v5164 = vpop.f32.mrf.mxu0
    %v5165 = vadd.f32 0.0, %v5164
    %5166 = vmatmul.bf16.gmra.mxu0 %v5077
    %v5167 = vpop.f32.mrf.mxu0
    %v5168 = vadd.f32 0.0, %v5167
    %v5169 = vpop.f32.mrf.mxu0
    %v5170 = vadd.f32 0.0, %v5169
    %5171 = vmatmul.bf16.gmra.mxu0 %v5078
    %v5172 = vpop.f32.mrf.mxu0
    %v5173 = vadd.f32 0.0, %v5172
    %v5174 = vpop.f32.mrf.mxu0
    %v5175 = vadd.f32 0.0, %v5174
    %5176 = vmatmul.bf16.gmra.mxu0 %v5079
    %v5177 = vpop.f32.mrf.mxu0
    %v5178 = vadd.f32 0.0, %v5177
    %v5179 = vpop.f32.mrf.mxu0
    %v5180 = vadd.f32 0.0, %v5179
    %5181 = vmatmul.bf16.gmra.mxu0 %v5080
    %v5182 = vpop.f32.mrf.mxu0
    %v5183 = vadd.f32 0.0, %v5182
    %v5184 = vpop.f32.mrf.mxu0
    %v5185 = vadd.f32 0.0, %v5184
    %5186 = vmatmul.bf16.gmra.mxu0 %v5081
    %v5187 = vpop.f32.mrf.mxu0
    %v5188 = vadd.f32 0.0, %v5187
    %v5189 = vpop.f32.mrf.mxu0
    %v5190 = vadd.f32 0.0, %v5189
    %5191 = vmatmul.bf16.gmra.mxu0 %v5082
    %v5192 = vpop.f32.mrf.mxu0
    %v5193 = vadd.f32 0.0, %v5192
    %v5194 = vpop.f32.mrf.mxu0
    %v5195 = vadd.f32 0.0, %v5194
    %5196 = vdwg.mxu0
    %v5197 = vadd.f32 %v4963, %v5158
    %v5198 = vadd.f32 %v4964, %v5160
    %v5199 = vadd.f32 %v4965, %v5163
    %v5200 = vadd.f32 %v4966, %v5165
    %v5201 = vadd.f32 %v4967, %v5168
    %v5202 = vadd.f32 %v4968, %v5170
    %v5203 = vadd.f32 %v4969, %v5173
    %v5204 = vadd.f32 %v4970, %v5175
    %v5205 = vadd.f32 %v4971, %v5178
    %v5206 = vadd.f32 %v4972, %v5180
    %v5207 = vadd.f32 %v4973, %v5183
    %v5208 = vadd.f32 %v4974, %v5185
    %v5209 = vadd.f32 %v4975, %v5188
    %v5210 = vadd.f32 %v4976, %v5190
    %v5211 = vadd.f32 %v4977, %v5193
    %v5212 = vadd.f32 %v4978, %v5195
    %5213 = vset.pattern.permute.xlu0 22
    %5214 = vperm.xlu0 %5213, %v80
    %v5215 = vpop.permute.xlu0 %5214
    %5216 = vset.pattern.permute.xlu0 22
    %5217 = vperm.xlu0 %5216, %v81
    %v5218 = vpop.permute.xlu0 %5217
    %5219 = vset.pattern.permute.xlu0 22
    %5220 = vperm.xlu0 %5219, %v82
    %v5221 = vpop.permute.xlu0 %5220
    %5222 = vset.pattern.permute.xlu0 22
    %5223 = vperm.xlu0 %5222, %v83
    %v5224 = vpop.permute.xlu0 %5223
    %5225 = vset.pattern.permute.xlu0 22
    %5226 = vperm.xlu0 %5225, %v84
    %v5227 = vpop.permute.xlu0 %5226
    %5228 = vset.pattern.permute.xlu0 22
    %5229 = vperm.xlu0 %5228, %v85
    %v5230 = vpop.permute.xlu0 %5229
    %5231 = vset.pattern.permute.xlu0 22
    %5232 = vperm.xlu0 %5231, %v86
    %v5233 = vpop.permute.xlu0 %5232
    %5234 = vset.pattern.permute.xlu0 22
    %5235 = vperm.xlu0 %5234, %v87
    %v5236 = vpop.permute.xlu0 %5235
    %5237 = vset.pattern.permute.xlu0 22
    %5238 = vperm.xlu0 %5237, %v88
    %v5239 = vpop.permute.xlu0 %5238
    %5240 = vset.pattern.permute.xlu0 22
    %5241 = vperm.xlu0 %5240, %v89
    %v5242 = vpop.permute.xlu0 %5241
    %5243 = vset.pattern.permute.xlu0 22
    %5244 = vperm.xlu0 %5243, %v90
    %v5245 = vpop.permute.xlu0 %5244
    %5246 = vset.pattern.permute.xlu0 22
    %5247 = vperm.xlu0 %5246, %v91
    %v5248 = vpop.permute.xlu0 %5247
    %5249 = vset.pattern.permute.xlu0 22
    %5250 = vperm.xlu0 %5249, %v92
    %v5251 = vpop.permute.xlu0 %5250
    %5252 = vset.pattern.permute.xlu0 22
    %5253 = vperm.xlu0 %5252, %v93
    %v5254 = vpop.permute.xlu0 %5253
    %5255 = vset.pattern.permute.xlu0 22
    %5256 = vperm.xlu0 %5255, %v94
    %v5257 = vpop.permute.xlu0 %5256
    %5258 = vset.pattern.permute.xlu0 22
    %5259 = vperm.xlu0 %5258, %v95
    %v5260 = vpop.permute.xlu0 %5259
    %vm5261 = vcmp.eq.s32.totalorder %v97, %v5215
    %vm5262 = vcmp.eq.s32.totalorder %v97, %v5218
    %vm5263 = vcmp.eq.s32.totalorder %v97, %v5221
    %vm5264 = vcmp.eq.s32.totalorder %v97, %v5224
    %vm5265 = vcmp.eq.s32.totalorder %v97, %v5227
    %vm5266 = vcmp.eq.s32.totalorder %v97, %v5230
    %vm5267 = vcmp.eq.s32.totalorder %v97, %v5233
    %vm5268 = vcmp.eq.s32.totalorder %v97, %v5236
    %vm5269 = vcmp.eq.s32.totalorder %v97, %v5239
    %vm5270 = vcmp.eq.s32.totalorder %v97, %v5242
    %vm5271 = vcmp.eq.s32.totalorder %v97, %v5245
    %vm5272 = vcmp.eq.s32.totalorder %v97, %v5248
    %vm5273 = vcmp.eq.s32.totalorder %v97, %v5251
    %vm5274 = vcmp.eq.s32.totalorder %v97, %v5254
    %vm5275 = vcmp.eq.s32.totalorder %v97, %v5257
    %vm5276 = vcmp.eq.s32.totalorder %v97, %v5260
    %v5277 = vsel %vm5261, 1, 0
    %v5278 = vsel %vm5262, 1, 0
    %v5279 = vsel %vm5263, 1, 0
    %v5280 = vsel %vm5264, 1, 0
    %v5281 = vsel %vm5265, 1, 0
    %v5282 = vsel %vm5266, 1, 0
    %v5283 = vsel %vm5267, 1, 0
    %v5284 = vsel %vm5268, 1, 0
    %v5285 = vsel %vm5269, 1, 0
    %v5286 = vsel %vm5270, 1, 0
    %v5287 = vsel %vm5271, 1, 0
    %v5288 = vsel %vm5272, 1, 0
    %v5289 = vsel %vm5273, 1, 0
    %v5290 = vsel %vm5274, 1, 0
    %v5291 = vsel %vm5275, 1, 0
    %v5292 = vsel %vm5276, 1, 0
    %v5293 = vcvt.s32.f32 %v5277
    %v5294 = vcvt.s32.f32 %v5278
    %v5295 = vcvt.s32.f32 %v5279
    %v5296 = vcvt.s32.f32 %v5280
    %v5297 = vcvt.s32.f32 %v5281
    %v5298 = vcvt.s32.f32 %v5282
    %v5299 = vcvt.s32.f32 %v5283
    %v5300 = vcvt.s32.f32 %v5284
    %v5301 = vcvt.s32.f32 %v5285
    %v5302 = vcvt.s32.f32 %v5286
    %v5303 = vcvt.s32.f32 %v5287
    %v5304 = vcvt.s32.f32 %v5288
    %v5305 = vcvt.s32.f32 %v5289
    %v5306 = vcvt.s32.f32 %v5290
    %v5307 = vcvt.s32.f32 %v5291
    %v5308 = vcvt.s32.f32 %v5292
    %v5309 = vpack.c.bf16 %v5294, %v5293
    %v5310 = vpack.c.bf16 %v5296, %v5295
    %v5311 = vpack.c.bf16 %v5298, %v5297
    %v5312 = vpack.c.bf16 %v5300, %v5299
    %v5313 = vpack.c.bf16 %v5302, %v5301
    %v5314 = vpack.c.bf16 %v5304, %v5303
    %v5315 = vpack.c.bf16 %v5306, %v5305
    %v5316 = vpack.c.bf16 %v5308, %v5307
    %s5317 = scalar_lea.vmem [#allocation2], 1408
    %v5318 = vld [vmem:[%s5317] sm:$0xf]
    %v5319 = vld [vmem:[%s5317 + $0x4] sm:$0xf]
    %v5320 = vld [vmem:[%s5317 + $0x8] sm:$0xf]
    %v5321 = vld [vmem:[%s5317 + $0xc] sm:$0xf]
    %v5322 = vld [vmem:[%s5317 + $0x10] sm:$0xf]
    %v5323 = vld [vmem:[%s5317 + $0x14] sm:$0xf]
    %v5324 = vld [vmem:[%s5317 + $0x18] sm:$0xf]
    %v5325 = vld [vmem:[%s5317 + $0x1c] sm:$0xf]
    %v5326 = vld [vmem:[%s5317 + $0x20] sm:$0xf]
    %v5327 = vld [vmem:[%s5317 + $0x24] sm:$0xf]
    %v5328 = vld [vmem:[%s5317 + $0x28] sm:$0xf]
    %v5329 = vld [vmem:[%s5317 + $0x2c] sm:$0xf]
    %v5330 = vld [vmem:[%s5317 + $0x30] sm:$0xf]
    %v5331 = vld [vmem:[%s5317 + $0x34] sm:$0xf]
    %v5332 = vld [vmem:[%s5317 + $0x38] sm:$0xf]
    %v5333 = vld [vmem:[%s5317 + $0x3c] sm:$0xf]
    %v5350 = vunpack.c.l.b16 %v5318
    %v5351 = vunpack.c.l.b16 %v5319
    %v5352 = vunpack.c.l.b16 %v5320
    %v5353 = vunpack.c.l.b16 %v5321
    %v5354 = vunpack.c.l.b16 %v5322
    %v5355 = vunpack.c.l.b16 %v5323
    %v5356 = vunpack.c.l.b16 %v5324
    %v5357 = vunpack.c.l.b16 %v5325
    %v5358 = vunpack.c.l.b16 %v5326
    %v5359 = vunpack.c.l.b16 %v5327
    %v5360 = vunpack.c.l.b16 %v5328
    %v5361 = vunpack.c.l.b16 %v5329
    %v5362 = vunpack.c.l.b16 %v5330
    %v5363 = vunpack.c.l.b16 %v5331
    %v5364 = vunpack.c.l.b16 %v5332
    %v5365 = vunpack.c.l.b16 %v5333
    %v5366 = vpack.c.b16 %v5351, %v5350
    %v5367 = vpack.c.b16 %v5353, %v5352
    %v5368 = vpack.c.b16 %v5355, %v5354
    %v5369 = vpack.c.b16 %v5357, %v5356
    %v5370 = vpack.c.b16 %v5359, %v5358
    %v5371 = vpack.c.b16 %v5361, %v5360
    %v5372 = vpack.c.b16 %v5363, %v5362
    %v5373 = vpack.c.b16 %v5365, %v5364
    %5382 = vmatpush.bf16.msra.mxu0 %v5373
    %5383 = vmatpush.bf16.msra.mxu0 %v5372
    %5384 = vmatpush.bf16.msra.mxu0 %v5371
    %5385 = vmatpush.bf16.msra.mxu0 %v5370
    %5386 = vmatpush.bf16.msra.mxu0 %v5369
    %5387 = vmatpush.bf16.msra.mxu0 %v5368
    %5388 = vmatpush.bf16.msra.mxu0 %v5367
    %5389 = vmatpush.bf16.msra.mxu0 %v5366
    %5390 = vmatmul.bf16.gmra.mxu0 %v5309
    %v5391 = vpop.f32.mrf.mxu0
    %v5392 = vadd.f32 0.0, %v5391
    %v5393 = vpop.f32.mrf.mxu0
    %v5394 = vadd.f32 0.0, %v5393
    %5395 = vmatmul.bf16.gmra.mxu0 %v5310
    %v5396 = vpop.f32.mrf.mxu0
    %v5397 = vadd.f32 0.0, %v5396
    %v5398 = vpop.f32.mrf.mxu0
    %v5399 = vadd.f32 0.0, %v5398
    %5400 = vmatmul.bf16.gmra.mxu0 %v5311
    %v5401 = vpop.f32.mrf.mxu0
    %v5402 = vadd.f32 0.0, %v5401
    %v5403 = vpop.f32.mrf.mxu0
    %v5404 = vadd.f32 0.0, %v5403
    %5405 = vmatmul.bf16.gmra.mxu0 %v5312
    %v5406 = vpop.f32.mrf.mxu0
    %v5407 = vadd.f32 0.0, %v5406
    %v5408 = vpop.f32.mrf.mxu0
    %v5409 = vadd.f32 0.0, %v5408
    %5410 = vmatmul.bf16.gmra.mxu0 %v5313
    %v5411 = vpop.f32.mrf.mxu0
    %v5412 = vadd.f32 0.0, %v5411
    %v5413 = vpop.f32.mrf.mxu0
    %v5414 = vadd.f32 0.0, %v5413
    %5415 = vmatmul.bf16.gmra.mxu0 %v5314
    %v5416 = vpop.f32.mrf.mxu0
    %v5417 = vadd.f32 0.0, %v5416
    %v5418 = vpop.f32.mrf.mxu0
    %v5419 = vadd.f32 0.0, %v5418
    %5420 = vmatmul.bf16.gmra.mxu0 %v5315
    %v5421 = vpop.f32.mrf.mxu0
    %v5422 = vadd.f32 0.0, %v5421
    %v5423 = vpop.f32.mrf.mxu0
    %v5424 = vadd.f32 0.0, %v5423
    %5425 = vmatmul.bf16.gmra.mxu0 %v5316
    %v5426 = vpop.f32.mrf.mxu0
    %v5427 = vadd.f32 0.0, %v5426
    %v5428 = vpop.f32.mrf.mxu0
    %v5429 = vadd.f32 0.0, %v5428
    %5430 = vdwg.mxu0
    %v5431 = vadd.f32 %v5197, %v5392
    %v5432 = vadd.f32 %v5198, %v5394
    %v5433 = vadd.f32 %v5199, %v5397
    %v5434 = vadd.f32 %v5200, %v5399
    %v5435 = vadd.f32 %v5201, %v5402
    %v5436 = vadd.f32 %v5202, %v5404
    %v5437 = vadd.f32 %v5203, %v5407
    %v5438 = vadd.f32 %v5204, %v5409
    %v5439 = vadd.f32 %v5205, %v5412
    %v5440 = vadd.f32 %v5206, %v5414
    %v5441 = vadd.f32 %v5207, %v5417
    %v5442 = vadd.f32 %v5208, %v5419
    %v5443 = vadd.f32 %v5209, %v5422
    %v5444 = vadd.f32 %v5210, %v5424
    %v5445 = vadd.f32 %v5211, %v5427
    %v5446 = vadd.f32 %v5212, %v5429
    %5447 = vset.pattern.permute.xlu0 23
    %5448 = vperm.xlu0 %5447, %v80
    %v5449 = vpop.permute.xlu0 %5448
    %5450 = vset.pattern.permute.xlu0 23
    %5451 = vperm.xlu0 %5450, %v81
    %v5452 = vpop.permute.xlu0 %5451
    %5453 = vset.pattern.permute.xlu0 23
    %5454 = vperm.xlu0 %5453, %v82
    %v5455 = vpop.permute.xlu0 %5454
    %5456 = vset.pattern.permute.xlu0 23
    %5457 = vperm.xlu0 %5456, %v83
    %v5458 = vpop.permute.xlu0 %5457
    %5459 = vset.pattern.permute.xlu0 23
    %5460 = vperm.xlu0 %5459, %v84
    %v5461 = vpop.permute.xlu0 %5460
    %5462 = vset.pattern.permute.xlu0 23
    %5463 = vperm.xlu0 %5462, %v85
    %v5464 = vpop.permute.xlu0 %5463
    %5465 = vset.pattern.permute.xlu0 23
    %5466 = vperm.xlu0 %5465, %v86
    %v5467 = vpop.permute.xlu0 %5466
    %5468 = vset.pattern.permute.xlu0 23
    %5469 = vperm.xlu0 %5468, %v87
    %v5470 = vpop.permute.xlu0 %5469
    %5471 = vset.pattern.permute.xlu0 23
    %5472 = vperm.xlu0 %5471, %v88
    %v5473 = vpop.permute.xlu0 %5472
    %5474 = vset.pattern.permute.xlu0 23
    %5475 = vperm.xlu0 %5474, %v89
    %v5476 = vpop.permute.xlu0 %5475
    %5477 = vset.pattern.permute.xlu0 23
    %5478 = vperm.xlu0 %5477, %v90
    %v5479 = vpop.permute.xlu0 %5478
    %5480 = vset.pattern.permute.xlu0 23
    %5481 = vperm.xlu0 %5480, %v91
    %v5482 = vpop.permute.xlu0 %5481
    %5483 = vset.pattern.permute.xlu0 23
    %5484 = vperm.xlu0 %5483, %v92
    %v5485 = vpop.permute.xlu0 %5484
    %5486 = vset.pattern.permute.xlu0 23
    %5487 = vperm.xlu0 %5486, %v93
    %v5488 = vpop.permute.xlu0 %5487
    %5489 = vset.pattern.permute.xlu0 23
    %5490 = vperm.xlu0 %5489, %v94
    %v5491 = vpop.permute.xlu0 %5490
    %5492 = vset.pattern.permute.xlu0 23
    %5493 = vperm.xlu0 %5492, %v95
    %v5494 = vpop.permute.xlu0 %5493
    %vm5495 = vcmp.eq.s32.totalorder %v97, %v5449
    %vm5496 = vcmp.eq.s32.totalorder %v97, %v5452
    %vm5497 = vcmp.eq.s32.totalorder %v97, %v5455
    %vm5498 = vcmp.eq.s32.totalorder %v97, %v5458
    %vm5499 = vcmp.eq.s32.totalorder %v97, %v5461
    %vm5500 = vcmp.eq.s32.totalorder %v97, %v5464
    %vm5501 = vcmp.eq.s32.totalorder %v97, %v5467
    %vm5502 = vcmp.eq.s32.totalorder %v97, %v5470
    %vm5503 = vcmp.eq.s32.totalorder %v97, %v5473
    %vm5504 = vcmp.eq.s32.totalorder %v97, %v5476
    %vm5505 = vcmp.eq.s32.totalorder %v97, %v5479
    %vm5506 = vcmp.eq.s32.totalorder %v97, %v5482
    %vm5507 = vcmp.eq.s32.totalorder %v97, %v5485
    %vm5508 = vcmp.eq.s32.totalorder %v97, %v5488
    %vm5509 = vcmp.eq.s32.totalorder %v97, %v5491
    %vm5510 = vcmp.eq.s32.totalorder %v97, %v5494
    %v5511 = vsel %vm5495, 1, 0
    %v5512 = vsel %vm5496, 1, 0
    %v5513 = vsel %vm5497, 1, 0
    %v5514 = vsel %vm5498, 1, 0
    %v5515 = vsel %vm5499, 1, 0
    %v5516 = vsel %vm5500, 1, 0
    %v5517 = vsel %vm5501, 1, 0
    %v5518 = vsel %vm5502, 1, 0
    %v5519 = vsel %vm5503, 1, 0
    %v5520 = vsel %vm5504, 1, 0
    %v5521 = vsel %vm5505, 1, 0
    %v5522 = vsel %vm5506, 1, 0
    %v5523 = vsel %vm5507, 1, 0
    %v5524 = vsel %vm5508, 1, 0
    %v5525 = vsel %vm5509, 1, 0
    %v5526 = vsel %vm5510, 1, 0
    %v5527 = vcvt.s32.f32 %v5511
    %v5528 = vcvt.s32.f32 %v5512
    %v5529 = vcvt.s32.f32 %v5513
    %v5530 = vcvt.s32.f32 %v5514
    %v5531 = vcvt.s32.f32 %v5515
    %v5532 = vcvt.s32.f32 %v5516
    %v5533 = vcvt.s32.f32 %v5517
    %v5534 = vcvt.s32.f32 %v5518
    %v5535 = vcvt.s32.f32 %v5519
    %v5536 = vcvt.s32.f32 %v5520
    %v5537 = vcvt.s32.f32 %v5521
    %v5538 = vcvt.s32.f32 %v5522
    %v5539 = vcvt.s32.f32 %v5523
    %v5540 = vcvt.s32.f32 %v5524
    %v5541 = vcvt.s32.f32 %v5525
    %v5542 = vcvt.s32.f32 %v5526
    %v5543 = vpack.c.bf16 %v5528, %v5527
    %v5544 = vpack.c.bf16 %v5530, %v5529
    %v5545 = vpack.c.bf16 %v5532, %v5531
    %v5546 = vpack.c.bf16 %v5534, %v5533
    %v5547 = vpack.c.bf16 %v5536, %v5535
    %v5548 = vpack.c.bf16 %v5538, %v5537
    %v5549 = vpack.c.bf16 %v5540, %v5539
    %v5550 = vpack.c.bf16 %v5542, %v5541
    %s5551 = scalar_lea.vmem [#allocation2], 1472
    %v5552 = vld [vmem:[%s5551] sm:$0xf]
    %v5553 = vld [vmem:[%s5551 + $0x4] sm:$0xf]
    %v5554 = vld [vmem:[%s5551 + $0x8] sm:$0xf]
    %v5555 = vld [vmem:[%s5551 + $0xc] sm:$0xf]
    %v5556 = vld [vmem:[%s5551 + $0x10] sm:$0xf]
    %v5557 = vld [vmem:[%s5551 + $0x14] sm:$0xf]
    %v5558 = vld [vmem:[%s5551 + $0x18] sm:$0xf]
    %v5559 = vld [vmem:[%s5551 + $0x1c] sm:$0xf]
    %v5560 = vld [vmem:[%s5551 + $0x20] sm:$0xf]
    %v5561 = vld [vmem:[%s5551 + $0x24] sm:$0xf]
    %v5562 = vld [vmem:[%s5551 + $0x28] sm:$0xf]
    %v5563 = vld [vmem:[%s5551 + $0x2c] sm:$0xf]
    %v5564 = vld [vmem:[%s5551 + $0x30] sm:$0xf]
    %v5565 = vld [vmem:[%s5551 + $0x34] sm:$0xf]
    %v5566 = vld [vmem:[%s5551 + $0x38] sm:$0xf]
    %v5567 = vld [vmem:[%s5551 + $0x3c] sm:$0xf]
    %v5584 = vunpack.c.l.b16 %v5552
    %v5585 = vunpack.c.l.b16 %v5553
    %v5586 = vunpack.c.l.b16 %v5554
    %v5587 = vunpack.c.l.b16 %v5555
    %v5588 = vunpack.c.l.b16 %v5556
    %v5589 = vunpack.c.l.b16 %v5557
    %v5590 = vunpack.c.l.b16 %v5558
    %v5591 = vunpack.c.l.b16 %v5559
    %v5592 = vunpack.c.l.b16 %v5560
    %v5593 = vunpack.c.l.b16 %v5561
    %v5594 = vunpack.c.l.b16 %v5562
    %v5595 = vunpack.c.l.b16 %v5563
    %v5596 = vunpack.c.l.b16 %v5564
    %v5597 = vunpack.c.l.b16 %v5565
    %v5598 = vunpack.c.l.b16 %v5566
    %v5599 = vunpack.c.l.b16 %v5567
    %v5600 = vpack.c.b16 %v5585, %v5584
    %v5601 = vpack.c.b16 %v5587, %v5586
    %v5602 = vpack.c.b16 %v5589, %v5588
    %v5603 = vpack.c.b16 %v5591, %v5590
    %v5604 = vpack.c.b16 %v5593, %v5592
    %v5605 = vpack.c.b16 %v5595, %v5594
    %v5606 = vpack.c.b16 %v5597, %v5596
    %v5607 = vpack.c.b16 %v5599, %v5598
    %5616 = vmatpush.bf16.msra.mxu0 %v5607
    %5617 = vmatpush.bf16.msra.mxu0 %v5606
    %5618 = vmatpush.bf16.msra.mxu0 %v5605
    %5619 = vmatpush.bf16.msra.mxu0 %v5604
    %5620 = vmatpush.bf16.msra.mxu0 %v5603
    %5621 = vmatpush.bf16.msra.mxu0 %v5602
    %5622 = vmatpush.bf16.msra.mxu0 %v5601
    %5623 = vmatpush.bf16.msra.mxu0 %v5600
    %5624 = vmatmul.bf16.gmra.mxu0 %v5543
    %v5625 = vpop.f32.mrf.mxu0
    %v5626 = vadd.f32 0.0, %v5625
    %v5627 = vpop.f32.mrf.mxu0
    %v5628 = vadd.f32 0.0, %v5627
    %5629 = vmatmul.bf16.gmra.mxu0 %v5544
    %v5630 = vpop.f32.mrf.mxu0
    %v5631 = vadd.f32 0.0, %v5630
    %v5632 = vpop.f32.mrf.mxu0
    %v5633 = vadd.f32 0.0, %v5632
    %5634 = vmatmul.bf16.gmra.mxu0 %v5545
    %v5635 = vpop.f32.mrf.mxu0
    %v5636 = vadd.f32 0.0, %v5635
    %v5637 = vpop.f32.mrf.mxu0
    %v5638 = vadd.f32 0.0, %v5637
    %5639 = vmatmul.bf16.gmra.mxu0 %v5546
    %v5640 = vpop.f32.mrf.mxu0
    %v5641 = vadd.f32 0.0, %v5640
    %v5642 = vpop.f32.mrf.mxu0
    %v5643 = vadd.f32 0.0, %v5642
    %5644 = vmatmul.bf16.gmra.mxu0 %v5547
    %v5645 = vpop.f32.mrf.mxu0
    %v5646 = vadd.f32 0.0, %v5645
    %v5647 = vpop.f32.mrf.mxu0
    %v5648 = vadd.f32 0.0, %v5647
    %5649 = vmatmul.bf16.gmra.mxu0 %v5548
    %v5650 = vpop.f32.mrf.mxu0
    %v5651 = vadd.f32 0.0, %v5650
    %v5652 = vpop.f32.mrf.mxu0
    %v5653 = vadd.f32 0.0, %v5652
    %5654 = vmatmul.bf16.gmra.mxu0 %v5549
    %v5655 = vpop.f32.mrf.mxu0
    %v5656 = vadd.f32 0.0, %v5655
    %v5657 = vpop.f32.mrf.mxu0
    %v5658 = vadd.f32 0.0, %v5657
    %5659 = vmatmul.bf16.gmra.mxu0 %v5550
    %v5660 = vpop.f32.mrf.mxu0
    %v5661 = vadd.f32 0.0, %v5660
    %v5662 = vpop.f32.mrf.mxu0
    %v5663 = vadd.f32 0.0, %v5662
    %5664 = vdwg.mxu0
    %v5665 = vadd.f32 %v5431, %v5626
    %v5666 = vadd.f32 %v5432, %v5628
    %v5667 = vadd.f32 %v5433, %v5631
    %v5668 = vadd.f32 %v5434, %v5633
    %v5669 = vadd.f32 %v5435, %v5636
    %v5670 = vadd.f32 %v5436, %v5638
    %v5671 = vadd.f32 %v5437, %v5641
    %v5672 = vadd.f32 %v5438, %v5643
    %v5673 = vadd.f32 %v5439, %v5646
    %v5674 = vadd.f32 %v5440, %v5648
    %v5675 = vadd.f32 %v5441, %v5651
    %v5676 = vadd.f32 %v5442, %v5653
    %v5677 = vadd.f32 %v5443, %v5656
    %v5678 = vadd.f32 %v5444, %v5658
    %v5679 = vadd.f32 %v5445, %v5661
    %v5680 = vadd.f32 %v5446, %v5663
    %5681 = vset.pattern.permute.xlu0 24
    %5682 = vperm.xlu0 %5681, %v80
    %v5683 = vpop.permute.xlu0 %5682
    %5684 = vset.pattern.permute.xlu0 24
    %5685 = vperm.xlu0 %5684, %v81
    %v5686 = vpop.permute.xlu0 %5685
    %5687 = vset.pattern.permute.xlu0 24
    %5688 = vperm.xlu0 %5687, %v82
    %v5689 = vpop.permute.xlu0 %5688
    %5690 = vset.pattern.permute.xlu0 24
    %5691 = vperm.xlu0 %5690, %v83
    %v5692 = vpop.permute.xlu0 %5691
    %5693 = vset.pattern.permute.xlu0 24
    %5694 = vperm.xlu0 %5693, %v84
    %v5695 = vpop.permute.xlu0 %5694
    %5696 = vset.pattern.permute.xlu0 24
    %5697 = vperm.xlu0 %5696, %v85
    %v5698 = vpop.permute.xlu0 %5697
    %5699 = vset.pattern.permute.xlu0 24
    %5700 = vperm.xlu0 %5699, %v86
    %v5701 = vpop.permute.xlu0 %5700
    %5702 = vset.pattern.permute.xlu0 24
    %5703 = vperm.xlu0 %5702, %v87
    %v5704 = vpop.permute.xlu0 %5703
    %5705 = vset.pattern.permute.xlu0 24
    %5706 = vperm.xlu0 %5705, %v88
    %v5707 = vpop.permute.xlu0 %5706
    %5708 = vset.pattern.permute.xlu0 24
    %5709 = vperm.xlu0 %5708, %v89
    %v5710 = vpop.permute.xlu0 %5709
    %5711 = vset.pattern.permute.xlu0 24
    %5712 = vperm.xlu0 %5711, %v90
    %v5713 = vpop.permute.xlu0 %5712
    %5714 = vset.pattern.permute.xlu0 24
    %5715 = vperm.xlu0 %5714, %v91
    %v5716 = vpop.permute.xlu0 %5715
    %5717 = vset.pattern.permute.xlu0 24
    %5718 = vperm.xlu0 %5717, %v92
    %v5719 = vpop.permute.xlu0 %5718
    %5720 = vset.pattern.permute.xlu0 24
    %5721 = vperm.xlu0 %5720, %v93
    %v5722 = vpop.permute.xlu0 %5721
    %5723 = vset.pattern.permute.xlu0 24
    %5724 = vperm.xlu0 %5723, %v94
    %v5725 = vpop.permute.xlu0 %5724
    %5726 = vset.pattern.permute.xlu0 24
    %5727 = vperm.xlu0 %5726, %v95
    %v5728 = vpop.permute.xlu0 %5727
    %vm5729 = vcmp.eq.s32.totalorder %v97, %v5683
    %vm5730 = vcmp.eq.s32.totalorder %v97, %v5686
    %vm5731 = vcmp.eq.s32.totalorder %v97, %v5689
    %vm5732 = vcmp.eq.s32.totalorder %v97, %v5692
    %vm5733 = vcmp.eq.s32.totalorder %v97, %v5695
    %vm5734 = vcmp.eq.s32.totalorder %v97, %v5698
    %vm5735 = vcmp.eq.s32.totalorder %v97, %v5701
    %vm5736 = vcmp.eq.s32.totalorder %v97, %v5704
    %vm5737 = vcmp.eq.s32.totalorder %v97, %v5707
    %vm5738 = vcmp.eq.s32.totalorder %v97, %v5710
    %vm5739 = vcmp.eq.s32.totalorder %v97, %v5713
    %vm5740 = vcmp.eq.s32.totalorder %v97, %v5716
    %vm5741 = vcmp.eq.s32.totalorder %v97, %v5719
    %vm5742 = vcmp.eq.s32.totalorder %v97, %v5722
    %vm5743 = vcmp.eq.s32.totalorder %v97, %v5725
    %vm5744 = vcmp.eq.s32.totalorder %v97, %v5728
    %v5745 = vsel %vm5729, 1, 0
    %v5746 = vsel %vm5730, 1, 0
    %v5747 = vsel %vm5731, 1, 0
    %v5748 = vsel %vm5732, 1, 0
    %v5749 = vsel %vm5733, 1, 0
    %v5750 = vsel %vm5734, 1, 0
    %v5751 = vsel %vm5735, 1, 0
    %v5752 = vsel %vm5736, 1, 0
    %v5753 = vsel %vm5737, 1, 0
    %v5754 = vsel %vm5738, 1, 0
    %v5755 = vsel %vm5739, 1, 0
    %v5756 = vsel %vm5740, 1, 0
    %v5757 = vsel %vm5741, 1, 0
    %v5758 = vsel %vm5742, 1, 0
    %v5759 = vsel %vm5743, 1, 0
    %v5760 = vsel %vm5744, 1, 0
    %v5761 = vcvt.s32.f32 %v5745
    %v5762 = vcvt.s32.f32 %v5746
    %v5763 = vcvt.s32.f32 %v5747
    %v5764 = vcvt.s32.f32 %v5748
    %v5765 = vcvt.s32.f32 %v5749
    %v5766 = vcvt.s32.f32 %v5750
    %v5767 = vcvt.s32.f32 %v5751
    %v5768 = vcvt.s32.f32 %v5752
    %v5769 = vcvt.s32.f32 %v5753
    %v5770 = vcvt.s32.f32 %v5754
    %v5771 = vcvt.s32.f32 %v5755
    %v5772 = vcvt.s32.f32 %v5756
    %v5773 = vcvt.s32.f32 %v5757
    %v5774 = vcvt.s32.f32 %v5758
    %v5775 = vcvt.s32.f32 %v5759
    %v5776 = vcvt.s32.f32 %v5760
    %v5777 = vpack.c.bf16 %v5762, %v5761
    %v5778 = vpack.c.bf16 %v5764, %v5763
    %v5779 = vpack.c.bf16 %v5766, %v5765
    %v5780 = vpack.c.bf16 %v5768, %v5767
    %v5781 = vpack.c.bf16 %v5770, %v5769
    %v5782 = vpack.c.bf16 %v5772, %v5771
    %v5783 = vpack.c.bf16 %v5774, %v5773
    %v5784 = vpack.c.bf16 %v5776, %v5775
    %s5785 = scalar_lea.vmem [#allocation2], 1536
    %v5786 = vld [vmem:[%s5785] sm:$0xf]
    %v5787 = vld [vmem:[%s5785 + $0x4] sm:$0xf]
    %v5788 = vld [vmem:[%s5785 + $0x8] sm:$0xf]
    %v5789 = vld [vmem:[%s5785 + $0xc] sm:$0xf]
    %v5790 = vld [vmem:[%s5785 + $0x10] sm:$0xf]
    %v5791 = vld [vmem:[%s5785 + $0x14] sm:$0xf]
    %v5792 = vld [vmem:[%s5785 + $0x18] sm:$0xf]
    %v5793 = vld [vmem:[%s5785 + $0x1c] sm:$0xf]
    %v5794 = vld [vmem:[%s5785 + $0x20] sm:$0xf]
    %v5795 = vld [vmem:[%s5785 + $0x24] sm:$0xf]
    %v5796 = vld [vmem:[%s5785 + $0x28] sm:$0xf]
    %v5797 = vld [vmem:[%s5785 + $0x2c] sm:$0xf]
    %v5798 = vld [vmem:[%s5785 + $0x30] sm:$0xf]
    %v5799 = vld [vmem:[%s5785 + $0x34] sm:$0xf]
    %v5800 = vld [vmem:[%s5785 + $0x38] sm:$0xf]
    %v5801 = vld [vmem:[%s5785 + $0x3c] sm:$0xf]
    %v5818 = vunpack.c.l.b16 %v5786
    %v5819 = vunpack.c.l.b16 %v5787
    %v5820 = vunpack.c.l.b16 %v5788
    %v5821 = vunpack.c.l.b16 %v5789
    %v5822 = vunpack.c.l.b16 %v5790
    %v5823 = vunpack.c.l.b16 %v5791
    %v5824 = vunpack.c.l.b16 %v5792
    %v5825 = vunpack.c.l.b16 %v5793
    %v5826 = vunpack.c.l.b16 %v5794
    %v5827 = vunpack.c.l.b16 %v5795
    %v5828 = vunpack.c.l.b16 %v5796
    %v5829 = vunpack.c.l.b16 %v5797
    %v5830 = vunpack.c.l.b16 %v5798
    %v5831 = vunpack.c.l.b16 %v5799
    %v5832 = vunpack.c.l.b16 %v5800
    %v5833 = vunpack.c.l.b16 %v5801
    %v5834 = vpack.c.b16 %v5819, %v5818
    %v5835 = vpack.c.b16 %v5821, %v5820
    %v5836 = vpack.c.b16 %v5823, %v5822
    %v5837 = vpack.c.b16 %v5825, %v5824
    %v5838 = vpack.c.b16 %v5827, %v5826
    %v5839 = vpack.c.b16 %v5829, %v5828
    %v5840 = vpack.c.b16 %v5831, %v5830
    %v5841 = vpack.c.b16 %v5833, %v5832
    %5850 = vmatpush.bf16.msra.mxu0 %v5841
    %5851 = vmatpush.bf16.msra.mxu0 %v5840
    %5852 = vmatpush.bf16.msra.mxu0 %v5839
    %5853 = vmatpush.bf16.msra.mxu0 %v5838
    %5854 = vmatpush.bf16.msra.mxu0 %v5837
    %5855 = vmatpush.bf16.msra.mxu0 %v5836
    %5856 = vmatpush.bf16.msra.mxu0 %v5835
    %5857 = vmatpush.bf16.msra.mxu0 %v5834
    %5858 = vmatmul.bf16.gmra.mxu0 %v5777
    %v5859 = vpop.f32.mrf.mxu0
    %v5860 = vadd.f32 0.0, %v5859
    %v5861 = vpop.f32.mrf.mxu0
    %v5862 = vadd.f32 0.0, %v5861
    %5863 = vmatmul.bf16.gmra.mxu0 %v5778
    %v5864 = vpop.f32.mrf.mxu0
    %v5865 = vadd.f32 0.0, %v5864
    %v5866 = vpop.f32.mrf.mxu0
    %v5867 = vadd.f32 0.0, %v5866
    %5868 = vmatmul.bf16.gmra.mxu0 %v5779
    %v5869 = vpop.f32.mrf.mxu0
    %v5870 = vadd.f32 0.0, %v5869
    %v5871 = vpop.f32.mrf.mxu0
    %v5872 = vadd.f32 0.0, %v5871
    %5873 = vmatmul.bf16.gmra.mxu0 %v5780
    %v5874 = vpop.f32.mrf.mxu0
    %v5875 = vadd.f32 0.0, %v5874
    %v5876 = vpop.f32.mrf.mxu0
    %v5877 = vadd.f32 0.0, %v5876
    %5878 = vmatmul.bf16.gmra.mxu0 %v5781
    %v5879 = vpop.f32.mrf.mxu0
    %v5880 = vadd.f32 0.0, %v5879
    %v5881 = vpop.f32.mrf.mxu0
    %v5882 = vadd.f32 0.0, %v5881
    %5883 = vmatmul.bf16.gmra.mxu0 %v5782
    %v5884 = vpop.f32.mrf.mxu0
    %v5885 = vadd.f32 0.0, %v5884
    %v5886 = vpop.f32.mrf.mxu0
    %v5887 = vadd.f32 0.0, %v5886
    %5888 = vmatmul.bf16.gmra.mxu0 %v5783
    %v5889 = vpop.f32.mrf.mxu0
    %v5890 = vadd.f32 0.0, %v5889
    %v5891 = vpop.f32.mrf.mxu0
    %v5892 = vadd.f32 0.0, %v5891
    %5893 = vmatmul.bf16.gmra.mxu0 %v5784
    %v5894 = vpop.f32.mrf.mxu0
    %v5895 = vadd.f32 0.0, %v5894
    %v5896 = vpop.f32.mrf.mxu0
    %v5897 = vadd.f32 0.0, %v5896
    %5898 = vdwg.mxu0
    %v5899 = vadd.f32 %v5665, %v5860
    %v5900 = vadd.f32 %v5666, %v5862
    %v5901 = vadd.f32 %v5667, %v5865
    %v5902 = vadd.f32 %v5668, %v5867
    %v5903 = vadd.f32 %v5669, %v5870
    %v5904 = vadd.f32 %v5670, %v5872
    %v5905 = vadd.f32 %v5671, %v5875
    %v5906 = vadd.f32 %v5672, %v5877
    %v5907 = vadd.f32 %v5673, %v5880
    %v5908 = vadd.f32 %v5674, %v5882
    %v5909 = vadd.f32 %v5675, %v5885
    %v5910 = vadd.f32 %v5676, %v5887
    %v5911 = vadd.f32 %v5677, %v5890
    %v5912 = vadd.f32 %v5678, %v5892
    %v5913 = vadd.f32 %v5679, %v5895
    %v5914 = vadd.f32 %v5680, %v5897
    %5915 = vset.pattern.permute.xlu0 25
    %5916 = vperm.xlu0 %5915, %v80
    %v5917 = vpop.permute.xlu0 %5916
    %5918 = vset.pattern.permute.xlu0 25
    %5919 = vperm.xlu0 %5918, %v81
    %v5920 = vpop.permute.xlu0 %5919
    %5921 = vset.pattern.permute.xlu0 25
    %5922 = vperm.xlu0 %5921, %v82
    %v5923 = vpop.permute.xlu0 %5922
    %5924 = vset.pattern.permute.xlu0 25
    %5925 = vperm.xlu0 %5924, %v83
    %v5926 = vpop.permute.xlu0 %5925
    %5927 = vset.pattern.permute.xlu0 25
    %5928 = vperm.xlu0 %5927, %v84
    %v5929 = vpop.permute.xlu0 %5928
    %5930 = vset.pattern.permute.xlu0 25
    %5931 = vperm.xlu0 %5930, %v85
    %v5932 = vpop.permute.xlu0 %5931
    %5933 = vset.pattern.permute.xlu0 25
    %5934 = vperm.xlu0 %5933, %v86
    %v5935 = vpop.permute.xlu0 %5934
    %5936 = vset.pattern.permute.xlu0 25
    %5937 = vperm.xlu0 %5936, %v87
    %v5938 = vpop.permute.xlu0 %5937
    %5939 = vset.pattern.permute.xlu0 25
    %5940 = vperm.xlu0 %5939, %v88
    %v5941 = vpop.permute.xlu0 %5940
    %5942 = vset.pattern.permute.xlu0 25
    %5943 = vperm.xlu0 %5942, %v89
    %v5944 = vpop.permute.xlu0 %5943
    %5945 = vset.pattern.permute.xlu0 25
    %5946 = vperm.xlu0 %5945, %v90
    %v5947 = vpop.permute.xlu0 %5946
    %5948 = vset.pattern.permute.xlu0 25
    %5949 = vperm.xlu0 %5948, %v91
    %v5950 = vpop.permute.xlu0 %5949
    %5951 = vset.pattern.permute.xlu0 25
    %5952 = vperm.xlu0 %5951, %v92
    %v5953 = vpop.permute.xlu0 %5952
    %5954 = vset.pattern.permute.xlu0 25
    %5955 = vperm.xlu0 %5954, %v93
    %v5956 = vpop.permute.xlu0 %5955
    %5957 = vset.pattern.permute.xlu0 25
    %5958 = vperm.xlu0 %5957, %v94
    %v5959 = vpop.permute.xlu0 %5958
    %5960 = vset.pattern.permute.xlu0 25
    %5961 = vperm.xlu0 %5960, %v95
    %v5962 = vpop.permute.xlu0 %5961
    %vm5963 = vcmp.eq.s32.totalorder %v97, %v5917
    %vm5964 = vcmp.eq.s32.totalorder %v97, %v5920
    %vm5965 = vcmp.eq.s32.totalorder %v97, %v5923
    %vm5966 = vcmp.eq.s32.totalorder %v97, %v5926
    %vm5967 = vcmp.eq.s32.totalorder %v97, %v5929
    %vm5968 = vcmp.eq.s32.totalorder %v97, %v5932
    %vm5969 = vcmp.eq.s32.totalorder %v97, %v5935
    %vm5970 = vcmp.eq.s32.totalorder %v97, %v5938
    %vm5971 = vcmp.eq.s32.totalorder %v97, %v5941
    %vm5972 = vcmp.eq.s32.totalorder %v97, %v5944
    %vm5973 = vcmp.eq.s32.totalorder %v97, %v5947
    %vm5974 = vcmp.eq.s32.totalorder %v97, %v5950
    %vm5975 = vcmp.eq.s32.totalorder %v97, %v5953
    %vm5976 = vcmp.eq.s32.totalorder %v97, %v5956
    %vm5977 = vcmp.eq.s32.totalorder %v97, %v5959
    %vm5978 = vcmp.eq.s32.totalorder %v97, %v5962
    %v5979 = vsel %vm5963, 1, 0
    %v5980 = vsel %vm5964, 1, 0
    %v5981 = vsel %vm5965, 1, 0
    %v5982 = vsel %vm5966, 1, 0
    %v5983 = vsel %vm5967, 1, 0
    %v5984 = vsel %vm5968, 1, 0
    %v5985 = vsel %vm5969, 1, 0
    %v5986 = vsel %vm5970, 1, 0
    %v5987 = vsel %vm5971, 1, 0
    %v5988 = vsel %vm5972, 1, 0
    %v5989 = vsel %vm5973, 1, 0
    %v5990 = vsel %vm5974, 1, 0
    %v5991 = vsel %vm5975, 1, 0
    %v5992 = vsel %vm5976, 1, 0
    %v5993 = vsel %vm5977, 1, 0
    %v5994 = vsel %vm5978, 1, 0
    %v5995 = vcvt.s32.f32 %v5979
    %v5996 = vcvt.s32.f32 %v5980
    %v5997 = vcvt.s32.f32 %v5981
    %v5998 = vcvt.s32.f32 %v5982
    %v5999 = vcvt.s32.f32 %v5983
    %v6000 = vcvt.s32.f32 %v5984
    %v6001 = vcvt.s32.f32 %v5985
    %v6002 = vcvt.s32.f32 %v5986
    %v6003 = vcvt.s32.f32 %v5987
    %v6004 = vcvt.s32.f32 %v5988
    %v6005 = vcvt.s32.f32 %v5989
    %v6006 = vcvt.s32.f32 %v5990
    %v6007 = vcvt.s32.f32 %v5991
    %v6008 = vcvt.s32.f32 %v5992
    %v6009 = vcvt.s32.f32 %v5993
    %v6010 = vcvt.s32.f32 %v5994
    %v6011 = vpack.c.bf16 %v5996, %v5995
    %v6012 = vpack.c.bf16 %v5998, %v5997
    %v6013 = vpack.c.bf16 %v6000, %v5999
    %v6014 = vpack.c.bf16 %v6002, %v6001
    %v6015 = vpack.c.bf16 %v6004, %v6003
    %v6016 = vpack.c.bf16 %v6006, %v6005
    %v6017 = vpack.c.bf16 %v6008, %v6007
    %v6018 = vpack.c.bf16 %v6010, %v6009
    %s6019 = scalar_lea.vmem [#allocation2], 1600
    %v6020 = vld [vmem:[%s6019] sm:$0xf]
    %v6021 = vld [vmem:[%s6019 + $0x4] sm:$0xf]
    %v6022 = vld [vmem:[%s6019 + $0x8] sm:$0xf]
    %v6023 = vld [vmem:[%s6019 + $0xc] sm:$0xf]
    %v6024 = vld [vmem:[%s6019 + $0x10] sm:$0xf]
    %v6025 = vld [vmem:[%s6019 + $0x14] sm:$0xf]
    %v6026 = vld [vmem:[%s6019 + $0x18] sm:$0xf]
    %v6027 = vld [vmem:[%s6019 + $0x1c] sm:$0xf]
    %v6028 = vld [vmem:[%s6019 + $0x20] sm:$0xf]
    %v6029 = vld [vmem:[%s6019 + $0x24] sm:$0xf]
    %v6030 = vld [vmem:[%s6019 + $0x28] sm:$0xf]
    %v6031 = vld [vmem:[%s6019 + $0x2c] sm:$0xf]
    %v6032 = vld [vmem:[%s6019 + $0x30] sm:$0xf]
    %v6033 = vld [vmem:[%s6019 + $0x34] sm:$0xf]
    %v6034 = vld [vmem:[%s6019 + $0x38] sm:$0xf]
    %v6035 = vld [vmem:[%s6019 + $0x3c] sm:$0xf]
    %v6052 = vunpack.c.l.b16 %v6020
    %v6053 = vunpack.c.l.b16 %v6021
    %v6054 = vunpack.c.l.b16 %v6022
    %v6055 = vunpack.c.l.b16 %v6023
    %v6056 = vunpack.c.l.b16 %v6024
    %v6057 = vunpack.c.l.b16 %v6025
    %v6058 = vunpack.c.l.b16 %v6026
    %v6059 = vunpack.c.l.b16 %v6027
    %v6060 = vunpack.c.l.b16 %v6028
    %v6061 = vunpack.c.l.b16 %v6029
    %v6062 = vunpack.c.l.b16 %v6030
    %v6063 = vunpack.c.l.b16 %v6031
    %v6064 = vunpack.c.l.b16 %v6032
    %v6065 = vunpack.c.l.b16 %v6033
    %v6066 = vunpack.c.l.b16 %v6034
    %v6067 = vunpack.c.l.b16 %v6035
    %v6068 = vpack.c.b16 %v6053, %v6052
    %v6069 = vpack.c.b16 %v6055, %v6054
    %v6070 = vpack.c.b16 %v6057, %v6056
    %v6071 = vpack.c.b16 %v6059, %v6058
    %v6072 = vpack.c.b16 %v6061, %v6060
    %v6073 = vpack.c.b16 %v6063, %v6062
    %v6074 = vpack.c.b16 %v6065, %v6064
    %v6075 = vpack.c.b16 %v6067, %v6066
    %6084 = vmatpush.bf16.msra.mxu0 %v6075
    %6085 = vmatpush.bf16.msra.mxu0 %v6074
    %6086 = vmatpush.bf16.msra.mxu0 %v6073
    %6087 = vmatpush.bf16.msra.mxu0 %v6072
    %6088 = vmatpush.bf16.msra.mxu0 %v6071
    %6089 = vmatpush.bf16.msra.mxu0 %v6070
    %6090 = vmatpush.bf16.msra.mxu0 %v6069
    %6091 = vmatpush.bf16.msra.mxu0 %v6068
    %6092 = vmatmul.bf16.gmra.mxu0 %v6011
    %v6093 = vpop.f32.mrf.mxu0
    %v6094 = vadd.f32 0.0, %v6093
    %v6095 = vpop.f32.mrf.mxu0
    %v6096 = vadd.f32 0.0, %v6095
    %6097 = vmatmul.bf16.gmra.mxu0 %v6012
    %v6098 = vpop.f32.mrf.mxu0
    %v6099 = vadd.f32 0.0, %v6098
    %v6100 = vpop.f32.mrf.mxu0
    %v6101 = vadd.f32 0.0, %v6100
    %6102 = vmatmul.bf16.gmra.mxu0 %v6013
    %v6103 = vpop.f32.mrf.mxu0
    %v6104 = vadd.f32 0.0, %v6103
    %v6105 = vpop.f32.mrf.mxu0
    %v6106 = vadd.f32 0.0, %v6105
    %6107 = vmatmul.bf16.gmra.mxu0 %v6014
    %v6108 = vpop.f32.mrf.mxu0
    %v6109 = vadd.f32 0.0, %v6108
    %v6110 = vpop.f32.mrf.mxu0
    %v6111 = vadd.f32 0.0, %v6110
    %6112 = vmatmul.bf16.gmra.mxu0 %v6015
    %v6113 = vpop.f32.mrf.mxu0
    %v6114 = vadd.f32 0.0, %v6113
    %v6115 = vpop.f32.mrf.mxu0
    %v6116 = vadd.f32 0.0, %v6115
    %6117 = vmatmul.bf16.gmra.mxu0 %v6016
    %v6118 = vpop.f32.mrf.mxu0
    %v6119 = vadd.f32 0.0, %v6118
    %v6120 = vpop.f32.mrf.mxu0
    %v6121 = vadd.f32 0.0, %v6120
    %6122 = vmatmul.bf16.gmra.mxu0 %v6017
    %v6123 = vpop.f32.mrf.mxu0
    %v6124 = vadd.f32 0.0, %v6123
    %v6125 = vpop.f32.mrf.mxu0
    %v6126 = vadd.f32 0.0, %v6125
    %6127 = vmatmul.bf16.gmra.mxu0 %v6018
    %v6128 = vpop.f32.mrf.mxu0
    %v6129 = vadd.f32 0.0, %v6128
    %v6130 = vpop.f32.mrf.mxu0
    %v6131 = vadd.f32 0.0, %v6130
    %6132 = vdwg.mxu0
    %v6133 = vadd.f32 %v5899, %v6094
    %v6134 = vadd.f32 %v5900, %v6096
    %v6135 = vadd.f32 %v5901, %v6099
    %v6136 = vadd.f32 %v5902, %v6101
    %v6137 = vadd.f32 %v5903, %v6104
    %v6138 = vadd.f32 %v5904, %v6106
    %v6139 = vadd.f32 %v5905, %v6109
    %v6140 = vadd.f32 %v5906, %v6111
    %v6141 = vadd.f32 %v5907, %v6114
    %v6142 = vadd.f32 %v5908, %v6116
    %v6143 = vadd.f32 %v5909, %v6119
    %v6144 = vadd.f32 %v5910, %v6121
    %v6145 = vadd.f32 %v5911, %v6124
    %v6146 = vadd.f32 %v5912, %v6126
    %v6147 = vadd.f32 %v5913, %v6129
    %v6148 = vadd.f32 %v5914, %v6131
    %6149 = vset.pattern.permute.xlu0 26
    %6150 = vperm.xlu0 %6149, %v80
    %v6151 = vpop.permute.xlu0 %6150
    %6152 = vset.pattern.permute.xlu0 26
    %6153 = vperm.xlu0 %6152, %v81
    %v6154 = vpop.permute.xlu0 %6153
    %6155 = vset.pattern.permute.xlu0 26
    %6156 = vperm.xlu0 %6155, %v82
    %v6157 = vpop.permute.xlu0 %6156
    %6158 = vset.pattern.permute.xlu0 26
    %6159 = vperm.xlu0 %6158, %v83
    %v6160 = vpop.permute.xlu0 %6159
    %6161 = vset.pattern.permute.xlu0 26
    %6162 = vperm.xlu0 %6161, %v84
    %v6163 = vpop.permute.xlu0 %6162
    %6164 = vset.pattern.permute.xlu0 26
    %6165 = vperm.xlu0 %6164, %v85
    %v6166 = vpop.permute.xlu0 %6165
    %6167 = vset.pattern.permute.xlu0 26
    %6168 = vperm.xlu0 %6167, %v86
    %v6169 = vpop.permute.xlu0 %6168
    %6170 = vset.pattern.permute.xlu0 26
    %6171 = vperm.xlu0 %6170, %v87
    %v6172 = vpop.permute.xlu0 %6171
    %6173 = vset.pattern.permute.xlu0 26
    %6174 = vperm.xlu0 %6173, %v88
    %v6175 = vpop.permute.xlu0 %6174
    %6176 = vset.pattern.permute.xlu0 26
    %6177 = vperm.xlu0 %6176, %v89
    %v6178 = vpop.permute.xlu0 %6177
    %6179 = vset.pattern.permute.xlu0 26
    %6180 = vperm.xlu0 %6179, %v90
    %v6181 = vpop.permute.xlu0 %6180
    %6182 = vset.pattern.permute.xlu0 26
    %6183 = vperm.xlu0 %6182, %v91
    %v6184 = vpop.permute.xlu0 %6183
    %6185 = vset.pattern.permute.xlu0 26
    %6186 = vperm.xlu0 %6185, %v92
    %v6187 = vpop.permute.xlu0 %6186
    %6188 = vset.pattern.permute.xlu0 26
    %6189 = vperm.xlu0 %6188, %v93
    %v6190 = vpop.permute.xlu0 %6189
    %6191 = vset.pattern.permute.xlu0 26
    %6192 = vperm.xlu0 %6191, %v94
    %v6193 = vpop.permute.xlu0 %6192
    %6194 = vset.pattern.permute.xlu0 26
    %6195 = vperm.xlu0 %6194, %v95
    %v6196 = vpop.permute.xlu0 %6195
    %vm6197 = vcmp.eq.s32.totalorder %v97, %v6151
    %vm6198 = vcmp.eq.s32.totalorder %v97, %v6154
    %vm6199 = vcmp.eq.s32.totalorder %v97, %v6157
    %vm6200 = vcmp.eq.s32.totalorder %v97, %v6160
    %vm6201 = vcmp.eq.s32.totalorder %v97, %v6163
    %vm6202 = vcmp.eq.s32.totalorder %v97, %v6166
    %vm6203 = vcmp.eq.s32.totalorder %v97, %v6169
    %vm6204 = vcmp.eq.s32.totalorder %v97, %v6172
    %vm6205 = vcmp.eq.s32.totalorder %v97, %v6175
    %vm6206 = vcmp.eq.s32.totalorder %v97, %v6178
    %vm6207 = vcmp.eq.s32.totalorder %v97, %v6181
    %vm6208 = vcmp.eq.s32.totalorder %v97, %v6184
    %vm6209 = vcmp.eq.s32.totalorder %v97, %v6187
    %vm6210 = vcmp.eq.s32.totalorder %v97, %v6190
    %vm6211 = vcmp.eq.s32.totalorder %v97, %v6193
    %vm6212 = vcmp.eq.s32.totalorder %v97, %v6196
    %v6213 = vsel %vm6197, 1, 0
    %v6214 = vsel %vm6198, 1, 0
    %v6215 = vsel %vm6199, 1, 0
    %v6216 = vsel %vm6200, 1, 0
    %v6217 = vsel %vm6201, 1, 0
    %v6218 = vsel %vm6202, 1, 0
    %v6219 = vsel %vm6203, 1, 0
    %v6220 = vsel %vm6204, 1, 0
    %v6221 = vsel %vm6205, 1, 0
    %v6222 = vsel %vm6206, 1, 0
    %v6223 = vsel %vm6207, 1, 0
    %v6224 = vsel %vm6208, 1, 0
    %v6225 = vsel %vm6209, 1, 0
    %v6226 = vsel %vm6210, 1, 0
    %v6227 = vsel %vm6211, 1, 0
    %v6228 = vsel %vm6212, 1, 0
    %v6229 = vcvt.s32.f32 %v6213
    %v6230 = vcvt.s32.f32 %v6214
    %v6231 = vcvt.s32.f32 %v6215
    %v6232 = vcvt.s32.f32 %v6216
    %v6233 = vcvt.s32.f32 %v6217
    %v6234 = vcvt.s32.f32 %v6218
    %v6235 = vcvt.s32.f32 %v6219
    %v6236 = vcvt.s32.f32 %v6220
    %v6237 = vcvt.s32.f32 %v6221
    %v6238 = vcvt.s32.f32 %v6222
    %v6239 = vcvt.s32.f32 %v6223
    %v6240 = vcvt.s32.f32 %v6224
    %v6241 = vcvt.s32.f32 %v6225
    %v6242 = vcvt.s32.f32 %v6226
    %v6243 = vcvt.s32.f32 %v6227
    %v6244 = vcvt.s32.f32 %v6228
    %v6245 = vpack.c.bf16 %v6230, %v6229
    %v6246 = vpack.c.bf16 %v6232, %v6231
    %v6247 = vpack.c.bf16 %v6234, %v6233
    %v6248 = vpack.c.bf16 %v6236, %v6235
    %v6249 = vpack.c.bf16 %v6238, %v6237
    %v6250 = vpack.c.bf16 %v6240, %v6239
    %v6251 = vpack.c.bf16 %v6242, %v6241
    %v6252 = vpack.c.bf16 %v6244, %v6243
    %s6253 = scalar_lea.vmem [#allocation2], 1664
    %v6254 = vld [vmem:[%s6253] sm:$0xf]
    %v6255 = vld [vmem:[%s6253 + $0x4] sm:$0xf]
    %v6256 = vld [vmem:[%s6253 + $0x8] sm:$0xf]
    %v6257 = vld [vmem:[%s6253 + $0xc] sm:$0xf]
    %v6258 = vld [vmem:[%s6253 + $0x10] sm:$0xf]
    %v6259 = vld [vmem:[%s6253 + $0x14] sm:$0xf]
    %v6260 = vld [vmem:[%s6253 + $0x18] sm:$0xf]
    %v6261 = vld [vmem:[%s6253 + $0x1c] sm:$0xf]
    %v6262 = vld [vmem:[%s6253 + $0x20] sm:$0xf]
    %v6263 = vld [vmem:[%s6253 + $0x24] sm:$0xf]
    %v6264 = vld [vmem:[%s6253 + $0x28] sm:$0xf]
    %v6265 = vld [vmem:[%s6253 + $0x2c] sm:$0xf]
    %v6266 = vld [vmem:[%s6253 + $0x30] sm:$0xf]
    %v6267 = vld [vmem:[%s6253 + $0x34] sm:$0xf]
    %v6268 = vld [vmem:[%s6253 + $0x38] sm:$0xf]
    %v6269 = vld [vmem:[%s6253 + $0x3c] sm:$0xf]
    %v6286 = vunpack.c.l.b16 %v6254
    %v6287 = vunpack.c.l.b16 %v6255
    %v6288 = vunpack.c.l.b16 %v6256
    %v6289 = vunpack.c.l.b16 %v6257
    %v6290 = vunpack.c.l.b16 %v6258
    %v6291 = vunpack.c.l.b16 %v6259
    %v6292 = vunpack.c.l.b16 %v6260
    %v6293 = vunpack.c.l.b16 %v6261
    %v6294 = vunpack.c.l.b16 %v6262
    %v6295 = vunpack.c.l.b16 %v6263
    %v6296 = vunpack.c.l.b16 %v6264
    %v6297 = vunpack.c.l.b16 %v6265
    %v6298 = vunpack.c.l.b16 %v6266
    %v6299 = vunpack.c.l.b16 %v6267
    %v6300 = vunpack.c.l.b16 %v6268
    %v6301 = vunpack.c.l.b16 %v6269
    %v6302 = vpack.c.b16 %v6287, %v6286
    %v6303 = vpack.c.b16 %v6289, %v6288
    %v6304 = vpack.c.b16 %v6291, %v6290
    %v6305 = vpack.c.b16 %v6293, %v6292
    %v6306 = vpack.c.b16 %v6295, %v6294
    %v6307 = vpack.c.b16 %v6297, %v6296
    %v6308 = vpack.c.b16 %v6299, %v6298
    %v6309 = vpack.c.b16 %v6301, %v6300
    %6318 = vmatpush.bf16.msra.mxu0 %v6309
    %6319 = vmatpush.bf16.msra.mxu0 %v6308
    %6320 = vmatpush.bf16.msra.mxu0 %v6307
    %6321 = vmatpush.bf16.msra.mxu0 %v6306
    %6322 = vmatpush.bf16.msra.mxu0 %v6305
    %6323 = vmatpush.bf16.msra.mxu0 %v6304
    %6324 = vmatpush.bf16.msra.mxu0 %v6303
    %6325 = vmatpush.bf16.msra.mxu0 %v6302
    %6326 = vmatmul.bf16.gmra.mxu0 %v6245
    %v6327 = vpop.f32.mrf.mxu0
    %v6328 = vadd.f32 0.0, %v6327
    %v6329 = vpop.f32.mrf.mxu0
    %v6330 = vadd.f32 0.0, %v6329
    %6331 = vmatmul.bf16.gmra.mxu0 %v6246
    %v6332 = vpop.f32.mrf.mxu0
    %v6333 = vadd.f32 0.0, %v6332
    %v6334 = vpop.f32.mrf.mxu0
    %v6335 = vadd.f32 0.0, %v6334
    %6336 = vmatmul.bf16.gmra.mxu0 %v6247
    %v6337 = vpop.f32.mrf.mxu0
    %v6338 = vadd.f32 0.0, %v6337
    %v6339 = vpop.f32.mrf.mxu0
    %v6340 = vadd.f32 0.0, %v6339
    %6341 = vmatmul.bf16.gmra.mxu0 %v6248
    %v6342 = vpop.f32.mrf.mxu0
    %v6343 = vadd.f32 0.0, %v6342
    %v6344 = vpop.f32.mrf.mxu0
    %v6345 = vadd.f32 0.0, %v6344
    %6346 = vmatmul.bf16.gmra.mxu0 %v6249
    %v6347 = vpop.f32.mrf.mxu0
    %v6348 = vadd.f32 0.0, %v6347
    %v6349 = vpop.f32.mrf.mxu0
    %v6350 = vadd.f32 0.0, %v6349
    %6351 = vmatmul.bf16.gmra.mxu0 %v6250
    %v6352 = vpop.f32.mrf.mxu0
    %v6353 = vadd.f32 0.0, %v6352
    %v6354 = vpop.f32.mrf.mxu0
    %v6355 = vadd.f32 0.0, %v6354
    %6356 = vmatmul.bf16.gmra.mxu0 %v6251
    %v6357 = vpop.f32.mrf.mxu0
    %v6358 = vadd.f32 0.0, %v6357
    %v6359 = vpop.f32.mrf.mxu0
    %v6360 = vadd.f32 0.0, %v6359
    %6361 = vmatmul.bf16.gmra.mxu0 %v6252
    %v6362 = vpop.f32.mrf.mxu0
    %v6363 = vadd.f32 0.0, %v6362
    %v6364 = vpop.f32.mrf.mxu0
    %v6365 = vadd.f32 0.0, %v6364
    %6366 = vdwg.mxu0
    %v6367 = vadd.f32 %v6133, %v6328
    %v6368 = vadd.f32 %v6134, %v6330
    %v6369 = vadd.f32 %v6135, %v6333
    %v6370 = vadd.f32 %v6136, %v6335
    %v6371 = vadd.f32 %v6137, %v6338
    %v6372 = vadd.f32 %v6138, %v6340
    %v6373 = vadd.f32 %v6139, %v6343
    %v6374 = vadd.f32 %v6140, %v6345
    %v6375 = vadd.f32 %v6141, %v6348
    %v6376 = vadd.f32 %v6142, %v6350
    %v6377 = vadd.f32 %v6143, %v6353
    %v6378 = vadd.f32 %v6144, %v6355
    %v6379 = vadd.f32 %v6145, %v6358
    %v6380 = vadd.f32 %v6146, %v6360
    %v6381 = vadd.f32 %v6147, %v6363
    %v6382 = vadd.f32 %v6148, %v6365
    %6383 = vset.pattern.permute.xlu0 27
    %6384 = vperm.xlu0 %6383, %v80
    %v6385 = vpop.permute.xlu0 %6384
    %6386 = vset.pattern.permute.xlu0 27
    %6387 = vperm.xlu0 %6386, %v81
    %v6388 = vpop.permute.xlu0 %6387
    %6389 = vset.pattern.permute.xlu0 27
    %6390 = vperm.xlu0 %6389, %v82
    %v6391 = vpop.permute.xlu0 %6390
    %6392 = vset.pattern.permute.xlu0 27
    %6393 = vperm.xlu0 %6392, %v83
    %v6394 = vpop.permute.xlu0 %6393
    %6395 = vset.pattern.permute.xlu0 27
    %6396 = vperm.xlu0 %6395, %v84
    %v6397 = vpop.permute.xlu0 %6396
    %6398 = vset.pattern.permute.xlu0 27
    %6399 = vperm.xlu0 %6398, %v85
    %v6400 = vpop.permute.xlu0 %6399
    %6401 = vset.pattern.permute.xlu0 27
    %6402 = vperm.xlu0 %6401, %v86
    %v6403 = vpop.permute.xlu0 %6402
    %6404 = vset.pattern.permute.xlu0 27
    %6405 = vperm.xlu0 %6404, %v87
    %v6406 = vpop.permute.xlu0 %6405
    %6407 = vset.pattern.permute.xlu0 27
    %6408 = vperm.xlu0 %6407, %v88
    %v6409 = vpop.permute.xlu0 %6408
    %6410 = vset.pattern.permute.xlu0 27
    %6411 = vperm.xlu0 %6410, %v89
    %v6412 = vpop.permute.xlu0 %6411
    %6413 = vset.pattern.permute.xlu0 27
    %6414 = vperm.xlu0 %6413, %v90
    %v6415 = vpop.permute.xlu0 %6414
    %6416 = vset.pattern.permute.xlu0 27
    %6417 = vperm.xlu0 %6416, %v91
    %v6418 = vpop.permute.xlu0 %6417
    %6419 = vset.pattern.permute.xlu0 27
    %6420 = vperm.xlu0 %6419, %v92
    %v6421 = vpop.permute.xlu0 %6420
    %6422 = vset.pattern.permute.xlu0 27
    %6423 = vperm.xlu0 %6422, %v93
    %v6424 = vpop.permute.xlu0 %6423
    %6425 = vset.pattern.permute.xlu0 27
    %6426 = vperm.xlu0 %6425, %v94
    %v6427 = vpop.permute.xlu0 %6426
    %6428 = vset.pattern.permute.xlu0 27
    %6429 = vperm.xlu0 %6428, %v95
    %v6430 = vpop.permute.xlu0 %6429
    %vm6431 = vcmp.eq.s32.totalorder %v97, %v6385
    %vm6432 = vcmp.eq.s32.totalorder %v97, %v6388
    %vm6433 = vcmp.eq.s32.totalorder %v97, %v6391
    %vm6434 = vcmp.eq.s32.totalorder %v97, %v6394
    %vm6435 = vcmp.eq.s32.totalorder %v97, %v6397
    %vm6436 = vcmp.eq.s32.totalorder %v97, %v6400
    %vm6437 = vcmp.eq.s32.totalorder %v97, %v6403
    %vm6438 = vcmp.eq.s32.totalorder %v97, %v6406
    %vm6439 = vcmp.eq.s32.totalorder %v97, %v6409
    %vm6440 = vcmp.eq.s32.totalorder %v97, %v6412
    %vm6441 = vcmp.eq.s32.totalorder %v97, %v6415
    %vm6442 = vcmp.eq.s32.totalorder %v97, %v6418
    %vm6443 = vcmp.eq.s32.totalorder %v97, %v6421
    %vm6444 = vcmp.eq.s32.totalorder %v97, %v6424
    %vm6445 = vcmp.eq.s32.totalorder %v97, %v6427
    %vm6446 = vcmp.eq.s32.totalorder %v97, %v6430
    %v6447 = vsel %vm6431, 1, 0
    %v6448 = vsel %vm6432, 1, 0
    %v6449 = vsel %vm6433, 1, 0
    %v6450 = vsel %vm6434, 1, 0
    %v6451 = vsel %vm6435, 1, 0
    %v6452 = vsel %vm6436, 1, 0
    %v6453 = vsel %vm6437, 1, 0
    %v6454 = vsel %vm6438, 1, 0
    %v6455 = vsel %vm6439, 1, 0
    %v6456 = vsel %vm6440, 1, 0
    %v6457 = vsel %vm6441, 1, 0
    %v6458 = vsel %vm6442, 1, 0
    %v6459 = vsel %vm6443, 1, 0
    %v6460 = vsel %vm6444, 1, 0
    %v6461 = vsel %vm6445, 1, 0
    %v6462 = vsel %vm6446, 1, 0
    %v6463 = vcvt.s32.f32 %v6447
    %v6464 = vcvt.s32.f32 %v6448
    %v6465 = vcvt.s32.f32 %v6449
    %v6466 = vcvt.s32.f32 %v6450
    %v6467 = vcvt.s32.f32 %v6451
    %v6468 = vcvt.s32.f32 %v6452
    %v6469 = vcvt.s32.f32 %v6453
    %v6470 = vcvt.s32.f32 %v6454
    %v6471 = vcvt.s32.f32 %v6455
    %v6472 = vcvt.s32.f32 %v6456
    %v6473 = vcvt.s32.f32 %v6457
    %v6474 = vcvt.s32.f32 %v6458
    %v6475 = vcvt.s32.f32 %v6459
    %v6476 = vcvt.s32.f32 %v6460
    %v6477 = vcvt.s32.f32 %v6461
    %v6478 = vcvt.s32.f32 %v6462
    %v6479 = vpack.c.bf16 %v6464, %v6463
    %v6480 = vpack.c.bf16 %v6466, %v6465
    %v6481 = vpack.c.bf16 %v6468, %v6467
    %v6482 = vpack.c.bf16 %v6470, %v6469
    %v6483 = vpack.c.bf16 %v6472, %v6471
    %v6484 = vpack.c.bf16 %v6474, %v6473
    %v6485 = vpack.c.bf16 %v6476, %v6475
    %v6486 = vpack.c.bf16 %v6478, %v6477
    %s6487 = scalar_lea.vmem [#allocation2], 1728
    %v6488 = vld [vmem:[%s6487] sm:$0xf]
    %v6489 = vld [vmem:[%s6487 + $0x4] sm:$0xf]
    %v6490 = vld [vmem:[%s6487 + $0x8] sm:$0xf]
    %v6491 = vld [vmem:[%s6487 + $0xc] sm:$0xf]
    %v6492 = vld [vmem:[%s6487 + $0x10] sm:$0xf]
    %v6493 = vld [vmem:[%s6487 + $0x14] sm:$0xf]
    %v6494 = vld [vmem:[%s6487 + $0x18] sm:$0xf]
    %v6495 = vld [vmem:[%s6487 + $0x1c] sm:$0xf]
    %v6496 = vld [vmem:[%s6487 + $0x20] sm:$0xf]
    %v6497 = vld [vmem:[%s6487 + $0x24] sm:$0xf]
    %v6498 = vld [vmem:[%s6487 + $0x28] sm:$0xf]
    %v6499 = vld [vmem:[%s6487 + $0x2c] sm:$0xf]
    %v6500 = vld [vmem:[%s6487 + $0x30] sm:$0xf]
    %v6501 = vld [vmem:[%s6487 + $0x34] sm:$0xf]
    %v6502 = vld [vmem:[%s6487 + $0x38] sm:$0xf]
    %v6503 = vld [vmem:[%s6487 + $0x3c] sm:$0xf]
    %v6520 = vunpack.c.l.b16 %v6488
    %v6521 = vunpack.c.l.b16 %v6489
    %v6522 = vunpack.c.l.b16 %v6490
    %v6523 = vunpack.c.l.b16 %v6491
    %v6524 = vunpack.c.l.b16 %v6492
    %v6525 = vunpack.c.l.b16 %v6493
    %v6526 = vunpack.c.l.b16 %v6494
    %v6527 = vunpack.c.l.b16 %v6495
    %v6528 = vunpack.c.l.b16 %v6496
    %v6529 = vunpack.c.l.b16 %v6497
    %v6530 = vunpack.c.l.b16 %v6498
    %v6531 = vunpack.c.l.b16 %v6499
    %v6532 = vunpack.c.l.b16 %v6500
    %v6533 = vunpack.c.l.b16 %v6501
    %v6534 = vunpack.c.l.b16 %v6502
    %v6535 = vunpack.c.l.b16 %v6503
    %v6536 = vpack.c.b16 %v6521, %v6520
    %v6537 = vpack.c.b16 %v6523, %v6522
    %v6538 = vpack.c.b16 %v6525, %v6524
    %v6539 = vpack.c.b16 %v6527, %v6526
    %v6540 = vpack.c.b16 %v6529, %v6528
    %v6541 = vpack.c.b16 %v6531, %v6530
    %v6542 = vpack.c.b16 %v6533, %v6532
    %v6543 = vpack.c.b16 %v6535, %v6534
    %6552 = vmatpush.bf16.msra.mxu0 %v6543
    %6553 = vmatpush.bf16.msra.mxu0 %v6542
    %6554 = vmatpush.bf16.msra.mxu0 %v6541
    %6555 = vmatpush.bf16.msra.mxu0 %v6540
    %6556 = vmatpush.bf16.msra.mxu0 %v6539
    %6557 = vmatpush.bf16.msra.mxu0 %v6538
    %6558 = vmatpush.bf16.msra.mxu0 %v6537
    %6559 = vmatpush.bf16.msra.mxu0 %v6536
    %6560 = vmatmul.bf16.gmra.mxu0 %v6479
    %v6561 = vpop.f32.mrf.mxu0
    %v6562 = vadd.f32 0.0, %v6561
    %v6563 = vpop.f32.mrf.mxu0
    %v6564 = vadd.f32 0.0, %v6563
    %6565 = vmatmul.bf16.gmra.mxu0 %v6480
    %v6566 = vpop.f32.mrf.mxu0
    %v6567 = vadd.f32 0.0, %v6566
    %v6568 = vpop.f32.mrf.mxu0
    %v6569 = vadd.f32 0.0, %v6568
    %6570 = vmatmul.bf16.gmra.mxu0 %v6481
    %v6571 = vpop.f32.mrf.mxu0
    %v6572 = vadd.f32 0.0, %v6571
    %v6573 = vpop.f32.mrf.mxu0
    %v6574 = vadd.f32 0.0, %v6573
    %6575 = vmatmul.bf16.gmra.mxu0 %v6482
    %v6576 = vpop.f32.mrf.mxu0
    %v6577 = vadd.f32 0.0, %v6576
    %v6578 = vpop.f32.mrf.mxu0
    %v6579 = vadd.f32 0.0, %v6578
    %6580 = vmatmul.bf16.gmra.mxu0 %v6483
    %v6581 = vpop.f32.mrf.mxu0
    %v6582 = vadd.f32 0.0, %v6581
    %v6583 = vpop.f32.mrf.mxu0
    %v6584 = vadd.f32 0.0, %v6583
    %6585 = vmatmul.bf16.gmra.mxu0 %v6484
    %v6586 = vpop.f32.mrf.mxu0
    %v6587 = vadd.f32 0.0, %v6586
    %v6588 = vpop.f32.mrf.mxu0
    %v6589 = vadd.f32 0.0, %v6588
    %6590 = vmatmul.bf16.gmra.mxu0 %v6485
    %v6591 = vpop.f32.mrf.mxu0
    %v6592 = vadd.f32 0.0, %v6591
    %v6593 = vpop.f32.mrf.mxu0
    %v6594 = vadd.f32 0.0, %v6593
    %6595 = vmatmul.bf16.gmra.mxu0 %v6486
    %v6596 = vpop.f32.mrf.mxu0
    %v6597 = vadd.f32 0.0, %v6596
    %v6598 = vpop.f32.mrf.mxu0
    %v6599 = vadd.f32 0.0, %v6598
    %6600 = vdwg.mxu0
    %v6601 = vadd.f32 %v6367, %v6562
    %v6602 = vadd.f32 %v6368, %v6564
    %v6603 = vadd.f32 %v6369, %v6567
    %v6604 = vadd.f32 %v6370, %v6569
    %v6605 = vadd.f32 %v6371, %v6572
    %v6606 = vadd.f32 %v6372, %v6574
    %v6607 = vadd.f32 %v6373, %v6577
    %v6608 = vadd.f32 %v6374, %v6579
    %v6609 = vadd.f32 %v6375, %v6582
    %v6610 = vadd.f32 %v6376, %v6584
    %v6611 = vadd.f32 %v6377, %v6587
    %v6612 = vadd.f32 %v6378, %v6589
    %v6613 = vadd.f32 %v6379, %v6592
    %v6614 = vadd.f32 %v6380, %v6594
    %v6615 = vadd.f32 %v6381, %v6597
    %v6616 = vadd.f32 %v6382, %v6599
    %6617 = vset.pattern.permute.xlu0 28
    %6618 = vperm.xlu0 %6617, %v80
    %v6619 = vpop.permute.xlu0 %6618
    %6620 = vset.pattern.permute.xlu0 28
    %6621 = vperm.xlu0 %6620, %v81
    %v6622 = vpop.permute.xlu0 %6621
    %6623 = vset.pattern.permute.xlu0 28
    %6624 = vperm.xlu0 %6623, %v82
    %v6625 = vpop.permute.xlu0 %6624
    %6626 = vset.pattern.permute.xlu0 28
    %6627 = vperm.xlu0 %6626, %v83
    %v6628 = vpop.permute.xlu0 %6627
    %6629 = vset.pattern.permute.xlu0 28
    %6630 = vperm.xlu0 %6629, %v84
    %v6631 = vpop.permute.xlu0 %6630
    %6632 = vset.pattern.permute.xlu0 28
    %6633 = vperm.xlu0 %6632, %v85
    %v6634 = vpop.permute.xlu0 %6633
    %6635 = vset.pattern.permute.xlu0 28
    %6636 = vperm.xlu0 %6635, %v86
    %v6637 = vpop.permute.xlu0 %6636
    %6638 = vset.pattern.permute.xlu0 28
    %6639 = vperm.xlu0 %6638, %v87
    %v6640 = vpop.permute.xlu0 %6639
    %6641 = vset.pattern.permute.xlu0 28
    %6642 = vperm.xlu0 %6641, %v88
    %v6643 = vpop.permute.xlu0 %6642
    %6644 = vset.pattern.permute.xlu0 28
    %6645 = vperm.xlu0 %6644, %v89
    %v6646 = vpop.permute.xlu0 %6645
    %6647 = vset.pattern.permute.xlu0 28
    %6648 = vperm.xlu0 %6647, %v90
    %v6649 = vpop.permute.xlu0 %6648
    %6650 = vset.pattern.permute.xlu0 28
    %6651 = vperm.xlu0 %6650, %v91
    %v6652 = vpop.permute.xlu0 %6651
    %6653 = vset.pattern.permute.xlu0 28
    %6654 = vperm.xlu0 %6653, %v92
    %v6655 = vpop.permute.xlu0 %6654
    %6656 = vset.pattern.permute.xlu0 28
    %6657 = vperm.xlu0 %6656, %v93
    %v6658 = vpop.permute.xlu0 %6657
    %6659 = vset.pattern.permute.xlu0 28
    %6660 = vperm.xlu0 %6659, %v94
    %v6661 = vpop.permute.xlu0 %6660
    %6662 = vset.pattern.permute.xlu0 28
    %6663 = vperm.xlu0 %6662, %v95
    %v6664 = vpop.permute.xlu0 %6663
    %vm6665 = vcmp.eq.s32.totalorder %v97, %v6619
    %vm6666 = vcmp.eq.s32.totalorder %v97, %v6622
    %vm6667 = vcmp.eq.s32.totalorder %v97, %v6625
    %vm6668 = vcmp.eq.s32.totalorder %v97, %v6628
    %vm6669 = vcmp.eq.s32.totalorder %v97, %v6631
    %vm6670 = vcmp.eq.s32.totalorder %v97, %v6634
    %vm6671 = vcmp.eq.s32.totalorder %v97, %v6637
    %vm6672 = vcmp.eq.s32.totalorder %v97, %v6640
    %vm6673 = vcmp.eq.s32.totalorder %v97, %v6643
    %vm6674 = vcmp.eq.s32.totalorder %v97, %v6646
    %vm6675 = vcmp.eq.s32.totalorder %v97, %v6649
    %vm6676 = vcmp.eq.s32.totalorder %v97, %v6652
    %vm6677 = vcmp.eq.s32.totalorder %v97, %v6655
    %vm6678 = vcmp.eq.s32.totalorder %v97, %v6658
    %vm6679 = vcmp.eq.s32.totalorder %v97, %v6661
    %vm6680 = vcmp.eq.s32.totalorder %v97, %v6664
    %v6681 = vsel %vm6665, 1, 0
    %v6682 = vsel %vm6666, 1, 0
    %v6683 = vsel %vm6667, 1, 0
    %v6684 = vsel %vm6668, 1, 0
    %v6685 = vsel %vm6669, 1, 0
    %v6686 = vsel %vm6670, 1, 0
    %v6687 = vsel %vm6671, 1, 0
    %v6688 = vsel %vm6672, 1, 0
    %v6689 = vsel %vm6673, 1, 0
    %v6690 = vsel %vm6674, 1, 0
    %v6691 = vsel %vm6675, 1, 0
    %v6692 = vsel %vm6676, 1, 0
    %v6693 = vsel %vm6677, 1, 0
    %v6694 = vsel %vm6678, 1, 0
    %v6695 = vsel %vm6679, 1, 0
    %v6696 = vsel %vm6680, 1, 0
    %v6697 = vcvt.s32.f32 %v6681
    %v6698 = vcvt.s32.f32 %v6682
    %v6699 = vcvt.s32.f32 %v6683
    %v6700 = vcvt.s32.f32 %v6684
    %v6701 = vcvt.s32.f32 %v6685
    %v6702 = vcvt.s32.f32 %v6686
    %v6703 = vcvt.s32.f32 %v6687
    %v6704 = vcvt.s32.f32 %v6688
    %v6705 = vcvt.s32.f32 %v6689
    %v6706 = vcvt.s32.f32 %v6690
    %v6707 = vcvt.s32.f32 %v6691
    %v6708 = vcvt.s32.f32 %v6692
    %v6709 = vcvt.s32.f32 %v6693
    %v6710 = vcvt.s32.f32 %v6694
    %v6711 = vcvt.s32.f32 %v6695
    %v6712 = vcvt.s32.f32 %v6696
    %v6713 = vpack.c.bf16 %v6698, %v6697
    %v6714 = vpack.c.bf16 %v6700, %v6699
    %v6715 = vpack.c.bf16 %v6702, %v6701
    %v6716 = vpack.c.bf16 %v6704, %v6703
    %v6717 = vpack.c.bf16 %v6706, %v6705
    %v6718 = vpack.c.bf16 %v6708, %v6707
    %v6719 = vpack.c.bf16 %v6710, %v6709
    %v6720 = vpack.c.bf16 %v6712, %v6711
    %s6721 = scalar_lea.vmem [#allocation2], 1792
    %v6722 = vld [vmem:[%s6721] sm:$0xf]
    %v6723 = vld [vmem:[%s6721 + $0x4] sm:$0xf]
    %v6724 = vld [vmem:[%s6721 + $0x8] sm:$0xf]
    %v6725 = vld [vmem:[%s6721 + $0xc] sm:$0xf]
    %v6726 = vld [vmem:[%s6721 + $0x10] sm:$0xf]
    %v6727 = vld [vmem:[%s6721 + $0x14] sm:$0xf]
    %v6728 = vld [vmem:[%s6721 + $0x18] sm:$0xf]
    %v6729 = vld [vmem:[%s6721 + $0x1c] sm:$0xf]
    %v6730 = vld [vmem:[%s6721 + $0x20] sm:$0xf]
    %v6731 = vld [vmem:[%s6721 + $0x24] sm:$0xf]
    %v6732 = vld [vmem:[%s6721 + $0x28] sm:$0xf]
    %v6733 = vld [vmem:[%s6721 + $0x2c] sm:$0xf]
    %v6734 = vld [vmem:[%s6721 + $0x30] sm:$0xf]
    %v6735 = vld [vmem:[%s6721 + $0x34] sm:$0xf]
    %v6736 = vld [vmem:[%s6721 + $0x38] sm:$0xf]
    %v6737 = vld [vmem:[%s6721 + $0x3c] sm:$0xf]
    %v6754 = vunpack.c.l.b16 %v6722
    %v6755 = vunpack.c.l.b16 %v6723
    %v6756 = vunpack.c.l.b16 %v6724
    %v6757 = vunpack.c.l.b16 %v6725
    %v6758 = vunpack.c.l.b16 %v6726
    %v6759 = vunpack.c.l.b16 %v6727
    %v6760 = vunpack.c.l.b16 %v6728
    %v6761 = vunpack.c.l.b16 %v6729
    %v6762 = vunpack.c.l.b16 %v6730
    %v6763 = vunpack.c.l.b16 %v6731
    %v6764 = vunpack.c.l.b16 %v6732
    %v6765 = vunpack.c.l.b16 %v6733
    %v6766 = vunpack.c.l.b16 %v6734
    %v6767 = vunpack.c.l.b16 %v6735
    %v6768 = vunpack.c.l.b16 %v6736
    %v6769 = vunpack.c.l.b16 %v6737
    %v6770 = vpack.c.b16 %v6755, %v6754
    %v6771 = vpack.c.b16 %v6757, %v6756
    %v6772 = vpack.c.b16 %v6759, %v6758
    %v6773 = vpack.c.b16 %v6761, %v6760
    %v6774 = vpack.c.b16 %v6763, %v6762
    %v6775 = vpack.c.b16 %v6765, %v6764
    %v6776 = vpack.c.b16 %v6767, %v6766
    %v6777 = vpack.c.b16 %v6769, %v6768
    %6786 = vmatpush.bf16.msra.mxu0 %v6777
    %6787 = vmatpush.bf16.msra.mxu0 %v6776
    %6788 = vmatpush.bf16.msra.mxu0 %v6775
    %6789 = vmatpush.bf16.msra.mxu0 %v6774
    %6790 = vmatpush.bf16.msra.mxu0 %v6773
    %6791 = vmatpush.bf16.msra.mxu0 %v6772
    %6792 = vmatpush.bf16.msra.mxu0 %v6771
    %6793 = vmatpush.bf16.msra.mxu0 %v6770
    %6794 = vmatmul.bf16.gmra.mxu0 %v6713
    %v6795 = vpop.f32.mrf.mxu0
    %v6796 = vadd.f32 0.0, %v6795
    %v6797 = vpop.f32.mrf.mxu0
    %v6798 = vadd.f32 0.0, %v6797
    %6799 = vmatmul.bf16.gmra.mxu0 %v6714
    %v6800 = vpop.f32.mrf.mxu0
    %v6801 = vadd.f32 0.0, %v6800
    %v6802 = vpop.f32.mrf.mxu0
    %v6803 = vadd.f32 0.0, %v6802
    %6804 = vmatmul.bf16.gmra.mxu0 %v6715
    %v6805 = vpop.f32.mrf.mxu0
    %v6806 = vadd.f32 0.0, %v6805
    %v6807 = vpop.f32.mrf.mxu0
    %v6808 = vadd.f32 0.0, %v6807
    %6809 = vmatmul.bf16.gmra.mxu0 %v6716
    %v6810 = vpop.f32.mrf.mxu0
    %v6811 = vadd.f32 0.0, %v6810
    %v6812 = vpop.f32.mrf.mxu0
    %v6813 = vadd.f32 0.0, %v6812
    %6814 = vmatmul.bf16.gmra.mxu0 %v6717
    %v6815 = vpop.f32.mrf.mxu0
    %v6816 = vadd.f32 0.0, %v6815
    %v6817 = vpop.f32.mrf.mxu0
    %v6818 = vadd.f32 0.0, %v6817
    %6819 = vmatmul.bf16.gmra.mxu0 %v6718
    %v6820 = vpop.f32.mrf.mxu0
    %v6821 = vadd.f32 0.0, %v6820
    %v6822 = vpop.f32.mrf.mxu0
    %v6823 = vadd.f32 0.0, %v6822
    %6824 = vmatmul.bf16.gmra.mxu0 %v6719
    %v6825 = vpop.f32.mrf.mxu0
    %v6826 = vadd.f32 0.0, %v6825
    %v6827 = vpop.f32.mrf.mxu0
    %v6828 = vadd.f32 0.0, %v6827
    %6829 = vmatmul.bf16.gmra.mxu0 %v6720
    %v6830 = vpop.f32.mrf.mxu0
    %v6831 = vadd.f32 0.0, %v6830
    %v6832 = vpop.f32.mrf.mxu0
    %v6833 = vadd.f32 0.0, %v6832
    %6834 = vdwg.mxu0
    %v6835 = vadd.f32 %v6601, %v6796
    %v6836 = vadd.f32 %v6602, %v6798
    %v6837 = vadd.f32 %v6603, %v6801
    %v6838 = vadd.f32 %v6604, %v6803
    %v6839 = vadd.f32 %v6605, %v6806
    %v6840 = vadd.f32 %v6606, %v6808
    %v6841 = vadd.f32 %v6607, %v6811
    %v6842 = vadd.f32 %v6608, %v6813
    %v6843 = vadd.f32 %v6609, %v6816
    %v6844 = vadd.f32 %v6610, %v6818
    %v6845 = vadd.f32 %v6611, %v6821
    %v6846 = vadd.f32 %v6612, %v6823
    %v6847 = vadd.f32 %v6613, %v6826
    %v6848 = vadd.f32 %v6614, %v6828
    %v6849 = vadd.f32 %v6615, %v6831
    %v6850 = vadd.f32 %v6616, %v6833
    %6851 = vset.pattern.permute.xlu0 29
    %6852 = vperm.xlu0 %6851, %v80
    %v6853 = vpop.permute.xlu0 %6852
    %6854 = vset.pattern.permute.xlu0 29
    %6855 = vperm.xlu0 %6854, %v81
    %v6856 = vpop.permute.xlu0 %6855
    %6857 = vset.pattern.permute.xlu0 29
    %6858 = vperm.xlu0 %6857, %v82
    %v6859 = vpop.permute.xlu0 %6858
    %6860 = vset.pattern.permute.xlu0 29
    %6861 = vperm.xlu0 %6860, %v83
    %v6862 = vpop.permute.xlu0 %6861
    %6863 = vset.pattern.permute.xlu0 29
    %6864 = vperm.xlu0 %6863, %v84
    %v6865 = vpop.permute.xlu0 %6864
    %6866 = vset.pattern.permute.xlu0 29
    %6867 = vperm.xlu0 %6866, %v85
    %v6868 = vpop.permute.xlu0 %6867
    %6869 = vset.pattern.permute.xlu0 29
    %6870 = vperm.xlu0 %6869, %v86
    %v6871 = vpop.permute.xlu0 %6870
    %6872 = vset.pattern.permute.xlu0 29
    %6873 = vperm.xlu0 %6872, %v87
    %v6874 = vpop.permute.xlu0 %6873
    %6875 = vset.pattern.permute.xlu0 29
    %6876 = vperm.xlu0 %6875, %v88
    %v6877 = vpop.permute.xlu0 %6876
    %6878 = vset.pattern.permute.xlu0 29
    %6879 = vperm.xlu0 %6878, %v89
    %v6880 = vpop.permute.xlu0 %6879
    %6881 = vset.pattern.permute.xlu0 29
    %6882 = vperm.xlu0 %6881, %v90
    %v6883 = vpop.permute.xlu0 %6882
    %6884 = vset.pattern.permute.xlu0 29
    %6885 = vperm.xlu0 %6884, %v91
    %v6886 = vpop.permute.xlu0 %6885
    %6887 = vset.pattern.permute.xlu0 29
    %6888 = vperm.xlu0 %6887, %v92
    %v6889 = vpop.permute.xlu0 %6888
    %6890 = vset.pattern.permute.xlu0 29
    %6891 = vperm.xlu0 %6890, %v93
    %v6892 = vpop.permute.xlu0 %6891
    %6893 = vset.pattern.permute.xlu0 29
    %6894 = vperm.xlu0 %6893, %v94
    %v6895 = vpop.permute.xlu0 %6894
    %6896 = vset.pattern.permute.xlu0 29
    %6897 = vperm.xlu0 %6896, %v95
    %v6898 = vpop.permute.xlu0 %6897
    %vm6899 = vcmp.eq.s32.totalorder %v97, %v6853
    %vm6900 = vcmp.eq.s32.totalorder %v97, %v6856
    %vm6901 = vcmp.eq.s32.totalorder %v97, %v6859
    %vm6902 = vcmp.eq.s32.totalorder %v97, %v6862
    %vm6903 = vcmp.eq.s32.totalorder %v97, %v6865
    %vm6904 = vcmp.eq.s32.totalorder %v97, %v6868
    %vm6905 = vcmp.eq.s32.totalorder %v97, %v6871
    %vm6906 = vcmp.eq.s32.totalorder %v97, %v6874
    %vm6907 = vcmp.eq.s32.totalorder %v97, %v6877
    %vm6908 = vcmp.eq.s32.totalorder %v97, %v6880
    %vm6909 = vcmp.eq.s32.totalorder %v97, %v6883
    %vm6910 = vcmp.eq.s32.totalorder %v97, %v6886
    %vm6911 = vcmp.eq.s32.totalorder %v97, %v6889
    %vm6912 = vcmp.eq.s32.totalorder %v97, %v6892
    %vm6913 = vcmp.eq.s32.totalorder %v97, %v6895
    %vm6914 = vcmp.eq.s32.totalorder %v97, %v6898
    %v6915 = vsel %vm6899, 1, 0
    %v6916 = vsel %vm6900, 1, 0
    %v6917 = vsel %vm6901, 1, 0
    %v6918 = vsel %vm6902, 1, 0
    %v6919 = vsel %vm6903, 1, 0
    %v6920 = vsel %vm6904, 1, 0
    %v6921 = vsel %vm6905, 1, 0
    %v6922 = vsel %vm6906, 1, 0
    %v6923 = vsel %vm6907, 1, 0
    %v6924 = vsel %vm6908, 1, 0
    %v6925 = vsel %vm6909, 1, 0
    %v6926 = vsel %vm6910, 1, 0
    %v6927 = vsel %vm6911, 1, 0
    %v6928 = vsel %vm6912, 1, 0
    %v6929 = vsel %vm6913, 1, 0
    %v6930 = vsel %vm6914, 1, 0
    %v6931 = vcvt.s32.f32 %v6915
    %v6932 = vcvt.s32.f32 %v6916
    %v6933 = vcvt.s32.f32 %v6917
    %v6934 = vcvt.s32.f32 %v6918
    %v6935 = vcvt.s32.f32 %v6919
    %v6936 = vcvt.s32.f32 %v6920
    %v6937 = vcvt.s32.f32 %v6921
    %v6938 = vcvt.s32.f32 %v6922
    %v6939 = vcvt.s32.f32 %v6923
    %v6940 = vcvt.s32.f32 %v6924
    %v6941 = vcvt.s32.f32 %v6925
    %v6942 = vcvt.s32.f32 %v6926
    %v6943 = vcvt.s32.f32 %v6927
    %v6944 = vcvt.s32.f32 %v6928
    %v6945 = vcvt.s32.f32 %v6929
    %v6946 = vcvt.s32.f32 %v6930
    %v6947 = vpack.c.bf16 %v6932, %v6931
    %v6948 = vpack.c.bf16 %v6934, %v6933
    %v6949 = vpack.c.bf16 %v6936, %v6935
    %v6950 = vpack.c.bf16 %v6938, %v6937
    %v6951 = vpack.c.bf16 %v6940, %v6939
    %v6952 = vpack.c.bf16 %v6942, %v6941
    %v6953 = vpack.c.bf16 %v6944, %v6943
    %v6954 = vpack.c.bf16 %v6946, %v6945
    %s6955 = scalar_lea.vmem [#allocation2], 1856
    %v6956 = vld [vmem:[%s6955] sm:$0xf]
    %v6957 = vld [vmem:[%s6955 + $0x4] sm:$0xf]
    %v6958 = vld [vmem:[%s6955 + $0x8] sm:$0xf]
    %v6959 = vld [vmem:[%s6955 + $0xc] sm:$0xf]
    %v6960 = vld [vmem:[%s6955 + $0x10] sm:$0xf]
    %v6961 = vld [vmem:[%s6955 + $0x14] sm:$0xf]
    %v6962 = vld [vmem:[%s6955 + $0x18] sm:$0xf]
    %v6963 = vld [vmem:[%s6955 + $0x1c] sm:$0xf]
    %v6964 = vld [vmem:[%s6955 + $0x20] sm:$0xf]
    %v6965 = vld [vmem:[%s6955 + $0x24] sm:$0xf]
    %v6966 = vld [vmem:[%s6955 + $0x28] sm:$0xf]
    %v6967 = vld [vmem:[%s6955 + $0x2c] sm:$0xf]
    %v6968 = vld [vmem:[%s6955 + $0x30] sm:$0xf]
    %v6969 = vld [vmem:[%s6955 + $0x34] sm:$0xf]
    %v6970 = vld [vmem:[%s6955 + $0x38] sm:$0xf]
    %v6971 = vld [vmem:[%s6955 + $0x3c] sm:$0xf]
    %v6988 = vunpack.c.l.b16 %v6956
    %v6989 = vunpack.c.l.b16 %v6957
    %v6990 = vunpack.c.l.b16 %v6958
    %v6991 = vunpack.c.l.b16 %v6959
    %v6992 = vunpack.c.l.b16 %v6960
    %v6993 = vunpack.c.l.b16 %v6961
    %v6994 = vunpack.c.l.b16 %v6962
    %v6995 = vunpack.c.l.b16 %v6963
    %v6996 = vunpack.c.l.b16 %v6964
    %v6997 = vunpack.c.l.b16 %v6965
    %v6998 = vunpack.c.l.b16 %v6966
    %v6999 = vunpack.c.l.b16 %v6967
    %v7000 = vunpack.c.l.b16 %v6968
    %v7001 = vunpack.c.l.b16 %v6969
    %v7002 = vunpack.c.l.b16 %v6970
    %v7003 = vunpack.c.l.b16 %v6971
    %v7004 = vpack.c.b16 %v6989, %v6988
    %v7005 = vpack.c.b16 %v6991, %v6990
    %v7006 = vpack.c.b16 %v6993, %v6992
    %v7007 = vpack.c.b16 %v6995, %v6994
    %v7008 = vpack.c.b16 %v6997, %v6996
    %v7009 = vpack.c.b16 %v6999, %v6998
    %v7010 = vpack.c.b16 %v7001, %v7000
    %v7011 = vpack.c.b16 %v7003, %v7002
    %7020 = vmatpush.bf16.msra.mxu0 %v7011
    %7021 = vmatpush.bf16.msra.mxu0 %v7010
    %7022 = vmatpush.bf16.msra.mxu0 %v7009
    %7023 = vmatpush.bf16.msra.mxu0 %v7008
    %7024 = vmatpush.bf16.msra.mxu0 %v7007
    %7025 = vmatpush.bf16.msra.mxu0 %v7006
    %7026 = vmatpush.bf16.msra.mxu0 %v7005
    %7027 = vmatpush.bf16.msra.mxu0 %v7004
    %7028 = vmatmul.bf16.gmra.mxu0 %v6947
    %v7029 = vpop.f32.mrf.mxu0
    %v7030 = vadd.f32 0.0, %v7029
    %v7031 = vpop.f32.mrf.mxu0
    %v7032 = vadd.f32 0.0, %v7031
    %7033 = vmatmul.bf16.gmra.mxu0 %v6948
    %v7034 = vpop.f32.mrf.mxu0
    %v7035 = vadd.f32 0.0, %v7034
    %v7036 = vpop.f32.mrf.mxu0
    %v7037 = vadd.f32 0.0, %v7036
    %7038 = vmatmul.bf16.gmra.mxu0 %v6949
    %v7039 = vpop.f32.mrf.mxu0
    %v7040 = vadd.f32 0.0, %v7039
    %v7041 = vpop.f32.mrf.mxu0
    %v7042 = vadd.f32 0.0, %v7041
    %7043 = vmatmul.bf16.gmra.mxu0 %v6950
    %v7044 = vpop.f32.mrf.mxu0
    %v7045 = vadd.f32 0.0, %v7044
    %v7046 = vpop.f32.mrf.mxu0
    %v7047 = vadd.f32 0.0, %v7046
    %7048 = vmatmul.bf16.gmra.mxu0 %v6951
    %v7049 = vpop.f32.mrf.mxu0
    %v7050 = vadd.f32 0.0, %v7049
    %v7051 = vpop.f32.mrf.mxu0
    %v7052 = vadd.f32 0.0, %v7051
    %7053 = vmatmul.bf16.gmra.mxu0 %v6952
    %v7054 = vpop.f32.mrf.mxu0
    %v7055 = vadd.f32 0.0, %v7054
    %v7056 = vpop.f32.mrf.mxu0
    %v7057 = vadd.f32 0.0, %v7056
    %7058 = vmatmul.bf16.gmra.mxu0 %v6953
    %v7059 = vpop.f32.mrf.mxu0
    %v7060 = vadd.f32 0.0, %v7059
    %v7061 = vpop.f32.mrf.mxu0
    %v7062 = vadd.f32 0.0, %v7061
    %7063 = vmatmul.bf16.gmra.mxu0 %v6954
    %v7064 = vpop.f32.mrf.mxu0
    %v7065 = vadd.f32 0.0, %v7064
    %v7066 = vpop.f32.mrf.mxu0
    %v7067 = vadd.f32 0.0, %v7066
    %7068 = vdwg.mxu0
    %v7069 = vadd.f32 %v6835, %v7030
    %v7070 = vadd.f32 %v6836, %v7032
    %v7071 = vadd.f32 %v6837, %v7035
    %v7072 = vadd.f32 %v6838, %v7037
    %v7073 = vadd.f32 %v6839, %v7040
    %v7074 = vadd.f32 %v6840, %v7042
    %v7075 = vadd.f32 %v6841, %v7045
    %v7076 = vadd.f32 %v6842, %v7047
    %v7077 = vadd.f32 %v6843, %v7050
    %v7078 = vadd.f32 %v6844, %v7052
    %v7079 = vadd.f32 %v6845, %v7055
    %v7080 = vadd.f32 %v6846, %v7057
    %v7081 = vadd.f32 %v6847, %v7060
    %v7082 = vadd.f32 %v6848, %v7062
    %v7083 = vadd.f32 %v6849, %v7065
    %v7084 = vadd.f32 %v6850, %v7067
    %7085 = vset.pattern.permute.xlu0 30
    %7086 = vperm.xlu0 %7085, %v80
    %v7087 = vpop.permute.xlu0 %7086
    %7088 = vset.pattern.permute.xlu0 30
    %7089 = vperm.xlu0 %7088, %v81
    %v7090 = vpop.permute.xlu0 %7089
    %7091 = vset.pattern.permute.xlu0 30
    %7092 = vperm.xlu0 %7091, %v82
    %v7093 = vpop.permute.xlu0 %7092
    %7094 = vset.pattern.permute.xlu0 30
    %7095 = vperm.xlu0 %7094, %v83
    %v7096 = vpop.permute.xlu0 %7095
    %7097 = vset.pattern.permute.xlu0 30
    %7098 = vperm.xlu0 %7097, %v84
    %v7099 = vpop.permute.xlu0 %7098
    %7100 = vset.pattern.permute.xlu0 30
    %7101 = vperm.xlu0 %7100, %v85
    %v7102 = vpop.permute.xlu0 %7101
    %7103 = vset.pattern.permute.xlu0 30
    %7104 = vperm.xlu0 %7103, %v86
    %v7105 = vpop.permute.xlu0 %7104
    %7106 = vset.pattern.permute.xlu0 30
    %7107 = vperm.xlu0 %7106, %v87
    %v7108 = vpop.permute.xlu0 %7107
    %7109 = vset.pattern.permute.xlu0 30
    %7110 = vperm.xlu0 %7109, %v88
    %v7111 = vpop.permute.xlu0 %7110
    %7112 = vset.pattern.permute.xlu0 30
    %7113 = vperm.xlu0 %7112, %v89
    %v7114 = vpop.permute.xlu0 %7113
    %7115 = vset.pattern.permute.xlu0 30
    %7116 = vperm.xlu0 %7115, %v90
    %v7117 = vpop.permute.xlu0 %7116
    %7118 = vset.pattern.permute.xlu0 30
    %7119 = vperm.xlu0 %7118, %v91
    %v7120 = vpop.permute.xlu0 %7119
    %7121 = vset.pattern.permute.xlu0 30
    %7122 = vperm.xlu0 %7121, %v92
    %v7123 = vpop.permute.xlu0 %7122
    %7124 = vset.pattern.permute.xlu0 30
    %7125 = vperm.xlu0 %7124, %v93
    %v7126 = vpop.permute.xlu0 %7125
    %7127 = vset.pattern.permute.xlu0 30
    %7128 = vperm.xlu0 %7127, %v94
    %v7129 = vpop.permute.xlu0 %7128
    %7130 = vset.pattern.permute.xlu0 30
    %7131 = vperm.xlu0 %7130, %v95
    %v7132 = vpop.permute.xlu0 %7131
    %vm7133 = vcmp.eq.s32.totalorder %v97, %v7087
    %vm7134 = vcmp.eq.s32.totalorder %v97, %v7090
    %vm7135 = vcmp.eq.s32.totalorder %v97, %v7093
    %vm7136 = vcmp.eq.s32.totalorder %v97, %v7096
    %vm7137 = vcmp.eq.s32.totalorder %v97, %v7099
    %vm7138 = vcmp.eq.s32.totalorder %v97, %v7102
    %vm7139 = vcmp.eq.s32.totalorder %v97, %v7105
    %vm7140 = vcmp.eq.s32.totalorder %v97, %v7108
    %vm7141 = vcmp.eq.s32.totalorder %v97, %v7111
    %vm7142 = vcmp.eq.s32.totalorder %v97, %v7114
    %vm7143 = vcmp.eq.s32.totalorder %v97, %v7117
    %vm7144 = vcmp.eq.s32.totalorder %v97, %v7120
    %vm7145 = vcmp.eq.s32.totalorder %v97, %v7123
    %vm7146 = vcmp.eq.s32.totalorder %v97, %v7126
    %vm7147 = vcmp.eq.s32.totalorder %v97, %v7129
    %vm7148 = vcmp.eq.s32.totalorder %v97, %v7132
    %v7149 = vsel %vm7133, 1, 0
    %v7150 = vsel %vm7134, 1, 0
    %v7151 = vsel %vm7135, 1, 0
    %v7152 = vsel %vm7136, 1, 0
    %v7153 = vsel %vm7137, 1, 0
    %v7154 = vsel %vm7138, 1, 0
    %v7155 = vsel %vm7139, 1, 0
    %v7156 = vsel %vm7140, 1, 0
    %v7157 = vsel %vm7141, 1, 0
    %v7158 = vsel %vm7142, 1, 0
    %v7159 = vsel %vm7143, 1, 0
    %v7160 = vsel %vm7144, 1, 0
    %v7161 = vsel %vm7145, 1, 0
    %v7162 = vsel %vm7146, 1, 0
    %v7163 = vsel %vm7147, 1, 0
    %v7164 = vsel %vm7148, 1, 0
    %v7165 = vcvt.s32.f32 %v7149
    %v7166 = vcvt.s32.f32 %v7150
    %v7167 = vcvt.s32.f32 %v7151
    %v7168 = vcvt.s32.f32 %v7152
    %v7169 = vcvt.s32.f32 %v7153
    %v7170 = vcvt.s32.f32 %v7154
    %v7171 = vcvt.s32.f32 %v7155
    %v7172 = vcvt.s32.f32 %v7156
    %v7173 = vcvt.s32.f32 %v7157
    %v7174 = vcvt.s32.f32 %v7158
    %v7175 = vcvt.s32.f32 %v7159
    %v7176 = vcvt.s32.f32 %v7160
    %v7177 = vcvt.s32.f32 %v7161
    %v7178 = vcvt.s32.f32 %v7162
    %v7179 = vcvt.s32.f32 %v7163
    %v7180 = vcvt.s32.f32 %v7164
    %v7181 = vpack.c.bf16 %v7166, %v7165
    %v7182 = vpack.c.bf16 %v7168, %v7167
    %v7183 = vpack.c.bf16 %v7170, %v7169
    %v7184 = vpack.c.bf16 %v7172, %v7171
    %v7185 = vpack.c.bf16 %v7174, %v7173
    %v7186 = vpack.c.bf16 %v7176, %v7175
    %v7187 = vpack.c.bf16 %v7178, %v7177
    %v7188 = vpack.c.bf16 %v7180, %v7179
    %s7189 = scalar_lea.vmem [#allocation2], 1920
    %v7190 = vld [vmem:[%s7189] sm:$0xf]
    %v7191 = vld [vmem:[%s7189 + $0x4] sm:$0xf]
    %v7192 = vld [vmem:[%s7189 + $0x8] sm:$0xf]
    %v7193 = vld [vmem:[%s7189 + $0xc] sm:$0xf]
    %v7194 = vld [vmem:[%s7189 + $0x10] sm:$0xf]
    %v7195 = vld [vmem:[%s7189 + $0x14] sm:$0xf]
    %v7196 = vld [vmem:[%s7189 + $0x18] sm:$0xf]
    %v7197 = vld [vmem:[%s7189 + $0x1c] sm:$0xf]
    %v7198 = vld [vmem:[%s7189 + $0x20] sm:$0xf]
    %v7199 = vld [vmem:[%s7189 + $0x24] sm:$0xf]
    %v7200 = vld [vmem:[%s7189 + $0x28] sm:$0xf]
    %v7201 = vld [vmem:[%s7189 + $0x2c] sm:$0xf]
    %v7202 = vld [vmem:[%s7189 + $0x30] sm:$0xf]
    %v7203 = vld [vmem:[%s7189 + $0x34] sm:$0xf]
    %v7204 = vld [vmem:[%s7189 + $0x38] sm:$0xf]
    %v7205 = vld [vmem:[%s7189 + $0x3c] sm:$0xf]
    %v7222 = vunpack.c.l.b16 %v7190
    %v7223 = vunpack.c.l.b16 %v7191
    %v7224 = vunpack.c.l.b16 %v7192
    %v7225 = vunpack.c.l.b16 %v7193
    %v7226 = vunpack.c.l.b16 %v7194
    %v7227 = vunpack.c.l.b16 %v7195
    %v7228 = vunpack.c.l.b16 %v7196
    %v7229 = vunpack.c.l.b16 %v7197
    %v7230 = vunpack.c.l.b16 %v7198
    %v7231 = vunpack.c.l.b16 %v7199
    %v7232 = vunpack.c.l.b16 %v7200
    %v7233 = vunpack.c.l.b16 %v7201
    %v7234 = vunpack.c.l.b16 %v7202
    %v7235 = vunpack.c.l.b16 %v7203
    %v7236 = vunpack.c.l.b16 %v7204
    %v7237 = vunpack.c.l.b16 %v7205
    %v7238 = vpack.c.b16 %v7223, %v7222
    %v7239 = vpack.c.b16 %v7225, %v7224
    %v7240 = vpack.c.b16 %v7227, %v7226
    %v7241 = vpack.c.b16 %v7229, %v7228
    %v7242 = vpack.c.b16 %v7231, %v7230
    %v7243 = vpack.c.b16 %v7233, %v7232
    %v7244 = vpack.c.b16 %v7235, %v7234
    %v7245 = vpack.c.b16 %v7237, %v7236
    %7254 = vmatpush.bf16.msra.mxu0 %v7245
    %7255 = vmatpush.bf16.msra.mxu0 %v7244
    %7256 = vmatpush.bf16.msra.mxu0 %v7243
    %7257 = vmatpush.bf16.msra.mxu0 %v7242
    %7258 = vmatpush.bf16.msra.mxu0 %v7241
    %7259 = vmatpush.bf16.msra.mxu0 %v7240
    %7260 = vmatpush.bf16.msra.mxu0 %v7239
    %7261 = vmatpush.bf16.msra.mxu0 %v7238
    %7262 = vmatmul.bf16.gmra.mxu0 %v7181
    %v7263 = vpop.f32.mrf.mxu0
    %v7264 = vadd.f32 0.0, %v7263
    %v7265 = vpop.f32.mrf.mxu0
    %v7266 = vadd.f32 0.0, %v7265
    %7267 = vmatmul.bf16.gmra.mxu0 %v7182
    %v7268 = vpop.f32.mrf.mxu0
    %v7269 = vadd.f32 0.0, %v7268
    %v7270 = vpop.f32.mrf.mxu0
    %v7271 = vadd.f32 0.0, %v7270
    %7272 = vmatmul.bf16.gmra.mxu0 %v7183
    %v7273 = vpop.f32.mrf.mxu0
    %v7274 = vadd.f32 0.0, %v7273
    %v7275 = vpop.f32.mrf.mxu0
    %v7276 = vadd.f32 0.0, %v7275
    %7277 = vmatmul.bf16.gmra.mxu0 %v7184
    %v7278 = vpop.f32.mrf.mxu0
    %v7279 = vadd.f32 0.0, %v7278
    %v7280 = vpop.f32.mrf.mxu0
    %v7281 = vadd.f32 0.0, %v7280
    %7282 = vmatmul.bf16.gmra.mxu0 %v7185
    %v7283 = vpop.f32.mrf.mxu0
    %v7284 = vadd.f32 0.0, %v7283
    %v7285 = vpop.f32.mrf.mxu0
    %v7286 = vadd.f32 0.0, %v7285
    %7287 = vmatmul.bf16.gmra.mxu0 %v7186
    %v7288 = vpop.f32.mrf.mxu0
    %v7289 = vadd.f32 0.0, %v7288
    %v7290 = vpop.f32.mrf.mxu0
    %v7291 = vadd.f32 0.0, %v7290
    %7292 = vmatmul.bf16.gmra.mxu0 %v7187
    %v7293 = vpop.f32.mrf.mxu0
    %v7294 = vadd.f32 0.0, %v7293
    %v7295 = vpop.f32.mrf.mxu0
    %v7296 = vadd.f32 0.0, %v7295
    %7297 = vmatmul.bf16.gmra.mxu0 %v7188
    %v7298 = vpop.f32.mrf.mxu0
    %v7299 = vadd.f32 0.0, %v7298
    %v7300 = vpop.f32.mrf.mxu0
    %v7301 = vadd.f32 0.0, %v7300
    %7302 = vdwg.mxu0
    %v7303 = vadd.f32 %v7069, %v7264
    %v7304 = vadd.f32 %v7070, %v7266
    %v7305 = vadd.f32 %v7071, %v7269
    %v7306 = vadd.f32 %v7072, %v7271
    %v7307 = vadd.f32 %v7073, %v7274
    %v7308 = vadd.f32 %v7074, %v7276
    %v7309 = vadd.f32 %v7075, %v7279
    %v7310 = vadd.f32 %v7076, %v7281
    %v7311 = vadd.f32 %v7077, %v7284
    %v7312 = vadd.f32 %v7078, %v7286
    %v7313 = vadd.f32 %v7079, %v7289
    %v7314 = vadd.f32 %v7080, %v7291
    %v7315 = vadd.f32 %v7081, %v7294
    %v7316 = vadd.f32 %v7082, %v7296
    %v7317 = vadd.f32 %v7083, %v7299
    %v7318 = vadd.f32 %v7084, %v7301
    %7319 = vset.pattern.permute.xlu0 31
    %7320 = vperm.xlu0 %7319, %v80
    %v7321 = vpop.permute.xlu0 %7320
    %7322 = vset.pattern.permute.xlu0 31
    %7323 = vperm.xlu0 %7322, %v81
    %v7324 = vpop.permute.xlu0 %7323
    %7325 = vset.pattern.permute.xlu0 31
    %7326 = vperm.xlu0 %7325, %v82
    %v7327 = vpop.permute.xlu0 %7326
    %7328 = vset.pattern.permute.xlu0 31
    %7329 = vperm.xlu0 %7328, %v83
    %v7330 = vpop.permute.xlu0 %7329
    %7331 = vset.pattern.permute.xlu0 31
    %7332 = vperm.xlu0 %7331, %v84
    %v7333 = vpop.permute.xlu0 %7332
    %7334 = vset.pattern.permute.xlu0 31
    %7335 = vperm.xlu0 %7334, %v85
    %v7336 = vpop.permute.xlu0 %7335
    %7337 = vset.pattern.permute.xlu0 31
    %7338 = vperm.xlu0 %7337, %v86
    %v7339 = vpop.permute.xlu0 %7338
    %7340 = vset.pattern.permute.xlu0 31
    %7341 = vperm.xlu0 %7340, %v87
    %v7342 = vpop.permute.xlu0 %7341
    %7343 = vset.pattern.permute.xlu0 31
    %7344 = vperm.xlu0 %7343, %v88
    %v7345 = vpop.permute.xlu0 %7344
    %7346 = vset.pattern.permute.xlu0 31
    %7347 = vperm.xlu0 %7346, %v89
    %v7348 = vpop.permute.xlu0 %7347
    %7349 = vset.pattern.permute.xlu0 31
    %7350 = vperm.xlu0 %7349, %v90
    %v7351 = vpop.permute.xlu0 %7350
    %7352 = vset.pattern.permute.xlu0 31
    %7353 = vperm.xlu0 %7352, %v91
    %v7354 = vpop.permute.xlu0 %7353
    %7355 = vset.pattern.permute.xlu0 31
    %7356 = vperm.xlu0 %7355, %v92
    %v7357 = vpop.permute.xlu0 %7356
    %7358 = vset.pattern.permute.xlu0 31
    %7359 = vperm.xlu0 %7358, %v93
    %v7360 = vpop.permute.xlu0 %7359
    %7361 = vset.pattern.permute.xlu0 31
    %7362 = vperm.xlu0 %7361, %v94
    %v7363 = vpop.permute.xlu0 %7362
    %7364 = vset.pattern.permute.xlu0 31
    %7365 = vperm.xlu0 %7364, %v95
    %v7366 = vpop.permute.xlu0 %7365
    %vm7367 = vcmp.eq.s32.totalorder %v97, %v7321
    %vm7368 = vcmp.eq.s32.totalorder %v97, %v7324
    %vm7369 = vcmp.eq.s32.totalorder %v97, %v7327
    %vm7370 = vcmp.eq.s32.totalorder %v97, %v7330
    %vm7371 = vcmp.eq.s32.totalorder %v97, %v7333
    %vm7372 = vcmp.eq.s32.totalorder %v97, %v7336
    %vm7373 = vcmp.eq.s32.totalorder %v97, %v7339
    %vm7374 = vcmp.eq.s32.totalorder %v97, %v7342
    %vm7375 = vcmp.eq.s32.totalorder %v97, %v7345
    %vm7376 = vcmp.eq.s32.totalorder %v97, %v7348
    %vm7377 = vcmp.eq.s32.totalorder %v97, %v7351
    %vm7378 = vcmp.eq.s32.totalorder %v97, %v7354
    %vm7379 = vcmp.eq.s32.totalorder %v97, %v7357
    %vm7380 = vcmp.eq.s32.totalorder %v97, %v7360
    %vm7381 = vcmp.eq.s32.totalorder %v97, %v7363
    %vm7382 = vcmp.eq.s32.totalorder %v97, %v7366
    %v7383 = vsel %vm7367, 1, 0
    %v7384 = vsel %vm7368, 1, 0
    %v7385 = vsel %vm7369, 1, 0
    %v7386 = vsel %vm7370, 1, 0
    %v7387 = vsel %vm7371, 1, 0
    %v7388 = vsel %vm7372, 1, 0
    %v7389 = vsel %vm7373, 1, 0
    %v7390 = vsel %vm7374, 1, 0
    %v7391 = vsel %vm7375, 1, 0
    %v7392 = vsel %vm7376, 1, 0
    %v7393 = vsel %vm7377, 1, 0
    %v7394 = vsel %vm7378, 1, 0
    %v7395 = vsel %vm7379, 1, 0
    %v7396 = vsel %vm7380, 1, 0
    %v7397 = vsel %vm7381, 1, 0
    %v7398 = vsel %vm7382, 1, 0
    %v7399 = vcvt.s32.f32 %v7383
    %v7400 = vcvt.s32.f32 %v7384
    %v7401 = vcvt.s32.f32 %v7385
    %v7402 = vcvt.s32.f32 %v7386
    %v7403 = vcvt.s32.f32 %v7387
    %v7404 = vcvt.s32.f32 %v7388
    %v7405 = vcvt.s32.f32 %v7389
    %v7406 = vcvt.s32.f32 %v7390
    %v7407 = vcvt.s32.f32 %v7391
    %v7408 = vcvt.s32.f32 %v7392
    %v7409 = vcvt.s32.f32 %v7393
    %v7410 = vcvt.s32.f32 %v7394
    %v7411 = vcvt.s32.f32 %v7395
    %v7412 = vcvt.s32.f32 %v7396
    %v7413 = vcvt.s32.f32 %v7397
    %v7414 = vcvt.s32.f32 %v7398
    %v7415 = vpack.c.bf16 %v7400, %v7399
    %v7416 = vpack.c.bf16 %v7402, %v7401
    %v7417 = vpack.c.bf16 %v7404, %v7403
    %v7418 = vpack.c.bf16 %v7406, %v7405
    %v7419 = vpack.c.bf16 %v7408, %v7407
    %v7420 = vpack.c.bf16 %v7410, %v7409
    %v7421 = vpack.c.bf16 %v7412, %v7411
    %v7422 = vpack.c.bf16 %v7414, %v7413
    %s7423 = scalar_lea.vmem [#allocation2], 1984
    %v7424 = vld [vmem:[%s7423] sm:$0xf]
    %v7425 = vld [vmem:[%s7423 + $0x4] sm:$0xf]
    %v7426 = vld [vmem:[%s7423 + $0x8] sm:$0xf]
    %v7427 = vld [vmem:[%s7423 + $0xc] sm:$0xf]
    %v7428 = vld [vmem:[%s7423 + $0x10] sm:$0xf]
    %v7429 = vld [vmem:[%s7423 + $0x14] sm:$0xf]
    %v7430 = vld [vmem:[%s7423 + $0x18] sm:$0xf]
    %v7431 = vld [vmem:[%s7423 + $0x1c] sm:$0xf]
    %v7432 = vld [vmem:[%s7423 + $0x20] sm:$0xf]
    %v7433 = vld [vmem:[%s7423 + $0x24] sm:$0xf]
    %v7434 = vld [vmem:[%s7423 + $0x28] sm:$0xf]
    %v7435 = vld [vmem:[%s7423 + $0x2c] sm:$0xf]
    %v7436 = vld [vmem:[%s7423 + $0x30] sm:$0xf]
    %v7437 = vld [vmem:[%s7423 + $0x34] sm:$0xf]
    %v7438 = vld [vmem:[%s7423 + $0x38] sm:$0xf]
    %v7439 = vld [vmem:[%s7423 + $0x3c] sm:$0xf]
    %v7456 = vunpack.c.l.b16 %v7424
    %v7457 = vunpack.c.l.b16 %v7425
    %v7458 = vunpack.c.l.b16 %v7426
    %v7459 = vunpack.c.l.b16 %v7427
    %v7460 = vunpack.c.l.b16 %v7428
    %v7461 = vunpack.c.l.b16 %v7429
    %v7462 = vunpack.c.l.b16 %v7430
    %v7463 = vunpack.c.l.b16 %v7431
    %v7464 = vunpack.c.l.b16 %v7432
    %v7465 = vunpack.c.l.b16 %v7433
    %v7466 = vunpack.c.l.b16 %v7434
    %v7467 = vunpack.c.l.b16 %v7435
    %v7468 = vunpack.c.l.b16 %v7436
    %v7469 = vunpack.c.l.b16 %v7437
    %v7470 = vunpack.c.l.b16 %v7438
    %v7471 = vunpack.c.l.b16 %v7439
    %v7472 = vpack.c.b16 %v7457, %v7456
    %v7473 = vpack.c.b16 %v7459, %v7458
    %v7474 = vpack.c.b16 %v7461, %v7460
    %v7475 = vpack.c.b16 %v7463, %v7462
    %v7476 = vpack.c.b16 %v7465, %v7464
    %v7477 = vpack.c.b16 %v7467, %v7466
    %v7478 = vpack.c.b16 %v7469, %v7468
    %v7479 = vpack.c.b16 %v7471, %v7470
    %7488 = vmatpush.bf16.msra.mxu0 %v7479
    %7489 = vmatpush.bf16.msra.mxu0 %v7478
    %7490 = vmatpush.bf16.msra.mxu0 %v7477
    %7491 = vmatpush.bf16.msra.mxu0 %v7476
    %7492 = vmatpush.bf16.msra.mxu0 %v7475
    %7493 = vmatpush.bf16.msra.mxu0 %v7474
    %7494 = vmatpush.bf16.msra.mxu0 %v7473
    %7495 = vmatpush.bf16.msra.mxu0 %v7472
    %7496 = vmatmul.bf16.gmra.mxu0 %v7415
    %v7497 = vpop.f32.mrf.mxu0
    %v7498 = vadd.f32 0.0, %v7497
    %v7499 = vpop.f32.mrf.mxu0
    %v7500 = vadd.f32 0.0, %v7499
    %7501 = vmatmul.bf16.gmra.mxu0 %v7416
    %v7502 = vpop.f32.mrf.mxu0
    %v7503 = vadd.f32 0.0, %v7502
    %v7504 = vpop.f32.mrf.mxu0
    %v7505 = vadd.f32 0.0, %v7504
    %7506 = vmatmul.bf16.gmra.mxu0 %v7417
    %v7507 = vpop.f32.mrf.mxu0
    %v7508 = vadd.f32 0.0, %v7507
    %v7509 = vpop.f32.mrf.mxu0
    %v7510 = vadd.f32 0.0, %v7509
    %7511 = vmatmul.bf16.gmra.mxu0 %v7418
    %v7512 = vpop.f32.mrf.mxu0
    %v7513 = vadd.f32 0.0, %v7512
    %v7514 = vpop.f32.mrf.mxu0
    %v7515 = vadd.f32 0.0, %v7514
    %7516 = vmatmul.bf16.gmra.mxu0 %v7419
    %v7517 = vpop.f32.mrf.mxu0
    %v7518 = vadd.f32 0.0, %v7517
    %v7519 = vpop.f32.mrf.mxu0
    %v7520 = vadd.f32 0.0, %v7519
    %7521 = vmatmul.bf16.gmra.mxu0 %v7420
    %v7522 = vpop.f32.mrf.mxu0
    %v7523 = vadd.f32 0.0, %v7522
    %v7524 = vpop.f32.mrf.mxu0
    %v7525 = vadd.f32 0.0, %v7524
    %7526 = vmatmul.bf16.gmra.mxu0 %v7421
    %v7527 = vpop.f32.mrf.mxu0
    %v7528 = vadd.f32 0.0, %v7527
    %v7529 = vpop.f32.mrf.mxu0
    %v7530 = vadd.f32 0.0, %v7529
    %7531 = vmatmul.bf16.gmra.mxu0 %v7422
    %v7532 = vpop.f32.mrf.mxu0
    %v7533 = vadd.f32 0.0, %v7532
    %v7534 = vpop.f32.mrf.mxu0
    %v7535 = vadd.f32 0.0, %v7534
    %7536 = vdwg.mxu0
    %v7537 = vadd.f32 %v7303, %v7498
    %v7538 = vadd.f32 %v7304, %v7500
    %v7539 = vadd.f32 %v7305, %v7503
    %v7540 = vadd.f32 %v7306, %v7505
    %v7541 = vadd.f32 %v7307, %v7508
    %v7542 = vadd.f32 %v7308, %v7510
    %v7543 = vadd.f32 %v7309, %v7513
    %v7544 = vadd.f32 %v7310, %v7515
    %v7545 = vadd.f32 %v7311, %v7518
    %v7546 = vadd.f32 %v7312, %v7520
    %v7547 = vadd.f32 %v7313, %v7523
    %v7548 = vadd.f32 %v7314, %v7525
    %v7549 = vadd.f32 %v7315, %v7528
    %v7550 = vadd.f32 %v7316, %v7530
    %v7551 = vadd.f32 %v7317, %v7533
    %v7552 = vadd.f32 %v7318, %v7535
    %7553 = vset.pattern.permute.xlu0 32
    %7554 = vperm.xlu0 %7553, %v80
    %v7555 = vpop.permute.xlu0 %7554
    %7556 = vset.pattern.permute.xlu0 32
    %7557 = vperm.xlu0 %7556, %v81
    %v7558 = vpop.permute.xlu0 %7557
    %7559 = vset.pattern.permute.xlu0 32
    %7560 = vperm.xlu0 %7559, %v82
    %v7561 = vpop.permute.xlu0 %7560
    %7562 = vset.pattern.permute.xlu0 32
    %7563 = vperm.xlu0 %7562, %v83
    %v7564 = vpop.permute.xlu0 %7563
    %7565 = vset.pattern.permute.xlu0 32
    %7566 = vperm.xlu0 %7565, %v84
    %v7567 = vpop.permute.xlu0 %7566
    %7568 = vset.pattern.permute.xlu0 32
    %7569 = vperm.xlu0 %7568, %v85
    %v7570 = vpop.permute.xlu0 %7569
    %7571 = vset.pattern.permute.xlu0 32
    %7572 = vperm.xlu0 %7571, %v86
    %v7573 = vpop.permute.xlu0 %7572
    %7574 = vset.pattern.permute.xlu0 32
    %7575 = vperm.xlu0 %7574, %v87
    %v7576 = vpop.permute.xlu0 %7575
    %7577 = vset.pattern.permute.xlu0 32
    %7578 = vperm.xlu0 %7577, %v88
    %v7579 = vpop.permute.xlu0 %7578
    %7580 = vset.pattern.permute.xlu0 32
    %7581 = vperm.xlu0 %7580, %v89
    %v7582 = vpop.permute.xlu0 %7581
    %7583 = vset.pattern.permute.xlu0 32
    %7584 = vperm.xlu0 %7583, %v90
    %v7585 = vpop.permute.xlu0 %7584
    %7586 = vset.pattern.permute.xlu0 32
    %7587 = vperm.xlu0 %7586, %v91
    %v7588 = vpop.permute.xlu0 %7587
    %7589 = vset.pattern.permute.xlu0 32
    %7590 = vperm.xlu0 %7589, %v92
    %v7591 = vpop.permute.xlu0 %7590
    %7592 = vset.pattern.permute.xlu0 32
    %7593 = vperm.xlu0 %7592, %v93
    %v7594 = vpop.permute.xlu0 %7593
    %7595 = vset.pattern.permute.xlu0 32
    %7596 = vperm.xlu0 %7595, %v94
    %v7597 = vpop.permute.xlu0 %7596
    %7598 = vset.pattern.permute.xlu0 32
    %7599 = vperm.xlu0 %7598, %v95
    %v7600 = vpop.permute.xlu0 %7599
    %vm7601 = vcmp.eq.s32.totalorder %v97, %v7555
    %vm7602 = vcmp.eq.s32.totalorder %v97, %v7558
    %vm7603 = vcmp.eq.s32.totalorder %v97, %v7561
    %vm7604 = vcmp.eq.s32.totalorder %v97, %v7564
    %vm7605 = vcmp.eq.s32.totalorder %v97, %v7567
    %vm7606 = vcmp.eq.s32.totalorder %v97, %v7570
    %vm7607 = vcmp.eq.s32.totalorder %v97, %v7573
    %vm7608 = vcmp.eq.s32.totalorder %v97, %v7576
    %vm7609 = vcmp.eq.s32.totalorder %v97, %v7579
    %vm7610 = vcmp.eq.s32.totalorder %v97, %v7582
    %vm7611 = vcmp.eq.s32.totalorder %v97, %v7585
    %vm7612 = vcmp.eq.s32.totalorder %v97, %v7588
    %vm7613 = vcmp.eq.s32.totalorder %v97, %v7591
    %vm7614 = vcmp.eq.s32.totalorder %v97, %v7594
    %vm7615 = vcmp.eq.s32.totalorder %v97, %v7597
    %vm7616 = vcmp.eq.s32.totalorder %v97, %v7600
    %v7617 = vsel %vm7601, 1, 0
    %v7618 = vsel %vm7602, 1, 0
    %v7619 = vsel %vm7603, 1, 0
    %v7620 = vsel %vm7604, 1, 0
    %v7621 = vsel %vm7605, 1, 0
    %v7622 = vsel %vm7606, 1, 0
    %v7623 = vsel %vm7607, 1, 0
    %v7624 = vsel %vm7608, 1, 0
    %v7625 = vsel %vm7609, 1, 0
    %v7626 = vsel %vm7610, 1, 0
    %v7627 = vsel %vm7611, 1, 0
    %v7628 = vsel %vm7612, 1, 0
    %v7629 = vsel %vm7613, 1, 0
    %v7630 = vsel %vm7614, 1, 0
    %v7631 = vsel %vm7615, 1, 0
    %v7632 = vsel %vm7616, 1, 0
    %v7633 = vcvt.s32.f32 %v7617
    %v7634 = vcvt.s32.f32 %v7618
    %v7635 = vcvt.s32.f32 %v7619
    %v7636 = vcvt.s32.f32 %v7620
    %v7637 = vcvt.s32.f32 %v7621
    %v7638 = vcvt.s32.f32 %v7622
    %v7639 = vcvt.s32.f32 %v7623
    %v7640 = vcvt.s32.f32 %v7624
    %v7641 = vcvt.s32.f32 %v7625
    %v7642 = vcvt.s32.f32 %v7626
    %v7643 = vcvt.s32.f32 %v7627
    %v7644 = vcvt.s32.f32 %v7628
    %v7645 = vcvt.s32.f32 %v7629
    %v7646 = vcvt.s32.f32 %v7630
    %v7647 = vcvt.s32.f32 %v7631
    %v7648 = vcvt.s32.f32 %v7632
    %v7649 = vpack.c.bf16 %v7634, %v7633
    %v7650 = vpack.c.bf16 %v7636, %v7635
    %v7651 = vpack.c.bf16 %v7638, %v7637
    %v7652 = vpack.c.bf16 %v7640, %v7639
    %v7653 = vpack.c.bf16 %v7642, %v7641
    %v7654 = vpack.c.bf16 %v7644, %v7643
    %v7655 = vpack.c.bf16 %v7646, %v7645
    %v7656 = vpack.c.bf16 %v7648, %v7647
    %s7657 = scalar_lea.vmem [#allocation2], 2048
    %v7658 = vld [vmem:[%s7657] sm:$0xf]
    %v7659 = vld [vmem:[%s7657 + $0x4] sm:$0xf]
    %v7660 = vld [vmem:[%s7657 + $0x8] sm:$0xf]
    %v7661 = vld [vmem:[%s7657 + $0xc] sm:$0xf]
    %v7662 = vld [vmem:[%s7657 + $0x10] sm:$0xf]
    %v7663 = vld [vmem:[%s7657 + $0x14] sm:$0xf]
    %v7664 = vld [vmem:[%s7657 + $0x18] sm:$0xf]
    %v7665 = vld [vmem:[%s7657 + $0x1c] sm:$0xf]
    %v7666 = vld [vmem:[%s7657 + $0x20] sm:$0xf]
    %v7667 = vld [vmem:[%s7657 + $0x24] sm:$0xf]
    %v7668 = vld [vmem:[%s7657 + $0x28] sm:$0xf]
    %v7669 = vld [vmem:[%s7657 + $0x2c] sm:$0xf]
    %v7670 = vld [vmem:[%s7657 + $0x30] sm:$0xf]
    %v7671 = vld [vmem:[%s7657 + $0x34] sm:$0xf]
    %v7672 = vld [vmem:[%s7657 + $0x38] sm:$0xf]
    %v7673 = vld [vmem:[%s7657 + $0x3c] sm:$0xf]
    %v7690 = vunpack.c.l.b16 %v7658
    %v7691 = vunpack.c.l.b16 %v7659
    %v7692 = vunpack.c.l.b16 %v7660
    %v7693 = vunpack.c.l.b16 %v7661
    %v7694 = vunpack.c.l.b16 %v7662
    %v7695 = vunpack.c.l.b16 %v7663
    %v7696 = vunpack.c.l.b16 %v7664
    %v7697 = vunpack.c.l.b16 %v7665
    %v7698 = vunpack.c.l.b16 %v7666
    %v7699 = vunpack.c.l.b16 %v7667
    %v7700 = vunpack.c.l.b16 %v7668
    %v7701 = vunpack.c.l.b16 %v7669
    %v7702 = vunpack.c.l.b16 %v7670
    %v7703 = vunpack.c.l.b16 %v7671
    %v7704 = vunpack.c.l.b16 %v7672
    %v7705 = vunpack.c.l.b16 %v7673
    %v7706 = vpack.c.b16 %v7691, %v7690
    %v7707 = vpack.c.b16 %v7693, %v7692
    %v7708 = vpack.c.b16 %v7695, %v7694
    %v7709 = vpack.c.b16 %v7697, %v7696
    %v7710 = vpack.c.b16 %v7699, %v7698
    %v7711 = vpack.c.b16 %v7701, %v7700
    %v7712 = vpack.c.b16 %v7703, %v7702
    %v7713 = vpack.c.b16 %v7705, %v7704
    %7722 = vmatpush.bf16.msra.mxu0 %v7713
    %7723 = vmatpush.bf16.msra.mxu0 %v7712
    %7724 = vmatpush.bf16.msra.mxu0 %v7711
    %7725 = vmatpush.bf16.msra.mxu0 %v7710
    %7726 = vmatpush.bf16.msra.mxu0 %v7709
    %7727 = vmatpush.bf16.msra.mxu0 %v7708
    %7728 = vmatpush.bf16.msra.mxu0 %v7707
    %7729 = vmatpush.bf16.msra.mxu0 %v7706
    %7730 = vmatmul.bf16.gmra.mxu0 %v7649
    %v7731 = vpop.f32.mrf.mxu0
    %v7732 = vadd.f32 0.0, %v7731
    %v7733 = vpop.f32.mrf.mxu0
    %v7734 = vadd.f32 0.0, %v7733
    %7735 = vmatmul.bf16.gmra.mxu0 %v7650
    %v7736 = vpop.f32.mrf.mxu0
    %v7737 = vadd.f32 0.0, %v7736
    %v7738 = vpop.f32.mrf.mxu0
    %v7739 = vadd.f32 0.0, %v7738
    %7740 = vmatmul.bf16.gmra.mxu0 %v7651
    %v7741 = vpop.f32.mrf.mxu0
    %v7742 = vadd.f32 0.0, %v7741
    %v7743 = vpop.f32.mrf.mxu0
    %v7744 = vadd.f32 0.0, %v7743
    %7745 = vmatmul.bf16.gmra.mxu0 %v7652
    %v7746 = vpop.f32.mrf.mxu0
    %v7747 = vadd.f32 0.0, %v7746
    %v7748 = vpop.f32.mrf.mxu0
    %v7749 = vadd.f32 0.0, %v7748
    %7750 = vmatmul.bf16.gmra.mxu0 %v7653
    %v7751 = vpop.f32.mrf.mxu0
    %v7752 = vadd.f32 0.0, %v7751
    %v7753 = vpop.f32.mrf.mxu0
    %v7754 = vadd.f32 0.0, %v7753
    %7755 = vmatmul.bf16.gmra.mxu0 %v7654
    %v7756 = vpop.f32.mrf.mxu0
    %v7757 = vadd.f32 0.0, %v7756
    %v7758 = vpop.f32.mrf.mxu0
    %v7759 = vadd.f32 0.0, %v7758
    %7760 = vmatmul.bf16.gmra.mxu0 %v7655
    %v7761 = vpop.f32.mrf.mxu0
    %v7762 = vadd.f32 0.0, %v7761
    %v7763 = vpop.f32.mrf.mxu0
    %v7764 = vadd.f32 0.0, %v7763
    %7765 = vmatmul.bf16.gmra.mxu0 %v7656
    %v7766 = vpop.f32.mrf.mxu0
    %v7767 = vadd.f32 0.0, %v7766
    %v7768 = vpop.f32.mrf.mxu0
    %v7769 = vadd.f32 0.0, %v7768
    %7770 = vdwg.mxu0
    %v7771 = vadd.f32 %v7537, %v7732
    %v7772 = vadd.f32 %v7538, %v7734
    %v7773 = vadd.f32 %v7539, %v7737
    %v7774 = vadd.f32 %v7540, %v7739
    %v7775 = vadd.f32 %v7541, %v7742
    %v7776 = vadd.f32 %v7542, %v7744
    %v7777 = vadd.f32 %v7543, %v7747
    %v7778 = vadd.f32 %v7544, %v7749
    %v7779 = vadd.f32 %v7545, %v7752
    %v7780 = vadd.f32 %v7546, %v7754
    %v7781 = vadd.f32 %v7547, %v7757
    %v7782 = vadd.f32 %v7548, %v7759
    %v7783 = vadd.f32 %v7549, %v7762
    %v7784 = vadd.f32 %v7550, %v7764
    %v7785 = vadd.f32 %v7551, %v7767
    %v7786 = vadd.f32 %v7552, %v7769
    %7787 = vset.pattern.permute.xlu0 33
    %7788 = vperm.xlu0 %7787, %v80
    %v7789 = vpop.permute.xlu0 %7788
    %7790 = vset.pattern.permute.xlu0 33
    %7791 = vperm.xlu0 %7790, %v81
    %v7792 = vpop.permute.xlu0 %7791
    %7793 = vset.pattern.permute.xlu0 33
    %7794 = vperm.xlu0 %7793, %v82
    %v7795 = vpop.permute.xlu0 %7794
    %7796 = vset.pattern.permute.xlu0 33
    %7797 = vperm.xlu0 %7796, %v83
    %v7798 = vpop.permute.xlu0 %7797
    %7799 = vset.pattern.permute.xlu0 33
    %7800 = vperm.xlu0 %7799, %v84
    %v7801 = vpop.permute.xlu0 %7800
    %7802 = vset.pattern.permute.xlu0 33
    %7803 = vperm.xlu0 %7802, %v85
    %v7804 = vpop.permute.xlu0 %7803
    %7805 = vset.pattern.permute.xlu0 33
    %7806 = vperm.xlu0 %7805, %v86
    %v7807 = vpop.permute.xlu0 %7806
    %7808 = vset.pattern.permute.xlu0 33
    %7809 = vperm.xlu0 %7808, %v87
    %v7810 = vpop.permute.xlu0 %7809
    %7811 = vset.pattern.permute.xlu0 33
    %7812 = vperm.xlu0 %7811, %v88
    %v7813 = vpop.permute.xlu0 %7812
    %7814 = vset.pattern.permute.xlu0 33
    %7815 = vperm.xlu0 %7814, %v89
    %v7816 = vpop.permute.xlu0 %7815
    %7817 = vset.pattern.permute.xlu0 33
    %7818 = vperm.xlu0 %7817, %v90
    %v7819 = vpop.permute.xlu0 %7818
    %7820 = vset.pattern.permute.xlu0 33
    %7821 = vperm.xlu0 %7820, %v91
    %v7822 = vpop.permute.xlu0 %7821
    %7823 = vset.pattern.permute.xlu0 33
    %7824 = vperm.xlu0 %7823, %v92
    %v7825 = vpop.permute.xlu0 %7824
    %7826 = vset.pattern.permute.xlu0 33
    %7827 = vperm.xlu0 %7826, %v93
    %v7828 = vpop.permute.xlu0 %7827
    %7829 = vset.pattern.permute.xlu0 33
    %7830 = vperm.xlu0 %7829, %v94
    %v7831 = vpop.permute.xlu0 %7830
    %7832 = vset.pattern.permute.xlu0 33
    %7833 = vperm.xlu0 %7832, %v95
    %v7834 = vpop.permute.xlu0 %7833
    %vm7835 = vcmp.eq.s32.totalorder %v97, %v7789
    %vm7836 = vcmp.eq.s32.totalorder %v97, %v7792
    %vm7837 = vcmp.eq.s32.totalorder %v97, %v7795
    %vm7838 = vcmp.eq.s32.totalorder %v97, %v7798
    %vm7839 = vcmp.eq.s32.totalorder %v97, %v7801
    %vm7840 = vcmp.eq.s32.totalorder %v97, %v7804
    %vm7841 = vcmp.eq.s32.totalorder %v97, %v7807
    %vm7842 = vcmp.eq.s32.totalorder %v97, %v7810
    %vm7843 = vcmp.eq.s32.totalorder %v97, %v7813
    %vm7844 = vcmp.eq.s32.totalorder %v97, %v7816
    %vm7845 = vcmp.eq.s32.totalorder %v97, %v7819
    %vm7846 = vcmp.eq.s32.totalorder %v97, %v7822
    %vm7847 = vcmp.eq.s32.totalorder %v97, %v7825
    %vm7848 = vcmp.eq.s32.totalorder %v97, %v7828
    %vm7849 = vcmp.eq.s32.totalorder %v97, %v7831
    %vm7850 = vcmp.eq.s32.totalorder %v97, %v7834
    %v7851 = vsel %vm7835, 1, 0
    %v7852 = vsel %vm7836, 1, 0
    %v7853 = vsel %vm7837, 1, 0
    %v7854 = vsel %vm7838, 1, 0
    %v7855 = vsel %vm7839, 1, 0
    %v7856 = vsel %vm7840, 1, 0
    %v7857 = vsel %vm7841, 1, 0
    %v7858 = vsel %vm7842, 1, 0
    %v7859 = vsel %vm7843, 1, 0
    %v7860 = vsel %vm7844, 1, 0
    %v7861 = vsel %vm7845, 1, 0
    %v7862 = vsel %vm7846, 1, 0
    %v7863 = vsel %vm7847, 1, 0
    %v7864 = vsel %vm7848, 1, 0
    %v7865 = vsel %vm7849, 1, 0
    %v7866 = vsel %vm7850, 1, 0
    %v7867 = vcvt.s32.f32 %v7851
    %v7868 = vcvt.s32.f32 %v7852
    %v7869 = vcvt.s32.f32 %v7853
    %v7870 = vcvt.s32.f32 %v7854
    %v7871 = vcvt.s32.f32 %v7855
    %v7872 = vcvt.s32.f32 %v7856
    %v7873 = vcvt.s32.f32 %v7857
    %v7874 = vcvt.s32.f32 %v7858
    %v7875 = vcvt.s32.f32 %v7859
    %v7876 = vcvt.s32.f32 %v7860
    %v7877 = vcvt.s32.f32 %v7861
    %v7878 = vcvt.s32.f32 %v7862
    %v7879 = vcvt.s32.f32 %v7863
    %v7880 = vcvt.s32.f32 %v7864
    %v7881 = vcvt.s32.f32 %v7865
    %v7882 = vcvt.s32.f32 %v7866
    %v7883 = vpack.c.bf16 %v7868, %v7867
    %v7884 = vpack.c.bf16 %v7870, %v7869
    %v7885 = vpack.c.bf16 %v7872, %v7871
    %v7886 = vpack.c.bf16 %v7874, %v7873
    %v7887 = vpack.c.bf16 %v7876, %v7875
    %v7888 = vpack.c.bf16 %v7878, %v7877
    %v7889 = vpack.c.bf16 %v7880, %v7879
    %v7890 = vpack.c.bf16 %v7882, %v7881
    %s7891 = scalar_lea.vmem [#allocation2], 2112
    %v7892 = vld [vmem:[%s7891] sm:$0xf]
    %v7893 = vld [vmem:[%s7891 + $0x4] sm:$0xf]
    %v7894 = vld [vmem:[%s7891 + $0x8] sm:$0xf]
    %v7895 = vld [vmem:[%s7891 + $0xc] sm:$0xf]
    %v7896 = vld [vmem:[%s7891 + $0x10] sm:$0xf]
    %v7897 = vld [vmem:[%s7891 + $0x14] sm:$0xf]
    %v7898 = vld [vmem:[%s7891 + $0x18] sm:$0xf]
    %v7899 = vld [vmem:[%s7891 + $0x1c] sm:$0xf]
    %v7900 = vld [vmem:[%s7891 + $0x20] sm:$0xf]
    %v7901 = vld [vmem:[%s7891 + $0x24] sm:$0xf]
    %v7902 = vld [vmem:[%s7891 + $0x28] sm:$0xf]
    %v7903 = vld [vmem:[%s7891 + $0x2c] sm:$0xf]
    %v7904 = vld [vmem:[%s7891 + $0x30] sm:$0xf]
    %v7905 = vld [vmem:[%s7891 + $0x34] sm:$0xf]
    %v7906 = vld [vmem:[%s7891 + $0x38] sm:$0xf]
    %v7907 = vld [vmem:[%s7891 + $0x3c] sm:$0xf]
    %v7924 = vunpack.c.l.b16 %v7892
    %v7925 = vunpack.c.l.b16 %v7893
    %v7926 = vunpack.c.l.b16 %v7894
    %v7927 = vunpack.c.l.b16 %v7895
    %v7928 = vunpack.c.l.b16 %v7896
    %v7929 = vunpack.c.l.b16 %v7897
    %v7930 = vunpack.c.l.b16 %v7898
    %v7931 = vunpack.c.l.b16 %v7899
    %v7932 = vunpack.c.l.b16 %v7900
    %v7933 = vunpack.c.l.b16 %v7901
    %v7934 = vunpack.c.l.b16 %v7902
    %v7935 = vunpack.c.l.b16 %v7903
    %v7936 = vunpack.c.l.b16 %v7904
    %v7937 = vunpack.c.l.b16 %v7905
    %v7938 = vunpack.c.l.b16 %v7906
    %v7939 = vunpack.c.l.b16 %v7907
    %v7940 = vpack.c.b16 %v7925, %v7924
    %v7941 = vpack.c.b16 %v7927, %v7926
    %v7942 = vpack.c.b16 %v7929, %v7928
    %v7943 = vpack.c.b16 %v7931, %v7930
    %v7944 = vpack.c.b16 %v7933, %v7932
    %v7945 = vpack.c.b16 %v7935, %v7934
    %v7946 = vpack.c.b16 %v7937, %v7936
    %v7947 = vpack.c.b16 %v7939, %v7938
    %7956 = vmatpush.bf16.msra.mxu0 %v7947
    %7957 = vmatpush.bf16.msra.mxu0 %v7946
    %7958 = vmatpush.bf16.msra.mxu0 %v7945
    %7959 = vmatpush.bf16.msra.mxu0 %v7944
    %7960 = vmatpush.bf16.msra.mxu0 %v7943
    %7961 = vmatpush.bf16.msra.mxu0 %v7942
    %7962 = vmatpush.bf16.msra.mxu0 %v7941
    %7963 = vmatpush.bf16.msra.mxu0 %v7940
    %7964 = vmatmul.bf16.gmra.mxu0 %v7883
    %v7965 = vpop.f32.mrf.mxu0
    %v7966 = vadd.f32 0.0, %v7965
    %v7967 = vpop.f32.mrf.mxu0
    %v7968 = vadd.f32 0.0, %v7967
    %7969 = vmatmul.bf16.gmra.mxu0 %v7884
    %v7970 = vpop.f32.mrf.mxu0
    %v7971 = vadd.f32 0.0, %v7970
    %v7972 = vpop.f32.mrf.mxu0
    %v7973 = vadd.f32 0.0, %v7972
    %7974 = vmatmul.bf16.gmra.mxu0 %v7885
    %v7975 = vpop.f32.mrf.mxu0
    %v7976 = vadd.f32 0.0, %v7975
    %v7977 = vpop.f32.mrf.mxu0
    %v7978 = vadd.f32 0.0, %v7977
    %7979 = vmatmul.bf16.gmra.mxu0 %v7886
    %v7980 = vpop.f32.mrf.mxu0
    %v7981 = vadd.f32 0.0, %v7980
    %v7982 = vpop.f32.mrf.mxu0
    %v7983 = vadd.f32 0.0, %v7982
    %7984 = vmatmul.bf16.gmra.mxu0 %v7887
    %v7985 = vpop.f32.mrf.mxu0
    %v7986 = vadd.f32 0.0, %v7985
    %v7987 = vpop.f32.mrf.mxu0
    %v7988 = vadd.f32 0.0, %v7987
    %7989 = vmatmul.bf16.gmra.mxu0 %v7888
    %v7990 = vpop.f32.mrf.mxu0
    %v7991 = vadd.f32 0.0, %v7990
    %v7992 = vpop.f32.mrf.mxu0
    %v7993 = vadd.f32 0.0, %v7992
    %7994 = vmatmul.bf16.gmra.mxu0 %v7889
    %v7995 = vpop.f32.mrf.mxu0
    %v7996 = vadd.f32 0.0, %v7995
    %v7997 = vpop.f32.mrf.mxu0
    %v7998 = vadd.f32 0.0, %v7997
    %7999 = vmatmul.bf16.gmra.mxu0 %v7890
    %v8000 = vpop.f32.mrf.mxu0
    %v8001 = vadd.f32 0.0, %v8000
    %v8002 = vpop.f32.mrf.mxu0
    %v8003 = vadd.f32 0.0, %v8002
    %8004 = vdwg.mxu0
    %v8005 = vadd.f32 %v7771, %v7966
    %v8006 = vadd.f32 %v7772, %v7968
    %v8007 = vadd.f32 %v7773, %v7971
    %v8008 = vadd.f32 %v7774, %v7973
    %v8009 = vadd.f32 %v7775, %v7976
    %v8010 = vadd.f32 %v7776, %v7978
    %v8011 = vadd.f32 %v7777, %v7981
    %v8012 = vadd.f32 %v7778, %v7983
    %v8013 = vadd.f32 %v7779, %v7986
    %v8014 = vadd.f32 %v7780, %v7988
    %v8015 = vadd.f32 %v7781, %v7991
    %v8016 = vadd.f32 %v7782, %v7993
    %v8017 = vadd.f32 %v7783, %v7996
    %v8018 = vadd.f32 %v7784, %v7998
    %v8019 = vadd.f32 %v7785, %v8001
    %v8020 = vadd.f32 %v7786, %v8003
    %8021 = vset.pattern.permute.xlu0 34
    %8022 = vperm.xlu0 %8021, %v80
    %v8023 = vpop.permute.xlu0 %8022
    %8024 = vset.pattern.permute.xlu0 34
    %8025 = vperm.xlu0 %8024, %v81
    %v8026 = vpop.permute.xlu0 %8025
    %8027 = vset.pattern.permute.xlu0 34
    %8028 = vperm.xlu0 %8027, %v82
    %v8029 = vpop.permute.xlu0 %8028
    %8030 = vset.pattern.permute.xlu0 34
    %8031 = vperm.xlu0 %8030, %v83
    %v8032 = vpop.permute.xlu0 %8031
    %8033 = vset.pattern.permute.xlu0 34
    %8034 = vperm.xlu0 %8033, %v84
    %v8035 = vpop.permute.xlu0 %8034
    %8036 = vset.pattern.permute.xlu0 34
    %8037 = vperm.xlu0 %8036, %v85
    %v8038 = vpop.permute.xlu0 %8037
    %8039 = vset.pattern.permute.xlu0 34
    %8040 = vperm.xlu0 %8039, %v86
    %v8041 = vpop.permute.xlu0 %8040
    %8042 = vset.pattern.permute.xlu0 34
    %8043 = vperm.xlu0 %8042, %v87
    %v8044 = vpop.permute.xlu0 %8043
    %8045 = vset.pattern.permute.xlu0 34
    %8046 = vperm.xlu0 %8045, %v88
    %v8047 = vpop.permute.xlu0 %8046
    %8048 = vset.pattern.permute.xlu0 34
    %8049 = vperm.xlu0 %8048, %v89
    %v8050 = vpop.permute.xlu0 %8049
    %8051 = vset.pattern.permute.xlu0 34
    %8052 = vperm.xlu0 %8051, %v90
    %v8053 = vpop.permute.xlu0 %8052
    %8054 = vset.pattern.permute.xlu0 34
    %8055 = vperm.xlu0 %8054, %v91
    %v8056 = vpop.permute.xlu0 %8055
    %8057 = vset.pattern.permute.xlu0 34
    %8058 = vperm.xlu0 %8057, %v92
    %v8059 = vpop.permute.xlu0 %8058
    %8060 = vset.pattern.permute.xlu0 34
    %8061 = vperm.xlu0 %8060, %v93
    %v8062 = vpop.permute.xlu0 %8061
    %8063 = vset.pattern.permute.xlu0 34
    %8064 = vperm.xlu0 %8063, %v94
    %v8065 = vpop.permute.xlu0 %8064
    %8066 = vset.pattern.permute.xlu0 34
    %8067 = vperm.xlu0 %8066, %v95
    %v8068 = vpop.permute.xlu0 %8067
    %vm8069 = vcmp.eq.s32.totalorder %v97, %v8023
    %vm8070 = vcmp.eq.s32.totalorder %v97, %v8026
    %vm8071 = vcmp.eq.s32.totalorder %v97, %v8029
    %vm8072 = vcmp.eq.s32.totalorder %v97, %v8032
    %vm8073 = vcmp.eq.s32.totalorder %v97, %v8035
    %vm8074 = vcmp.eq.s32.totalorder %v97, %v8038
    %vm8075 = vcmp.eq.s32.totalorder %v97, %v8041
    %vm8076 = vcmp.eq.s32.totalorder %v97, %v8044
    %vm8077 = vcmp.eq.s32.totalorder %v97, %v8047
    %vm8078 = vcmp.eq.s32.totalorder %v97, %v8050
    %vm8079 = vcmp.eq.s32.totalorder %v97, %v8053
    %vm8080 = vcmp.eq.s32.totalorder %v97, %v8056
    %vm8081 = vcmp.eq.s32.totalorder %v97, %v8059
    %vm8082 = vcmp.eq.s32.totalorder %v97, %v8062
    %vm8083 = vcmp.eq.s32.totalorder %v97, %v8065
    %vm8084 = vcmp.eq.s32.totalorder %v97, %v8068
    %v8085 = vsel %vm8069, 1, 0
    %v8086 = vsel %vm8070, 1, 0
    %v8087 = vsel %vm8071, 1, 0
    %v8088 = vsel %vm8072, 1, 0
    %v8089 = vsel %vm8073, 1, 0
    %v8090 = vsel %vm8074, 1, 0
    %v8091 = vsel %vm8075, 1, 0
    %v8092 = vsel %vm8076, 1, 0
    %v8093 = vsel %vm8077, 1, 0
    %v8094 = vsel %vm8078, 1, 0
    %v8095 = vsel %vm8079, 1, 0
    %v8096 = vsel %vm8080, 1, 0
    %v8097 = vsel %vm8081, 1, 0
    %v8098 = vsel %vm8082, 1, 0
    %v8099 = vsel %vm8083, 1, 0
    %v8100 = vsel %vm8084, 1, 0
    %v8101 = vcvt.s32.f32 %v8085
    %v8102 = vcvt.s32.f32 %v8086
    %v8103 = vcvt.s32.f32 %v8087
    %v8104 = vcvt.s32.f32 %v8088
    %v8105 = vcvt.s32.f32 %v8089
    %v8106 = vcvt.s32.f32 %v8090
    %v8107 = vcvt.s32.f32 %v8091
    %v8108 = vcvt.s32.f32 %v8092
    %v8109 = vcvt.s32.f32 %v8093
    %v8110 = vcvt.s32.f32 %v8094
    %v8111 = vcvt.s32.f32 %v8095
    %v8112 = vcvt.s32.f32 %v8096
    %v8113 = vcvt.s32.f32 %v8097
    %v8114 = vcvt.s32.f32 %v8098
    %v8115 = vcvt.s32.f32 %v8099
    %v8116 = vcvt.s32.f32 %v8100
    %v8117 = vpack.c.bf16 %v8102, %v8101
    %v8118 = vpack.c.bf16 %v8104, %v8103
    %v8119 = vpack.c.bf16 %v8106, %v8105
    %v8120 = vpack.c.bf16 %v8108, %v8107
    %v8121 = vpack.c.bf16 %v8110, %v8109
    %v8122 = vpack.c.bf16 %v8112, %v8111
    %v8123 = vpack.c.bf16 %v8114, %v8113
    %v8124 = vpack.c.bf16 %v8116, %v8115
    %s8125 = scalar_lea.vmem [#allocation2], 2176
    %v8126 = vld [vmem:[%s8125] sm:$0xf]
    %v8127 = vld [vmem:[%s8125 + $0x4] sm:$0xf]
    %v8128 = vld [vmem:[%s8125 + $0x8] sm:$0xf]
    %v8129 = vld [vmem:[%s8125 + $0xc] sm:$0xf]
    %v8130 = vld [vmem:[%s8125 + $0x10] sm:$0xf]
    %v8131 = vld [vmem:[%s8125 + $0x14] sm:$0xf]
    %v8132 = vld [vmem:[%s8125 + $0x18] sm:$0xf]
    %v8133 = vld [vmem:[%s8125 + $0x1c] sm:$0xf]
    %v8134 = vld [vmem:[%s8125 + $0x20] sm:$0xf]
    %v8135 = vld [vmem:[%s8125 + $0x24] sm:$0xf]
    %v8136 = vld [vmem:[%s8125 + $0x28] sm:$0xf]
    %v8137 = vld [vmem:[%s8125 + $0x2c] sm:$0xf]
    %v8138 = vld [vmem:[%s8125 + $0x30] sm:$0xf]
    %v8139 = vld [vmem:[%s8125 + $0x34] sm:$0xf]
    %v8140 = vld [vmem:[%s8125 + $0x38] sm:$0xf]
    %v8141 = vld [vmem:[%s8125 + $0x3c] sm:$0xf]
    %v8158 = vunpack.c.l.b16 %v8126
    %v8159 = vunpack.c.l.b16 %v8127
    %v8160 = vunpack.c.l.b16 %v8128
    %v8161 = vunpack.c.l.b16 %v8129
    %v8162 = vunpack.c.l.b16 %v8130
    %v8163 = vunpack.c.l.b16 %v8131
    %v8164 = vunpack.c.l.b16 %v8132
    %v8165 = vunpack.c.l.b16 %v8133
    %v8166 = vunpack.c.l.b16 %v8134
    %v8167 = vunpack.c.l.b16 %v8135
    %v8168 = vunpack.c.l.b16 %v8136
    %v8169 = vunpack.c.l.b16 %v8137
    %v8170 = vunpack.c.l.b16 %v8138
    %v8171 = vunpack.c.l.b16 %v8139
    %v8172 = vunpack.c.l.b16 %v8140
    %v8173 = vunpack.c.l.b16 %v8141
    %v8174 = vpack.c.b16 %v8159, %v8158
    %v8175 = vpack.c.b16 %v8161, %v8160
    %v8176 = vpack.c.b16 %v8163, %v8162
    %v8177 = vpack.c.b16 %v8165, %v8164
    %v8178 = vpack.c.b16 %v8167, %v8166
    %v8179 = vpack.c.b16 %v8169, %v8168
    %v8180 = vpack.c.b16 %v8171, %v8170
    %v8181 = vpack.c.b16 %v8173, %v8172
    %8190 = vmatpush.bf16.msra.mxu0 %v8181
    %8191 = vmatpush.bf16.msra.mxu0 %v8180
    %8192 = vmatpush.bf16.msra.mxu0 %v8179
    %8193 = vmatpush.bf16.msra.mxu0 %v8178
    %8194 = vmatpush.bf16.msra.mxu0 %v8177
    %8195 = vmatpush.bf16.msra.mxu0 %v8176
    %8196 = vmatpush.bf16.msra.mxu0 %v8175
    %8197 = vmatpush.bf16.msra.mxu0 %v8174
    %8198 = vmatmul.bf16.gmra.mxu0 %v8117
    %v8199 = vpop.f32.mrf.mxu0
    %v8200 = vadd.f32 0.0, %v8199
    %v8201 = vpop.f32.mrf.mxu0
    %v8202 = vadd.f32 0.0, %v8201
    %8203 = vmatmul.bf16.gmra.mxu0 %v8118
    %v8204 = vpop.f32.mrf.mxu0
    %v8205 = vadd.f32 0.0, %v8204
    %v8206 = vpop.f32.mrf.mxu0
    %v8207 = vadd.f32 0.0, %v8206
    %8208 = vmatmul.bf16.gmra.mxu0 %v8119
    %v8209 = vpop.f32.mrf.mxu0
    %v8210 = vadd.f32 0.0, %v8209
    %v8211 = vpop.f32.mrf.mxu0
    %v8212 = vadd.f32 0.0, %v8211
    %8213 = vmatmul.bf16.gmra.mxu0 %v8120
    %v8214 = vpop.f32.mrf.mxu0
    %v8215 = vadd.f32 0.0, %v8214
    %v8216 = vpop.f32.mrf.mxu0
    %v8217 = vadd.f32 0.0, %v8216
    %8218 = vmatmul.bf16.gmra.mxu0 %v8121
    %v8219 = vpop.f32.mrf.mxu0
    %v8220 = vadd.f32 0.0, %v8219
    %v8221 = vpop.f32.mrf.mxu0
    %v8222 = vadd.f32 0.0, %v8221
    %8223 = vmatmul.bf16.gmra.mxu0 %v8122
    %v8224 = vpop.f32.mrf.mxu0
    %v8225 = vadd.f32 0.0, %v8224
    %v8226 = vpop.f32.mrf.mxu0
    %v8227 = vadd.f32 0.0, %v8226
    %8228 = vmatmul.bf16.gmra.mxu0 %v8123
    %v8229 = vpop.f32.mrf.mxu0
    %v8230 = vadd.f32 0.0, %v8229
    %v8231 = vpop.f32.mrf.mxu0
    %v8232 = vadd.f32 0.0, %v8231
    %8233 = vmatmul.bf16.gmra.mxu0 %v8124
    %v8234 = vpop.f32.mrf.mxu0
    %v8235 = vadd.f32 0.0, %v8234
    %v8236 = vpop.f32.mrf.mxu0
    %v8237 = vadd.f32 0.0, %v8236
    %8238 = vdwg.mxu0
    %v8239 = vadd.f32 %v8005, %v8200
    %v8240 = vadd.f32 %v8006, %v8202
    %v8241 = vadd.f32 %v8007, %v8205
    %v8242 = vadd.f32 %v8008, %v8207
    %v8243 = vadd.f32 %v8009, %v8210
    %v8244 = vadd.f32 %v8010, %v8212
    %v8245 = vadd.f32 %v8011, %v8215
    %v8246 = vadd.f32 %v8012, %v8217
    %v8247 = vadd.f32 %v8013, %v8220
    %v8248 = vadd.f32 %v8014, %v8222
    %v8249 = vadd.f32 %v8015, %v8225
    %v8250 = vadd.f32 %v8016, %v8227
    %v8251 = vadd.f32 %v8017, %v8230
    %v8252 = vadd.f32 %v8018, %v8232
    %v8253 = vadd.f32 %v8019, %v8235
    %v8254 = vadd.f32 %v8020, %v8237
    %8255 = vset.pattern.permute.xlu0 35
    %8256 = vperm.xlu0 %8255, %v80
    %v8257 = vpop.permute.xlu0 %8256
    %8258 = vset.pattern.permute.xlu0 35
    %8259 = vperm.xlu0 %8258, %v81
    %v8260 = vpop.permute.xlu0 %8259
    %8261 = vset.pattern.permute.xlu0 35
    %8262 = vperm.xlu0 %8261, %v82
    %v8263 = vpop.permute.xlu0 %8262
    %8264 = vset.pattern.permute.xlu0 35
    %8265 = vperm.xlu0 %8264, %v83
    %v8266 = vpop.permute.xlu0 %8265
    %8267 = vset.pattern.permute.xlu0 35
    %8268 = vperm.xlu0 %8267, %v84
    %v8269 = vpop.permute.xlu0 %8268
    %8270 = vset.pattern.permute.xlu0 35
    %8271 = vperm.xlu0 %8270, %v85
    %v8272 = vpop.permute.xlu0 %8271
    %8273 = vset.pattern.permute.xlu0 35
    %8274 = vperm.xlu0 %8273, %v86
    %v8275 = vpop.permute.xlu0 %8274
    %8276 = vset.pattern.permute.xlu0 35
    %8277 = vperm.xlu0 %8276, %v87
    %v8278 = vpop.permute.xlu0 %8277
    %8279 = vset.pattern.permute.xlu0 35
    %8280 = vperm.xlu0 %8279, %v88
    %v8281 = vpop.permute.xlu0 %8280
    %8282 = vset.pattern.permute.xlu0 35
    %8283 = vperm.xlu0 %8282, %v89
    %v8284 = vpop.permute.xlu0 %8283
    %8285 = vset.pattern.permute.xlu0 35
    %8286 = vperm.xlu0 %8285, %v90
    %v8287 = vpop.permute.xlu0 %8286
    %8288 = vset.pattern.permute.xlu0 35
    %8289 = vperm.xlu0 %8288, %v91
    %v8290 = vpop.permute.xlu0 %8289
    %8291 = vset.pattern.permute.xlu0 35
    %8292 = vperm.xlu0 %8291, %v92
    %v8293 = vpop.permute.xlu0 %8292
    %8294 = vset.pattern.permute.xlu0 35
    %8295 = vperm.xlu0 %8294, %v93
    %v8296 = vpop.permute.xlu0 %8295
    %8297 = vset.pattern.permute.xlu0 35
    %8298 = vperm.xlu0 %8297, %v94
    %v8299 = vpop.permute.xlu0 %8298
    %8300 = vset.pattern.permute.xlu0 35
    %8301 = vperm.xlu0 %8300, %v95
    %v8302 = vpop.permute.xlu0 %8301
    %vm8303 = vcmp.eq.s32.totalorder %v97, %v8257
    %vm8304 = vcmp.eq.s32.totalorder %v97, %v8260
    %vm8305 = vcmp.eq.s32.totalorder %v97, %v8263
    %vm8306 = vcmp.eq.s32.totalorder %v97, %v8266
    %vm8307 = vcmp.eq.s32.totalorder %v97, %v8269
    %vm8308 = vcmp.eq.s32.totalorder %v97, %v8272
    %vm8309 = vcmp.eq.s32.totalorder %v97, %v8275
    %vm8310 = vcmp.eq.s32.totalorder %v97, %v8278
    %vm8311 = vcmp.eq.s32.totalorder %v97, %v8281
    %vm8312 = vcmp.eq.s32.totalorder %v97, %v8284
    %vm8313 = vcmp.eq.s32.totalorder %v97, %v8287
    %vm8314 = vcmp.eq.s32.totalorder %v97, %v8290
    %vm8315 = vcmp.eq.s32.totalorder %v97, %v8293
    %vm8316 = vcmp.eq.s32.totalorder %v97, %v8296
    %vm8317 = vcmp.eq.s32.totalorder %v97, %v8299
    %vm8318 = vcmp.eq.s32.totalorder %v97, %v8302
    %v8319 = vsel %vm8303, 1, 0
    %v8320 = vsel %vm8304, 1, 0
    %v8321 = vsel %vm8305, 1, 0
    %v8322 = vsel %vm8306, 1, 0
    %v8323 = vsel %vm8307, 1, 0
    %v8324 = vsel %vm8308, 1, 0
    %v8325 = vsel %vm8309, 1, 0
    %v8326 = vsel %vm8310, 1, 0
    %v8327 = vsel %vm8311, 1, 0
    %v8328 = vsel %vm8312, 1, 0
    %v8329 = vsel %vm8313, 1, 0
    %v8330 = vsel %vm8314, 1, 0
    %v8331 = vsel %vm8315, 1, 0
    %v8332 = vsel %vm8316, 1, 0
    %v8333 = vsel %vm8317, 1, 0
    %v8334 = vsel %vm8318, 1, 0
    %v8335 = vcvt.s32.f32 %v8319
    %v8336 = vcvt.s32.f32 %v8320
    %v8337 = vcvt.s32.f32 %v8321
    %v8338 = vcvt.s32.f32 %v8322
    %v8339 = vcvt.s32.f32 %v8323
    %v8340 = vcvt.s32.f32 %v8324
    %v8341 = vcvt.s32.f32 %v8325
    %v8342 = vcvt.s32.f32 %v8326
    %v8343 = vcvt.s32.f32 %v8327
    %v8344 = vcvt.s32.f32 %v8328
    %v8345 = vcvt.s32.f32 %v8329
    %v8346 = vcvt.s32.f32 %v8330
    %v8347 = vcvt.s32.f32 %v8331
    %v8348 = vcvt.s32.f32 %v8332
    %v8349 = vcvt.s32.f32 %v8333
    %v8350 = vcvt.s32.f32 %v8334
    %v8351 = vpack.c.bf16 %v8336, %v8335
    %v8352 = vpack.c.bf16 %v8338, %v8337
    %v8353 = vpack.c.bf16 %v8340, %v8339
    %v8354 = vpack.c.bf16 %v8342, %v8341
    %v8355 = vpack.c.bf16 %v8344, %v8343
    %v8356 = vpack.c.bf16 %v8346, %v8345
    %v8357 = vpack.c.bf16 %v8348, %v8347
    %v8358 = vpack.c.bf16 %v8350, %v8349
    %s8359 = scalar_lea.vmem [#allocation2], 2240
    %v8360 = vld [vmem:[%s8359] sm:$0xf]
    %v8361 = vld [vmem:[%s8359 + $0x4] sm:$0xf]
    %v8362 = vld [vmem:[%s8359 + $0x8] sm:$0xf]
    %v8363 = vld [vmem:[%s8359 + $0xc] sm:$0xf]
    %v8364 = vld [vmem:[%s8359 + $0x10] sm:$0xf]
    %v8365 = vld [vmem:[%s8359 + $0x14] sm:$0xf]
    %v8366 = vld [vmem:[%s8359 + $0x18] sm:$0xf]
    %v8367 = vld [vmem:[%s8359 + $0x1c] sm:$0xf]
    %v8368 = vld [vmem:[%s8359 + $0x20] sm:$0xf]
    %v8369 = vld [vmem:[%s8359 + $0x24] sm:$0xf]
    %v8370 = vld [vmem:[%s8359 + $0x28] sm:$0xf]
    %v8371 = vld [vmem:[%s8359 + $0x2c] sm:$0xf]
    %v8372 = vld [vmem:[%s8359 + $0x30] sm:$0xf]
    %v8373 = vld [vmem:[%s8359 + $0x34] sm:$0xf]
    %v8374 = vld [vmem:[%s8359 + $0x38] sm:$0xf]
    %v8375 = vld [vmem:[%s8359 + $0x3c] sm:$0xf]
    %v8392 = vunpack.c.l.b16 %v8360
    %v8393 = vunpack.c.l.b16 %v8361
    %v8394 = vunpack.c.l.b16 %v8362
    %v8395 = vunpack.c.l.b16 %v8363
    %v8396 = vunpack.c.l.b16 %v8364
    %v8397 = vunpack.c.l.b16 %v8365
    %v8398 = vunpack.c.l.b16 %v8366
    %v8399 = vunpack.c.l.b16 %v8367
    %v8400 = vunpack.c.l.b16 %v8368
    %v8401 = vunpack.c.l.b16 %v8369
    %v8402 = vunpack.c.l.b16 %v8370
    %v8403 = vunpack.c.l.b16 %v8371
    %v8404 = vunpack.c.l.b16 %v8372
    %v8405 = vunpack.c.l.b16 %v8373
    %v8406 = vunpack.c.l.b16 %v8374
    %v8407 = vunpack.c.l.b16 %v8375
    %v8408 = vpack.c.b16 %v8393, %v8392
    %v8409 = vpack.c.b16 %v8395, %v8394
    %v8410 = vpack.c.b16 %v8397, %v8396
    %v8411 = vpack.c.b16 %v8399, %v8398
    %v8412 = vpack.c.b16 %v8401, %v8400
    %v8413 = vpack.c.b16 %v8403, %v8402
    %v8414 = vpack.c.b16 %v8405, %v8404
    %v8415 = vpack.c.b16 %v8407, %v8406
    %8424 = vmatpush.bf16.msra.mxu0 %v8415
    %8425 = vmatpush.bf16.msra.mxu0 %v8414
    %8426 = vmatpush.bf16.msra.mxu0 %v8413
    %8427 = vmatpush.bf16.msra.mxu0 %v8412
    %8428 = vmatpush.bf16.msra.mxu0 %v8411
    %8429 = vmatpush.bf16.msra.mxu0 %v8410
    %8430 = vmatpush.bf16.msra.mxu0 %v8409
    %8431 = vmatpush.bf16.msra.mxu0 %v8408
    %8432 = vmatmul.bf16.gmra.mxu0 %v8351
    %v8433 = vpop.f32.mrf.mxu0
    %v8434 = vadd.f32 0.0, %v8433
    %v8435 = vpop.f32.mrf.mxu0
    %v8436 = vadd.f32 0.0, %v8435
    %8437 = vmatmul.bf16.gmra.mxu0 %v8352
    %v8438 = vpop.f32.mrf.mxu0
    %v8439 = vadd.f32 0.0, %v8438
    %v8440 = vpop.f32.mrf.mxu0
    %v8441 = vadd.f32 0.0, %v8440
    %8442 = vmatmul.bf16.gmra.mxu0 %v8353
    %v8443 = vpop.f32.mrf.mxu0
    %v8444 = vadd.f32 0.0, %v8443
    %v8445 = vpop.f32.mrf.mxu0
    %v8446 = vadd.f32 0.0, %v8445
    %8447 = vmatmul.bf16.gmra.mxu0 %v8354
    %v8448 = vpop.f32.mrf.mxu0
    %v8449 = vadd.f32 0.0, %v8448
    %v8450 = vpop.f32.mrf.mxu0
    %v8451 = vadd.f32 0.0, %v8450
    %8452 = vmatmul.bf16.gmra.mxu0 %v8355
    %v8453 = vpop.f32.mrf.mxu0
    %v8454 = vadd.f32 0.0, %v8453
    %v8455 = vpop.f32.mrf.mxu0
    %v8456 = vadd.f32 0.0, %v8455
    %8457 = vmatmul.bf16.gmra.mxu0 %v8356
    %v8458 = vpop.f32.mrf.mxu0
    %v8459 = vadd.f32 0.0, %v8458
    %v8460 = vpop.f32.mrf.mxu0
    %v8461 = vadd.f32 0.0, %v8460
    %8462 = vmatmul.bf16.gmra.mxu0 %v8357
    %v8463 = vpop.f32.mrf.mxu0
    %v8464 = vadd.f32 0.0, %v8463
    %v8465 = vpop.f32.mrf.mxu0
    %v8466 = vadd.f32 0.0, %v8465
    %8467 = vmatmul.bf16.gmra.mxu0 %v8358
    %v8468 = vpop.f32.mrf.mxu0
    %v8469 = vadd.f32 0.0, %v8468
    %v8470 = vpop.f32.mrf.mxu0
    %v8471 = vadd.f32 0.0, %v8470
    %8472 = vdwg.mxu0
    %v8473 = vadd.f32 %v8239, %v8434
    %v8474 = vadd.f32 %v8240, %v8436
    %v8475 = vadd.f32 %v8241, %v8439
    %v8476 = vadd.f32 %v8242, %v8441
    %v8477 = vadd.f32 %v8243, %v8444
    %v8478 = vadd.f32 %v8244, %v8446
    %v8479 = vadd.f32 %v8245, %v8449
    %v8480 = vadd.f32 %v8246, %v8451
    %v8481 = vadd.f32 %v8247, %v8454
    %v8482 = vadd.f32 %v8248, %v8456
    %v8483 = vadd.f32 %v8249, %v8459
    %v8484 = vadd.f32 %v8250, %v8461
    %v8485 = vadd.f32 %v8251, %v8464
    %v8486 = vadd.f32 %v8252, %v8466
    %v8487 = vadd.f32 %v8253, %v8469
    %v8488 = vadd.f32 %v8254, %v8471
    %v8489 = vld [vmem:[#allocation5] sm:$0x1]
    %v8491 = vperm.slane %v8489, 0
    %v8493 = vadd.f32 %v8473, %v8491
    %v8494 = vadd.f32 %v8474, %v8491
    %v8495 = vadd.f32 %v8475, %v8491
    %v8496 = vadd.f32 %v8476, %v8491
    %v8497 = vadd.f32 %v8477, %v8491
    %v8498 = vadd.f32 %v8478, %v8491
    %v8499 = vadd.f32 %v8479, %v8491
    %v8500 = vadd.f32 %v8480, %v8491
    %v8501 = vadd.f32 %v8481, %v8491
    %v8502 = vadd.f32 %v8482, %v8491
    %v8503 = vadd.f32 %v8483, %v8491
    %v8504 = vadd.f32 %v8484, %v8491
    %v8505 = vadd.f32 %v8485, %v8491
    %v8506 = vadd.f32 %v8486, %v8491
    %v8507 = vadd.f32 %v8487, %v8491
    %v8508 = vadd.f32 %v8488, %v8491
    %v8509 = vmax.f32 %v8493, 0.0
    %v8510 = vmax.f32 %v8494, 0.0
    %v8511 = vmax.f32 %v8495, 0.0
    %v8512 = vmax.f32 %v8496, 0.0
    %v8513 = vmax.f32 %v8497, 0.0
    %v8514 = vmax.f32 %v8498, 0.0
    %v8515 = vmax.f32 %v8499, 0.0
    %v8516 = vmax.f32 %v8500, 0.0
    %v8517 = vmax.f32 %v8501, 0.0
    %v8518 = vmax.f32 %v8502, 0.0
    %v8519 = vmax.f32 %v8503, 0.0
    %v8520 = vmax.f32 %v8504, 0.0
    %v8521 = vmax.f32 %v8505, 0.0
    %v8522 = vmax.f32 %v8506, 0.0
    %v8523 = vmax.f32 %v8507, 0.0
    %v8524 = vmax.f32 %v8508, 0.0
    %v8525 = vpack.c.bf16 %v8510, %v8509
    %v8526 = vpack.c.bf16 %v8512, %v8511
    %v8527 = vpack.c.bf16 %v8514, %v8513
    %v8528 = vpack.c.bf16 %v8516, %v8515
    %v8529 = vpack.c.bf16 %v8518, %v8517
    %v8530 = vpack.c.bf16 %v8520, %v8519
    %v8531 = vpack.c.bf16 %v8522, %v8521
    %v8532 = vpack.c.bf16 %v8524, %v8523
    %v8533 = vld [vmem:[#allocation7] sm:$0xf]
    %v8534 = vld [vmem:[#allocation7 + $0x4] sm:$0xf]
    %v8535 = vld [vmem:[#allocation7 + $0x8] sm:$0xf]
    %v8536 = vld [vmem:[#allocation7 + $0xc] sm:$0xf]
    %v8537 = vld [vmem:[#allocation7 + $0x10] sm:$0xf]
    %v8538 = vld [vmem:[#allocation7 + $0x14] sm:$0xf]
    %v8539 = vld [vmem:[#allocation7 + $0x18] sm:$0xf]
    %v8540 = vld [vmem:[#allocation7 + $0x1c] sm:$0xf]
    %v8541 = vld [vmem:[#allocation7 + $0x20] sm:$0xf]
    %v8542 = vld [vmem:[#allocation7 + $0x24] sm:$0xf]
    %v8543 = vld [vmem:[#allocation7 + $0x28] sm:$0xf]
    %v8544 = vld [vmem:[#allocation7 + $0x2c] sm:$0xf]
    %v8545 = vld [vmem:[#allocation7 + $0x30] sm:$0xf]
    %v8546 = vld [vmem:[#allocation7 + $0x34] sm:$0xf]
    %v8547 = vld [vmem:[#allocation7 + $0x38] sm:$0xf]
    %v8548 = vld [vmem:[#allocation7 + $0x3c] sm:$0xf]
    %v8549 = vld [vmem:[#allocation8] sm:$0x1]
    %v8551 = vperm.slane %v8549, 0
    %v8569 = vunpack.c.l.b16 %v8533
    %v8570 = vunpack.c.l.b16 %v8534
    %v8571 = vunpack.c.l.b16 %v8535
    %v8572 = vunpack.c.l.b16 %v8536
    %v8573 = vunpack.c.l.b16 %v8537
    %v8574 = vunpack.c.l.b16 %v8538
    %v8575 = vunpack.c.l.b16 %v8539
    %v8576 = vunpack.c.l.b16 %v8540
    %v8577 = vunpack.c.l.b16 %v8541
    %v8578 = vunpack.c.l.b16 %v8542
    %v8579 = vunpack.c.l.b16 %v8543
    %v8580 = vunpack.c.l.b16 %v8544
    %v8581 = vunpack.c.l.b16 %v8545
    %v8582 = vunpack.c.l.b16 %v8546
    %v8583 = vunpack.c.l.b16 %v8547
    %v8584 = vunpack.c.l.b16 %v8548
    %v8585 = vpack.c.b16 %v8570, %v8569
    %v8586 = vpack.c.b16 %v8572, %v8571
    %v8587 = vpack.c.b16 %v8574, %v8573
    %v8588 = vpack.c.b16 %v8576, %v8575
    %v8589 = vpack.c.b16 %v8578, %v8577
    %v8590 = vpack.c.b16 %v8580, %v8579
    %v8591 = vpack.c.b16 %v8582, %v8581
    %v8592 = vpack.c.b16 %v8584, %v8583
    %8601 = vmatpush.bf16.msra.mxu0 %v8592
    %8602 = vmatpush.bf16.msra.mxu0 %v8591
    %8603 = vmatpush.bf16.msra.mxu0 %v8590
    %8604 = vmatpush.bf16.msra.mxu0 %v8589
    %8605 = vmatpush.bf16.msra.mxu0 %v8588
    %8606 = vmatpush.bf16.msra.mxu0 %v8587
    %8607 = vmatpush.bf16.msra.mxu0 %v8586
    %8608 = vmatpush.bf16.msra.mxu0 %v8585
    %8609 = vmatmul.bf16.gmra.mxu0 %v8525
    %v8610 = vpop.f32.mrf.mxu0
    %v8611 = vadd.f32 %v8551, %v8610
    %v8612 = vpop.f32.mrf.mxu0
    %v8613 = vadd.f32 %v8551, %v8612
    %8614 = vmatmul.bf16.gmra.mxu0 %v8526
    %v8615 = vpop.f32.mrf.mxu0
    %v8616 = vadd.f32 %v8551, %v8615
    %v8617 = vpop.f32.mrf.mxu0
    %v8618 = vadd.f32 %v8551, %v8617
    %8619 = vmatmul.bf16.gmra.mxu0 %v8527
    %v8620 = vpop.f32.mrf.mxu0
    %v8621 = vadd.f32 %v8551, %v8620
    %v8622 = vpop.f32.mrf.mxu0
    %v8623 = vadd.f32 %v8551, %v8622
    %8624 = vmatmul.bf16.gmra.mxu0 %v8528
    %v8625 = vpop.f32.mrf.mxu0
    %v8626 = vadd.f32 %v8551, %v8625
    %v8627 = vpop.f32.mrf.mxu0
    %v8628 = vadd.f32 %v8551, %v8627
    %8629 = vmatmul.bf16.gmra.mxu0 %v8529
    %v8630 = vpop.f32.mrf.mxu0
    %v8631 = vadd.f32 %v8551, %v8630
    %v8632 = vpop.f32.mrf.mxu0
    %v8633 = vadd.f32 %v8551, %v8632
    %8634 = vmatmul.bf16.gmra.mxu0 %v8530
    %v8635 = vpop.f32.mrf.mxu0
    %v8636 = vadd.f32 %v8551, %v8635
    %v8637 = vpop.f32.mrf.mxu0
    %v8638 = vadd.f32 %v8551, %v8637
    %8639 = vmatmul.bf16.gmra.mxu0 %v8531
    %v8640 = vpop.f32.mrf.mxu0
    %v8641 = vadd.f32 %v8551, %v8640
    %v8642 = vpop.f32.mrf.mxu0
    %v8643 = vadd.f32 %v8551, %v8642
    %8644 = vmatmul.bf16.gmra.mxu0 %v8532
    %v8645 = vpop.f32.mrf.mxu0
    %v8646 = vadd.f32 %v8551, %v8645
    %v8647 = vpop.f32.mrf.mxu0
    %v8648 = vadd.f32 %v8551, %v8647
    %8649 = vdwg.mxu0
    %8650 = vst [vmem:[#allocation10] sm:$0xff] %v8611
    %8651 = vst [vmem:[#allocation10 + $0x8] sm:$0xff] %v8613
    %8652 = vst [vmem:[#allocation10 + $0x10] sm:$0xff] %v8616
    %8653 = vst [vmem:[#allocation10 + $0x18] sm:$0xff] %v8618
    %8654 = vst [vmem:[#allocation10 + $0x20] sm:$0xff] %v8621
    %8655 = vst [vmem:[#allocation10 + $0x28] sm:$0xff] %v8623
    %8656 = vst [vmem:[#allocation10 + $0x30] sm:$0xff] %v8626
    %8657 = vst [vmem:[#allocation10 + $0x38] sm:$0xff] %v8628
    %8658 = vst [vmem:[#allocation10 + $0x40] sm:$0xff] %v8631
    %8659 = vst [vmem:[#allocation10 + $0x48] sm:$0xff] %v8633
    %8660 = vst [vmem:[#allocation10 + $0x50] sm:$0xff] %v8636
    %8661 = vst [vmem:[#allocation10 + $0x58] sm:$0xff] %v8638
    %8662 = vst [vmem:[#allocation10 + $0x60] sm:$0xff] %v8641
    %8663 = vst [vmem:[#allocation10 + $0x68] sm:$0xff] %v8643
    %8664 = vst [vmem:[#allocation10 + $0x70] sm:$0xff] %v8646
    %8665 = vst [vmem:[#allocation10 + $0x78] sm:$0xff] %v8648
    // Predicated region
    $region38: #{tpu_custom_call.1} parent=1 // pred_check
      _
    $region39: #{tpu_custom_call.1} parent=1 // pred_check_branch
      %8667 = sbr.rel (0) target = $region41
    $region40: #{tpu_custom_call.1} parent=1 // pred_region
      %8669 = vsyncadd [#allocation4], 0
      %s8670 = sshll.u32 [#allocation10], 4
      %s8671 = int_to_ptr.vmem [resolvable:$true] %s8670
      %s8672 = sshll.u32 %s5, 4
      %s8673 = int_to_ptr.hbm [resolvable:$true] %s8672
      %8678 = dma.vmem_to_hbm [thread:$0]  %s8671, 2048, %s8673, [#allocation4], 128, 128, 8
    $region41: #{tpu_custom_call.1} parent=1 // pred_fallthru
      _
    // Predicated region
    $region42: #{tpu_custom_call.1} parent=1 // pred_check
      _
    $region43: #{tpu_custom_call.1} parent=1 // pred_check_branch
      %8680 = sbr.rel (0) target = $region45
    $region44: #{tpu_custom_call.1} parent=1 // pred_region
      %8682 = dma.done [#allocation4], 2048
    $region45: #{tpu_custom_call.1} parent=1 // pred_fallthru
      _
    %8683 = vsyncpa [#allocation3], 1
    %8684 = vsyncpa [#allocation6], 1
    %8685 = vsyncpa [#allocation9], 1
    %8686 = vsyncpa [#allocation4], 1

</llo_original>
